<compile_context>
chip_gen: v6e
topology: v6e:2x2x1
jax: 0.10.0
libtpu: 0.0.40
codegen_flags: <defaults>
</compile_context>

<pallas_src>
import functools

import numpy as np

import jax
import jax.numpy as jnp
from jax import lax
from jax.experimental import pallas as pl
from jax.experimental.pallas import tpu as pltpu


# ------------------------------ Pallas kernel --------------------------------


def _encoder_kernel(H, W,
                    x_ref, peb_ref,
                    w1_ref,
                    w2_ref, b2_ref,
                    w3_ref, b3_ref,
                    w4_ref, b4_ref,
                    w5_ref, b5_ref,
                    w6_ref, b6_ref,
                    s1_ref, s2_ref, u1_ref, u2_ref,
                    o_ref):
    """Whole Encoder forward for one batch element, entirely in VMEM.

    Activations use the transposed lane-dense layout (C, H*W)."""

    def shift_cols(a, off):
        # out[:, p] = a[:, p + off] if 0 <= p + off < N else 0   (off is static)
        if off == 0:
            return a
        C, _ = a.shape
        zeros = jnp.zeros((C, abs(off)), a.dtype)
        if off > 0:
            return jnp.concatenate([a[:, off:], zeros], axis=1)
        return jnp.concatenate([zeros, a[:, :off]], axis=1)

    def conv3x3_relu(a, w_ref_, bias, Hh, Ww):
        # a: (Cin, Hh*Ww) f32; w_ref_: (Cout, 9*Cin) bf16, columns ordered
        # (ky*3+kx)*Cin + cin; bias: (Cout, 1) or (Cout, Hh*Ww) f32.
        _, N = a.shape
        col = lax.broadcasted_iota(jnp.int32, (1, N), 1)
        if Ww & (Ww - 1) == 0:
            xi = jnp.bitwise_and(col, Ww - 1)        # p % Ww (power of two)
        else:
            xi = lax.rem(col, Ww)
        taps = []
        for dy in (-1, 0, 1):
            for dx in (-1, 0, 1):
                s = shift_cols(a, dy * Ww + dx)
                # zero columns whose x+dx falls outside [0, Ww); the y halo is
                # handled automatically by the zero-fill shift.
                if dx == -1:
                    s = jnp.where(xi >= 1, s, 0.0)
                elif dx == 1:
                    s = jnp.where(xi <= Ww - 2, s, 0.0)
                taps.append(s)
        im2col = jnp.concatenate(taps, axis=0).astype(jnp.bfloat16)  # (9*Cin, N)
        acc = jnp.dot(w_ref_[...], im2col, preferred_element_type=jnp.float32)
        return jnp.maximum(acc + bias, 0.0)                          # f32

    def resample(a, m_ref):
        # exact stride-2 subsample / bilinear-2x upsample as an MXU matmul
        return jnp.dot(a.astype(jnp.bfloat16), m_ref[...],
                       preferred_element_type=jnp.float32)

    H2, W2 = H // 2, W // 2
    H4, W4 = H // 4, W // 4

    x0 = x_ref[0].astype(jnp.float32)                                  # (Cpad, H*W)

    # ---- down path ----
    d1 = conv3x3_relu(x0, w1_ref, peb_ref[...], H, W)                  # (z, H*W)
    d2 = resample(conv3x3_relu(d1, w2_ref, b2_ref[...], H, W), s1_ref)     # stride 2
    d3 = resample(conv3x3_relu(d2, w3_ref, b3_ref[...], H2, W2), s2_ref)   # stride 2

    # ---- up path ----
    u3 = resample(conv3x3_relu(d3, w4_ref, b4_ref[...], H4, W4), u1_ref)   # 2x up
    u2 = resample(conv3x3_relu(jnp.concatenate([u3, d2], axis=0),
                               w5_ref, b5_ref[...], H2, W2), u2_ref)       # 2x up
    feat = conv3x3_relu(jnp.concatenate([u2, d1], axis=0),
                        w6_ref, b6_ref[...], H, W)                         # (z, H*W)

    o_ref[0] = feat.astype(o_ref.dtype)


# ------------------------ constant resample matrices --------------------------


def _subsample_matrix(h, w):
    """(h*w, (h//2)*(w//2)) 0/1 matrix selecting even rows/cols (stride 2)."""
    h2, w2 = h // 2, w // 2
    q = np.arange(h2 * w2)
    p = (q // w2) * 2 * w + (q % w2) * 2
    m = np.zeros((h * w, h2 * w2), np.float32)
    m[p, q] = 1.0
    return m


def _upsample_matrix(h, w):
    """(h*w, 4*h*w) bilinear 2x matrix, align_corners=False (separable)."""
    def m1d(n):
        j = np.arange(2 * n)
        src = (j + 0.5) / 2.0 - 0.5
        i0 = np.floor(src).astype(np.int64)
        frac = (src - i0).astype(np.float32)
        lo = np.clip(i0, 0, n - 1)
        hi = np.clip(i0 + 1, 0, n - 1)
        m = np.zeros((n, 2 * n), np.float32)
        m[lo, j] += 1.0 - frac
        m[hi, j] += frac
        return m
    my, mx = m1d(h), m1d(w)
    return np.einsum("yY,xX->yxYX", my, mx).reshape(h * w, 4 * h * w)


# --------------------------------- wrapper ------------------------------------


def _flatten_w(w):
    # (Cout, Cin, 3, 3) -> (Cout, 9*Cin) with column index (ky*3+kx)*Cin + cin
    co, ci = w.shape[0], w.shape[1]
    return jnp.transpose(w, (0, 2, 3, 1)).reshape(co, 9 * ci)


def encoder_forward(params, x_nchw, bottom=False):
    """Fused Pallas forward: x (B, C, H, W) f32 NCHW -> (B, z_dim, H, W) f32."""
    # TODO(synk): bottom=True (extra enc_down_0 + stride-2 enc_down_1) is not
    # wired into the fused kernel; only the default bottom=False path is.
    assert not bottom, "fused kernel implements bottom=False"
    B, C, H, W = x_nchw.shape
    assert H % 4 == 0 and W % 4 == 0
    HW = H * W
    bf = jnp.bfloat16

    w1, b1 = params["enc_down_1"]                        # (z, C+4, 3, 3), (z,)
    z = w1.shape[0]
    assert w1.shape[1] == C + 4

    # Fold the constant positional-embedding channels into a spatial bias.
    X = jnp.linspace(-1.0, 1.0, W, dtype=jnp.float32)
    Y = jnp.linspace(-1.0, 1.0, H, dtype=jnp.float32)
    x1 = jnp.broadcast_to(X[None, :], (H, W))
    y1 = jnp.broadcast_to(Y[:, None], (H, W))
    pe = jnp.stack([x1, 2.0 - x1, y1, 2.0 - y1], axis=0)            # (4, H, W)
    pe_bias = lax.conv_general_dilated(
        pe[None], w1[:, C:], (1, 1), ((1, 1), (1, 1)),
        dimension_numbers=("NCHW", "OIHW", "NCHW"))[0]
    pe_bias = pe_bias.reshape(z, HW) + b1[:, None]                  # (z, H*W) f32

    # First-layer image weights, input channels padded to a multiple of 8.
    C_pad = ((C + 7) // 8) * 8
    w1_img = jnp.transpose(w1[:, :C], (0, 2, 3, 1))                 # (z, 3, 3, C)
    w1_img = jnp.pad(w1_img, ((0, 0), (0, 0), (0, 0), (0, C_pad - C)))
    w1_img = w1_img.reshape(z, 9 * C_pad).astype(bf)

    w2, b2 = params["enc_down_2"]
    w3, b3 = params["enc_down_3"]
    w4, b4 = params["enc_up_3"]
    w5, b5 = params["enc_up_2"]
    w6, b6 = params["enc_up_1"]

    x_flat = jnp.pad(x_nchw.reshape(B, C, HW),
                     ((0, 0), (0, C_pad - C), (0, 0)))              # (B, Cpad, HW) f32

    operands = [
        x_flat, pe_bias, w1_img,
        _flatten_w(w2).astype(bf), b2.reshape(z, 1),
        _flatten_w(w3).astype(bf), b3.reshape(z, 1),
        _flatten_w(w4).astype(bf), b4.reshape(z, 1),
        _flatten_w(w5).astype(bf), b5.reshape(z, 1),
        _flatten_w(w6).astype(bf), b6.reshape(z, 1),
        jnp.asarray(_subsample_matrix(H, W), bf),
        jnp.asarray(_subsample_matrix(H // 2, W // 2), bf),
        jnp.asarray(_upsample_matrix(H // 4, W // 4), bf),
        jnp.asarray(_upsample_matrix(H // 2, W // 2), bf),
    ]

    def _full_spec(a):
        nd = a.ndim
        return pl.BlockSpec(a.shape, lambda b, _nd=nd: (0,) * _nd)

    in_specs = ([pl.BlockSpec((1, C_pad, HW), lambda b: (b, 0, 0))]
                + [_full_spec(a) for a in operands[1:]])

    out = pl.pallas_call(
        functools.partial(_encoder_kernel, H, W),
        out_shape=jax.ShapeDtypeStruct((B, z, HW), jnp.float32),
        grid=(B,),
        in_specs=in_specs,
        out_specs=pl.BlockSpec((1, z, HW), lambda b: (b, 0, 0)),
        compiler_params=pltpu.CompilerParams(
            dimension_semantics=("parallel",),
            vmem_limit_bytes=48 * 1024 * 1024),
    )(*operands)

    return out.reshape(B, z, H, W)                                  # already NCHW


# ------------------------------- parameters -----------------------------------


def _init_conv(key, cin, cout):
    # Same distribution as PyTorch Conv2d default init (bound = 1/sqrt(fan_in)).
    k1, k2 = jax.random.split(key)
    bound = 1.0 / float(np.sqrt(cin * 9))
    w = jax.random.uniform(k1, (cout, cin, 3, 3), jnp.float32, -bound, bound)
    b = jax.random.uniform(k2, (cout,), jnp.float32, -bound, bound)
    return w, b


def init_encoder_params(key, input_nc=3, z_dim=64, bottom=False):
    keys = jax.random.split(key, 7)
    params = {}
    if bottom:
        params["enc_down_0"] = _init_conv(keys[0], input_nc + 4, z_dim)
        params["enc_down_1"] = _init_conv(keys[1], z_dim, z_dim)
    else:
        params["enc_down_1"] = _init_conv(keys[1], input_nc + 4, z_dim)
    params["enc_down_2"] = _init_conv(keys[2], z_dim, z_dim)
    params["enc_down_3"] = _init_conv(keys[3], z_dim, z_dim)
    params["enc_up_3"] = _init_conv(keys[4], z_dim, z_dim)
    params["enc_up_2"] = _init_conv(keys[5], 2 * z_dim, z_dim)
    params["enc_up_1"] = _init_conv(keys[6], 2 * z_dim, z_dim)
    return params


# -------------------------- pure-JAX f32 reference ----------------------------


def _reference_forward(params, x_nchw):
    """Mirrors the PyTorch module (bottom=False) in f32 for verification."""
    def conv_relu(x, w, b, stride):
        y = lax.conv_general_dilated(x, w, (stride, stride), ((1, 1), (1, 1)),
                                     dimension_numbers=("NCHW", "OIHW", "NCHW"))
        return jnp.maximum(y + b[None, :, None, None], 0.0)

    def up2(x):  # bilinear 2x, align_corners=False (NCHW spatial axes 2, 3)
        def up_axis(a, axis):
            n = a.shape[axis]
            idx = jnp.arange(n)
            prev = jnp.take(a, jnp.clip(idx - 1, 0, n - 1), axis=axis)
            nxt = jnp.take(a, jnp.clip(idx + 1, 0, n - 1), axis=axis)
            even = 0.25 * prev + 0.75 * a
            odd = 0.75 * a + 0.25 * nxt
            out = jnp.stack([even, odd], axis=axis + 1)
            shape = list(a.shape)
            shape[axis] = 2 * n
            return out.reshape(shape)
        return up_axis(up_axis(x, 2), 3)

    B, C, H, W = x_nchw.shape
    X = jnp.linspace(-1.0, 1.0, W, dtype=jnp.float32)
    Y = jnp.linspace(-1.0, 1.0, H, dtype=jnp.float32)
    x1 = jnp.broadcast_to(X[None, :], (H, W))
    y1 = jnp.broadcast_to(Y[:, None], (H, W))
    pe = jnp.stack([x1, 2.0 - x1, y1, 2.0 - y1], axis=0)
    x_ = jnp.concatenate([x_nchw, jnp.broadcast_to(pe[None], (B, 4, H, W))], axis=1)
    d1 = conv_relu(x_, *params["enc_down_1"], 1)
    d2 = conv_relu(d1, *params["enc_down_2"], 2)
    d3 = conv_relu(d2, *params["enc_down_3"], 2)
    u3 = up2(conv_relu(d3, *params["enc_up_3"], 1))
    u2 = up2(conv_relu(jnp.concatenate([u3, d2], axis=1), *params["enc_up_2"], 1))
    return conv_relu(jnp.concatenate([u2, d1], axis=1), *params["enc_up_1"], 1)


# ----------------------------------- main --------------------------------------


if __name__ == "__main__":
    key = jax.random.PRNGKey(0)
    k_x, k_p = jax.random.split(key)

    B, C, H, W = 2, 3, 32, 32
    z_dim = 32
    x = jax.random.normal(k_x, (B, C, H, W), jnp.float32)
    params = init_encoder_params(k_p, input_nc=C, z_dim=z_dim, bottom=False)

    fwd = jax.jit(functools.partial(encoder_forward, bottom=False))
    out = fwd(params, x)
    jax.block_until_ready(out)

    assert out.shape == (B, z_dim, H, W), out.shape
    assert bool(jnp.all(jnp.isfinite(out)))

    # Verify against the pure-JAX f32 reference (tolerance covers bf16 MXU inputs).
    ref = _reference_forward(params, x)
    rel = float(jnp.max(jnp.abs(out - ref)) / (jnp.max(jnp.abs(ref)) + 1e-6))
    assert rel < 0.1, f"kernel/reference mismatch: rel_max_err={rel:.4f}"

    print("KERNEL_OK")
</pallas_src>

<mosaic_0001>
module attributes {stable_mosaic.version = 11 : i64} {
  func.func @_encoder_kernel(%arg0: i32, %arg1: memref<1x8x1024xf32, #tpu.memory_space<vmem>>, %arg2: memref<32x1024xf32, #tpu.memory_space<vmem>>, %arg3: memref<32x72xbf16, #tpu.memory_space<vmem>>, %arg4: memref<32x288xbf16, #tpu.memory_space<vmem>>, %arg5: memref<32x1xf32, #tpu.memory_space<vmem>>, %arg6: memref<32x288xbf16, #tpu.memory_space<vmem>>, %arg7: memref<32x1xf32, #tpu.memory_space<vmem>>, %arg8: memref<32x288xbf16, #tpu.memory_space<vmem>>, %arg9: memref<32x1xf32, #tpu.memory_space<vmem>>, %arg10: memref<32x576xbf16, #tpu.memory_space<vmem>>, %arg11: memref<32x1xf32, #tpu.memory_space<vmem>>, %arg12: memref<32x576xbf16, #tpu.memory_space<vmem>>, %arg13: memref<32x1xf32, #tpu.memory_space<vmem>>, %arg14: memref<1024x256xbf16, #tpu.memory_space<vmem>>, %arg15: memref<256x64xbf16, #tpu.memory_space<vmem>>, %arg16: memref<64x256xbf16, #tpu.memory_space<vmem>>, %arg17: memref<256x1024xbf16, #tpu.memory_space<vmem>>, %arg18: memref<1x32x1024xf32, #tpu.memory_space<vmem>>) attributes {dimension_semantics = [#tpu.dimension_semantics<parallel>], iteration_bounds = array<i64: 2>, scalar_prefetch = 0 : i64, scratch_operands = 0 : i64, tpu.core_type = #tpu.core_type<tc>, window_params = [{transform_indices = @transform_0, window_bounds = array<i64: 1, 8, 1024>}, {pipeline_mode = #tpu.pipeline_mode<synchronous>, transform_indices = @transform_1, window_bounds = array<i64: 32, 1024>}, {pipeline_mode = #tpu.pipeline_mode<synchronous>, transform_indices = @transform_2, window_bounds = array<i64: 32, 72>}, {pipeline_mode = #tpu.pipeline_mode<synchronous>, transform_indices = @transform_3, window_bounds = array<i64: 32, 288>}, {pipeline_mode = #tpu.pipeline_mode<synchronous>, transform_indices = @transform_4, window_bounds = array<i64: 32, 1>}, {pipeline_mode = #tpu.pipeline_mode<synchronous>, transform_indices = @transform_5, window_bounds = array<i64: 32, 288>}, {pipeline_mode = #tpu.pipeline_mode<synchronous>, transform_indices = @transform_6, window_bounds = array<i64: 32, 1>}, {pipeline_mode = #tpu.pipeline_mode<synchronous>, transform_indices = @transform_7, window_bounds = array<i64: 32, 288>}, {pipeline_mode = #tpu.pipeline_mode<synchronous>, transform_indices = @transform_8, window_bounds = array<i64: 32, 1>}, {pipeline_mode = #tpu.pipeline_mode<synchronous>, transform_indices = @transform_9, window_bounds = array<i64: 32, 576>}, {pipeline_mode = #tpu.pipeline_mode<synchronous>, transform_indices = @transform_10, window_bounds = array<i64: 32, 1>}, {pipeline_mode = #tpu.pipeline_mode<synchronous>, transform_indices = @transform_11, window_bounds = array<i64: 32, 576>}, {pipeline_mode = #tpu.pipeline_mode<synchronous>, transform_indices = @transform_12, window_bounds = array<i64: 32, 1>}, {pipeline_mode = #tpu.pipeline_mode<synchronous>, transform_indices = @transform_13, window_bounds = array<i64: 1024, 256>}, {pipeline_mode = #tpu.pipeline_mode<synchronous>, transform_indices = @transform_14, window_bounds = array<i64: 256, 64>}, {pipeline_mode = #tpu.pipeline_mode<synchronous>, transform_indices = @transform_15, window_bounds = array<i64: 64, 256>}, {pipeline_mode = #tpu.pipeline_mode<synchronous>, transform_indices = @transform_16, window_bounds = array<i64: 256, 1024>}, {transform_indices = @transform_17, window_bounds = array<i64: 1, 32, 1024>}]} {
    %c0 = arith.constant 0 : index
    %c0_0 = arith.constant 0 : index
    %c0_1 = arith.constant 0 : index
    %0 = vector.load %arg1[%c0, %c0_0, %c0_1] : memref<1x8x1024xf32, #tpu.memory_space<vmem>>, vector<1x8x1024xf32>
    %1 = vector.shape_cast %0 : vector<1x8x1024xf32> to vector<8x1024xf32>
    %c0_2 = arith.constant 0 : index
    %c0_3 = arith.constant 0 : index
    %2 = vector.load %arg2[%c0_2, %c0_3] : memref<32x1024xf32, #tpu.memory_space<vmem>>, vector<32x1024xf32>
    %3 = tpu.iota {dimensions = array<i32: 1>} : vector<1x1024xi32>
    %c31_i32 = arith.constant 31 : i32
    %4 = vector.broadcast %c31_i32 : i32 to vector<1x1024xi32>
    %5 = arith.andi %3, %4 : vector<1x1024xi32>
    %cst = arith.constant 0.000000e+00 : f32
    %6 = vector.broadcast %cst : f32 to vector<8x33xf32>
    %7 = vector.extract_strided_slice %1 {offsets = [0, 0], sizes = [8, 991], strides = [1, 1]} : vector<8x1024xf32> to vector<8x991xf32>
    %8 = tpu.concatenate %6, %7 in 1 : vector<8x33xf32>, vector<8x991xf32> -> vector<8x1024xf32>
    %c1_i32 = arith.constant 1 : i32
    %9 = vector.broadcast %c1_i32 : i32 to vector<1x1024xi32>
    %10 = arith.cmpi sge, %5, %9 : vector<1x1024xi32>
    %cst_4 = arith.constant 0.000000e+00 : f32
    %11 = vector.shape_cast %10 : vector<1x1024xi1> to vector<1x1024xi1>
    %12 = vector.broadcast %11 : vector<1x1024xi1> to vector<8x1024xi1>
    %13 = vector.broadcast %cst_4 : f32 to vector<8x1024xf32>
    %14 = arith.select %12, %8, %13 : vector<8x1024xi1>, vector<8x1024xf32>
    %cst_5 = arith.constant 0.000000e+00 : f32
    %15 = vector.broadcast %cst_5 : f32 to vector<8x32xf32>
    %16 = vector.extract_strided_slice %1 {offsets = [0, 0], sizes = [8, 992], strides = [1, 1]} : vector<8x1024xf32> to vector<8x992xf32>
    %17 = tpu.concatenate %15, %16 in 1 : vector<8x32xf32>, vector<8x992xf32> -> vector<8x1024xf32>
    %cst_6 = arith.constant 0.000000e+00 : f32
    %18 = vector.broadcast %cst_6 : f32 to vector<8x31xf32>
    %19 = vector.extract_strided_slice %1 {offsets = [0, 0], sizes = [8, 993], strides = [1, 1]} : vector<8x1024xf32> to vector<8x993xf32>
    %20 = tpu.concatenate %18, %19 in 1 : vector<8x31xf32>, vector<8x993xf32> -> vector<8x1024xf32>
    %c30_i32 = arith.constant 30 : i32
    %21 = vector.broadcast %c30_i32 : i32 to vector<1x1024xi32>
    %22 = arith.cmpi sle, %5, %21 : vector<1x1024xi32>
    %cst_7 = arith.constant 0.000000e+00 : f32
    %23 = vector.shape_cast %22 : vector<1x1024xi1> to vector<1x1024xi1>
    %24 = vector.broadcast %23 : vector<1x1024xi1> to vector<8x1024xi1>
    %25 = vector.broadcast %cst_7 : f32 to vector<8x1024xf32>
    %26 = arith.select %24, %20, %25 : vector<8x1024xi1>, vector<8x1024xf32>
    %cst_8 = arith.constant 0.000000e+00 : f32
    %27 = vector.broadcast %cst_8 : f32 to vector<8x1xf32>
    %28 = vector.extract_strided_slice %1 {offsets = [0, 0], sizes = [8, 1023], strides = [1, 1]} : vector<8x1024xf32> to vector<8x1023xf32>
    %29 = tpu.concatenate %27, %28 in 1 : vector<8x1xf32>, vector<8x1023xf32> -> vector<8x1024xf32>
    %c1_i32_9 = arith.constant 1 : i32
    %30 = vector.broadcast %c1_i32_9 : i32 to vector<1x1024xi32>
    %31 = arith.cmpi sge, %5, %30 : vector<1x1024xi32>
    %cst_10 = arith.constant 0.000000e+00 : f32
    %32 = vector.shape_cast %31 : vector<1x1024xi1> to vector<1x1024xi1>
    %33 = vector.broadcast %32 : vector<1x1024xi1> to vector<8x1024xi1>
    %34 = vector.broadcast %cst_10 : f32 to vector<8x1024xf32>
    %35 = arith.select %33, %29, %34 : vector<8x1024xi1>, vector<8x1024xf32>
    %cst_11 = arith.constant 0.000000e+00 : f32
    %36 = vector.broadcast %cst_11 : f32 to vector<8x1xf32>
    %37 = vector.extract_strided_slice %1 {offsets = [0, 1], sizes = [8, 1023], strides = [1, 1]} : vector<8x1024xf32> to vector<8x1023xf32>
    %38 = tpu.concatenate %37, %36 in 1 : vector<8x1023xf32>, vector<8x1xf32> -> vector<8x1024xf32>
    %c30_i32_12 = arith.constant 30 : i32
    %39 = vector.broadcast %c30_i32_12 : i32 to vector<1x1024xi32>
    %40 = arith.cmpi sle, %5, %39 : vector<1x1024xi32>
    %cst_13 = arith.constant 0.000000e+00 : f32
    %41 = vector.shape_cast %40 : vector<1x1024xi1> to vector<1x1024xi1>
    %42 = vector.broadcast %41 : vector<1x1024xi1> to vector<8x1024xi1>
    %43 = vector.broadcast %cst_13 : f32 to vector<8x1024xf32>
    %44 = arith.select %42, %38, %43 : vector<8x1024xi1>, vector<8x1024xf32>
    %cst_14 = arith.constant 0.000000e+00 : f32
    %45 = vector.broadcast %cst_14 : f32 to vector<8x31xf32>
    %46 = vector.extract_strided_slice %1 {offsets = [0, 31], sizes = [8, 993], strides = [1, 1]} : vector<8x1024xf32> to vector<8x993xf32>
    %47 = tpu.concatenate %46, %45 in 1 : vector<8x993xf32>, vector<8x31xf32> -> vector<8x1024xf32>
    %c1_i32_15 = arith.constant 1 : i32
    %48 = vector.broadcast %c1_i32_15 : i32 to vector<1x1024xi32>
    %49 = arith.cmpi sge, %5, %48 : vector<1x1024xi32>
    %cst_16 = arith.constant 0.000000e+00 : f32
    %50 = vector.shape_cast %49 : vector<1x1024xi1> to vector<1x1024xi1>
    %51 = vector.broadcast %50 : vector<1x1024xi1> to vector<8x1024xi1>
    %52 = vector.broadcast %cst_16 : f32 to vector<8x1024xf32>
    %53 = arith.select %51, %47, %52 : vector<8x1024xi1>, vector<8x1024xf32>
    %cst_17 = arith.constant 0.000000e+00 : f32
    %54 = vector.broadcast %cst_17 : f32 to vector<8x32xf32>
    %55 = vector.extract_strided_slice %1 {offsets = [0, 32], sizes = [8, 992], strides = [1, 1]} : vector<8x1024xf32> to vector<8x992xf32>
    %56 = tpu.concatenate %55, %54 in 1 : vector<8x992xf32>, vector<8x32xf32> -> vector<8x1024xf32>
    %cst_18 = arith.constant 0.000000e+00 : f32
    %57 = vector.broadcast %cst_18 : f32 to vector<8x33xf32>
    %58 = vector.extract_strided_slice %1 {offsets = [0, 33], sizes = [8, 991], strides = [1, 1]} : vector<8x1024xf32> to vector<8x991xf32>
    %59 = tpu.concatenate %58, %57 in 1 : vector<8x991xf32>, vector<8x33xf32> -> vector<8x1024xf32>
    %c30_i32_19 = arith.constant 30 : i32
    %60 = vector.broadcast %c30_i32_19 : i32 to vector<1x1024xi32>
    %61 = arith.cmpi sle, %5, %60 : vector<1x1024xi32>
    %cst_20 = arith.constant 0.000000e+00 : f32
    %62 = vector.shape_cast %61 : vector<1x1024xi1> to vector<1x1024xi1>
    %63 = vector.broadcast %62 : vector<1x1024xi1> to vector<8x1024xi1>
    %64 = vector.broadcast %cst_20 : f32 to vector<8x1024xf32>
    %65 = arith.select %63, %59, %64 : vector<8x1024xi1>, vector<8x1024xf32>
    %66 = tpu.concatenate %14, %17, %26, %35, %1, %44, %53, %56, %65 in 0 : vector<8x1024xf32>, vector<8x1024xf32>, vector<8x1024xf32>, vector<8x1024xf32>, vector<8x1024xf32>, vector<8x1024xf32>, vector<8x1024xf32>, vector<8x1024xf32>, vector<8x1024xf32> -> vector<72x1024xf32>
    %67 = arith.truncf %66 : vector<72x1024xf32> to vector<72x1024xbf16>
    %c0_21 = arith.constant 0 : index
    %c0_22 = arith.constant 0 : index
    %68 = vector.load %arg3[%c0_21, %c0_22] : memref<32x72xbf16, #tpu.memory_space<vmem>>, vector<32x72xbf16>
    %cst_23 = arith.constant dense<0.000000e+00> : vector<32x1024xf32>
    %69 = tpu.matmul %68, %67, %cst_23 {dimension_numbers = #tpu.dot_dimension_numbers<[1], [0], [0], [1], [0, 0, 1, 1], [], []>} : vector<32x72xbf16>, vector<72x1024xbf16>, vector<32x1024xf32> -> vector<32x1024xf32>
    %70 = arith.addf %69, %2 : vector<32x1024xf32>
    %cst_24 = arith.constant 0.000000e+00 : f32
    %71 = vector.broadcast %cst_24 : f32 to vector<32x1024xf32>
    %72 = arith.maximumf %70, %71 : vector<32x1024xf32>
    %c0_25 = arith.constant 0 : index
    %c0_26 = arith.constant 0 : index
    %73 = vector.load %arg5[%c0_25, %c0_26] : memref<32x1xf32, #tpu.memory_space<vmem>>, vector<32x1xf32>
    %74 = tpu.iota {dimensions = array<i32: 1>} : vector<1x1024xi32>
    %c31_i32_27 = arith.constant 31 : i32
    %75 = vector.broadcast %c31_i32_27 : i32 to vector<1x1024xi32>
    %76 = arith.andi %74, %75 : vector<1x1024xi32>
    %cst_28 = arith.constant 0.000000e+00 : f32
    %77 = vector.broadcast %cst_28 : f32 to vector<32x33xf32>
    %78 = vector.extract_strided_slice %72 {offsets = [0, 0], sizes = [32, 991], strides = [1, 1]} : vector<32x1024xf32> to vector<32x991xf32>
    %79 = tpu.concatenate %77, %78 in 1 : vector<32x33xf32>, vector<32x991xf32> -> vector<32x1024xf32>
    %c1_i32_29 = arith.constant 1 : i32
    %80 = vector.broadcast %c1_i32_29 : i32 to vector<1x1024xi32>
    %81 = arith.cmpi sge, %76, %80 : vector<1x1024xi32>
    %cst_30 = arith.constant 0.000000e+00 : f32
    %82 = vector.shape_cast %81 : vector<1x1024xi1> to vector<1x1024xi1>
    %83 = vector.broadcast %82 : vector<1x1024xi1> to vector<32x1024xi1>
    %84 = vector.broadcast %cst_30 : f32 to vector<32x1024xf32>
    %85 = arith.select %83, %79, %84 : vector<32x1024xi1>, vector<32x1024xf32>
    %cst_31 = arith.constant 0.000000e+00 : f32
    %86 = vector.broadcast %cst_31 : f32 to vector<32x32xf32>
    %87 = vector.extract_strided_slice %72 {offsets = [0, 0], sizes = [32, 992], strides = [1, 1]} : vector<32x1024xf32> to vector<32x992xf32>
    %88 = tpu.concatenate %86, %87 in 1 : vector<32x32xf32>, vector<32x992xf32> -> vector<32x1024xf32>
    %cst_32 = arith.constant 0.000000e+00 : f32
    %89 = vector.broadcast %cst_32 : f32 to vector<32x31xf32>
    %90 = vector.extract_strided_slice %72 {offsets = [0, 0], sizes = [32, 993], strides = [1, 1]} : vector<32x1024xf32> to vector<32x993xf32>
    %91 = tpu.concatenate %89, %90 in 1 : vector<32x31xf32>, vector<32x993xf32> -> vector<32x1024xf32>
    %c30_i32_33 = arith.constant 30 : i32
    %92 = vector.broadcast %c30_i32_33 : i32 to vector<1x1024xi32>
    %93 = arith.cmpi sle, %76, %92 : vector<1x1024xi32>
    %cst_34 = arith.constant 0.000000e+00 : f32
    %94 = vector.shape_cast %93 : vector<1x1024xi1> to vector<1x1024xi1>
    %95 = vector.broadcast %94 : vector<1x1024xi1> to vector<32x1024xi1>
    %96 = vector.broadcast %cst_34 : f32 to vector<32x1024xf32>
    %97 = arith.select %95, %91, %96 : vector<32x1024xi1>, vector<32x1024xf32>
    %cst_35 = arith.constant 0.000000e+00 : f32
    %98 = vector.broadcast %cst_35 : f32 to vector<32x1xf32>
    %99 = vector.extract_strided_slice %72 {offsets = [0, 0], sizes = [32, 1023], strides = [1, 1]} : vector<32x1024xf32> to vector<32x1023xf32>
    %100 = tpu.concatenate %98, %99 in 1 : vector<32x1xf32>, vector<32x1023xf32> -> vector<32x1024xf32>
    %c1_i32_36 = arith.constant 1 : i32
    %101 = vector.broadcast %c1_i32_36 : i32 to vector<1x1024xi32>
    %102 = arith.cmpi sge, %76, %101 : vector<1x1024xi32>
    %cst_37 = arith.constant 0.000000e+00 : f32
    %103 = vector.shape_cast %102 : vector<1x1024xi1> to vector<1x1024xi1>
    %104 = vector.broadcast %103 : vector<1x1024xi1> to vector<32x1024xi1>
    %105 = vector.broadcast %cst_37 : f32 to vector<32x1024xf32>
    %106 = arith.select %104, %100, %105 : vector<32x1024xi1>, vector<32x1024xf32>
    %cst_38 = arith.constant 0.000000e+00 : f32
    %107 = vector.broadcast %cst_38 : f32 to vector<32x1xf32>
    %108 = vector.extract_strided_slice %72 {offsets = [0, 1], sizes = [32, 1023], strides = [1, 1]} : vector<32x1024xf32> to vector<32x1023xf32>
    %109 = tpu.concatenate %108, %107 in 1 : vector<32x1023xf32>, vector<32x1xf32> -> vector<32x1024xf32>
    %c30_i32_39 = arith.constant 30 : i32
    %110 = vector.broadcast %c30_i32_39 : i32 to vector<1x1024xi32>
    %111 = arith.cmpi sle, %76, %110 : vector<1x1024xi32>
    %cst_40 = arith.constant 0.000000e+00 : f32
    %112 = vector.shape_cast %111 : vector<1x1024xi1> to vector<1x1024xi1>
    %113 = vector.broadcast %112 : vector<1x1024xi1> to vector<32x1024xi1>
    %114 = vector.broadcast %cst_40 : f32 to vector<32x1024xf32>
    %115 = arith.select %113, %109, %114 : vector<32x1024xi1>, vector<32x1024xf32>
    %cst_41 = arith.constant 0.000000e+00 : f32
    %116 = vector.broadcast %cst_41 : f32 to vector<32x31xf32>
    %117 = vector.extract_strided_slice %72 {offsets = [0, 31], sizes = [32, 993], strides = [1, 1]} : vector<32x1024xf32> to vector<32x993xf32>
    %118 = tpu.concatenate %117, %116 in 1 : vector<32x993xf32>, vector<32x31xf32> -> vector<32x1024xf32>
    %c1_i32_42 = arith.constant 1 : i32
    %119 = vector.broadcast %c1_i32_42 : i32 to vector<1x1024xi32>
    %120 = arith.cmpi sge, %76, %119 : vector<1x1024xi32>
    %cst_43 = arith.constant 0.000000e+00 : f32
    %121 = vector.shape_cast %120 : vector<1x1024xi1> to vector<1x1024xi1>
    %122 = vector.broadcast %121 : vector<1x1024xi1> to vector<32x1024xi1>
    %123 = vector.broadcast %cst_43 : f32 to vector<32x1024xf32>
    %124 = arith.select %122, %118, %123 : vector<32x1024xi1>, vector<32x1024xf32>
    %cst_44 = arith.constant 0.000000e+00 : f32
    %125 = vector.broadcast %cst_44 : f32 to vector<32x32xf32>
    %126 = vector.extract_strided_slice %72 {offsets = [0, 32], sizes = [32, 992], strides = [1, 1]} : vector<32x1024xf32> to vector<32x992xf32>
    %127 = tpu.concatenate %126, %125 in 1 : vector<32x992xf32>, vector<32x32xf32> -> vector<32x1024xf32>
    %cst_45 = arith.constant 0.000000e+00 : f32
    %128 = vector.broadcast %cst_45 : f32 to vector<32x33xf32>
    %129 = vector.extract_strided_slice %72 {offsets = [0, 33], sizes = [32, 991], strides = [1, 1]} : vector<32x1024xf32> to vector<32x991xf32>
    %130 = tpu.concatenate %129, %128 in 1 : vector<32x991xf32>, vector<32x33xf32> -> vector<32x1024xf32>
    %c30_i32_46 = arith.constant 30 : i32
    %131 = vector.broadcast %c30_i32_46 : i32 to vector<1x1024xi32>
    %132 = arith.cmpi sle, %76, %131 : vector<1x1024xi32>
    %cst_47 = arith.constant 0.000000e+00 : f32
    %133 = vector.shape_cast %132 : vector<1x1024xi1> to vector<1x1024xi1>
    %134 = vector.broadcast %133 : vector<1x1024xi1> to vector<32x1024xi1>
    %135 = vector.broadcast %cst_47 : f32 to vector<32x1024xf32>
    %136 = arith.select %134, %130, %135 : vector<32x1024xi1>, vector<32x1024xf32>
    %137 = tpu.concatenate %85, %88, %97, %106, %72, %115, %124, %127, %136 in 0 : vector<32x1024xf32>, vector<32x1024xf32>, vector<32x1024xf32>, vector<32x1024xf32>, vector<32x1024xf32>, vector<32x1024xf32>, vector<32x1024xf32>, vector<32x1024xf32>, vector<32x1024xf32> -> vector<288x1024xf32>
    %138 = arith.truncf %137 : vector<288x1024xf32> to vector<288x1024xbf16>
    %c0_48 = arith.constant 0 : index
    %c0_49 = arith.constant 0 : index
    %139 = vector.load %arg4[%c0_48, %c0_49] : memref<32x288xbf16, #tpu.memory_space<vmem>>, vector<32x288xbf16>
    %cst_50 = arith.constant dense<0.000000e+00> : vector<32x1024xf32>
    %140 = tpu.matmul %139, %138, %cst_50 {dimension_numbers = #tpu.dot_dimension_numbers<[1], [0], [0], [1], [0, 0, 1, 1], [], []>} : vector<32x288xbf16>, vector<288x1024xbf16>, vector<32x1024xf32> -> vector<32x1024xf32>
    %141 = vector.broadcast %73 : vector<32x1xf32> to vector<32x1024xf32>
    %142 = arith.addf %140, %141 : vector<32x1024xf32>
    %cst_51 = arith.constant 0.000000e+00 : f32
    %143 = vector.broadcast %cst_51 : f32 to vector<32x1024xf32>
    %144 = arith.maximumf %142, %143 : vector<32x1024xf32>
    %145 = arith.truncf %144 : vector<32x1024xf32> to vector<32x1024xbf16>
    %c0_52 = arith.constant 0 : index
    %c0_53 = arith.constant 0 : index
    %146 = vector.load %arg14[%c0_52, %c0_53] : memref<1024x256xbf16, #tpu.memory_space<vmem>>, vector<1024x256xbf16>
    %cst_54 = arith.constant dense<0.000000e+00> : vector<32x256xf32>
    %147 = tpu.matmul %145, %146, %cst_54 {dimension_numbers = #tpu.dot_dimension_numbers<[1], [0], [0], [1], [0, 0, 1, 1], [], []>} : vector<32x1024xbf16>, vector<1024x256xbf16>, vector<32x256xf32> -> vector<32x256xf32>
    %c0_55 = arith.constant 0 : index
    %c0_56 = arith.constant 0 : index
    %148 = vector.load %arg7[%c0_55, %c0_56] : memref<32x1xf32, #tpu.memory_space<vmem>>, vector<32x1xf32>
    %149 = tpu.iota {dimensions = array<i32: 1>} : vector<1x256xi32>
    %c15_i32 = arith.constant 15 : i32
    %150 = vector.broadcast %c15_i32 : i32 to vector<1x256xi32>
    %151 = arith.andi %149, %150 : vector<1x256xi32>
    %cst_57 = arith.constant 0.000000e+00 : f32
    %152 = vector.broadcast %cst_57 : f32 to vector<32x17xf32>
    %153 = vector.extract_strided_slice %147 {offsets = [0, 0], sizes = [32, 239], strides = [1, 1]} : vector<32x256xf32> to vector<32x239xf32>
    %154 = tpu.concatenate %152, %153 in 1 : vector<32x17xf32>, vector<32x239xf32> -> vector<32x256xf32>
    %c1_i32_58 = arith.constant 1 : i32
    %155 = vector.broadcast %c1_i32_58 : i32 to vector<1x256xi32>
    %156 = arith.cmpi sge, %151, %155 : vector<1x256xi32>
    %cst_59 = arith.constant 0.000000e+00 : f32
    %157 = vector.shape_cast %156 : vector<1x256xi1> to vector<1x256xi1>
    %158 = vector.broadcast %157 : vector<1x256xi1> to vector<32x256xi1>
    %159 = vector.broadcast %cst_59 : f32 to vector<32x256xf32>
    %160 = arith.select %158, %154, %159 : vector<32x256xi1>, vector<32x256xf32>
    %cst_60 = arith.constant 0.000000e+00 : f32
    %161 = vector.broadcast %cst_60 : f32 to vector<32x16xf32>
    %162 = vector.extract_strided_slice %147 {offsets = [0, 0], sizes = [32, 240], strides = [1, 1]} : vector<32x256xf32> to vector<32x240xf32>
    %163 = tpu.concatenate %161, %162 in 1 : vector<32x16xf32>, vector<32x240xf32> -> vector<32x256xf32>
    %cst_61 = arith.constant 0.000000e+00 : f32
    %164 = vector.broadcast %cst_61 : f32 to vector<32x15xf32>
    %165 = vector.extract_strided_slice %147 {offsets = [0, 0], sizes = [32, 241], strides = [1, 1]} : vector<32x256xf32> to vector<32x241xf32>
    %166 = tpu.concatenate %164, %165 in 1 : vector<32x15xf32>, vector<32x241xf32> -> vector<32x256xf32>
    %c14_i32 = arith.constant 14 : i32
    %167 = vector.broadcast %c14_i32 : i32 to vector<1x256xi32>
    %168 = arith.cmpi sle, %151, %167 : vector<1x256xi32>
    %cst_62 = arith.constant 0.000000e+00 : f32
    %169 = vector.shape_cast %168 : vector<1x256xi1> to vector<1x256xi1>
    %170 = vector.broadcast %169 : vector<1x256xi1> to vector<32x256xi1>
    %171 = vector.broadcast %cst_62 : f32 to vector<32x256xf32>
    %172 = arith.select %170, %166, %171 : vector<32x256xi1>, vector<32x256xf32>
    %cst_63 = arith.constant 0.000000e+00 : f32
    %173 = vector.broadcast %cst_63 : f32 to vector<32x1xf32>
    %174 = vector.extract_strided_slice %147 {offsets = [0, 0], sizes = [32, 255], strides = [1, 1]} : vector<32x256xf32> to vector<32x255xf32>
    %175 = tpu.concatenate %173, %174 in 1 : vector<32x1xf32>, vector<32x255xf32> -> vector<32x256xf32>
    %c1_i32_64 = arith.constant 1 : i32
    %176 = vector.broadcast %c1_i32_64 : i32 to vector<1x256xi32>
    %177 = arith.cmpi sge, %151, %176 : vector<1x256xi32>
    %cst_65 = arith.constant 0.000000e+00 : f32
    %178 = vector.shape_cast %177 : vector<1x256xi1> to vector<1x256xi1>
    %179 = vector.broadcast %178 : vector<1x256xi1> to vector<32x256xi1>
    %180 = vector.broadcast %cst_65 : f32 to vector<32x256xf32>
    %181 = arith.select %179, %175, %180 : vector<32x256xi1>, vector<32x256xf32>
    %cst_66 = arith.constant 0.000000e+00 : f32
    %182 = vector.broadcast %cst_66 : f32 to vector<32x1xf32>
    %183 = vector.extract_strided_slice %147 {offsets = [0, 1], sizes = [32, 255], strides = [1, 1]} : vector<32x256xf32> to vector<32x255xf32>
    %184 = tpu.concatenate %183, %182 in 1 : vector<32x255xf32>, vector<32x1xf32> -> vector<32x256xf32>
    %c14_i32_67 = arith.constant 14 : i32
    %185 = vector.broadcast %c14_i32_67 : i32 to vector<1x256xi32>
    %186 = arith.cmpi sle, %151, %185 : vector<1x256xi32>
    %cst_68 = arith.constant 0.000000e+00 : f32
    %187 = vector.shape_cast %186 : vector<1x256xi1> to vector<1x256xi1>
    %188 = vector.broadcast %187 : vector<1x256xi1> to vector<32x256xi1>
    %189 = vector.broadcast %cst_68 : f32 to vector<32x256xf32>
    %190 = arith.select %188, %184, %189 : vector<32x256xi1>, vector<32x256xf32>
    %cst_69 = arith.constant 0.000000e+00 : f32
    %191 = vector.broadcast %cst_69 : f32 to vector<32x15xf32>
    %192 = vector.extract_strided_slice %147 {offsets = [0, 15], sizes = [32, 241], strides = [1, 1]} : vector<32x256xf32> to vector<32x241xf32>
    %193 = tpu.concatenate %192, %191 in 1 : vector<32x241xf32>, vector<32x15xf32> -> vector<32x256xf32>
    %c1_i32_70 = arith.constant 1 : i32
    %194 = vector.broadcast %c1_i32_70 : i32 to vector<1x256xi32>
    %195 = arith.cmpi sge, %151, %194 : vector<1x256xi32>
    %cst_71 = arith.constant 0.000000e+00 : f32
    %196 = vector.shape_cast %195 : vector<1x256xi1> to vector<1x256xi1>
    %197 = vector.broadcast %196 : vector<1x256xi1> to vector<32x256xi1>
    %198 = vector.broadcast %cst_71 : f32 to vector<32x256xf32>
    %199 = arith.select %197, %193, %198 : vector<32x256xi1>, vector<32x256xf32>
    %cst_72 = arith.constant 0.000000e+00 : f32
    %200 = vector.broadcast %cst_72 : f32 to vector<32x16xf32>
    %201 = vector.extract_strided_slice %147 {offsets = [0, 16], sizes = [32, 240], strides = [1, 1]} : vector<32x256xf32> to vector<32x240xf32>
    %202 = tpu.concatenate %201, %200 in 1 : vector<32x240xf32>, vector<32x16xf32> -> vector<32x256xf32>
    %cst_73 = arith.constant 0.000000e+00 : f32
    %203 = vector.broadcast %cst_73 : f32 to vector<32x17xf32>
    %204 = vector.extract_strided_slice %147 {offsets = [0, 17], sizes = [32, 239], strides = [1, 1]} : vector<32x256xf32> to vector<32x239xf32>
    %205 = tpu.concatenate %204, %203 in 1 : vector<32x239xf32>, vector<32x17xf32> -> vector<32x256xf32>
    %c14_i32_74 = arith.constant 14 : i32
    %206 = vector.broadcast %c14_i32_74 : i32 to vector<1x256xi32>
    %207 = arith.cmpi sle, %151, %206 : vector<1x256xi32>
    %cst_75 = arith.constant 0.000000e+00 : f32
    %208 = vector.shape_cast %207 : vector<1x256xi1> to vector<1x256xi1>
    %209 = vector.broadcast %208 : vector<1x256xi1> to vector<32x256xi1>
    %210 = vector.broadcast %cst_75 : f32 to vector<32x256xf32>
    %211 = arith.select %209, %205, %210 : vector<32x256xi1>, vector<32x256xf32>
    %212 = tpu.concatenate %160, %163, %172, %181, %147, %190, %199, %202, %211 in 0 : vector<32x256xf32>, vector<32x256xf32>, vector<32x256xf32>, vector<32x256xf32>, vector<32x256xf32>, vector<32x256xf32>, vector<32x256xf32>, vector<32x256xf32>, vector<32x256xf32> -> vector<288x256xf32>
    %213 = arith.truncf %212 : vector<288x256xf32> to vector<288x256xbf16>
    %c0_76 = arith.constant 0 : index
    %c0_77 = arith.constant 0 : index
    %214 = vector.load %arg6[%c0_76, %c0_77] : memref<32x288xbf16, #tpu.memory_space<vmem>>, vector<32x288xbf16>
    %cst_78 = arith.constant dense<0.000000e+00> : vector<32x256xf32>
    %215 = tpu.matmul %214, %213, %cst_78 {dimension_numbers = #tpu.dot_dimension_numbers<[1], [0], [0], [1], [0, 0, 1, 1], [], []>} : vector<32x288xbf16>, vector<288x256xbf16>, vector<32x256xf32> -> vector<32x256xf32>
    %216 = vector.broadcast %148 : vector<32x1xf32> to vector<32x256xf32>
    %217 = arith.addf %215, %216 : vector<32x256xf32>
    %cst_79 = arith.constant 0.000000e+00 : f32
    %218 = vector.broadcast %cst_79 : f32 to vector<32x256xf32>
    %219 = arith.maximumf %217, %218 : vector<32x256xf32>
    %220 = arith.truncf %219 : vector<32x256xf32> to vector<32x256xbf16>
    %c0_80 = arith.constant 0 : index
    %c0_81 = arith.constant 0 : index
    %221 = vector.load %arg15[%c0_80, %c0_81] : memref<256x64xbf16, #tpu.memory_space<vmem>>, vector<256x64xbf16>
    %cst_82 = arith.constant dense<0.000000e+00> : vector<32x64xf32>
    %222 = tpu.matmul %220, %221, %cst_82 {dimension_numbers = #tpu.dot_dimension_numbers<[1], [0], [0], [1], [0, 0, 1, 1], [], []>} : vector<32x256xbf16>, vector<256x64xbf16>, vector<32x64xf32> -> vector<32x64xf32>
    %c0_83 = arith.constant 0 : index
    %c0_84 = arith.constant 0 : index
    %223 = vector.load %arg9[%c0_83, %c0_84] : memref<32x1xf32, #tpu.memory_space<vmem>>, vector<32x1xf32>
    %224 = tpu.iota {dimensions = array<i32: 1>} : vector<1x64xi32>
    %c7_i32 = arith.constant 7 : i32
    %225 = vector.broadcast %c7_i32 : i32 to vector<1x64xi32>
    %226 = arith.andi %224, %225 : vector<1x64xi32>
    %cst_85 = arith.constant 0.000000e+00 : f32
    %227 = vector.broadcast %cst_85 : f32 to vector<32x9xf32>
    %228 = vector.extract_strided_slice %222 {offsets = [0, 0], sizes = [32, 55], strides = [1, 1]} : vector<32x64xf32> to vector<32x55xf32>
    %229 = tpu.concatenate %227, %228 in 1 : vector<32x9xf32>, vector<32x55xf32> -> vector<32x64xf32>
    %c1_i32_86 = arith.constant 1 : i32
    %230 = vector.broadcast %c1_i32_86 : i32 to vector<1x64xi32>
    %231 = arith.cmpi sge, %226, %230 : vector<1x64xi32>
    %cst_87 = arith.constant 0.000000e+00 : f32
    %232 = vector.shape_cast %231 : vector<1x64xi1> to vector<1x64xi1>
    %233 = vector.broadcast %232 : vector<1x64xi1> to vector<32x64xi1>
    %234 = vector.broadcast %cst_87 : f32 to vector<32x64xf32>
    %235 = arith.select %233, %229, %234 : vector<32x64xi1>, vector<32x64xf32>
    %cst_88 = arith.constant 0.000000e+00 : f32
    %236 = vector.broadcast %cst_88 : f32 to vector<32x8xf32>
    %237 = vector.extract_strided_slice %222 {offsets = [0, 0], sizes = [32, 56], strides = [1, 1]} : vector<32x64xf32> to vector<32x56xf32>
    %238 = tpu.concatenate %236, %237 in 1 : vector<32x8xf32>, vector<32x56xf32> -> vector<32x64xf32>
    %cst_89 = arith.constant 0.000000e+00 : f32
    %239 = vector.broadcast %cst_89 : f32 to vector<32x7xf32>
    %240 = vector.extract_strided_slice %222 {offsets = [0, 0], sizes = [32, 57], strides = [1, 1]} : vector<32x64xf32> to vector<32x57xf32>
    %241 = tpu.concatenate %239, %240 in 1 : vector<32x7xf32>, vector<32x57xf32> -> vector<32x64xf32>
    %c6_i32 = arith.constant 6 : i32
    %242 = vector.broadcast %c6_i32 : i32 to vector<1x64xi32>
    %243 = arith.cmpi sle, %226, %242 : vector<1x64xi32>
    %cst_90 = arith.constant 0.000000e+00 : f32
    %244 = vector.shape_cast %243 : vector<1x64xi1> to vector<1x64xi1>
    %245 = vector.broadcast %244 : vector<1x64xi1> to vector<32x64xi1>
    %246 = vector.broadcast %cst_90 : f32 to vector<32x64xf32>
    %247 = arith.select %245, %241, %246 : vector<32x64xi1>, vector<32x64xf32>
    %cst_91 = arith.constant 0.000000e+00 : f32
    %248 = vector.broadcast %cst_91 : f32 to vector<32x1xf32>
    %249 = vector.extract_strided_slice %222 {offsets = [0, 0], sizes = [32, 63], strides = [1, 1]} : vector<32x64xf32> to vector<32x63xf32>
    %250 = tpu.concatenate %248, %249 in 1 : vector<32x1xf32>, vector<32x63xf32> -> vector<32x64xf32>
    %c1_i32_92 = arith.constant 1 : i32
    %251 = vector.broadcast %c1_i32_92 : i32 to vector<1x64xi32>
    %252 = arith.cmpi sge, %226, %251 : vector<1x64xi32>
    %cst_93 = arith.constant 0.000000e+00 : f32
    %253 = vector.shape_cast %252 : vector<1x64xi1> to vector<1x64xi1>
    %254 = vector.broadcast %253 : vector<1x64xi1> to vector<32x64xi1>
    %255 = vector.broadcast %cst_93 : f32 to vector<32x64xf32>
    %256 = arith.select %254, %250, %255 : vector<32x64xi1>, vector<32x64xf32>
    %cst_94 = arith.constant 0.000000e+00 : f32
    %257 = vector.broadcast %cst_94 : f32 to vector<32x1xf32>
    %258 = vector.extract_strided_slice %222 {offsets = [0, 1], sizes = [32, 63], strides = [1, 1]} : vector<32x64xf32> to vector<32x63xf32>
    %259 = tpu.concatenate %258, %257 in 1 : vector<32x63xf32>, vector<32x1xf32> -> vector<32x64xf32>
    %c6_i32_95 = arith.constant 6 : i32
    %260 = vector.broadcast %c6_i32_95 : i32 to vector<1x64xi32>
    %261 = arith.cmpi sle, %226, %260 : vector<1x64xi32>
    %cst_96 = arith.constant 0.000000e+00 : f32
    %262 = vector.shape_cast %261 : vector<1x64xi1> to vector<1x64xi1>
    %263 = vector.broadcast %262 : vector<1x64xi1> to vector<32x64xi1>
    %264 = vector.broadcast %cst_96 : f32 to vector<32x64xf32>
    %265 = arith.select %263, %259, %264 : vector<32x64xi1>, vector<32x64xf32>
    %cst_97 = arith.constant 0.000000e+00 : f32
    %266 = vector.broadcast %cst_97 : f32 to vector<32x7xf32>
    %267 = vector.extract_strided_slice %222 {offsets = [0, 7], sizes = [32, 57], strides = [1, 1]} : vector<32x64xf32> to vector<32x57xf32>
    %268 = tpu.concatenate %267, %266 in 1 : vector<32x57xf32>, vector<32x7xf32> -> vector<32x64xf32>
    %c1_i32_98 = arith.constant 1 : i32
    %269 = vector.broadcast %c1_i32_98 : i32 to vector<1x64xi32>
    %270 = arith.cmpi sge, %226, %269 : vector<1x64xi32>
    %cst_99 = arith.constant 0.000000e+00 : f32
    %271 = vector.shape_cast %270 : vector<1x64xi1> to vector<1x64xi1>
    %272 = vector.broadcast %271 : vector<1x64xi1> to vector<32x64xi1>
    %273 = vector.broadcast %cst_99 : f32 to vector<32x64xf32>
    %274 = arith.select %272, %268, %273 : vector<32x64xi1>, vector<32x64xf32>
    %cst_100 = arith.constant 0.000000e+00 : f32
    %275 = vector.broadcast %cst_100 : f32 to vector<32x8xf32>
    %276 = vector.extract_strided_slice %222 {offsets = [0, 8], sizes = [32, 56], strides = [1, 1]} : vector<32x64xf32> to vector<32x56xf32>
    %277 = tpu.concatenate %276, %275 in 1 : vector<32x56xf32>, vector<32x8xf32> -> vector<32x64xf32>
    %cst_101 = arith.constant 0.000000e+00 : f32
    %278 = vector.broadcast %cst_101 : f32 to vector<32x9xf32>
    %279 = vector.extract_strided_slice %222 {offsets = [0, 9], sizes = [32, 55], strides = [1, 1]} : vector<32x64xf32> to vector<32x55xf32>
    %280 = tpu.concatenate %279, %278 in 1 : vector<32x55xf32>, vector<32x9xf32> -> vector<32x64xf32>
    %c6_i32_102 = arith.constant 6 : i32
    %281 = vector.broadcast %c6_i32_102 : i32 to vector<1x64xi32>
    %282 = arith.cmpi sle, %226, %281 : vector<1x64xi32>
    %cst_103 = arith.constant 0.000000e+00 : f32
    %283 = vector.shape_cast %282 : vector<1x64xi1> to vector<1x64xi1>
    %284 = vector.broadcast %283 : vector<1x64xi1> to vector<32x64xi1>
    %285 = vector.broadcast %cst_103 : f32 to vector<32x64xf32>
    %286 = arith.select %284, %280, %285 : vector<32x64xi1>, vector<32x64xf32>
    %287 = tpu.concatenate %235, %238, %247, %256, %222, %265, %274, %277, %286 in 0 : vector<32x64xf32>, vector<32x64xf32>, vector<32x64xf32>, vector<32x64xf32>, vector<32x64xf32>, vector<32x64xf32>, vector<32x64xf32>, vector<32x64xf32>, vector<32x64xf32> -> vector<288x64xf32>
    %288 = arith.truncf %287 : vector<288x64xf32> to vector<288x64xbf16>
    %c0_104 = arith.constant 0 : index
    %c0_105 = arith.constant 0 : index
    %289 = vector.load %arg8[%c0_104, %c0_105] : memref<32x288xbf16, #tpu.memory_space<vmem>>, vector<32x288xbf16>
    %cst_106 = arith.constant dense<0.000000e+00> : vector<32x64xf32>
    %290 = tpu.matmul %289, %288, %cst_106 {dimension_numbers = #tpu.dot_dimension_numbers<[1], [0], [0], [1], [0, 0, 1, 1], [], []>} : vector<32x288xbf16>, vector<288x64xbf16>, vector<32x64xf32> -> vector<32x64xf32>
    %291 = vector.broadcast %223 : vector<32x1xf32> to vector<32x64xf32>
    %292 = arith.addf %290, %291 : vector<32x64xf32>
    %cst_107 = arith.constant 0.000000e+00 : f32
    %293 = vector.broadcast %cst_107 : f32 to vector<32x64xf32>
    %294 = arith.maximumf %292, %293 : vector<32x64xf32>
    %295 = arith.truncf %294 : vector<32x64xf32> to vector<32x64xbf16>
    %c0_108 = arith.constant 0 : index
    %c0_109 = arith.constant 0 : index
    %296 = vector.load %arg16[%c0_108, %c0_109] : memref<64x256xbf16, #tpu.memory_space<vmem>>, vector<64x256xbf16>
    %cst_110 = arith.constant dense<0.000000e+00> : vector<32x256xf32>
    %297 = tpu.matmul %295, %296, %cst_110 {dimension_numbers = #tpu.dot_dimension_numbers<[1], [0], [0], [1], [0, 0, 1, 1], [], []>} : vector<32x64xbf16>, vector<64x256xbf16>, vector<32x256xf32> -> vector<32x256xf32>
    %298 = tpu.concatenate %297, %147 in 0 : vector<32x256xf32>, vector<32x256xf32> -> vector<64x256xf32>
    %c0_111 = arith.constant 0 : index
    %c0_112 = arith.constant 0 : index
    %299 = vector.load %arg11[%c0_111, %c0_112] : memref<32x1xf32, #tpu.memory_space<vmem>>, vector<32x1xf32>
    %300 = tpu.iota {dimensions = array<i32: 1>} : vector<1x256xi32>
    %c15_i32_113 = arith.constant 15 : i32
    %301 = vector.broadcast %c15_i32_113 : i32 to vector<1x256xi32>
    %302 = arith.andi %300, %301 : vector<1x256xi32>
    %cst_114 = arith.constant 0.000000e+00 : f32
    %303 = vector.broadcast %cst_114 : f32 to vector<64x17xf32>
    %304 = vector.extract_strided_slice %298 {offsets = [0, 0], sizes = [64, 239], strides = [1, 1]} : vector<64x256xf32> to vector<64x239xf32>
    %305 = tpu.concatenate %303, %304 in 1 : vector<64x17xf32>, vector<64x239xf32> -> vector<64x256xf32>
    %c1_i32_115 = arith.constant 1 : i32
    %306 = vector.broadcast %c1_i32_115 : i32 to vector<1x256xi32>
    %307 = arith.cmpi sge, %302, %306 : vector<1x256xi32>
    %cst_116 = arith.constant 0.000000e+00 : f32
    %308 = vector.shape_cast %307 : vector<1x256xi1> to vector<1x256xi1>
    %309 = vector.broadcast %308 : vector<1x256xi1> to vector<64x256xi1>
    %310 = vector.broadcast %cst_116 : f32 to vector<64x256xf32>
    %311 = arith.select %309, %305, %310 : vector<64x256xi1>, vector<64x256xf32>
    %cst_117 = arith.constant 0.000000e+00 : f32
    %312 = vector.broadcast %cst_117 : f32 to vector<64x16xf32>
    %313 = vector.extract_strided_slice %298 {offsets = [0, 0], sizes = [64, 240], strides = [1, 1]} : vector<64x256xf32> to vector<64x240xf32>
    %314 = tpu.concatenate %312, %313 in 1 : vector<64x16xf32>, vector<64x240xf32> -> vector<64x256xf32>
    %cst_118 = arith.constant 0.000000e+00 : f32
    %315 = vector.broadcast %cst_118 : f32 to vector<64x15xf32>
    %316 = vector.extract_strided_slice %298 {offsets = [0, 0], sizes = [64, 241], strides = [1, 1]} : vector<64x256xf32> to vector<64x241xf32>
    %317 = tpu.concatenate %315, %316 in 1 : vector<64x15xf32>, vector<64x241xf32> -> vector<64x256xf32>
    %c14_i32_119 = arith.constant 14 : i32
    %318 = vector.broadcast %c14_i32_119 : i32 to vector<1x256xi32>
    %319 = arith.cmpi sle, %302, %318 : vector<1x256xi32>
    %cst_120 = arith.constant 0.000000e+00 : f32
    %320 = vector.shape_cast %319 : vector<1x256xi1> to vector<1x256xi1>
    %321 = vector.broadcast %320 : vector<1x256xi1> to vector<64x256xi1>
    %322 = vector.broadcast %cst_120 : f32 to vector<64x256xf32>
    %323 = arith.select %321, %317, %322 : vector<64x256xi1>, vector<64x256xf32>
    %cst_121 = arith.constant 0.000000e+00 : f32
    %324 = vector.broadcast %cst_121 : f32 to vector<64x1xf32>
    %325 = vector.extract_strided_slice %298 {offsets = [0, 0], sizes = [64, 255], strides = [1, 1]} : vector<64x256xf32> to vector<64x255xf32>
    %326 = tpu.concatenate %324, %325 in 1 : vector<64x1xf32>, vector<64x255xf32> -> vector<64x256xf32>
    %c1_i32_122 = arith.constant 1 : i32
    %327 = vector.broadcast %c1_i32_122 : i32 to vector<1x256xi32>
    %328 = arith.cmpi sge, %302, %327 : vector<1x256xi32>
    %cst_123 = arith.constant 0.000000e+00 : f32
    %329 = vector.shape_cast %328 : vector<1x256xi1> to vector<1x256xi1>
    %330 = vector.broadcast %329 : vector<1x256xi1> to vector<64x256xi1>
    %331 = vector.broadcast %cst_123 : f32 to vector<64x256xf32>
    %332 = arith.select %330, %326, %331 : vector<64x256xi1>, vector<64x256xf32>
    %cst_124 = arith.constant 0.000000e+00 : f32
    %333 = vector.broadcast %cst_124 : f32 to vector<64x1xf32>
    %334 = vector.extract_strided_slice %298 {offsets = [0, 1], sizes = [64, 255], strides = [1, 1]} : vector<64x256xf32> to vector<64x255xf32>
    %335 = tpu.concatenate %334, %333 in 1 : vector<64x255xf32>, vector<64x1xf32> -> vector<64x256xf32>
    %c14_i32_125 = arith.constant 14 : i32
    %336 = vector.broadcast %c14_i32_125 : i32 to vector<1x256xi32>
    %337 = arith.cmpi sle, %302, %336 : vector<1x256xi32>
    %cst_126 = arith.constant 0.000000e+00 : f32
    %338 = vector.shape_cast %337 : vector<1x256xi1> to vector<1x256xi1>
    %339 = vector.broadcast %338 : vector<1x256xi1> to vector<64x256xi1>
    %340 = vector.broadcast %cst_126 : f32 to vector<64x256xf32>
    %341 = arith.select %339, %335, %340 : vector<64x256xi1>, vector<64x256xf32>
    %cst_127 = arith.constant 0.000000e+00 : f32
    %342 = vector.broadcast %cst_127 : f32 to vector<64x15xf32>
    %343 = vector.extract_strided_slice %298 {offsets = [0, 15], sizes = [64, 241], strides = [1, 1]} : vector<64x256xf32> to vector<64x241xf32>
    %344 = tpu.concatenate %343, %342 in 1 : vector<64x241xf32>, vector<64x15xf32> -> vector<64x256xf32>
    %c1_i32_128 = arith.constant 1 : i32
    %345 = vector.broadcast %c1_i32_128 : i32 to vector<1x256xi32>
    %346 = arith.cmpi sge, %302, %345 : vector<1x256xi32>
    %cst_129 = arith.constant 0.000000e+00 : f32
    %347 = vector.shape_cast %346 : vector<1x256xi1> to vector<1x256xi1>
    %348 = vector.broadcast %347 : vector<1x256xi1> to vector<64x256xi1>
    %349 = vector.broadcast %cst_129 : f32 to vector<64x256xf32>
    %350 = arith.select %348, %344, %349 : vector<64x256xi1>, vector<64x256xf32>
    %cst_130 = arith.constant 0.000000e+00 : f32
    %351 = vector.broadcast %cst_130 : f32 to vector<64x16xf32>
    %352 = vector.extract_strided_slice %298 {offsets = [0, 16], sizes = [64, 240], strides = [1, 1]} : vector<64x256xf32> to vector<64x240xf32>
    %353 = tpu.concatenate %352, %351 in 1 : vector<64x240xf32>, vector<64x16xf32> -> vector<64x256xf32>
    %cst_131 = arith.constant 0.000000e+00 : f32
    %354 = vector.broadcast %cst_131 : f32 to vector<64x17xf32>
    %355 = vector.extract_strided_slice %298 {offsets = [0, 17], sizes = [64, 239], strides = [1, 1]} : vector<64x256xf32> to vector<64x239xf32>
    %356 = tpu.concatenate %355, %354 in 1 : vector<64x239xf32>, vector<64x17xf32> -> vector<64x256xf32>
    %c14_i32_132 = arith.constant 14 : i32
    %357 = vector.broadcast %c14_i32_132 : i32 to vector<1x256xi32>
    %358 = arith.cmpi sle, %302, %357 : vector<1x256xi32>
    %cst_133 = arith.constant 0.000000e+00 : f32
    %359 = vector.shape_cast %358 : vector<1x256xi1> to vector<1x256xi1>
    %360 = vector.broadcast %359 : vector<1x256xi1> to vector<64x256xi1>
    %361 = vector.broadcast %cst_133 : f32 to vector<64x256xf32>
    %362 = arith.select %360, %356, %361 : vector<64x256xi1>, vector<64x256xf32>
    %363 = tpu.concatenate %311, %314, %323, %332, %298, %341, %350, %353, %362 in 0 : vector<64x256xf32>, vector<64x256xf32>, vector<64x256xf32>, vector<64x256xf32>, vector<64x256xf32>, vector<64x256xf32>, vector<64x256xf32>, vector<64x256xf32>, vector<64x256xf32> -> vector<576x256xf32>
    %364 = arith.truncf %363 : vector<576x256xf32> to vector<576x256xbf16>
    %c0_134 = arith.constant 0 : index
    %c0_135 = arith.constant 0 : index
    %365 = vector.load %arg10[%c0_134, %c0_135] : memref<32x576xbf16, #tpu.memory_space<vmem>>, vector<32x576xbf16>
    %cst_136 = arith.constant dense<0.000000e+00> : vector<32x256xf32>
    %366 = tpu.matmul %365, %364, %cst_136 {dimension_numbers = #tpu.dot_dimension_numbers<[1], [0], [0], [1], [0, 0, 1, 1], [], []>} : vector<32x576xbf16>, vector<576x256xbf16>, vector<32x256xf32> -> vector<32x256xf32>
    %367 = vector.broadcast %299 : vector<32x1xf32> to vector<32x256xf32>
    %368 = arith.addf %366, %367 : vector<32x256xf32>
    %cst_137 = arith.constant 0.000000e+00 : f32
    %369 = vector.broadcast %cst_137 : f32 to vector<32x256xf32>
    %370 = arith.maximumf %368, %369 : vector<32x256xf32>
    %371 = arith.truncf %370 : vector<32x256xf32> to vector<32x256xbf16>
    %c0_138 = arith.constant 0 : index
    %c0_139 = arith.constant 0 : index
    %372 = vector.load %arg17[%c0_138, %c0_139] : memref<256x1024xbf16, #tpu.memory_space<vmem>>, vector<256x1024xbf16>
    %cst_140 = arith.constant dense<0.000000e+00> : vector<32x1024xf32>
    %373 = tpu.matmul %371, %372, %cst_140 {dimension_numbers = #tpu.dot_dimension_numbers<[1], [0], [0], [1], [0, 0, 1, 1], [], []>} : vector<32x256xbf16>, vector<256x1024xbf16>, vector<32x1024xf32> -> vector<32x1024xf32>
    %374 = tpu.concatenate %373, %72 in 0 : vector<32x1024xf32>, vector<32x1024xf32> -> vector<64x1024xf32>
    %c0_141 = arith.constant 0 : index
    %c0_142 = arith.constant 0 : index
    %375 = vector.load %arg13[%c0_141, %c0_142] : memref<32x1xf32, #tpu.memory_space<vmem>>, vector<32x1xf32>
    %376 = tpu.iota {dimensions = array<i32: 1>} : vector<1x1024xi32>
    %c31_i32_143 = arith.constant 31 : i32
    %377 = vector.broadcast %c31_i32_143 : i32 to vector<1x1024xi32>
    %378 = arith.andi %376, %377 : vector<1x1024xi32>
    %cst_144 = arith.constant 0.000000e+00 : f32
    %379 = vector.broadcast %cst_144 : f32 to vector<64x33xf32>
    %380 = vector.extract_strided_slice %374 {offsets = [0, 0], sizes = [64, 991], strides = [1, 1]} : vector<64x1024xf32> to vector<64x991xf32>
    %381 = tpu.concatenate %379, %380 in 1 : vector<64x33xf32>, vector<64x991xf32> -> vector<64x1024xf32>
    %c1_i32_145 = arith.constant 1 : i32
    %382 = vector.broadcast %c1_i32_145 : i32 to vector<1x1024xi32>
    %383 = arith.cmpi sge, %378, %382 : vector<1x1024xi32>
    %cst_146 = arith.constant 0.000000e+00 : f32
    %384 = vector.shape_cast %383 : vector<1x1024xi1> to vector<1x1024xi1>
    %385 = vector.broadcast %384 : vector<1x1024xi1> to vector<64x1024xi1>
    %386 = vector.broadcast %cst_146 : f32 to vector<64x1024xf32>
    %387 = arith.select %385, %381, %386 : vector<64x1024xi1>, vector<64x1024xf32>
    %cst_147 = arith.constant 0.000000e+00 : f32
    %388 = vector.broadcast %cst_147 : f32 to vector<64x32xf32>
    %389 = vector.extract_strided_slice %374 {offsets = [0, 0], sizes = [64, 992], strides = [1, 1]} : vector<64x1024xf32> to vector<64x992xf32>
    %390 = tpu.concatenate %388, %389 in 1 : vector<64x32xf32>, vector<64x992xf32> -> vector<64x1024xf32>
    %cst_148 = arith.constant 0.000000e+00 : f32
    %391 = vector.broadcast %cst_148 : f32 to vector<64x31xf32>
    %392 = vector.extract_strided_slice %374 {offsets = [0, 0], sizes = [64, 993], strides = [1, 1]} : vector<64x1024xf32> to vector<64x993xf32>
    %393 = tpu.concatenate %391, %392 in 1 : vector<64x31xf32>, vector<64x993xf32> -> vector<64x1024xf32>
    %c30_i32_149 = arith.constant 30 : i32
    %394 = vector.broadcast %c30_i32_149 : i32 to vector<1x1024xi32>
    %395 = arith.cmpi sle, %378, %394 : vector<1x1024xi32>
    %cst_150 = arith.constant 0.000000e+00 : f32
    %396 = vector.shape_cast %395 : vector<1x1024xi1> to vector<1x1024xi1>
    %397 = vector.broadcast %396 : vector<1x1024xi1> to vector<64x1024xi1>
    %398 = vector.broadcast %cst_150 : f32 to vector<64x1024xf32>
    %399 = arith.select %397, %393, %398 : vector<64x1024xi1>, vector<64x1024xf32>
    %cst_151 = arith.constant 0.000000e+00 : f32
    %400 = vector.broadcast %cst_151 : f32 to vector<64x1xf32>
    %401 = vector.extract_strided_slice %374 {offsets = [0, 0], sizes = [64, 1023], strides = [1, 1]} : vector<64x1024xf32> to vector<64x1023xf32>
    %402 = tpu.concatenate %400, %401 in 1 : vector<64x1xf32>, vector<64x1023xf32> -> vector<64x1024xf32>
    %c1_i32_152 = arith.constant 1 : i32
    %403 = vector.broadcast %c1_i32_152 : i32 to vector<1x1024xi32>
    %404 = arith.cmpi sge, %378, %403 : vector<1x1024xi32>
    %cst_153 = arith.constant 0.000000e+00 : f32
    %405 = vector.shape_cast %404 : vector<1x1024xi1> to vector<1x1024xi1>
    %406 = vector.broadcast %405 : vector<1x1024xi1> to vector<64x1024xi1>
    %407 = vector.broadcast %cst_153 : f32 to vector<64x1024xf32>
    %408 = arith.select %406, %402, %407 : vector<64x1024xi1>, vector<64x1024xf32>
    %cst_154 = arith.constant 0.000000e+00 : f32
    %409 = vector.broadcast %cst_154 : f32 to vector<64x1xf32>
    %410 = vector.extract_strided_slice %374 {offsets = [0, 1], sizes = [64, 1023], strides = [1, 1]} : vector<64x1024xf32> to vector<64x1023xf32>
    %411 = tpu.concatenate %410, %409 in 1 : vector<64x1023xf32>, vector<64x1xf32> -> vector<64x1024xf32>
    %c30_i32_155 = arith.constant 30 : i32
    %412 = vector.broadcast %c30_i32_155 : i32 to vector<1x1024xi32>
    %413 = arith.cmpi sle, %378, %412 : vector<1x1024xi32>
    %cst_156 = arith.constant 0.000000e+00 : f32
    %414 = vector.shape_cast %413 : vector<1x1024xi1> to vector<1x1024xi1>
    %415 = vector.broadcast %414 : vector<1x1024xi1> to vector<64x1024xi1>
    %416 = vector.broadcast %cst_156 : f32 to vector<64x1024xf32>
    %417 = arith.select %415, %411, %416 : vector<64x1024xi1>, vector<64x1024xf32>
    %cst_157 = arith.constant 0.000000e+00 : f32
    %418 = vector.broadcast %cst_157 : f32 to vector<64x31xf32>
    %419 = vector.extract_strided_slice %374 {offsets = [0, 31], sizes = [64, 993], strides = [1, 1]} : vector<64x1024xf32> to vector<64x993xf32>
    %420 = tpu.concatenate %419, %418 in 1 : vector<64x993xf32>, vector<64x31xf32> -> vector<64x1024xf32>
    %c1_i32_158 = arith.constant 1 : i32
    %421 = vector.broadcast %c1_i32_158 : i32 to vector<1x1024xi32>
    %422 = arith.cmpi sge, %378, %421 : vector<1x1024xi32>
    %cst_159 = arith.constant 0.000000e+00 : f32
    %423 = vector.shape_cast %422 : vector<1x1024xi1> to vector<1x1024xi1>
    %424 = vector.broadcast %423 : vector<1x1024xi1> to vector<64x1024xi1>
    %425 = vector.broadcast %cst_159 : f32 to vector<64x1024xf32>
    %426 = arith.select %424, %420, %425 : vector<64x1024xi1>, vector<64x1024xf32>
    %cst_160 = arith.constant 0.000000e+00 : f32
    %427 = vector.broadcast %cst_160 : f32 to vector<64x32xf32>
    %428 = vector.extract_strided_slice %374 {offsets = [0, 32], sizes = [64, 992], strides = [1, 1]} : vector<64x1024xf32> to vector<64x992xf32>
    %429 = tpu.concatenate %428, %427 in 1 : vector<64x992xf32>, vector<64x32xf32> -> vector<64x1024xf32>
    %cst_161 = arith.constant 0.000000e+00 : f32
    %430 = vector.broadcast %cst_161 : f32 to vector<64x33xf32>
    %431 = vector.extract_strided_slice %374 {offsets = [0, 33], sizes = [64, 991], strides = [1, 1]} : vector<64x1024xf32> to vector<64x991xf32>
    %432 = tpu.concatenate %431, %430 in 1 : vector<64x991xf32>, vector<64x33xf32> -> vector<64x1024xf32>
    %c30_i32_162 = arith.constant 30 : i32
    %433 = vector.broadcast %c30_i32_162 : i32 to vector<1x1024xi32>
    %434 = arith.cmpi sle, %378, %433 : vector<1x1024xi32>
    %cst_163 = arith.constant 0.000000e+00 : f32
    %435 = vector.shape_cast %434 : vector<1x1024xi1> to vector<1x1024xi1>
    %436 = vector.broadcast %435 : vector<1x1024xi1> to vector<64x1024xi1>
    %437 = vector.broadcast %cst_163 : f32 to vector<64x1024xf32>
    %438 = arith.select %436, %432, %437 : vector<64x1024xi1>, vector<64x1024xf32>
    %439 = tpu.concatenate %387, %390, %399, %408, %374, %417, %426, %429, %438 in 0 : vector<64x1024xf32>, vector<64x1024xf32>, vector<64x1024xf32>, vector<64x1024xf32>, vector<64x1024xf32>, vector<64x1024xf32>, vector<64x1024xf32>, vector<64x1024xf32>, vector<64x1024xf32> -> vector<576x1024xf32>
    %440 = arith.truncf %439 : vector<576x1024xf32> to vector<576x1024xbf16>
    %c0_164 = arith.constant 0 : index
    %c0_165 = arith.constant 0 : index
    %441 = vector.load %arg12[%c0_164, %c0_165] : memref<32x576xbf16, #tpu.memory_space<vmem>>, vector<32x576xbf16>
    %cst_166 = arith.constant dense<0.000000e+00> : vector<32x1024xf32>
    %442 = tpu.matmul %441, %440, %cst_166 {dimension_numbers = #tpu.dot_dimension_numbers<[1], [0], [0], [1], [0, 0, 1, 1], [], []>} : vector<32x576xbf16>, vector<576x1024xbf16>, vector<32x1024xf32> -> vector<32x1024xf32>
    %443 = vector.broadcast %375 : vector<32x1xf32> to vector<32x1024xf32>
    %444 = arith.addf %442, %443 : vector<32x1024xf32>
    %cst_167 = arith.constant 0.000000e+00 : f32
    %445 = vector.broadcast %cst_167 : f32 to vector<32x1024xf32>
    %446 = arith.maximumf %444, %445 : vector<32x1024xf32>
    %c0_168 = arith.constant 0 : index
    %c0_169 = arith.constant 0 : index
    %c0_170 = arith.constant 0 : index
    %447 = vector.load %arg18[%c0_168, %c0_169, %c0_170] : memref<1x32x1024xf32, #tpu.memory_space<vmem>>, vector<1x32x1024xf32>
    %448 = vector.shape_cast %447 : vector<1x32x1024xf32> to vector<32x1024xf32>
    %449 = vector.shape_cast %446 : vector<32x1024xf32> to vector<1x32x1024xf32>
    tpu.vector_store %arg18[%c0_168, %c0_169, %c0_170], %449 {strides = array<i32>} : memref<1x32x1024xf32, #tpu.memory_space<vmem>>, vector<1x32x1024xf32>,
    return
  }
  func.func @transform_0(%arg0: i32) -> (i32, i32, i32) {
    %c0_i32 = arith.constant 0 : i32
    %c0_i32_0 = arith.constant 0 : i32
    %c0_i32_1 = arith.constant 0 : i32
    return %arg0, %c0_i32, %c0_i32_0 : i32, i32, i32
  }
  func.func @transform_1(%arg0: i32) -> (i32, i32) {
    %c0_i32 = arith.constant 0 : i32
    %c0_i32_0 = arith.constant 0 : i32
    %c0_i32_1 = arith.constant 0 : i32
    return %c0_i32, %c0_i32_0 : i32, i32
  }
  func.func @transform_2(%arg0: i32) -> (i32, i32) {
    %c0_i32 = arith.constant 0 : i32
    %c0_i32_0 = arith.constant 0 : i32
    %c0_i32_1 = arith.constant 0 : i32
    return %c0_i32, %c0_i32_0 : i32, i32
  }
  func.func @transform_3(%arg0: i32) -> (i32, i32) {
    %c0_i32 = arith.constant 0 : i32
    %c0_i32_0 = arith.constant 0 : i32
    %c0_i32_1 = arith.constant 0 : i32
    return %c0_i32, %c0_i32_0 : i32, i32
  }
  func.func @transform_4(%arg0: i32) -> (i32, i32) {
    %c0_i32 = arith.constant 0 : i32
    %c0_i32_0 = arith.constant 0 : i32
    %c0_i32_1 = arith.constant 0 : i32
    return %c0_i32, %c0_i32_0 : i32, i32
  }
  func.func @transform_5(%arg0: i32) -> (i32, i32) {
    %c0_i32 = arith.constant 0 : i32
    %c0_i32_0 = arith.constant 0 : i32
    %c0_i32_1 = arith.constant 0 : i32
    return %c0_i32, %c0_i32_0 : i32, i32
  }
  func.func @transform_6(%arg0: i32) -> (i32, i32) {
    %c0_i32 = arith.constant 0 : i32
    %c0_i32_0 = arith.constant 0 : i32
    %c0_i32_1 = arith.constant 0 : i32
    return %c0_i32, %c0_i32_0 : i32, i32
  }
  func.func @transform_7(%arg0: i32) -> (i32, i32) {
    %c0_i32 = arith.constant 0 : i32
    %c0_i32_0 = arith.constant 0 : i32
    %c0_i32_1 = arith.constant 0 : i32
    return %c0_i32, %c0_i32_0 : i32, i32
  }
  func.func @transform_8(%arg0: i32) -> (i32, i32) {
    %c0_i32 = arith.constant 0 : i32
    %c0_i32_0 = arith.constant 0 : i32
    %c0_i32_1 = arith.constant 0 : i32
    return %c0_i32, %c0_i32_0 : i32, i32
  }
  func.func @transform_9(%arg0: i32) -> (i32, i32) {
    %c0_i32 = arith.constant 0 : i32
    %c0_i32_0 = arith.constant 0 : i32
    %c0_i32_1 = arith.constant 0 : i32
    return %c0_i32, %c0_i32_0 : i32, i32
  }
  func.func @transform_10(%arg0: i32) -> (i32, i32) {
    %c0_i32 = arith.constant 0 : i32
    %c0_i32_0 = arith.constant 0 : i32
    %c0_i32_1 = arith.constant 0 : i32
    return %c0_i32, %c0_i32_0 : i32, i32
  }
  func.func @transform_11(%arg0: i32) -> (i32, i32) {
    %c0_i32 = arith.constant 0 : i32
    %c0_i32_0 = arith.constant 0 : i32
    %c0_i32_1 = arith.constant 0 : i32
    return %c0_i32, %c0_i32_0 : i32, i32
  }
  func.func @transform_12(%arg0: i32) -> (i32, i32) {
    %c0_i32 = arith.constant 0 : i32
    %c0_i32_0 = arith.constant 0 : i32
    %c0_i32_1 = arith.constant 0 : i32
    return %c0_i32, %c0_i32_0 : i32, i32
  }
  func.func @transform_13(%arg0: i32) -> (i32, i32) {
    %c0_i32 = arith.constant 0 : i32
    %c0_i32_0 = arith.constant 0 : i32
    %c0_i32_1 = arith.constant 0 : i32
    return %c0_i32, %c0_i32_0 : i32, i32
  }
  func.func @transform_14(%arg0: i32) -> (i32, i32) {
    %c0_i32 = arith.constant 0 : i32
    %c0_i32_0 = arith.constant 0 : i32
    %c0_i32_1 = arith.constant 0 : i32
    return %c0_i32, %c0_i32_0 : i32, i32
  }
  func.func @transform_15(%arg0: i32) -> (i32, i32) {
    %c0_i32 = arith.constant 0 : i32
    %c0_i32_0 = arith.constant 0 : i32
    %c0_i32_1 = arith.constant 0 : i32
    return %c0_i32, %c0_i32_0 : i32, i32
  }
  func.func @transform_16(%arg0: i32) -> (i32, i32) {
    %c0_i32 = arith.constant 0 : i32
    %c0_i32_0 = arith.constant 0 : i32
    %c0_i32_1 = arith.constant 0 : i32
    return %c0_i32, %c0_i32_0 : i32, i32
  }
  func.func @transform_17(%arg0: i32) -> (i32, i32, i32) {
    %c0_i32 = arith.constant 0 : i32
    %c0_i32_0 = arith.constant 0 : i32
    %c0_i32_1 = arith.constant 0 : i32
    return %arg0, %c0_i32, %c0_i32_0 : i32, i32, i32
  }
}

</mosaic_0001>

<llo_original>
// kernel: encoder_forward.1
$region0: #{encoder_forward.1}
  #allocation0 [shape = 'u32[]', space=smem, size = 0x4, offset = 0x4, fixed_abs, tag = 'smem constant byte address 0x4 - core index']
  #allocation1 [shape = 'u32[144,128]{1,0:T(1,128)}', space=vmem, size = 0x12000, scoped, tag = 'internal scratch']
  %s0 = inlined_call_operand.vmem [shape: f32[2,8,1024], index: 0, kind: input, shape index: {}]
  %s1 = inlined_call_operand.vmem [shape: f32[32,1024], index: 1, kind: input, shape index: {}]
  %s2 = inlined_call_operand.vmem [shape: bf16[32,72], index: 2, kind: input, shape index: {}]
  %s3 = inlined_call_operand.vmem [shape: bf16[32,288], index: 3, kind: input, shape index: {}]
  %s4 = inlined_call_operand.vmem [shape: f32[32,1], index: 4, kind: input, shape index: {}]
  %s5 = inlined_call_operand.vmem [shape: bf16[32,288], index: 5, kind: input, shape index: {}]
  %s6 = inlined_call_operand.vmem [shape: f32[32,1], index: 6, kind: input, shape index: {}]
  %s7 = inlined_call_operand.vmem [shape: bf16[32,288], index: 7, kind: input, shape index: {}]
  %s8 = inlined_call_operand.vmem [shape: f32[32,1], index: 8, kind: input, shape index: {}]
  %s9 = inlined_call_operand.vmem [shape: bf16[32,576], index: 9, kind: input, shape index: {}]
  %s10 = inlined_call_operand.vmem [shape: f32[32,1], index: 10, kind: input, shape index: {}]
  %s11 = inlined_call_operand.vmem [shape: bf16[32,576], index: 11, kind: input, shape index: {}]
  %s12 = inlined_call_operand.vmem [shape: f32[32,1], index: 12, kind: input, shape index: {}]
  %s13 = inlined_call_operand.vmem [shape: bf16[1024,256], index: 13, kind: input, shape index: {}]
  %s14 = inlined_call_operand.vmem [shape: bf16[256,64], index: 14, kind: input, shape index: {}]
  %s15 = inlined_call_operand.vmem [shape: bf16[64,256], index: 15, kind: input, shape index: {}]
  %s16 = inlined_call_operand.vmem [shape: bf16[256,1024], index: 16, kind: input, shape index: {}]
  %s17 = inlined_call_operand.vmem [shape: f32[2,32,1024], index: 17, kind: output, shape index: {}]
  %s18 = sld [smem:[#allocation0]]
  $region101: #{encoder_forward.1} parent=0
    _
  %s20 = ssub.s32 1, %s18
  %s21 = scalar_select 0, %s20, %s18
  loop: start=0, step=1, limit=4
  $region2: #{encoder_forward.1} parent=0 // loop_pre_header
    _
  $region3: #{encoder_forward.1} parent=0 // loop_header
    %s23 = sphi 0, %s27
    %p24 = scmp.ge.s32.totalorder %s23, 4
    %s33 = sphi 0, %s35
    %s36 = sphi 0, %s33
    %s37 = sphi 0, %s36
    %s53 = sphi 0, %s37
    %s57 = sphi 0, %s57
    %s59 = sphi 0, %s57
    %s60 = sphi 0, %s59
    %s74 = sphi 0, %s60
    %s78 = sphi 0, %s78
    %s80 = sphi 0, %s78
    %s81 = sphi 0, %s80
    %s95 = sphi 0, %s81
    %s99 = sphi 0, %s99
    %s101 = sphi 0, %s99
    %s102 = sphi 0, %s101
    %s116 = sphi 0, %s102
    %s120 = sphi 0, %s120
    %s122 = sphi 0, %s120
    %s123 = sphi 0, %s122
    %s137 = sphi 0, %s123
    %s141 = sphi 0, %s141
    %s143 = sphi 0, %s141
    %s144 = sphi 0, %s143
    %s158 = sphi 0, %s144
    %s162 = sphi 0, %s162
    %s164 = sphi 0, %s162
    %s165 = sphi 0, %s164
    %s179 = sphi 0, %s165
    %s183 = sphi 0, %s183
    %s185 = sphi 0, %s183
    %s186 = sphi 0, %s185
    %s200 = sphi 0, %s186
    %s204 = sphi 0, %s204
    %s206 = sphi 0, %s204
    %s207 = sphi 0, %s206
    %s221 = sphi 0, %s207
    %s225 = sphi 0, %s225
    %s227 = sphi 0, %s225
    %s228 = sphi 0, %s227
    %s242 = sphi 0, %s228
    %s246 = sphi 0, %s246
    %s248 = sphi 0, %s246
    %s249 = sphi 0, %s248
    %s263 = sphi 0, %s249
    %s267 = sphi 0, %s267
    %s269 = sphi 0, %s267
    %s270 = sphi 0, %s269
    %s284 = sphi 0, %s270
    %s288 = sphi 0, %s288
    %s290 = sphi 0, %s288
    %s291 = sphi 0, %s290
    %s305 = sphi 0, %s291
    %s309 = sphi 0, %s309
    %s311 = sphi 0, %s309
    %s312 = sphi 0, %s311
    %s326 = sphi 0, %s312
    %s330 = sphi 0, %s330
    %s332 = sphi 0, %s330
    %s333 = sphi 0, %s332
    %s347 = sphi 0, %s333
    %s351 = sphi 0, %s351
    %s353 = sphi 0, %s351
    %s354 = sphi 0, %s353
    %s368 = sphi 0, %s354
    %s372 = sphi 0, %s372
    %s374 = sphi 0, %s372
    %s375 = sphi 0, %s374
    %s389 = sphi 0, %s375
    %s395 = sphi 0, %s397
    %s398 = sphi 0, %s395
    %s399 = sphi 0, %s398
    %s415 = sphi 0, %s399
  $region4: #{encoder_forward.1} parent=0 // loop_header_branch
    %26 = sbr.rel (%p24) target = $region8
  $region5: #{encoder_forward.1} parent=0 // loop_body
    %s28 = ssub.s32 %s23, 1
    %s29 = ssub.s32 %s23, 2
    %s30 = sadd.s32 %s23, 1
    %s31 = ssub.s32 %s23, %s30
    %p32 = scmp.eq.s32.totalorder %s31, 0
    %s34 = sadd.s32 %s33, 1
    %s35 = scalar_select %p32, %s33, %s34
    %p38 = pneg %p32
    %p39 = scmp.eq.s32.totalorder %s23, 1
    %p40 = por %p38, %p39
    %p41 = scmp.ne.s32.totalorder %s33, %s36
    %p42 = scmp.eq.s32.totalorder %s23, 0
    %p43 = por %p41, %p42
    %p44 = scmp.ne.s32.totalorder %s33, %s36
    %p45 = scmp.eq.s32.totalorder %s28, 1
    %p46 = por %p44, %p45
    %p47 = scmp.ne.s32.totalorder %s36, %s37
    %p48 = scmp.eq.s32.totalorder %s28, 0
    %p49 = por %p47, %p48
    %p50 = scmp.ne.s32.totalorder %s36, %s37
    %p51 = scmp.eq.s32.totalorder %s29, 1
    %p52 = por %p50, %p51
    %p54 = scmp.ne.s32.totalorder %s37, %s53
    %p55 = scmp.eq.s32.totalorder %s29, 0
    %p56 = por %p54, %p55
    %s58 = sadd.s32 %s57, 1
    %p61 = scmp.eq.s32.totalorder %s23, 1
    %p62 = scmp.ne.s32.totalorder %s57, %s59
    %p63 = scmp.eq.s32.totalorder %s23, 0
    %p64 = por %p62, %p63
    %p65 = scmp.ne.s32.totalorder %s57, %s59
    %p66 = scmp.eq.s32.totalorder %s28, 1
    %p67 = por %p65, %p66
    %p68 = scmp.ne.s32.totalorder %s59, %s60
    %p69 = scmp.eq.s32.totalorder %s28, 0
    %p70 = por %p68, %p69
    %p71 = scmp.ne.s32.totalorder %s59, %s60
    %p72 = scmp.eq.s32.totalorder %s29, 1
    %p73 = por %p71, %p72
    %p75 = scmp.ne.s32.totalorder %s60, %s74
    %p76 = scmp.eq.s32.totalorder %s29, 0
    %p77 = por %p75, %p76
    %s79 = sadd.s32 %s78, 1
    %p82 = scmp.eq.s32.totalorder %s23, 1
    %p83 = scmp.ne.s32.totalorder %s78, %s80
    %p84 = scmp.eq.s32.totalorder %s23, 0
    %p85 = por %p83, %p84
    %p86 = scmp.ne.s32.totalorder %s78, %s80
    %p87 = scmp.eq.s32.totalorder %s28, 1
    %p88 = por %p86, %p87
    %p89 = scmp.ne.s32.totalorder %s80, %s81
    %p90 = scmp.eq.s32.totalorder %s28, 0
    %p91 = por %p89, %p90
    %p92 = scmp.ne.s32.totalorder %s80, %s81
    %p93 = scmp.eq.s32.totalorder %s29, 1
    %p94 = por %p92, %p93
    %p96 = scmp.ne.s32.totalorder %s81, %s95
    %p97 = scmp.eq.s32.totalorder %s29, 0
    %p98 = por %p96, %p97
    %s100 = sadd.s32 %s99, 1
    %p103 = scmp.eq.s32.totalorder %s23, 1
    %p104 = scmp.ne.s32.totalorder %s99, %s101
    %p105 = scmp.eq.s32.totalorder %s23, 0
    %p106 = por %p104, %p105
    %p107 = scmp.ne.s32.totalorder %s99, %s101
    %p108 = scmp.eq.s32.totalorder %s28, 1
    %p109 = por %p107, %p108
    %p110 = scmp.ne.s32.totalorder %s101, %s102
    %p111 = scmp.eq.s32.totalorder %s28, 0
    %p112 = por %p110, %p111
    %p113 = scmp.ne.s32.totalorder %s101, %s102
    %p114 = scmp.eq.s32.totalorder %s29, 1
    %p115 = por %p113, %p114
    %p117 = scmp.ne.s32.totalorder %s102, %s116
    %p118 = scmp.eq.s32.totalorder %s29, 0
    %p119 = por %p117, %p118
    %s121 = sadd.s32 %s120, 1
    %p124 = scmp.eq.s32.totalorder %s23, 1
    %p125 = scmp.ne.s32.totalorder %s120, %s122
    %p126 = scmp.eq.s32.totalorder %s23, 0
    %p127 = por %p125, %p126
    %p128 = scmp.ne.s32.totalorder %s120, %s122
    %p129 = scmp.eq.s32.totalorder %s28, 1
    %p130 = por %p128, %p129
    %p131 = scmp.ne.s32.totalorder %s122, %s123
    %p132 = scmp.eq.s32.totalorder %s28, 0
    %p133 = por %p131, %p132
    %p134 = scmp.ne.s32.totalorder %s122, %s123
    %p135 = scmp.eq.s32.totalorder %s29, 1
    %p136 = por %p134, %p135
    %p138 = scmp.ne.s32.totalorder %s123, %s137
    %p139 = scmp.eq.s32.totalorder %s29, 0
    %p140 = por %p138, %p139
    %s142 = sadd.s32 %s141, 1
    %p145 = scmp.eq.s32.totalorder %s23, 1
    %p146 = scmp.ne.s32.totalorder %s141, %s143
    %p147 = scmp.eq.s32.totalorder %s23, 0
    %p148 = por %p146, %p147
    %p149 = scmp.ne.s32.totalorder %s141, %s143
    %p150 = scmp.eq.s32.totalorder %s28, 1
    %p151 = por %p149, %p150
    %p152 = scmp.ne.s32.totalorder %s143, %s144
    %p153 = scmp.eq.s32.totalorder %s28, 0
    %p154 = por %p152, %p153
    %p155 = scmp.ne.s32.totalorder %s143, %s144
    %p156 = scmp.eq.s32.totalorder %s29, 1
    %p157 = por %p155, %p156
    %p159 = scmp.ne.s32.totalorder %s144, %s158
    %p160 = scmp.eq.s32.totalorder %s29, 0
    %p161 = por %p159, %p160
    %s163 = sadd.s32 %s162, 1
    %p166 = scmp.eq.s32.totalorder %s23, 1
    %p167 = scmp.ne.s32.totalorder %s162, %s164
    %p168 = scmp.eq.s32.totalorder %s23, 0
    %p169 = por %p167, %p168
    %p170 = scmp.ne.s32.totalorder %s162, %s164
    %p171 = scmp.eq.s32.totalorder %s28, 1
    %p172 = por %p170, %p171
    %p173 = scmp.ne.s32.totalorder %s164, %s165
    %p174 = scmp.eq.s32.totalorder %s28, 0
    %p175 = por %p173, %p174
    %p176 = scmp.ne.s32.totalorder %s164, %s165
    %p177 = scmp.eq.s32.totalorder %s29, 1
    %p178 = por %p176, %p177
    %p180 = scmp.ne.s32.totalorder %s165, %s179
    %p181 = scmp.eq.s32.totalorder %s29, 0
    %p182 = por %p180, %p181
    %s184 = sadd.s32 %s183, 1
    %p187 = scmp.eq.s32.totalorder %s23, 1
    %p188 = scmp.ne.s32.totalorder %s183, %s185
    %p189 = scmp.eq.s32.totalorder %s23, 0
    %p190 = por %p188, %p189
    %p191 = scmp.ne.s32.totalorder %s183, %s185
    %p192 = scmp.eq.s32.totalorder %s28, 1
    %p193 = por %p191, %p192
    %p194 = scmp.ne.s32.totalorder %s185, %s186
    %p195 = scmp.eq.s32.totalorder %s28, 0
    %p196 = por %p194, %p195
    %p197 = scmp.ne.s32.totalorder %s185, %s186
    %p198 = scmp.eq.s32.totalorder %s29, 1
    %p199 = por %p197, %p198
    %p201 = scmp.ne.s32.totalorder %s186, %s200
    %p202 = scmp.eq.s32.totalorder %s29, 0
    %p203 = por %p201, %p202
    %s205 = sadd.s32 %s204, 1
    %p208 = scmp.eq.s32.totalorder %s23, 1
    %p209 = scmp.ne.s32.totalorder %s204, %s206
    %p210 = scmp.eq.s32.totalorder %s23, 0
    %p211 = por %p209, %p210
    %p212 = scmp.ne.s32.totalorder %s204, %s206
    %p213 = scmp.eq.s32.totalorder %s28, 1
    %p214 = por %p212, %p213
    %p215 = scmp.ne.s32.totalorder %s206, %s207
    %p216 = scmp.eq.s32.totalorder %s28, 0
    %p217 = por %p215, %p216
    %p218 = scmp.ne.s32.totalorder %s206, %s207
    %p219 = scmp.eq.s32.totalorder %s29, 1
    %p220 = por %p218, %p219
    %p222 = scmp.ne.s32.totalorder %s207, %s221
    %p223 = scmp.eq.s32.totalorder %s29, 0
    %p224 = por %p222, %p223
    %s226 = sadd.s32 %s225, 1
    %p229 = scmp.eq.s32.totalorder %s23, 1
    %p230 = scmp.ne.s32.totalorder %s225, %s227
    %p231 = scmp.eq.s32.totalorder %s23, 0
    %p232 = por %p230, %p231
    %p233 = scmp.ne.s32.totalorder %s225, %s227
    %p234 = scmp.eq.s32.totalorder %s28, 1
    %p235 = por %p233, %p234
    %p236 = scmp.ne.s32.totalorder %s227, %s228
    %p237 = scmp.eq.s32.totalorder %s28, 0
    %p238 = por %p236, %p237
    %p239 = scmp.ne.s32.totalorder %s227, %s228
    %p240 = scmp.eq.s32.totalorder %s29, 1
    %p241 = por %p239, %p240
    %p243 = scmp.ne.s32.totalorder %s228, %s242
    %p244 = scmp.eq.s32.totalorder %s29, 0
    %p245 = por %p243, %p244
    %s247 = sadd.s32 %s246, 1
    %p250 = scmp.eq.s32.totalorder %s23, 1
    %p251 = scmp.ne.s32.totalorder %s246, %s248
    %p252 = scmp.eq.s32.totalorder %s23, 0
    %p253 = por %p251, %p252
    %p254 = scmp.ne.s32.totalorder %s246, %s248
    %p255 = scmp.eq.s32.totalorder %s28, 1
    %p256 = por %p254, %p255
    %p257 = scmp.ne.s32.totalorder %s248, %s249
    %p258 = scmp.eq.s32.totalorder %s28, 0
    %p259 = por %p257, %p258
    %p260 = scmp.ne.s32.totalorder %s248, %s249
    %p261 = scmp.eq.s32.totalorder %s29, 1
    %p262 = por %p260, %p261
    %p264 = scmp.ne.s32.totalorder %s249, %s263
    %p265 = scmp.eq.s32.totalorder %s29, 0
    %p266 = por %p264, %p265
    %s268 = sadd.s32 %s267, 1
    %p271 = scmp.eq.s32.totalorder %s23, 1
    %p272 = scmp.ne.s32.totalorder %s267, %s269
    %p273 = scmp.eq.s32.totalorder %s23, 0
    %p274 = por %p272, %p273
    %p275 = scmp.ne.s32.totalorder %s267, %s269
    %p276 = scmp.eq.s32.totalorder %s28, 1
    %p277 = por %p275, %p276
    %p278 = scmp.ne.s32.totalorder %s269, %s270
    %p279 = scmp.eq.s32.totalorder %s28, 0
    %p280 = por %p278, %p279
    %p281 = scmp.ne.s32.totalorder %s269, %s270
    %p282 = scmp.eq.s32.totalorder %s29, 1
    %p283 = por %p281, %p282
    %p285 = scmp.ne.s32.totalorder %s270, %s284
    %p286 = scmp.eq.s32.totalorder %s29, 0
    %p287 = por %p285, %p286
    %s289 = sadd.s32 %s288, 1
    %p292 = scmp.eq.s32.totalorder %s23, 1
    %p293 = scmp.ne.s32.totalorder %s288, %s290
    %p294 = scmp.eq.s32.totalorder %s23, 0
    %p295 = por %p293, %p294
    %p296 = scmp.ne.s32.totalorder %s288, %s290
    %p297 = scmp.eq.s32.totalorder %s28, 1
    %p298 = por %p296, %p297
    %p299 = scmp.ne.s32.totalorder %s290, %s291
    %p300 = scmp.eq.s32.totalorder %s28, 0
    %p301 = por %p299, %p300
    %p302 = scmp.ne.s32.totalorder %s290, %s291
    %p303 = scmp.eq.s32.totalorder %s29, 1
    %p304 = por %p302, %p303
    %p306 = scmp.ne.s32.totalorder %s291, %s305
    %p307 = scmp.eq.s32.totalorder %s29, 0
    %p308 = por %p306, %p307
    %s310 = sadd.s32 %s309, 1
    %p313 = scmp.eq.s32.totalorder %s23, 1
    %p314 = scmp.ne.s32.totalorder %s309, %s311
    %p315 = scmp.eq.s32.totalorder %s23, 0
    %p316 = por %p314, %p315
    %p317 = scmp.ne.s32.totalorder %s309, %s311
    %p318 = scmp.eq.s32.totalorder %s28, 1
    %p319 = por %p317, %p318
    %p320 = scmp.ne.s32.totalorder %s311, %s312
    %p321 = scmp.eq.s32.totalorder %s28, 0
    %p322 = por %p320, %p321
    %p323 = scmp.ne.s32.totalorder %s311, %s312
    %p324 = scmp.eq.s32.totalorder %s29, 1
    %p325 = por %p323, %p324
    %p327 = scmp.ne.s32.totalorder %s312, %s326
    %p328 = scmp.eq.s32.totalorder %s29, 0
    %p329 = por %p327, %p328
    %s331 = sadd.s32 %s330, 1
    %p334 = scmp.eq.s32.totalorder %s23, 1
    %p335 = scmp.ne.s32.totalorder %s330, %s332
    %p336 = scmp.eq.s32.totalorder %s23, 0
    %p337 = por %p335, %p336
    %p338 = scmp.ne.s32.totalorder %s330, %s332
    %p339 = scmp.eq.s32.totalorder %s28, 1
    %p340 = por %p338, %p339
    %p341 = scmp.ne.s32.totalorder %s332, %s333
    %p342 = scmp.eq.s32.totalorder %s28, 0
    %p343 = por %p341, %p342
    %p344 = scmp.ne.s32.totalorder %s332, %s333
    %p345 = scmp.eq.s32.totalorder %s29, 1
    %p346 = por %p344, %p345
    %p348 = scmp.ne.s32.totalorder %s333, %s347
    %p349 = scmp.eq.s32.totalorder %s29, 0
    %p350 = por %p348, %p349
    %s352 = sadd.s32 %s351, 1
    %p355 = scmp.eq.s32.totalorder %s23, 1
    %p356 = scmp.ne.s32.totalorder %s351, %s353
    %p357 = scmp.eq.s32.totalorder %s23, 0
    %p358 = por %p356, %p357
    %p359 = scmp.ne.s32.totalorder %s351, %s353
    %p360 = scmp.eq.s32.totalorder %s28, 1
    %p361 = por %p359, %p360
    %p362 = scmp.ne.s32.totalorder %s353, %s354
    %p363 = scmp.eq.s32.totalorder %s28, 0
    %p364 = por %p362, %p363
    %p365 = scmp.ne.s32.totalorder %s353, %s354
    %p366 = scmp.eq.s32.totalorder %s29, 1
    %p367 = por %p365, %p366
    %p369 = scmp.ne.s32.totalorder %s354, %s368
    %p370 = scmp.eq.s32.totalorder %s29, 0
    %p371 = por %p369, %p370
    %s373 = sadd.s32 %s372, 1
    %p376 = scmp.eq.s32.totalorder %s23, 1
    %p377 = scmp.ne.s32.totalorder %s372, %s374
    %p378 = scmp.eq.s32.totalorder %s23, 0
    %p379 = por %p377, %p378
    %p380 = scmp.ne.s32.totalorder %s372, %s374
    %p381 = scmp.eq.s32.totalorder %s28, 1
    %p382 = por %p380, %p381
    %p383 = scmp.ne.s32.totalorder %s374, %s375
    %p384 = scmp.eq.s32.totalorder %s28, 0
    %p385 = por %p383, %p384
    %p386 = scmp.ne.s32.totalorder %s374, %s375
    %p387 = scmp.eq.s32.totalorder %s29, 1
    %p388 = por %p386, %p387
    %p390 = scmp.ne.s32.totalorder %s375, %s389
    %p391 = scmp.eq.s32.totalorder %s29, 0
    %p392 = por %p390, %p391
    %s393 = ssub.s32 %s23, %s30
    %p394 = scmp.eq.s32.totalorder %s393, 0
    %s396 = sadd.s32 %s395, 1
    %s397 = scalar_select %p394, %s395, %s396
    %p400 = pneg %p394
    %p401 = scmp.eq.s32.totalorder %s23, 1
    %p402 = por %p400, %p401
    %p403 = scmp.ne.s32.totalorder %s395, %s398
    %p404 = scmp.eq.s32.totalorder %s23, 0
    %p405 = por %p403, %p404
    %p406 = scmp.ne.s32.totalorder %s395, %s398
    %p407 = scmp.eq.s32.totalorder %s28, 1
    %p408 = por %p406, %p407
    %p409 = scmp.ne.s32.totalorder %s398, %s399
    %p410 = scmp.eq.s32.totalorder %s28, 0
    %p411 = por %p409, %p410
    %p412 = scmp.ne.s32.totalorder %s398, %s399
    %p413 = scmp.eq.s32.totalorder %s29, 1
    %p414 = por %p412, %p413
    %p416 = scmp.ne.s32.totalorder %s399, %s415
    %p417 = scmp.eq.s32.totalorder %s29, 0
    %p418 = por %p416, %p417
    %p419 = scmp.le.s32.totalorder 1, %s23
    %p420 = scmp.lt.s32.totalorder %s23, 3
    %p421 = pnand %p419, %p420
    %p422 = pneg %p421
    // Predicated region
    $region9: #{encoder_forward.1} parent=5 // pred_check
      _
    $region10: #{encoder_forward.1} parent=5 // pred_check_branch
      %424 = sbr.rel (%p421) target = $region12
    $region11: #{encoder_forward.1} parent=5 // pred_region
      %s425 = ssub.s32 %s23, 1
      // Predicated region
      $region13: #{encoder_forward.1} parent=11 // pred_check
        %p426 = pneg %p70
      $region14: #{encoder_forward.1} parent=11 // pred_check_branch
        %428 = sbr.rel (%p426) target = $region16
      $region15: #{encoder_forward.1} parent=11 // pred_region
        _
      $region16: #{encoder_forward.1} parent=11 // pred_fallthru
        _
      // Predicated region
      $region17: #{encoder_forward.1} parent=11 // pred_check
        %p429 = pneg %p91
      $region18: #{encoder_forward.1} parent=11 // pred_check_branch
        %431 = sbr.rel (%p429) target = $region20
      $region19: #{encoder_forward.1} parent=11 // pred_region
        _
      $region20: #{encoder_forward.1} parent=11 // pred_fallthru
        _
      // Predicated region
      $region21: #{encoder_forward.1} parent=11 // pred_check
        %p432 = pneg %p112
      $region22: #{encoder_forward.1} parent=11 // pred_check_branch
        %434 = sbr.rel (%p432) target = $region24
      $region23: #{encoder_forward.1} parent=11 // pred_region
        _
      $region24: #{encoder_forward.1} parent=11 // pred_fallthru
        _
      // Predicated region
      $region25: #{encoder_forward.1} parent=11 // pred_check
        %p435 = pneg %p133
      $region26: #{encoder_forward.1} parent=11 // pred_check_branch
        %437 = sbr.rel (%p435) target = $region28
      $region27: #{encoder_forward.1} parent=11 // pred_region
        _
      $region28: #{encoder_forward.1} parent=11 // pred_fallthru
        _
      // Predicated region
      $region29: #{encoder_forward.1} parent=11 // pred_check
        %p438 = pneg %p154
      $region30: #{encoder_forward.1} parent=11 // pred_check_branch
        %440 = sbr.rel (%p438) target = $region32
      $region31: #{encoder_forward.1} parent=11 // pred_region
        _
      $region32: #{encoder_forward.1} parent=11 // pred_fallthru
        _
      // Predicated region
      $region33: #{encoder_forward.1} parent=11 // pred_check
        %p441 = pneg %p175
      $region34: #{encoder_forward.1} parent=11 // pred_check_branch
        %443 = sbr.rel (%p441) target = $region36
      $region35: #{encoder_forward.1} parent=11 // pred_region
        _
      $region36: #{encoder_forward.1} parent=11 // pred_fallthru
        _
      // Predicated region
      $region37: #{encoder_forward.1} parent=11 // pred_check
        %p444 = pneg %p196
      $region38: #{encoder_forward.1} parent=11 // pred_check_branch
        %446 = sbr.rel (%p444) target = $region40
      $region39: #{encoder_forward.1} parent=11 // pred_region
        _
      $region40: #{encoder_forward.1} parent=11 // pred_fallthru
        _
      // Predicated region
      $region41: #{encoder_forward.1} parent=11 // pred_check
        %p447 = pneg %p217
      $region42: #{encoder_forward.1} parent=11 // pred_check_branch
        %449 = sbr.rel (%p447) target = $region44
      $region43: #{encoder_forward.1} parent=11 // pred_region
        _
      $region44: #{encoder_forward.1} parent=11 // pred_fallthru
        _
      // Predicated region
      $region45: #{encoder_forward.1} parent=11 // pred_check
        %p450 = pneg %p238
      $region46: #{encoder_forward.1} parent=11 // pred_check_branch
        %452 = sbr.rel (%p450) target = $region48
      $region47: #{encoder_forward.1} parent=11 // pred_region
        _
      $region48: #{encoder_forward.1} parent=11 // pred_fallthru
        _
      // Predicated region
      $region49: #{encoder_forward.1} parent=11 // pred_check
        %p453 = pneg %p259
      $region50: #{encoder_forward.1} parent=11 // pred_check_branch
        %455 = sbr.rel (%p453) target = $region52
      $region51: #{encoder_forward.1} parent=11 // pred_region
        _
      $region52: #{encoder_forward.1} parent=11 // pred_fallthru
        _
      // Predicated region
      $region53: #{encoder_forward.1} parent=11 // pred_check
        %p456 = pneg %p280
      $region54: #{encoder_forward.1} parent=11 // pred_check_branch
        %458 = sbr.rel (%p456) target = $region56
      $region55: #{encoder_forward.1} parent=11 // pred_region
        _
      $region56: #{encoder_forward.1} parent=11 // pred_fallthru
        _
      // Predicated region
      $region57: #{encoder_forward.1} parent=11 // pred_check
        %p459 = pneg %p301
      $region58: #{encoder_forward.1} parent=11 // pred_check_branch
        %461 = sbr.rel (%p459) target = $region60
      $region59: #{encoder_forward.1} parent=11 // pred_region
        _
      $region60: #{encoder_forward.1} parent=11 // pred_fallthru
        _
      // Predicated region
      $region61: #{encoder_forward.1} parent=11 // pred_check
        %p462 = pneg %p322
      $region62: #{encoder_forward.1} parent=11 // pred_check_branch
        %464 = sbr.rel (%p462) target = $region64
      $region63: #{encoder_forward.1} parent=11 // pred_region
        _
      $region64: #{encoder_forward.1} parent=11 // pred_fallthru
        _
      // Predicated region
      $region65: #{encoder_forward.1} parent=11 // pred_check
        %p465 = pneg %p343
      $region66: #{encoder_forward.1} parent=11 // pred_check_branch
        %467 = sbr.rel (%p465) target = $region68
      $region67: #{encoder_forward.1} parent=11 // pred_region
        _
      $region68: #{encoder_forward.1} parent=11 // pred_fallthru
        _
      // Predicated region
      $region69: #{encoder_forward.1} parent=11 // pred_check
        %p468 = pneg %p364
      $region70: #{encoder_forward.1} parent=11 // pred_check_branch
        %470 = sbr.rel (%p468) target = $region72
      $region71: #{encoder_forward.1} parent=11 // pred_region
        _
      $region72: #{encoder_forward.1} parent=11 // pred_fallthru
        _
      // Predicated region
      $region73: #{encoder_forward.1} parent=11 // pred_check
        %p471 = pneg %p385
      $region74: #{encoder_forward.1} parent=11 // pred_check_branch
        %473 = sbr.rel (%p471) target = $region76
      $region75: #{encoder_forward.1} parent=11 // pred_region
        _
      $region76: #{encoder_forward.1} parent=11 // pred_fallthru
        _
    $region12: #{encoder_forward.1} parent=5 // pred_fallthru
      _
    %p474 = scmp.lt.s32.totalorder %s23, 2
    // Predicated region
    $region77: #{encoder_forward.1} parent=5 // pred_check
      %p475 = pneg %p474
    $region78: #{encoder_forward.1} parent=5 // pred_check_branch
      %477 = sbr.rel (%p475) target = $region80
    $region79: #{encoder_forward.1} parent=5 // pred_region
      // Predicated region
      $region81: #{encoder_forward.1} parent=79 // pred_check
        %p478 = pneg %p43
      $region82: #{encoder_forward.1} parent=79 // pred_check_branch
        %480 = sbr.rel (%p478) target = $region84
      $region83: #{encoder_forward.1} parent=79 // pred_region
        %p481 = scmp.lt.s32.totalorder %s23, 1
        %s482 = scalar_select %p481, %s23, 1
        %s483 = smul.addr %s482, 8
        %s484 = smul.addr %s483, 8
        %s485 = scalar_lea.vmem %s0, %s484
      $region84: #{encoder_forward.1} parent=79 // pred_fallthru
        _
    $region80: #{encoder_forward.1} parent=5 // pred_fallthru
      _
    %p486 = scmp.le.s32.totalorder 1, %s23
    %p487 = scmp.lt.s32.totalorder %s23, 3
    %p488 = pnand %p486, %p487
    %p489 = pneg %p488
    // Predicated region
    $region85: #{encoder_forward.1} parent=5 // pred_check
      _
    $region86: #{encoder_forward.1} parent=5 // pred_check_branch
      %491 = sbr.rel (%p488) target = $region88
    $region87: #{encoder_forward.1} parent=5 // pred_region
      %s492 = ssub.s32 %s23, 1
      %p493 = scmp.lt.s32.totalorder %s28, 1
      %s494 = scalar_select %p493, %s28, 1
      %s495 = smul.addr %s494, 8
      %s496 = smul.addr %s495, 8
      %s497 = scalar_lea.vmem %s0, %s496
      %p498 = pneg %p49
      %p499 = pneg %p46
      %p500 = pneg %p70
      %p501 = pneg %p67
      %p502 = pneg %p91
      %p503 = pneg %p88
      %p504 = pneg %p112
      %p505 = pneg %p109
      %p506 = pneg %p133
      %p507 = pneg %p130
      %p508 = pneg %p154
      %p509 = pneg %p151
      %p510 = pneg %p175
      %p511 = pneg %p172
      %p512 = pneg %p196
      %p513 = pneg %p193
      %p514 = pneg %p217
      %p515 = pneg %p214
      %p516 = pneg %p238
      %p517 = pneg %p235
      %p518 = pneg %p259
      %p519 = pneg %p256
      %p520 = pneg %p280
      %p521 = pneg %p277
      %p522 = pneg %p301
      %p523 = pneg %p298
      %p524 = pneg %p322
      %p525 = pneg %p319
      %p526 = pneg %p343
      %p527 = pneg %p340
      %p528 = pneg %p364
      %p529 = pneg %p361
      %p530 = pneg %p385
      %p531 = pneg %p382
      %p532 = pneg %p411
      %p533 = pneg %p408
      %p534 = scmp.lt.s32.totalorder %s28, 1
      %s535 = scalar_select %p534, %s28, 1
      %s536 = smul.addr %s535, 32
      %s537 = smul.addr %s536, 8
      %s538 = scalar_lea.vmem %s17, %s537
      %p539 = scmp.lt.s32.totalorder %s28, 1
      %s540 = scalar_select %p539, %s28, 1
      %s541 = smul.addr %s540, 8
      %s542 = smul.addr %s541, 8
      %s543 = scalar_lea.vmem %s0, %s542
      %p544 = scmp.lt.s32.totalorder %s28, 1
      %s545 = scalar_select %p544, %s28, 1
      %s546 = smul.addr %s545, 32
      %s547 = smul.addr %s546, 8
      %s548 = scalar_lea.vmem %s17, %s547
      %v550 = vld [vmem:[%s543] sm:$0xff]
      %v551 = vld [vmem:[%s543 + $0x8] sm:$0xff]
      %v552 = vld [vmem:[%s543 + $0x10] sm:$0xff]
      %v553 = vld [vmem:[%s543 + $0x18] sm:$0xff]
      %v554 = vld [vmem:[%s543 + $0x20] sm:$0xff]
      %v555 = vld [vmem:[%s543 + $0x28] sm:$0xff]
      %v556 = vld [vmem:[%s543 + $0x30] sm:$0xff]
      %v557 = vld [vmem:[%s543 + $0x38] sm:$0xff]
      %v558 = vld [vmem:[%s1] sm:$0xff]
      %v559 = vld [vmem:[%s1 + $0x8] sm:$0xff]
      %v560 = vld [vmem:[%s1 + $0x10] sm:$0xff]
      %v561 = vld [vmem:[%s1 + $0x18] sm:$0xff]
      %v562 = vld [vmem:[%s1 + $0x20] sm:$0xff]
      %v563 = vld [vmem:[%s1 + $0x28] sm:$0xff]
      %v564 = vld [vmem:[%s1 + $0x30] sm:$0xff]
      %v565 = vld [vmem:[%s1 + $0x38] sm:$0xff]
      %v566 = vld [vmem:[%s1 + $0x40] sm:$0xff]
      %v567 = vld [vmem:[%s1 + $0x48] sm:$0xff]
      %v568 = vld [vmem:[%s1 + $0x50] sm:$0xff]
      %v569 = vld [vmem:[%s1 + $0x58] sm:$0xff]
      %v570 = vld [vmem:[%s1 + $0x60] sm:$0xff]
      %v571 = vld [vmem:[%s1 + $0x68] sm:$0xff]
      %v572 = vld [vmem:[%s1 + $0x70] sm:$0xff]
      %v573 = vld [vmem:[%s1 + $0x78] sm:$0xff]
      %v574 = vld [vmem:[%s1 + $0x80] sm:$0xff]
      %v575 = vld [vmem:[%s1 + $0x88] sm:$0xff]
      %v576 = vld [vmem:[%s1 + $0x90] sm:$0xff]
      %v577 = vld [vmem:[%s1 + $0x98] sm:$0xff]
      %v578 = vld [vmem:[%s1 + $0xa0] sm:$0xff]
      %v579 = vld [vmem:[%s1 + $0xa8] sm:$0xff]
      %v580 = vld [vmem:[%s1 + $0xb0] sm:$0xff]
      %v581 = vld [vmem:[%s1 + $0xb8] sm:$0xff]
      %v582 = vld [vmem:[%s1 + $0xc0] sm:$0xff]
      %v583 = vld [vmem:[%s1 + $0xc8] sm:$0xff]
      %v584 = vld [vmem:[%s1 + $0xd0] sm:$0xff]
      %v585 = vld [vmem:[%s1 + $0xd8] sm:$0xff]
      %v586 = vld [vmem:[%s1 + $0xe0] sm:$0xff]
      %v587 = vld [vmem:[%s1 + $0xe8] sm:$0xff]
      %v588 = vld [vmem:[%s1 + $0xf0] sm:$0xff]
      %v589 = vld [vmem:[%s1 + $0xf8] sm:$0xff]
      %v590 = vlaneseq
      %v591 = vand.u32 %v590, 127
      %v592 = vadd.s32 %v591, 128
      %v593 = vadd.s32 %v591, 256
      %v594 = vadd.s32 %v591, 384
      %v595 = vadd.s32 %v591, 512
      %v596 = vadd.s32 %v591, 640
      %v597 = vadd.s32 %v591, 768
      %v598 = vadd.s32 %v591, 896
      %v599 = vand.u32 %v591, 31
      %v600 = vand.u32 %v592, 31
      %v601 = vand.u32 %v593, 31
      %v602 = vand.u32 %v594, 31
      %v603 = vand.u32 %v595, 31
      %v604 = vand.u32 %v596, 31
      %v605 = vand.u32 %v597, 31
      %v606 = vand.u32 %v598, 31
      %615 = vrot.lane.b32.xlu0 %v550, 33
      %v616 = vpop.permute.xlu0 %615
      %617 = vrot.lane.b32.xlu0 %v551, 33
      %v618 = vpop.permute.xlu0 %617
      %619 = vrot.lane.b32.xlu0 %v552, 33
      %v620 = vpop.permute.xlu0 %619
      %621 = vrot.lane.b32.xlu0 %v553, 33
      %v622 = vpop.permute.xlu0 %621
      %623 = vrot.lane.b32.xlu0 %v554, 33
      %v624 = vpop.permute.xlu0 %623
      %625 = vrot.lane.b32.xlu0 %v555, 33
      %v626 = vpop.permute.xlu0 %625
      %627 = vrot.lane.b32.xlu0 %v556, 33
      %v628 = vpop.permute.xlu0 %627
      %629 = vrot.lane.b32.xlu0 %v557, 33
      %v630 = vpop.permute.xlu0 %629
      %vm631 = vcmask 269312
      %v632 = vsel %vm631, %v616, %v618
      %v633 = vsel %vm631, %v618, %v620
      %v634 = vsel %vm631, %v620, %v622
      %v635 = vsel %vm631, %v622, %v624
      %v636 = vsel %vm631, %v624, %v626
      %v637 = vsel %vm631, %v626, %v628
      %v638 = vsel %vm631, %v628, %v630
      %v647 = vsel %vm631, 0.0, %v616
      %vm648 = vcmp.ge.s32.totalorder %v599, 1
      %vm649 = vcmp.ge.s32.totalorder %v600, 1
      %vm650 = vcmp.ge.s32.totalorder %v601, 1
      %vm651 = vcmp.ge.s32.totalorder %v602, 1
      %vm652 = vcmp.ge.s32.totalorder %v603, 1
      %vm653 = vcmp.ge.s32.totalorder %v604, 1
      %vm654 = vcmp.ge.s32.totalorder %v605, 1
      %vm655 = vcmp.ge.s32.totalorder %v606, 1
      %v656 = vsel %vm648, 1, 0
      %v657 = vsel %vm649, 1, 0
      %v658 = vsel %vm650, 1, 0
      %v659 = vsel %vm651, 1, 0
      %v660 = vsel %vm652, 1, 0
      %v661 = vsel %vm653, 1, 0
      %v662 = vsel %vm654, 1, 0
      %v663 = vsel %vm655, 1, 0
      %vm664 = vcmp.eq.s32.totalorder %v656, 1
      %vm665 = vcmp.eq.s32.totalorder %v657, 1
      %vm666 = vcmp.eq.s32.totalorder %v658, 1
      %vm667 = vcmp.eq.s32.totalorder %v659, 1
      %vm668 = vcmp.eq.s32.totalorder %v660, 1
      %vm669 = vcmp.eq.s32.totalorder %v661, 1
      %vm670 = vcmp.eq.s32.totalorder %v662, 1
      %vm671 = vcmp.eq.s32.totalorder %v663, 1
      %v672 = vsel %vm664, %v647, 0.0
      %v673 = vsel %vm665, %v632, 0.0
      %v674 = vsel %vm666, %v633, 0.0
      %v675 = vsel %vm667, %v634, 0.0
      %v676 = vsel %vm668, %v635, 0.0
      %v677 = vsel %vm669, %v636, 0.0
      %v678 = vsel %vm670, %v637, 0.0
      %v679 = vsel %vm671, %v638, 0.0
      %680 = vrot.lane.b32.xlu0 %v550, 32
      %v681 = vpop.permute.xlu0 %680
      %682 = vrot.lane.b32.xlu0 %v551, 32
      %v683 = vpop.permute.xlu0 %682
      %684 = vrot.lane.b32.xlu0 %v552, 32
      %v685 = vpop.permute.xlu0 %684
      %686 = vrot.lane.b32.xlu0 %v553, 32
      %v687 = vpop.permute.xlu0 %686
      %688 = vrot.lane.b32.xlu0 %v554, 32
      %v689 = vpop.permute.xlu0 %688
      %690 = vrot.lane.b32.xlu0 %v555, 32
      %v691 = vpop.permute.xlu0 %690
      %692 = vrot.lane.b32.xlu0 %v556, 32
      %v693 = vpop.permute.xlu0 %692
      %694 = vrot.lane.b32.xlu0 %v557, 32
      %v695 = vpop.permute.xlu0 %694
      %vm696 = vcmask 261120
      %v697 = vsel %vm696, %v681, %v683
      %v698 = vsel %vm696, %v683, %v685
      %v699 = vsel %vm696, %v685, %v687
      %v700 = vsel %vm696, %v687, %v689
      %v701 = vsel %vm696, %v689, %v691
      %v702 = vsel %vm696, %v691, %v693
      %v703 = vsel %vm696, %v693, %v695
      %v712 = vsel %vm696, 0.0, %v681
      %713 = vrot.lane.b32.xlu0 %v550, 31
      %v714 = vpop.permute.xlu0 %713
      %715 = vrot.lane.b32.xlu0 %v551, 31
      %v716 = vpop.permute.xlu0 %715
      %717 = vrot.lane.b32.xlu0 %v552, 31
      %v718 = vpop.permute.xlu0 %717
      %719 = vrot.lane.b32.xlu0 %v553, 31
      %v720 = vpop.permute.xlu0 %719
      %721 = vrot.lane.b32.xlu0 %v554, 31
      %v722 = vpop.permute.xlu0 %721
      %723 = vrot.lane.b32.xlu0 %v555, 31
      %v724 = vpop.permute.xlu0 %723
      %725 = vrot.lane.b32.xlu0 %v556, 31
      %v726 = vpop.permute.xlu0 %725
      %727 = vrot.lane.b32.xlu0 %v557, 31
      %v728 = vpop.permute.xlu0 %727
      %vm729 = vcmask 252928
      %v730 = vsel %vm729, %v714, %v716
      %v731 = vsel %vm729, %v716, %v718
      %v732 = vsel %vm729, %v718, %v720
      %v733 = vsel %vm729, %v720, %v722
      %v734 = vsel %vm729, %v722, %v724
      %v735 = vsel %vm729, %v724, %v726
      %v736 = vsel %vm729, %v726, %v728
      %v745 = vsel %vm729, 0.0, %v714
      %vm746 = vcmp.le.s32.totalorder %v599, 30
      %vm747 = vcmp.le.s32.totalorder %v600, 30
      %vm748 = vcmp.le.s32.totalorder %v601, 30
      %vm749 = vcmp.le.s32.totalorder %v602, 30
      %vm750 = vcmp.le.s32.totalorder %v603, 30
      %vm751 = vcmp.le.s32.totalorder %v604, 30
      %vm752 = vcmp.le.s32.totalorder %v605, 30
      %vm753 = vcmp.le.s32.totalorder %v606, 30
      %v754 = vsel %vm746, 1, 0
      %v755 = vsel %vm747, 1, 0
      %v756 = vsel %vm748, 1, 0
      %v757 = vsel %vm749, 1, 0
      %v758 = vsel %vm750, 1, 0
      %v759 = vsel %vm751, 1, 0
      %v760 = vsel %vm752, 1, 0
      %v761 = vsel %vm753, 1, 0
      %vm762 = vcmp.eq.s32.totalorder %v754, 1
      %vm763 = vcmp.eq.s32.totalorder %v755, 1
      %vm764 = vcmp.eq.s32.totalorder %v756, 1
      %vm765 = vcmp.eq.s32.totalorder %v757, 1
      %vm766 = vcmp.eq.s32.totalorder %v758, 1
      %vm767 = vcmp.eq.s32.totalorder %v759, 1
      %vm768 = vcmp.eq.s32.totalorder %v760, 1
      %vm769 = vcmp.eq.s32.totalorder %v761, 1
      %v770 = vsel %vm762, %v745, 0.0
      %v771 = vsel %vm763, %v730, 0.0
      %v772 = vsel %vm764, %v731, 0.0
      %v773 = vsel %vm765, %v732, 0.0
      %v774 = vsel %vm766, %v733, 0.0
      %v775 = vsel %vm767, %v734, 0.0
      %v776 = vsel %vm768, %v735, 0.0
      %v777 = vsel %vm769, %v736, 0.0
      %778 = vrot.lane.b32.xlu0 %v550, 1
      %v779 = vpop.permute.xlu0 %778
      %780 = vrot.lane.b32.xlu0 %v551, 1
      %v781 = vpop.permute.xlu0 %780
      %782 = vrot.lane.b32.xlu0 %v552, 1
      %v783 = vpop.permute.xlu0 %782
      %784 = vrot.lane.b32.xlu0 %v553, 1
      %v785 = vpop.permute.xlu0 %784
      %786 = vrot.lane.b32.xlu0 %v554, 1
      %v787 = vpop.permute.xlu0 %786
      %788 = vrot.lane.b32.xlu0 %v555, 1
      %v789 = vpop.permute.xlu0 %788
      %790 = vrot.lane.b32.xlu0 %v556, 1
      %v791 = vpop.permute.xlu0 %790
      %792 = vrot.lane.b32.xlu0 %v557, 1
      %v793 = vpop.permute.xlu0 %792
      %vm794 = vcmask 7168
      %v795 = vsel %vm794, %v779, %v781
      %v796 = vsel %vm794, %v781, %v783
      %v797 = vsel %vm794, %v783, %v785
      %v798 = vsel %vm794, %v785, %v787
      %v799 = vsel %vm794, %v787, %v789
      %v800 = vsel %vm794, %v789, %v791
      %v801 = vsel %vm794, %v791, %v793
      %v810 = vsel %vm794, 0.0, %v779
      %v811 = vsel %vm664, %v810, 0.0
      %v812 = vsel %vm665, %v795, 0.0
      %v813 = vsel %vm666, %v796, 0.0
      %v814 = vsel %vm667, %v797, 0.0
      %v815 = vsel %vm668, %v798, 0.0
      %v816 = vsel %vm669, %v799, 0.0
      %v817 = vsel %vm670, %v800, 0.0
      %v818 = vsel %vm671, %v801, 0.0
      %819 = vrot.lane.b32.xlu0 %v550, 127
      %v820 = vpop.permute.xlu0 %819
      %821 = vrot.lane.b32.xlu0 %v551, 127
      %v822 = vpop.permute.xlu0 %821
      %823 = vrot.lane.b32.xlu0 %v552, 127
      %v824 = vpop.permute.xlu0 %823
      %825 = vrot.lane.b32.xlu0 %v553, 127
      %v826 = vpop.permute.xlu0 %825
      %827 = vrot.lane.b32.xlu0 %v554, 127
      %v828 = vpop.permute.xlu0 %827
      %829 = vrot.lane.b32.xlu0 %v555, 127
      %v830 = vpop.permute.xlu0 %829
      %831 = vrot.lane.b32.xlu0 %v556, 127
      %v832 = vpop.permute.xlu0 %831
      %833 = vrot.lane.b32.xlu0 %v557, 127
      %v834 = vpop.permute.xlu0 %833
      %vm835 = vcmask 1039360
      %v836 = vsel %vm835, %v820, %v822
      %v837 = vsel %vm835, %v822, %v824
      %v838 = vsel %vm835, %v824, %v826
      %v839 = vsel %vm835, %v826, %v828
      %v840 = vsel %vm835, %v828, %v830
      %v841 = vsel %vm835, %v830, %v832
      %v842 = vsel %vm835, %v832, %v834
      %v851 = vsel %vm835, %v834, 0.0
      %v852 = vsel %vm762, %v836, 0.0
      %v853 = vsel %vm763, %v837, 0.0
      %v854 = vsel %vm764, %v838, 0.0
      %v855 = vsel %vm765, %v839, 0.0
      %v856 = vsel %vm766, %v840, 0.0
      %v857 = vsel %vm767, %v841, 0.0
      %v858 = vsel %vm768, %v842, 0.0
      %v859 = vsel %vm769, %v851, 0.0
      %860 = vrot.lane.b32.xlu0 %v550, 97
      %v861 = vpop.permute.xlu0 %860
      %862 = vrot.lane.b32.xlu0 %v551, 97
      %v863 = vpop.permute.xlu0 %862
      %864 = vrot.lane.b32.xlu0 %v552, 97
      %v865 = vpop.permute.xlu0 %864
      %866 = vrot.lane.b32.xlu0 %v553, 97
      %v867 = vpop.permute.xlu0 %866
      %868 = vrot.lane.b32.xlu0 %v554, 97
      %v869 = vpop.permute.xlu0 %868
      %870 = vrot.lane.b32.xlu0 %v555, 97
      %v871 = vpop.permute.xlu0 %870
      %872 = vrot.lane.b32.xlu0 %v556, 97
      %v873 = vpop.permute.xlu0 %872
      %874 = vrot.lane.b32.xlu0 %v557, 97
      %v875 = vpop.permute.xlu0 %874
      %vm876 = vcmask 793600
      %v877 = vsel %vm876, %v861, %v863
      %v878 = vsel %vm876, %v863, %v865
      %v879 = vsel %vm876, %v865, %v867
      %v880 = vsel %vm876, %v867, %v869
      %v881 = vsel %vm876, %v869, %v871
      %v882 = vsel %vm876, %v871, %v873
      %v883 = vsel %vm876, %v873, %v875
      %v892 = vsel %vm876, %v875, 0.0
      %v893 = vsel %vm664, %v877, 0.0
      %v894 = vsel %vm665, %v878, 0.0
      %v895 = vsel %vm666, %v879, 0.0
      %v896 = vsel %vm667, %v880, 0.0
      %v897 = vsel %vm668, %v881, 0.0
      %v898 = vsel %vm669, %v882, 0.0
      %v899 = vsel %vm670, %v883, 0.0
      %v900 = vsel %vm671, %v892, 0.0
      %901 = vrot.lane.b32.xlu0 %v550, 96
      %v902 = vpop.permute.xlu0 %901
      %903 = vrot.lane.b32.xlu0 %v551, 96
      %v904 = vpop.permute.xlu0 %903
      %905 = vrot.lane.b32.xlu0 %v552, 96
      %v906 = vpop.permute.xlu0 %905
      %907 = vrot.lane.b32.xlu0 %v553, 96
      %v908 = vpop.permute.xlu0 %907
      %909 = vrot.lane.b32.xlu0 %v554, 96
      %v910 = vpop.permute.xlu0 %909
      %911 = vrot.lane.b32.xlu0 %v555, 96
      %v912 = vpop.permute.xlu0 %911
      %913 = vrot.lane.b32.xlu0 %v556, 96
      %v914 = vpop.permute.xlu0 %913
      %915 = vrot.lane.b32.xlu0 %v557, 96
      %v916 = vpop.permute.xlu0 %915
      %vm917 = vcmask 785408
      %v918 = vsel %vm917, %v902, %v904
      %v919 = vsel %vm917, %v904, %v906
      %v920 = vsel %vm917, %v906, %v908
      %v921 = vsel %vm917, %v908, %v910
      %v922 = vsel %vm917, %v910, %v912
      %v923 = vsel %vm917, %v912, %v914
      %v924 = vsel %vm917, %v914, %v916
      %v933 = vsel %vm917, %v916, 0.0
      %934 = vrot.lane.b32.xlu0 %v550, 95
      %v935 = vpop.permute.xlu0 %934
      %936 = vrot.lane.b32.xlu0 %v551, 95
      %v937 = vpop.permute.xlu0 %936
      %938 = vrot.lane.b32.xlu0 %v552, 95
      %v939 = vpop.permute.xlu0 %938
      %940 = vrot.lane.b32.xlu0 %v553, 95
      %v941 = vpop.permute.xlu0 %940
      %942 = vrot.lane.b32.xlu0 %v554, 95
      %v943 = vpop.permute.xlu0 %942
      %944 = vrot.lane.b32.xlu0 %v555, 95
      %v945 = vpop.permute.xlu0 %944
      %946 = vrot.lane.b32.xlu0 %v556, 95
      %v947 = vpop.permute.xlu0 %946
      %948 = vrot.lane.b32.xlu0 %v557, 95
      %v949 = vpop.permute.xlu0 %948
      %vm950 = vcmask 777216
      %v951 = vsel %vm950, %v935, %v937
      %v952 = vsel %vm950, %v937, %v939
      %v953 = vsel %vm950, %v939, %v941
      %v954 = vsel %vm950, %v941, %v943
      %v955 = vsel %vm950, %v943, %v945
      %v956 = vsel %vm950, %v945, %v947
      %v957 = vsel %vm950, %v947, %v949
      %v966 = vsel %vm950, %v949, 0.0
      %v967 = vsel %vm762, %v951, 0.0
      %v968 = vsel %vm763, %v952, 0.0
      %v969 = vsel %vm764, %v953, 0.0
      %v970 = vsel %vm765, %v954, 0.0
      %v971 = vsel %vm766, %v955, 0.0
      %v972 = vsel %vm767, %v956, 0.0
      %v973 = vsel %vm768, %v957, 0.0
      %v974 = vsel %vm769, %v966, 0.0
      %v975 = vpack.c.bf16 %v712, %v672
      %v976 = vpack.c.bf16 %v697, %v673
      %v977 = vpack.c.bf16 %v698, %v674
      %v978 = vpack.c.bf16 %v699, %v675
      %v979 = vpack.c.bf16 %v700, %v676
      %v980 = vpack.c.bf16 %v701, %v677
      %v981 = vpack.c.bf16 %v702, %v678
      %v982 = vpack.c.bf16 %v703, %v679
      %v983 = vpack.c.bf16 %v811, %v770
      %v984 = vpack.c.bf16 %v812, %v771
      %v985 = vpack.c.bf16 %v813, %v772
      %v986 = vpack.c.bf16 %v814, %v773
      %v987 = vpack.c.bf16 %v815, %v774
      %v988 = vpack.c.bf16 %v816, %v775
      %v989 = vpack.c.bf16 %v817, %v776
      %v990 = vpack.c.bf16 %v818, %v777
      %v991 = vpack.c.bf16 %v852, %v550
      %v992 = vpack.c.bf16 %v853, %v551
      %v993 = vpack.c.bf16 %v854, %v552
      %v994 = vpack.c.bf16 %v855, %v553
      %v995 = vpack.c.bf16 %v856, %v554
      %v996 = vpack.c.bf16 %v857, %v555
      %v997 = vpack.c.bf16 %v858, %v556
      %v998 = vpack.c.bf16 %v859, %v557
      %v999 = vpack.c.bf16 %v918, %v893
      %v1000 = vpack.c.bf16 %v919, %v894
      %v1001 = vpack.c.bf16 %v920, %v895
      %v1002 = vpack.c.bf16 %v921, %v896
      %v1003 = vpack.c.bf16 %v922, %v897
      %v1004 = vpack.c.bf16 %v923, %v898
      %v1005 = vpack.c.bf16 %v924, %v899
      %v1006 = vpack.c.bf16 %v933, %v900
      %v1007 = vpack.c.bf16 %v967, %v967
      %v1008 = vpack.c.bf16 %v968, %v968
      %v1009 = vpack.c.bf16 %v969, %v969
      %v1010 = vpack.c.bf16 %v970, %v970
      %v1011 = vpack.c.bf16 %v971, %v971
      %v1012 = vpack.c.bf16 %v972, %v972
      %v1013 = vpack.c.bf16 %v973, %v973
      %v1014 = vpack.c.bf16 %v974, %v974
      %v1015 = vld [vmem:[%s2] sm:$0xf]
      %v1016 = vld [vmem:[%s2 + $0x4] sm:$0xf]
      %v1017 = vld [vmem:[%s2 + $0x8] sm:$0xf]
      %v1018 = vld [vmem:[%s2 + $0xc] sm:$0xf]
      %v1023 = vunpack.c.l.b16 %v1015
      %v1024 = vunpack.c.l.b16 %v1016
      %v1025 = vunpack.c.l.b16 %v1017
      %v1026 = vunpack.c.l.b16 %v1018
      %v1027 = vpack.c.b16 %v1024, %v1023
      %v1028 = vpack.c.b16 %v1026, %v1025
      %vm1029 = vcmask 588800
      %v1031 = vsel %vm1029, %v1027, 0
      %v1034 = vsel %vm1029, %v1028, 0
      %vm1036 = vcmask 1043456
      %v1038 = vsel %vm1036, %v1007, 0
      %v1041 = vsel %vm1036, %v1008, 0
      %v1044 = vsel %vm1036, %v1009, 0
      %v1047 = vsel %vm1036, %v1010, 0
      %v1050 = vsel %vm1036, %v1011, 0
      %v1053 = vsel %vm1036, %v1012, 0
      %v1056 = vsel %vm1036, %v1013, 0
      %v1059 = vsel %vm1036, %v1014, 0
      %1061 = vmatprep.subr.bf16.mxu0 0
      %1062 = vmatpush1.bf16.msra.mxu0 0
      %1063 = vmatprep.subr.bf16.mxu0 0
      %1064 = vmatpush1.bf16.msra.mxu0 0
      %1065 = vmatprep.subr.bf16.mxu0 0
      %1066 = vmatpush1.bf16.msra.mxu0 0
      %1067 = vmatprep.subr.bf16.mxu0 %v1041
      %1068 = vmatpush1.bf16.msra.mxu0 %v1038
      %1069 = vmatprep.subr.bf16.mxu0 %v1000
      %1070 = vmatpush1.bf16.msra.mxu0 %v999
      %1071 = vmatprep.subr.bf16.mxu0 %v992
      %1072 = vmatpush1.bf16.msra.mxu0 %v991
      %1073 = vmatprep.subr.bf16.mxu0 %v984
      %1074 = vmatpush1.bf16.msra.mxu0 %v983
      %1075 = vmatprep.subr.bf16.mxu0 %v976
      %1076 = vmatpush1.bf16.msra.mxu0 %v975
      %1077 = vmatprep.subr.bf16.mxu0 0
      %1078 = vmatpush2.bf16.msra.mxu0 0
      %1079 = vmatprep.subr.bf16.mxu0 0
      %1080 = vmatpush2.bf16.msra.mxu0 0
      %1081 = vmatprep.subr.bf16.mxu0 0
      %1082 = vmatpush2.bf16.msra.mxu0 0
      %1083 = vmatprep.subr.bf16.mxu0 0
      %1084 = vmatpush2.bf16.msra.mxu0 0
      %1085 = vmatprep.subr.bf16.mxu0 0
      %1086 = vmatpush2.bf16.msra.mxu0 0
      %1087 = vmatprep.subr.bf16.mxu0 0
      %1088 = vmatpush2.bf16.msra.mxu0 0
      %1089 = vmatprep.subr.bf16.mxu0 0
      %1090 = vmatpush2.bf16.msra.mxu0 0
      %1091 = vmatprep.subr.bf16.mxu0 0
      %1092 = vmatpush2.bf16.msra.mxu0 0
      %1093 = vmatprep.mubr.bf16.mxu0 0
      %1094 = vmatmul.mubr.bf16.gmra.mxu0 %v1031
      %v1095 = vpop.f32.mrf.mxu0
      %v1096 = vadd.f32 %v558, %v1095
      %v1097 = vpop.f32.mrf.mxu0
      %v1098 = vadd.f32 %v559, %v1097
      %v1099 = vpop.f32.mrf.mxu0
      %v1100 = vadd.f32 %v566, %v1099
      %v1101 = vpop.f32.mrf.mxu0
      %v1102 = vadd.f32 %v567, %v1101
      %1103 = vmatprep.mubr.bf16.mxu0 0
      %1104 = vmatmul.mubr.bf16.gmra.mxu0 %v1034
      %v1105 = vpop.f32.mrf.mxu0
      %v1106 = vadd.f32 %v574, %v1105
      %v1107 = vpop.f32.mrf.mxu0
      %v1108 = vadd.f32 %v575, %v1107
      %v1109 = vpop.f32.mrf.mxu0
      %v1110 = vadd.f32 %v582, %v1109
      %v1111 = vpop.f32.mrf.mxu0
      %v1112 = vadd.f32 %v583, %v1111
      %1113 = vdwg.mxu0
      %1114 = vmatprep.subr.bf16.mxu0 0
      %1115 = vmatpush1.bf16.msra.mxu0 0
      %1116 = vmatprep.subr.bf16.mxu0 0
      %1117 = vmatpush1.bf16.msra.mxu0 0
      %1118 = vmatprep.subr.bf16.mxu0 0
      %1119 = vmatpush1.bf16.msra.mxu0 0
      %1120 = vmatprep.subr.bf16.mxu0 %v1047
      %1121 = vmatpush1.bf16.msra.mxu0 %v1044
      %1122 = vmatprep.subr.bf16.mxu0 %v1002
      %1123 = vmatpush1.bf16.msra.mxu0 %v1001
      %1124 = vmatprep.subr.bf16.mxu0 %v994
      %1125 = vmatpush1.bf16.msra.mxu0 %v993
      %1126 = vmatprep.subr.bf16.mxu0 %v986
      %1127 = vmatpush1.bf16.msra.mxu0 %v985
      %1128 = vmatprep.subr.bf16.mxu0 %v978
      %1129 = vmatpush1.bf16.msra.mxu0 %v977
      %1130 = vmatprep.subr.bf16.mxu0 0
      %1131 = vmatpush2.bf16.msra.mxu0 0
      %1132 = vmatprep.subr.bf16.mxu0 0
      %1133 = vmatpush2.bf16.msra.mxu0 0
      %1134 = vmatprep.subr.bf16.mxu0 0
      %1135 = vmatpush2.bf16.msra.mxu0 0
      %1136 = vmatprep.subr.bf16.mxu0 0
      %1137 = vmatpush2.bf16.msra.mxu0 0
      %1138 = vmatprep.subr.bf16.mxu0 0
      %1139 = vmatpush2.bf16.msra.mxu0 0
      %1140 = vmatprep.subr.bf16.mxu0 0
      %1141 = vmatpush2.bf16.msra.mxu0 0
      %1142 = vmatprep.subr.bf16.mxu0 0
      %1143 = vmatpush2.bf16.msra.mxu0 0
      %1144 = vmatprep.subr.bf16.mxu0 0
      %1145 = vmatpush2.bf16.msra.mxu0 0
      %1146 = vmatprep.mubr.bf16.mxu0 0
      %1147 = vmatmul.mubr.bf16.gmra.mxu0 %v1031
      %v1148 = vpop.f32.mrf.mxu0
      %v1149 = vadd.f32 %v560, %v1148
      %v1150 = vpop.f32.mrf.mxu0
      %v1151 = vadd.f32 %v561, %v1150
      %v1152 = vpop.f32.mrf.mxu0
      %v1153 = vadd.f32 %v568, %v1152
      %v1154 = vpop.f32.mrf.mxu0
      %v1155 = vadd.f32 %v569, %v1154
      %1156 = vmatprep.mubr.bf16.mxu0 0
      %1157 = vmatmul.mubr.bf16.gmra.mxu0 %v1034
      %v1158 = vpop.f32.mrf.mxu0
      %v1159 = vadd.f32 %v576, %v1158
      %v1160 = vpop.f32.mrf.mxu0
      %v1161 = vadd.f32 %v577, %v1160
      %v1162 = vpop.f32.mrf.mxu0
      %v1163 = vadd.f32 %v584, %v1162
      %v1164 = vpop.f32.mrf.mxu0
      %v1165 = vadd.f32 %v585, %v1164
      %1166 = vdwg.mxu0
      %1167 = vmatprep.subr.bf16.mxu0 0
      %1168 = vmatpush1.bf16.msra.mxu0 0
      %1169 = vmatprep.subr.bf16.mxu0 0
      %1170 = vmatpush1.bf16.msra.mxu0 0
      %1171 = vmatprep.subr.bf16.mxu0 0
      %1172 = vmatpush1.bf16.msra.mxu0 0
      %1173 = vmatprep.subr.bf16.mxu0 %v1053
      %1174 = vmatpush1.bf16.msra.mxu0 %v1050
      %1175 = vmatprep.subr.bf16.mxu0 %v1004
      %1176 = vmatpush1.bf16.msra.mxu0 %v1003
      %1177 = vmatprep.subr.bf16.mxu0 %v996
      %1178 = vmatpush1.bf16.msra.mxu0 %v995
      %1179 = vmatprep.subr.bf16.mxu0 %v988
      %1180 = vmatpush1.bf16.msra.mxu0 %v987
      %1181 = vmatprep.subr.bf16.mxu0 %v980
      %1182 = vmatpush1.bf16.msra.mxu0 %v979
      %1183 = vmatprep.subr.bf16.mxu0 0
      %1184 = vmatpush2.bf16.msra.mxu0 0
      %1185 = vmatprep.subr.bf16.mxu0 0
      %1186 = vmatpush2.bf16.msra.mxu0 0
      %1187 = vmatprep.subr.bf16.mxu0 0
      %1188 = vmatpush2.bf16.msra.mxu0 0
      %1189 = vmatprep.subr.bf16.mxu0 0
      %1190 = vmatpush2.bf16.msra.mxu0 0
      %1191 = vmatprep.subr.bf16.mxu0 0
      %1192 = vmatpush2.bf16.msra.mxu0 0
      %1193 = vmatprep.subr.bf16.mxu0 0
      %1194 = vmatpush2.bf16.msra.mxu0 0
      %1195 = vmatprep.subr.bf16.mxu0 0
      %1196 = vmatpush2.bf16.msra.mxu0 0
      %1197 = vmatprep.subr.bf16.mxu0 0
      %1198 = vmatpush2.bf16.msra.mxu0 0
      %1199 = vmatprep.mubr.bf16.mxu0 0
      %1200 = vmatmul.mubr.bf16.gmra.mxu0 %v1031
      %v1201 = vpop.f32.mrf.mxu0
      %v1202 = vadd.f32 %v562, %v1201
      %v1203 = vpop.f32.mrf.mxu0
      %v1204 = vadd.f32 %v563, %v1203
      %v1205 = vpop.f32.mrf.mxu0
      %v1206 = vadd.f32 %v570, %v1205
      %v1207 = vpop.f32.mrf.mxu0
      %v1208 = vadd.f32 %v571, %v1207
      %1209 = vmatprep.mubr.bf16.mxu0 0
      %1210 = vmatmul.mubr.bf16.gmra.mxu0 %v1034
      %v1211 = vpop.f32.mrf.mxu0
      %v1212 = vadd.f32 %v578, %v1211
      %v1213 = vpop.f32.mrf.mxu0
      %v1214 = vadd.f32 %v579, %v1213
      %v1215 = vpop.f32.mrf.mxu0
      %v1216 = vadd.f32 %v586, %v1215
      %v1217 = vpop.f32.mrf.mxu0
      %v1218 = vadd.f32 %v587, %v1217
      %1219 = vdwg.mxu0
      %1220 = vmatprep.subr.bf16.mxu0 0
      %1221 = vmatpush1.bf16.msra.mxu0 0
      %1222 = vmatprep.subr.bf16.mxu0 0
      %1223 = vmatpush1.bf16.msra.mxu0 0
      %1224 = vmatprep.subr.bf16.mxu0 0
      %1225 = vmatpush1.bf16.msra.mxu0 0
      %1226 = vmatprep.subr.bf16.mxu0 %v1059
      %1227 = vmatpush1.bf16.msra.mxu0 %v1056
      %1228 = vmatprep.subr.bf16.mxu0 %v1006
      %1229 = vmatpush1.bf16.msra.mxu0 %v1005
      %1230 = vmatprep.subr.bf16.mxu0 %v998
      %1231 = vmatpush1.bf16.msra.mxu0 %v997
      %1232 = vmatprep.subr.bf16.mxu0 %v990
      %1233 = vmatpush1.bf16.msra.mxu0 %v989
      %1234 = vmatprep.subr.bf16.mxu0 %v982
      %1235 = vmatpush1.bf16.msra.mxu0 %v981
      %1236 = vmatprep.subr.bf16.mxu0 0
      %1237 = vmatpush2.bf16.msra.mxu0 0
      %1238 = vmatprep.subr.bf16.mxu0 0
      %1239 = vmatpush2.bf16.msra.mxu0 0
      %1240 = vmatprep.subr.bf16.mxu0 0
      %1241 = vmatpush2.bf16.msra.mxu0 0
      %1242 = vmatprep.subr.bf16.mxu0 0
      %1243 = vmatpush2.bf16.msra.mxu0 0
      %1244 = vmatprep.subr.bf16.mxu0 0
      %1245 = vmatpush2.bf16.msra.mxu0 0
      %1246 = vmatprep.subr.bf16.mxu0 0
      %1247 = vmatpush2.bf16.msra.mxu0 0
      %1248 = vmatprep.subr.bf16.mxu0 0
      %1249 = vmatpush2.bf16.msra.mxu0 0
      %1250 = vmatprep.subr.bf16.mxu0 0
      %1251 = vmatpush2.bf16.msra.mxu0 0
      %1252 = vmatprep.mubr.bf16.mxu0 0
      %1253 = vmatmul.mubr.bf16.gmra.mxu0 %v1031
      %v1254 = vpop.f32.mrf.mxu0
      %v1255 = vadd.f32 %v564, %v1254
      %v1256 = vpop.f32.mrf.mxu0
      %v1257 = vadd.f32 %v565, %v1256
      %v1258 = vpop.f32.mrf.mxu0
      %v1259 = vadd.f32 %v572, %v1258
      %v1260 = vpop.f32.mrf.mxu0
      %v1261 = vadd.f32 %v573, %v1260
      %1262 = vmatprep.mubr.bf16.mxu0 0
      %1263 = vmatmul.mubr.bf16.gmra.mxu0 %v1034
      %v1264 = vpop.f32.mrf.mxu0
      %v1265 = vadd.f32 %v580, %v1264
      %v1266 = vpop.f32.mrf.mxu0
      %v1267 = vadd.f32 %v581, %v1266
      %v1268 = vpop.f32.mrf.mxu0
      %v1269 = vadd.f32 %v588, %v1268
      %v1270 = vpop.f32.mrf.mxu0
      %v1271 = vadd.f32 %v589, %v1270
      %1272 = vdwg.mxu0
      %v1273 = vmax.f32 %v1096, 0.0
      %v1274 = vmax.f32 %v1098, 0.0
      %v1275 = vmax.f32 %v1149, 0.0
      %v1276 = vmax.f32 %v1151, 0.0
      %v1277 = vmax.f32 %v1202, 0.0
      %v1278 = vmax.f32 %v1204, 0.0
      %v1279 = vmax.f32 %v1255, 0.0
      %v1280 = vmax.f32 %v1257, 0.0
      %v1281 = vmax.f32 %v1100, 0.0
      %v1282 = vmax.f32 %v1102, 0.0
      %v1283 = vmax.f32 %v1153, 0.0
      %v1284 = vmax.f32 %v1155, 0.0
      %v1285 = vmax.f32 %v1206, 0.0
      %v1286 = vmax.f32 %v1208, 0.0
      %v1287 = vmax.f32 %v1259, 0.0
      %v1288 = vmax.f32 %v1261, 0.0
      %v1289 = vmax.f32 %v1106, 0.0
      %v1290 = vmax.f32 %v1108, 0.0
      %v1291 = vmax.f32 %v1159, 0.0
      %v1292 = vmax.f32 %v1161, 0.0
      %v1293 = vmax.f32 %v1212, 0.0
      %v1294 = vmax.f32 %v1214, 0.0
      %v1295 = vmax.f32 %v1265, 0.0
      %v1296 = vmax.f32 %v1267, 0.0
      %v1297 = vmax.f32 %v1110, 0.0
      %v1298 = vmax.f32 %v1112, 0.0
      %v1299 = vmax.f32 %v1163, 0.0
      %v1300 = vmax.f32 %v1165, 0.0
      %v1301 = vmax.f32 %v1216, 0.0
      %v1302 = vmax.f32 %v1218, 0.0
      %v1303 = vmax.f32 %v1269, 0.0
      %v1304 = vmax.f32 %v1271, 0.0
      %v1305 = vld [vmem:[%s4] sm:$0xff]
      %v1306 = vld [vmem:[%s4 + $0x8] sm:$0xff]
      %v1307 = vld [vmem:[%s4 + $0x10] sm:$0xff]
      %v1308 = vld [vmem:[%s4 + $0x18] sm:$0xff]
      %1341 = vrot.lane.b32.xlu0 %v1273, 33
      %v1342 = vpop.permute.xlu0 %1341
      %1343 = vrot.lane.b32.xlu0 %v1274, 33
      %v1344 = vpop.permute.xlu0 %1343
      %1345 = vrot.lane.b32.xlu0 %v1275, 33
      %v1346 = vpop.permute.xlu0 %1345
      %1347 = vrot.lane.b32.xlu0 %v1276, 33
      %v1348 = vpop.permute.xlu0 %1347
      %1349 = vrot.lane.b32.xlu0 %v1277, 33
      %v1350 = vpop.permute.xlu0 %1349
      %1351 = vrot.lane.b32.xlu0 %v1278, 33
      %v1352 = vpop.permute.xlu0 %1351
      %1353 = vrot.lane.b32.xlu0 %v1279, 33
      %v1354 = vpop.permute.xlu0 %1353
      %1355 = vrot.lane.b32.xlu0 %v1280, 33
      %v1356 = vpop.permute.xlu0 %1355
      %1357 = vrot.lane.b32.xlu0 %v1281, 33
      %v1358 = vpop.permute.xlu0 %1357
      %1359 = vrot.lane.b32.xlu0 %v1282, 33
      %v1360 = vpop.permute.xlu0 %1359
      %1361 = vrot.lane.b32.xlu0 %v1283, 33
      %v1362 = vpop.permute.xlu0 %1361
      %1363 = vrot.lane.b32.xlu0 %v1284, 33
      %v1364 = vpop.permute.xlu0 %1363
      %1365 = vrot.lane.b32.xlu0 %v1285, 33
      %v1366 = vpop.permute.xlu0 %1365
      %1367 = vrot.lane.b32.xlu0 %v1286, 33
      %v1368 = vpop.permute.xlu0 %1367
      %1369 = vrot.lane.b32.xlu0 %v1287, 33
      %v1370 = vpop.permute.xlu0 %1369
      %1371 = vrot.lane.b32.xlu0 %v1288, 33
      %v1372 = vpop.permute.xlu0 %1371
      %1373 = vrot.lane.b32.xlu0 %v1289, 33
      %v1374 = vpop.permute.xlu0 %1373
      %1375 = vrot.lane.b32.xlu0 %v1290, 33
      %v1376 = vpop.permute.xlu0 %1375
      %1377 = vrot.lane.b32.xlu0 %v1291, 33
      %v1378 = vpop.permute.xlu0 %1377
      %1379 = vrot.lane.b32.xlu0 %v1292, 33
      %v1380 = vpop.permute.xlu0 %1379
      %1381 = vrot.lane.b32.xlu0 %v1293, 33
      %v1382 = vpop.permute.xlu0 %1381
      %1383 = vrot.lane.b32.xlu0 %v1294, 33
      %v1384 = vpop.permute.xlu0 %1383
      %1385 = vrot.lane.b32.xlu0 %v1295, 33
      %v1386 = vpop.permute.xlu0 %1385
      %1387 = vrot.lane.b32.xlu0 %v1296, 33
      %v1388 = vpop.permute.xlu0 %1387
      %1389 = vrot.lane.b32.xlu0 %v1297, 33
      %v1390 = vpop.permute.xlu0 %1389
      %1391 = vrot.lane.b32.xlu0 %v1298, 33
      %v1392 = vpop.permute.xlu0 %1391
      %1393 = vrot.lane.b32.xlu0 %v1299, 33
      %v1394 = vpop.permute.xlu0 %1393
      %1395 = vrot.lane.b32.xlu0 %v1300, 33
      %v1396 = vpop.permute.xlu0 %1395
      %1397 = vrot.lane.b32.xlu0 %v1301, 33
      %v1398 = vpop.permute.xlu0 %1397
      %1399 = vrot.lane.b32.xlu0 %v1302, 33
      %v1400 = vpop.permute.xlu0 %1399
      %1401 = vrot.lane.b32.xlu0 %v1303, 33
      %v1402 = vpop.permute.xlu0 %1401
      %1403 = vrot.lane.b32.xlu0 %v1304, 33
      %v1404 = vpop.permute.xlu0 %1403
      %v1405 = vsel %vm631, %v1342, %v1344
      %v1406 = vsel %vm631, %v1344, %v1346
      %v1407 = vsel %vm631, %v1346, %v1348
      %v1408 = vsel %vm631, %v1348, %v1350
      %v1409 = vsel %vm631, %v1350, %v1352
      %v1410 = vsel %vm631, %v1352, %v1354
      %v1411 = vsel %vm631, %v1354, %v1356
      %v1412 = vsel %vm631, %v1358, %v1360
      %v1413 = vsel %vm631, %v1360, %v1362
      %v1414 = vsel %vm631, %v1362, %v1364
      %v1415 = vsel %vm631, %v1364, %v1366
      %v1416 = vsel %vm631, %v1366, %v1368
      %v1417 = vsel %vm631, %v1368, %v1370
      %v1418 = vsel %vm631, %v1370, %v1372
      %v1419 = vsel %vm631, %v1374, %v1376
      %v1420 = vsel %vm631, %v1376, %v1378
      %v1421 = vsel %vm631, %v1378, %v1380
      %v1422 = vsel %vm631, %v1380, %v1382
      %v1423 = vsel %vm631, %v1382, %v1384
      %v1424 = vsel %vm631, %v1384, %v1386
      %v1425 = vsel %vm631, %v1386, %v1388
      %v1426 = vsel %vm631, %v1390, %v1392
      %v1427 = vsel %vm631, %v1392, %v1394
      %v1428 = vsel %vm631, %v1394, %v1396
      %v1429 = vsel %vm631, %v1396, %v1398
      %v1430 = vsel %vm631, %v1398, %v1400
      %v1431 = vsel %vm631, %v1400, %v1402
      %v1432 = vsel %vm631, %v1402, %v1404
      %v1465 = vsel %vm631, 0.0, %v1342
      %v1466 = vsel %vm631, 0.0, %v1358
      %v1467 = vsel %vm631, 0.0, %v1374
      %v1468 = vsel %vm631, 0.0, %v1390
      %v1469 = vsel %vm664, %v1465, 0.0
      %v1470 = vsel %vm665, %v1405, 0.0
      %v1471 = vsel %vm666, %v1406, 0.0
      %v1472 = vsel %vm667, %v1407, 0.0
      %v1473 = vsel %vm668, %v1408, 0.0
      %v1474 = vsel %vm669, %v1409, 0.0
      %v1475 = vsel %vm670, %v1410, 0.0
      %v1476 = vsel %vm671, %v1411, 0.0
      %v1477 = vsel %vm664, %v1466, 0.0
      %v1478 = vsel %vm665, %v1412, 0.0
      %v1479 = vsel %vm666, %v1413, 0.0
      %v1480 = vsel %vm667, %v1414, 0.0
      %v1481 = vsel %vm668, %v1415, 0.0
      %v1482 = vsel %vm669, %v1416, 0.0
      %v1483 = vsel %vm670, %v1417, 0.0
      %v1484 = vsel %vm671, %v1418, 0.0
      %v1485 = vsel %vm664, %v1467, 0.0
      %v1486 = vsel %vm665, %v1419, 0.0
      %v1487 = vsel %vm666, %v1420, 0.0
      %v1488 = vsel %vm667, %v1421, 0.0
      %v1489 = vsel %vm668, %v1422, 0.0
      %v1490 = vsel %vm669, %v1423, 0.0
      %v1491 = vsel %vm670, %v1424, 0.0
      %v1492 = vsel %vm671, %v1425, 0.0
      %v1493 = vsel %vm664, %v1468, 0.0
      %v1494 = vsel %vm665, %v1426, 0.0
      %v1495 = vsel %vm666, %v1427, 0.0
      %v1496 = vsel %vm667, %v1428, 0.0
      %v1497 = vsel %vm668, %v1429, 0.0
      %v1498 = vsel %vm669, %v1430, 0.0
      %v1499 = vsel %vm670, %v1431, 0.0
      %v1500 = vsel %vm671, %v1432, 0.0
      %1501 = vrot.lane.b32.xlu0 %v1273, 32
      %v1502 = vpop.permute.xlu0 %1501
      %1503 = vrot.lane.b32.xlu0 %v1274, 32
      %v1504 = vpop.permute.xlu0 %1503
      %1505 = vrot.lane.b32.xlu0 %v1275, 32
      %v1506 = vpop.permute.xlu0 %1505
      %1507 = vrot.lane.b32.xlu0 %v1276, 32
      %v1508 = vpop.permute.xlu0 %1507
      %1509 = vrot.lane.b32.xlu0 %v1277, 32
      %v1510 = vpop.permute.xlu0 %1509
      %1511 = vrot.lane.b32.xlu0 %v1278, 32
      %v1512 = vpop.permute.xlu0 %1511
      %1513 = vrot.lane.b32.xlu0 %v1279, 32
      %v1514 = vpop.permute.xlu0 %1513
      %1515 = vrot.lane.b32.xlu0 %v1280, 32
      %v1516 = vpop.permute.xlu0 %1515
      %1517 = vrot.lane.b32.xlu0 %v1281, 32
      %v1518 = vpop.permute.xlu0 %1517
      %1519 = vrot.lane.b32.xlu0 %v1282, 32
      %v1520 = vpop.permute.xlu0 %1519
      %1521 = vrot.lane.b32.xlu0 %v1283, 32
      %v1522 = vpop.permute.xlu0 %1521
      %1523 = vrot.lane.b32.xlu0 %v1284, 32
      %v1524 = vpop.permute.xlu0 %1523
      %1525 = vrot.lane.b32.xlu0 %v1285, 32
      %v1526 = vpop.permute.xlu0 %1525
      %1527 = vrot.lane.b32.xlu0 %v1286, 32
      %v1528 = vpop.permute.xlu0 %1527
      %1529 = vrot.lane.b32.xlu0 %v1287, 32
      %v1530 = vpop.permute.xlu0 %1529
      %1531 = vrot.lane.b32.xlu0 %v1288, 32
      %v1532 = vpop.permute.xlu0 %1531
      %1533 = vrot.lane.b32.xlu0 %v1289, 32
      %v1534 = vpop.permute.xlu0 %1533
      %1535 = vrot.lane.b32.xlu0 %v1290, 32
      %v1536 = vpop.permute.xlu0 %1535
      %1537 = vrot.lane.b32.xlu0 %v1291, 32
      %v1538 = vpop.permute.xlu0 %1537
      %1539 = vrot.lane.b32.xlu0 %v1292, 32
      %v1540 = vpop.permute.xlu0 %1539
      %1541 = vrot.lane.b32.xlu0 %v1293, 32
      %v1542 = vpop.permute.xlu0 %1541
      %1543 = vrot.lane.b32.xlu0 %v1294, 32
      %v1544 = vpop.permute.xlu0 %1543
      %1545 = vrot.lane.b32.xlu0 %v1295, 32
      %v1546 = vpop.permute.xlu0 %1545
      %1547 = vrot.lane.b32.xlu0 %v1296, 32
      %v1548 = vpop.permute.xlu0 %1547
      %1549 = vrot.lane.b32.xlu0 %v1297, 32
      %v1550 = vpop.permute.xlu0 %1549
      %1551 = vrot.lane.b32.xlu0 %v1298, 32
      %v1552 = vpop.permute.xlu0 %1551
      %1553 = vrot.lane.b32.xlu0 %v1299, 32
      %v1554 = vpop.permute.xlu0 %1553
      %1555 = vrot.lane.b32.xlu0 %v1300, 32
      %v1556 = vpop.permute.xlu0 %1555
      %1557 = vrot.lane.b32.xlu0 %v1301, 32
      %v1558 = vpop.permute.xlu0 %1557
      %1559 = vrot.lane.b32.xlu0 %v1302, 32
      %v1560 = vpop.permute.xlu0 %1559
      %1561 = vrot.lane.b32.xlu0 %v1303, 32
      %v1562 = vpop.permute.xlu0 %1561
      %1563 = vrot.lane.b32.xlu0 %v1304, 32
      %v1564 = vpop.permute.xlu0 %1563
      %v1565 = vsel %vm696, %v1502, %v1504
      %v1566 = vsel %vm696, %v1504, %v1506
      %v1567 = vsel %vm696, %v1506, %v1508
      %v1568 = vsel %vm696, %v1508, %v1510
      %v1569 = vsel %vm696, %v1510, %v1512
      %v1570 = vsel %vm696, %v1512, %v1514
      %v1571 = vsel %vm696, %v1514, %v1516
      %v1572 = vsel %vm696, %v1518, %v1520
      %v1573 = vsel %vm696, %v1520, %v1522
      %v1574 = vsel %vm696, %v1522, %v1524
      %v1575 = vsel %vm696, %v1524, %v1526
      %v1576 = vsel %vm696, %v1526, %v1528
      %v1577 = vsel %vm696, %v1528, %v1530
      %v1578 = vsel %vm696, %v1530, %v1532
      %v1579 = vsel %vm696, %v1534, %v1536
      %v1580 = vsel %vm696, %v1536, %v1538
      %v1581 = vsel %vm696, %v1538, %v1540
      %v1582 = vsel %vm696, %v1540, %v1542
      %v1583 = vsel %vm696, %v1542, %v1544
      %v1584 = vsel %vm696, %v1544, %v1546
      %v1585 = vsel %vm696, %v1546, %v1548
      %v1586 = vsel %vm696, %v1550, %v1552
      %v1587 = vsel %vm696, %v1552, %v1554
      %v1588 = vsel %vm696, %v1554, %v1556
      %v1589 = vsel %vm696, %v1556, %v1558
      %v1590 = vsel %vm696, %v1558, %v1560
      %v1591 = vsel %vm696, %v1560, %v1562
      %v1592 = vsel %vm696, %v1562, %v1564
      %v1625 = vsel %vm696, 0.0, %v1502
      %v1626 = vsel %vm696, 0.0, %v1518
      %v1627 = vsel %vm696, 0.0, %v1534
      %v1628 = vsel %vm696, 0.0, %v1550
      %1629 = vrot.lane.b32.xlu0 %v1273, 31
      %v1630 = vpop.permute.xlu0 %1629
      %1631 = vrot.lane.b32.xlu0 %v1274, 31
      %v1632 = vpop.permute.xlu0 %1631
      %1633 = vrot.lane.b32.xlu0 %v1275, 31
      %v1634 = vpop.permute.xlu0 %1633
      %1635 = vrot.lane.b32.xlu0 %v1276, 31
      %v1636 = vpop.permute.xlu0 %1635
      %1637 = vrot.lane.b32.xlu0 %v1277, 31
      %v1638 = vpop.permute.xlu0 %1637
      %1639 = vrot.lane.b32.xlu0 %v1278, 31
      %v1640 = vpop.permute.xlu0 %1639
      %1641 = vrot.lane.b32.xlu0 %v1279, 31
      %v1642 = vpop.permute.xlu0 %1641
      %1643 = vrot.lane.b32.xlu0 %v1280, 31
      %v1644 = vpop.permute.xlu0 %1643
      %1645 = vrot.lane.b32.xlu0 %v1281, 31
      %v1646 = vpop.permute.xlu0 %1645
      %1647 = vrot.lane.b32.xlu0 %v1282, 31
      %v1648 = vpop.permute.xlu0 %1647
      %1649 = vrot.lane.b32.xlu0 %v1283, 31
      %v1650 = vpop.permute.xlu0 %1649
      %1651 = vrot.lane.b32.xlu0 %v1284, 31
      %v1652 = vpop.permute.xlu0 %1651
      %1653 = vrot.lane.b32.xlu0 %v1285, 31
      %v1654 = vpop.permute.xlu0 %1653
      %1655 = vrot.lane.b32.xlu0 %v1286, 31
      %v1656 = vpop.permute.xlu0 %1655
      %1657 = vrot.lane.b32.xlu0 %v1287, 31
      %v1658 = vpop.permute.xlu0 %1657
      %1659 = vrot.lane.b32.xlu0 %v1288, 31
      %v1660 = vpop.permute.xlu0 %1659
      %1661 = vrot.lane.b32.xlu0 %v1289, 31
      %v1662 = vpop.permute.xlu0 %1661
      %1663 = vrot.lane.b32.xlu0 %v1290, 31
      %v1664 = vpop.permute.xlu0 %1663
      %1665 = vrot.lane.b32.xlu0 %v1291, 31
      %v1666 = vpop.permute.xlu0 %1665
      %1667 = vrot.lane.b32.xlu0 %v1292, 31
      %v1668 = vpop.permute.xlu0 %1667
      %1669 = vrot.lane.b32.xlu0 %v1293, 31
      %v1670 = vpop.permute.xlu0 %1669
      %1671 = vrot.lane.b32.xlu0 %v1294, 31
      %v1672 = vpop.permute.xlu0 %1671
      %1673 = vrot.lane.b32.xlu0 %v1295, 31
      %v1674 = vpop.permute.xlu0 %1673
      %1675 = vrot.lane.b32.xlu0 %v1296, 31
      %v1676 = vpop.permute.xlu0 %1675
      %1677 = vrot.lane.b32.xlu0 %v1297, 31
      %v1678 = vpop.permute.xlu0 %1677
      %1679 = vrot.lane.b32.xlu0 %v1298, 31
      %v1680 = vpop.permute.xlu0 %1679
      %1681 = vrot.lane.b32.xlu0 %v1299, 31
      %v1682 = vpop.permute.xlu0 %1681
      %1683 = vrot.lane.b32.xlu0 %v1300, 31
      %v1684 = vpop.permute.xlu0 %1683
      %1685 = vrot.lane.b32.xlu0 %v1301, 31
      %v1686 = vpop.permute.xlu0 %1685
      %1687 = vrot.lane.b32.xlu0 %v1302, 31
      %v1688 = vpop.permute.xlu0 %1687
      %1689 = vrot.lane.b32.xlu0 %v1303, 31
      %v1690 = vpop.permute.xlu0 %1689
      %1691 = vrot.lane.b32.xlu0 %v1304, 31
      %v1692 = vpop.permute.xlu0 %1691
      %v1693 = vsel %vm729, %v1630, %v1632
      %v1694 = vsel %vm729, %v1632, %v1634
      %v1695 = vsel %vm729, %v1634, %v1636
      %v1696 = vsel %vm729, %v1636, %v1638
      %v1697 = vsel %vm729, %v1638, %v1640
      %v1698 = vsel %vm729, %v1640, %v1642
      %v1699 = vsel %vm729, %v1642, %v1644
      %v1700 = vsel %vm729, %v1646, %v1648
      %v1701 = vsel %vm729, %v1648, %v1650
      %v1702 = vsel %vm729, %v1650, %v1652
      %v1703 = vsel %vm729, %v1652, %v1654
      %v1704 = vsel %vm729, %v1654, %v1656
      %v1705 = vsel %vm729, %v1656, %v1658
      %v1706 = vsel %vm729, %v1658, %v1660
      %v1707 = vsel %vm729, %v1662, %v1664
      %v1708 = vsel %vm729, %v1664, %v1666
      %v1709 = vsel %vm729, %v1666, %v1668
      %v1710 = vsel %vm729, %v1668, %v1670
      %v1711 = vsel %vm729, %v1670, %v1672
      %v1712 = vsel %vm729, %v1672, %v1674
      %v1713 = vsel %vm729, %v1674, %v1676
      %v1714 = vsel %vm729, %v1678, %v1680
      %v1715 = vsel %vm729, %v1680, %v1682
      %v1716 = vsel %vm729, %v1682, %v1684
      %v1717 = vsel %vm729, %v1684, %v1686
      %v1718 = vsel %vm729, %v1686, %v1688
      %v1719 = vsel %vm729, %v1688, %v1690
      %v1720 = vsel %vm729, %v1690, %v1692
      %v1753 = vsel %vm729, 0.0, %v1630
      %v1754 = vsel %vm729, 0.0, %v1646
      %v1755 = vsel %vm729, 0.0, %v1662
      %v1756 = vsel %vm729, 0.0, %v1678
      %v1757 = vsel %vm762, %v1753, 0.0
      %v1758 = vsel %vm763, %v1693, 0.0
      %v1759 = vsel %vm764, %v1694, 0.0
      %v1760 = vsel %vm765, %v1695, 0.0
      %v1761 = vsel %vm766, %v1696, 0.0
      %v1762 = vsel %vm767, %v1697, 0.0
      %v1763 = vsel %vm768, %v1698, 0.0
      %v1764 = vsel %vm769, %v1699, 0.0
      %v1765 = vsel %vm762, %v1754, 0.0
      %v1766 = vsel %vm763, %v1700, 0.0
      %v1767 = vsel %vm764, %v1701, 0.0
      %v1768 = vsel %vm765, %v1702, 0.0
      %v1769 = vsel %vm766, %v1703, 0.0
      %v1770 = vsel %vm767, %v1704, 0.0
      %v1771 = vsel %vm768, %v1705, 0.0
      %v1772 = vsel %vm769, %v1706, 0.0
      %v1773 = vsel %vm762, %v1755, 0.0
      %v1774 = vsel %vm763, %v1707, 0.0
      %v1775 = vsel %vm764, %v1708, 0.0
      %v1776 = vsel %vm765, %v1709, 0.0
      %v1777 = vsel %vm766, %v1710, 0.0
      %v1778 = vsel %vm767, %v1711, 0.0
      %v1779 = vsel %vm768, %v1712, 0.0
      %v1780 = vsel %vm769, %v1713, 0.0
      %v1781 = vsel %vm762, %v1756, 0.0
      %v1782 = vsel %vm763, %v1714, 0.0
      %v1783 = vsel %vm764, %v1715, 0.0
      %v1784 = vsel %vm765, %v1716, 0.0
      %v1785 = vsel %vm766, %v1717, 0.0
      %v1786 = vsel %vm767, %v1718, 0.0
      %v1787 = vsel %vm768, %v1719, 0.0
      %v1788 = vsel %vm769, %v1720, 0.0
      %1789 = vrot.lane.b32.xlu0 %v1273, 1
      %v1790 = vpop.permute.xlu0 %1789
      %1791 = vrot.lane.b32.xlu0 %v1274, 1
      %v1792 = vpop.permute.xlu0 %1791
      %1793 = vrot.lane.b32.xlu0 %v1275, 1
      %v1794 = vpop.permute.xlu0 %1793
      %1795 = vrot.lane.b32.xlu0 %v1276, 1
      %v1796 = vpop.permute.xlu0 %1795
      %1797 = vrot.lane.b32.xlu0 %v1277, 1
      %v1798 = vpop.permute.xlu0 %1797
      %1799 = vrot.lane.b32.xlu0 %v1278, 1
      %v1800 = vpop.permute.xlu0 %1799
      %1801 = vrot.lane.b32.xlu0 %v1279, 1
      %v1802 = vpop.permute.xlu0 %1801
      %1803 = vrot.lane.b32.xlu0 %v1280, 1
      %v1804 = vpop.permute.xlu0 %1803
      %1805 = vrot.lane.b32.xlu0 %v1281, 1
      %v1806 = vpop.permute.xlu0 %1805
      %1807 = vrot.lane.b32.xlu0 %v1282, 1
      %v1808 = vpop.permute.xlu0 %1807
      %1809 = vrot.lane.b32.xlu0 %v1283, 1
      %v1810 = vpop.permute.xlu0 %1809
      %1811 = vrot.lane.b32.xlu0 %v1284, 1
      %v1812 = vpop.permute.xlu0 %1811
      %1813 = vrot.lane.b32.xlu0 %v1285, 1
      %v1814 = vpop.permute.xlu0 %1813
      %1815 = vrot.lane.b32.xlu0 %v1286, 1
      %v1816 = vpop.permute.xlu0 %1815
      %1817 = vrot.lane.b32.xlu0 %v1287, 1
      %v1818 = vpop.permute.xlu0 %1817
      %1819 = vrot.lane.b32.xlu0 %v1288, 1
      %v1820 = vpop.permute.xlu0 %1819
      %1821 = vrot.lane.b32.xlu0 %v1289, 1
      %v1822 = vpop.permute.xlu0 %1821
      %1823 = vrot.lane.b32.xlu0 %v1290, 1
      %v1824 = vpop.permute.xlu0 %1823
      %1825 = vrot.lane.b32.xlu0 %v1291, 1
      %v1826 = vpop.permute.xlu0 %1825
      %1827 = vrot.lane.b32.xlu0 %v1292, 1
      %v1828 = vpop.permute.xlu0 %1827
      %1829 = vrot.lane.b32.xlu0 %v1293, 1
      %v1830 = vpop.permute.xlu0 %1829
      %1831 = vrot.lane.b32.xlu0 %v1294, 1
      %v1832 = vpop.permute.xlu0 %1831
      %1833 = vrot.lane.b32.xlu0 %v1295, 1
      %v1834 = vpop.permute.xlu0 %1833
      %1835 = vrot.lane.b32.xlu0 %v1296, 1
      %v1836 = vpop.permute.xlu0 %1835
      %1837 = vrot.lane.b32.xlu0 %v1297, 1
      %v1838 = vpop.permute.xlu0 %1837
      %1839 = vrot.lane.b32.xlu0 %v1298, 1
      %v1840 = vpop.permute.xlu0 %1839
      %1841 = vrot.lane.b32.xlu0 %v1299, 1
      %v1842 = vpop.permute.xlu0 %1841
      %1843 = vrot.lane.b32.xlu0 %v1300, 1
      %v1844 = vpop.permute.xlu0 %1843
      %1845 = vrot.lane.b32.xlu0 %v1301, 1
      %v1846 = vpop.permute.xlu0 %1845
      %1847 = vrot.lane.b32.xlu0 %v1302, 1
      %v1848 = vpop.permute.xlu0 %1847
      %1849 = vrot.lane.b32.xlu0 %v1303, 1
      %v1850 = vpop.permute.xlu0 %1849
      %1851 = vrot.lane.b32.xlu0 %v1304, 1
      %v1852 = vpop.permute.xlu0 %1851
      %v1853 = vsel %vm794, %v1790, %v1792
      %v1854 = vsel %vm794, %v1792, %v1794
      %v1855 = vsel %vm794, %v1794, %v1796
      %v1856 = vsel %vm794, %v1796, %v1798
      %v1857 = vsel %vm794, %v1798, %v1800
      %v1858 = vsel %vm794, %v1800, %v1802
      %v1859 = vsel %vm794, %v1802, %v1804
      %v1860 = vsel %vm794, %v1806, %v1808
      %v1861 = vsel %vm794, %v1808, %v1810
      %v1862 = vsel %vm794, %v1810, %v1812
      %v1863 = vsel %vm794, %v1812, %v1814
      %v1864 = vsel %vm794, %v1814, %v1816
      %v1865 = vsel %vm794, %v1816, %v1818
      %v1866 = vsel %vm794, %v1818, %v1820
      %v1867 = vsel %vm794, %v1822, %v1824
      %v1868 = vsel %vm794, %v1824, %v1826
      %v1869 = vsel %vm794, %v1826, %v1828
      %v1870 = vsel %vm794, %v1828, %v1830
      %v1871 = vsel %vm794, %v1830, %v1832
      %v1872 = vsel %vm794, %v1832, %v1834
      %v1873 = vsel %vm794, %v1834, %v1836
      %v1874 = vsel %vm794, %v1838, %v1840
      %v1875 = vsel %vm794, %v1840, %v1842
      %v1876 = vsel %vm794, %v1842, %v1844
      %v1877 = vsel %vm794, %v1844, %v1846
      %v1878 = vsel %vm794, %v1846, %v1848
      %v1879 = vsel %vm794, %v1848, %v1850
      %v1880 = vsel %vm794, %v1850, %v1852
      %v1913 = vsel %vm794, 0.0, %v1790
      %v1914 = vsel %vm794, 0.0, %v1806
      %v1915 = vsel %vm794, 0.0, %v1822
      %v1916 = vsel %vm794, 0.0, %v1838
      %v1917 = vsel %vm664, %v1913, 0.0
      %v1918 = vsel %vm665, %v1853, 0.0
      %v1919 = vsel %vm666, %v1854, 0.0
      %v1920 = vsel %vm667, %v1855, 0.0
      %v1921 = vsel %vm668, %v1856, 0.0
      %v1922 = vsel %vm669, %v1857, 0.0
      %v1923 = vsel %vm670, %v1858, 0.0
      %v1924 = vsel %vm671, %v1859, 0.0
      %v1925 = vsel %vm664, %v1914, 0.0
      %v1926 = vsel %vm665, %v1860, 0.0
      %v1927 = vsel %vm666, %v1861, 0.0
      %v1928 = vsel %vm667, %v1862, 0.0
      %v1929 = vsel %vm668, %v1863, 0.0
      %v1930 = vsel %vm669, %v1864, 0.0
      %v1931 = vsel %vm670, %v1865, 0.0
      %v1932 = vsel %vm671, %v1866, 0.0
      %v1933 = vsel %vm664, %v1915, 0.0
      %v1934 = vsel %vm665, %v1867, 0.0
      %v1935 = vsel %vm666, %v1868, 0.0
      %v1936 = vsel %vm667, %v1869, 0.0
      %v1937 = vsel %vm668, %v1870, 0.0
      %v1938 = vsel %vm669, %v1871, 0.0
      %v1939 = vsel %vm670, %v1872, 0.0
      %v1940 = vsel %vm671, %v1873, 0.0
      %v1941 = vsel %vm664, %v1916, 0.0
      %v1942 = vsel %vm665, %v1874, 0.0
      %v1943 = vsel %vm666, %v1875, 0.0
      %v1944 = vsel %vm667, %v1876, 0.0
      %v1945 = vsel %vm668, %v1877, 0.0
      %v1946 = vsel %vm669, %v1878, 0.0
      %v1947 = vsel %vm670, %v1879, 0.0
      %v1948 = vsel %vm671, %v1880, 0.0
      %1949 = vrot.lane.b32.xlu0 %v1273, 127
      %v1950 = vpop.permute.xlu0 %1949
      %1951 = vrot.lane.b32.xlu0 %v1274, 127
      %v1952 = vpop.permute.xlu0 %1951
      %1953 = vrot.lane.b32.xlu0 %v1275, 127
      %v1954 = vpop.permute.xlu0 %1953
      %1955 = vrot.lane.b32.xlu0 %v1276, 127
      %v1956 = vpop.permute.xlu0 %1955
      %1957 = vrot.lane.b32.xlu0 %v1277, 127
      %v1958 = vpop.permute.xlu0 %1957
      %1959 = vrot.lane.b32.xlu0 %v1278, 127
      %v1960 = vpop.permute.xlu0 %1959
      %1961 = vrot.lane.b32.xlu0 %v1279, 127
      %v1962 = vpop.permute.xlu0 %1961
      %1963 = vrot.lane.b32.xlu0 %v1280, 127
      %v1964 = vpop.permute.xlu0 %1963
      %1965 = vrot.lane.b32.xlu0 %v1281, 127
      %v1966 = vpop.permute.xlu0 %1965
      %1967 = vrot.lane.b32.xlu0 %v1282, 127
      %v1968 = vpop.permute.xlu0 %1967
      %1969 = vrot.lane.b32.xlu0 %v1283, 127
      %v1970 = vpop.permute.xlu0 %1969
      %1971 = vrot.lane.b32.xlu0 %v1284, 127
      %v1972 = vpop.permute.xlu0 %1971
      %1973 = vrot.lane.b32.xlu0 %v1285, 127
      %v1974 = vpop.permute.xlu0 %1973
      %1975 = vrot.lane.b32.xlu0 %v1286, 127
      %v1976 = vpop.permute.xlu0 %1975
      %1977 = vrot.lane.b32.xlu0 %v1287, 127
      %v1978 = vpop.permute.xlu0 %1977
      %1979 = vrot.lane.b32.xlu0 %v1288, 127
      %v1980 = vpop.permute.xlu0 %1979
      %1981 = vrot.lane.b32.xlu0 %v1289, 127
      %v1982 = vpop.permute.xlu0 %1981
      %1983 = vrot.lane.b32.xlu0 %v1290, 127
      %v1984 = vpop.permute.xlu0 %1983
      %1985 = vrot.lane.b32.xlu0 %v1291, 127
      %v1986 = vpop.permute.xlu0 %1985
      %1987 = vrot.lane.b32.xlu0 %v1292, 127
      %v1988 = vpop.permute.xlu0 %1987
      %1989 = vrot.lane.b32.xlu0 %v1293, 127
      %v1990 = vpop.permute.xlu0 %1989
      %1991 = vrot.lane.b32.xlu0 %v1294, 127
      %v1992 = vpop.permute.xlu0 %1991
      %1993 = vrot.lane.b32.xlu0 %v1295, 127
      %v1994 = vpop.permute.xlu0 %1993
      %1995 = vrot.lane.b32.xlu0 %v1296, 127
      %v1996 = vpop.permute.xlu0 %1995
      %1997 = vrot.lane.b32.xlu0 %v1297, 127
      %v1998 = vpop.permute.xlu0 %1997
      %1999 = vrot.lane.b32.xlu0 %v1298, 127
      %v2000 = vpop.permute.xlu0 %1999
      %2001 = vrot.lane.b32.xlu0 %v1299, 127
      %v2002 = vpop.permute.xlu0 %2001
      %2003 = vrot.lane.b32.xlu0 %v1300, 127
      %v2004 = vpop.permute.xlu0 %2003
      %2005 = vrot.lane.b32.xlu0 %v1301, 127
      %v2006 = vpop.permute.xlu0 %2005
      %2007 = vrot.lane.b32.xlu0 %v1302, 127
      %v2008 = vpop.permute.xlu0 %2007
      %2009 = vrot.lane.b32.xlu0 %v1303, 127
      %v2010 = vpop.permute.xlu0 %2009
      %2011 = vrot.lane.b32.xlu0 %v1304, 127
      %v2012 = vpop.permute.xlu0 %2011
      %v2013 = vsel %vm835, %v1950, %v1952
      %v2014 = vsel %vm835, %v1952, %v1954
      %v2015 = vsel %vm835, %v1954, %v1956
      %v2016 = vsel %vm835, %v1956, %v1958
      %v2017 = vsel %vm835, %v1958, %v1960
      %v2018 = vsel %vm835, %v1960, %v1962
      %v2019 = vsel %vm835, %v1962, %v1964
      %v2020 = vsel %vm835, %v1966, %v1968
      %v2021 = vsel %vm835, %v1968, %v1970
      %v2022 = vsel %vm835, %v1970, %v1972
      %v2023 = vsel %vm835, %v1972, %v1974
      %v2024 = vsel %vm835, %v1974, %v1976
      %v2025 = vsel %vm835, %v1976, %v1978
      %v2026 = vsel %vm835, %v1978, %v1980
      %v2027 = vsel %vm835, %v1982, %v1984
      %v2028 = vsel %vm835, %v1984, %v1986
      %v2029 = vsel %vm835, %v1986, %v1988
      %v2030 = vsel %vm835, %v1988, %v1990
      %v2031 = vsel %vm835, %v1990, %v1992
      %v2032 = vsel %vm835, %v1992, %v1994
      %v2033 = vsel %vm835, %v1994, %v1996
      %v2034 = vsel %vm835, %v1998, %v2000
      %v2035 = vsel %vm835, %v2000, %v2002
      %v2036 = vsel %vm835, %v2002, %v2004
      %v2037 = vsel %vm835, %v2004, %v2006
      %v2038 = vsel %vm835, %v2006, %v2008
      %v2039 = vsel %vm835, %v2008, %v2010
      %v2040 = vsel %vm835, %v2010, %v2012
      %v2073 = vsel %vm835, %v1964, 0.0
      %v2074 = vsel %vm835, %v1980, 0.0
      %v2075 = vsel %vm835, %v1996, 0.0
      %v2076 = vsel %vm835, %v2012, 0.0
      %v2077 = vsel %vm762, %v2013, 0.0
      %v2078 = vsel %vm763, %v2014, 0.0
      %v2079 = vsel %vm764, %v2015, 0.0
      %v2080 = vsel %vm765, %v2016, 0.0
      %v2081 = vsel %vm766, %v2017, 0.0
      %v2082 = vsel %vm767, %v2018, 0.0
      %v2083 = vsel %vm768, %v2019, 0.0
      %v2084 = vsel %vm769, %v2073, 0.0
      %v2085 = vsel %vm762, %v2020, 0.0
      %v2086 = vsel %vm763, %v2021, 0.0
      %v2087 = vsel %vm764, %v2022, 0.0
      %v2088 = vsel %vm765, %v2023, 0.0
      %v2089 = vsel %vm766, %v2024, 0.0
      %v2090 = vsel %vm767, %v2025, 0.0
      %v2091 = vsel %vm768, %v2026, 0.0
      %v2092 = vsel %vm769, %v2074, 0.0
      %v2093 = vsel %vm762, %v2027, 0.0
      %v2094 = vsel %vm763, %v2028, 0.0
      %v2095 = vsel %vm764, %v2029, 0.0
      %v2096 = vsel %vm765, %v2030, 0.0
      %v2097 = vsel %vm766, %v2031, 0.0
      %v2098 = vsel %vm767, %v2032, 0.0
      %v2099 = vsel %vm768, %v2033, 0.0
      %v2100 = vsel %vm769, %v2075, 0.0
      %v2101 = vsel %vm762, %v2034, 0.0
      %v2102 = vsel %vm763, %v2035, 0.0
      %v2103 = vsel %vm764, %v2036, 0.0
      %v2104 = vsel %vm765, %v2037, 0.0
      %v2105 = vsel %vm766, %v2038, 0.0
      %v2106 = vsel %vm767, %v2039, 0.0
      %v2107 = vsel %vm768, %v2040, 0.0
      %v2108 = vsel %vm769, %v2076, 0.0
      %2109 = vrot.lane.b32.xlu0 %v1273, 97
      %v2110 = vpop.permute.xlu0 %2109
      %2111 = vrot.lane.b32.xlu0 %v1274, 97
      %v2112 = vpop.permute.xlu0 %2111
      %2113 = vrot.lane.b32.xlu0 %v1275, 97
      %v2114 = vpop.permute.xlu0 %2113
      %2115 = vrot.lane.b32.xlu0 %v1276, 97
      %v2116 = vpop.permute.xlu0 %2115
      %2117 = vrot.lane.b32.xlu0 %v1277, 97
      %v2118 = vpop.permute.xlu0 %2117
      %2119 = vrot.lane.b32.xlu0 %v1278, 97
      %v2120 = vpop.permute.xlu0 %2119
      %2121 = vrot.lane.b32.xlu0 %v1279, 97
      %v2122 = vpop.permute.xlu0 %2121
      %2123 = vrot.lane.b32.xlu0 %v1280, 97
      %v2124 = vpop.permute.xlu0 %2123
      %2125 = vrot.lane.b32.xlu0 %v1281, 97
      %v2126 = vpop.permute.xlu0 %2125
      %2127 = vrot.lane.b32.xlu0 %v1282, 97
      %v2128 = vpop.permute.xlu0 %2127
      %2129 = vrot.lane.b32.xlu0 %v1283, 97
      %v2130 = vpop.permute.xlu0 %2129
      %2131 = vrot.lane.b32.xlu0 %v1284, 97
      %v2132 = vpop.permute.xlu0 %2131
      %2133 = vrot.lane.b32.xlu0 %v1285, 97
      %v2134 = vpop.permute.xlu0 %2133
      %2135 = vrot.lane.b32.xlu0 %v1286, 97
      %v2136 = vpop.permute.xlu0 %2135
      %2137 = vrot.lane.b32.xlu0 %v1287, 97
      %v2138 = vpop.permute.xlu0 %2137
      %2139 = vrot.lane.b32.xlu0 %v1288, 97
      %v2140 = vpop.permute.xlu0 %2139
      %2141 = vrot.lane.b32.xlu0 %v1289, 97
      %v2142 = vpop.permute.xlu0 %2141
      %2143 = vrot.lane.b32.xlu0 %v1290, 97
      %v2144 = vpop.permute.xlu0 %2143
      %2145 = vrot.lane.b32.xlu0 %v1291, 97
      %v2146 = vpop.permute.xlu0 %2145
      %2147 = vrot.lane.b32.xlu0 %v1292, 97
      %v2148 = vpop.permute.xlu0 %2147
      %2149 = vrot.lane.b32.xlu0 %v1293, 97
      %v2150 = vpop.permute.xlu0 %2149
      %2151 = vrot.lane.b32.xlu0 %v1294, 97
      %v2152 = vpop.permute.xlu0 %2151
      %2153 = vrot.lane.b32.xlu0 %v1295, 97
      %v2154 = vpop.permute.xlu0 %2153
      %2155 = vrot.lane.b32.xlu0 %v1296, 97
      %v2156 = vpop.permute.xlu0 %2155
      %2157 = vrot.lane.b32.xlu0 %v1297, 97
      %v2158 = vpop.permute.xlu0 %2157
      %2159 = vrot.lane.b32.xlu0 %v1298, 97
      %v2160 = vpop.permute.xlu0 %2159
      %2161 = vrot.lane.b32.xlu0 %v1299, 97
      %v2162 = vpop.permute.xlu0 %2161
      %2163 = vrot.lane.b32.xlu0 %v1300, 97
      %v2164 = vpop.permute.xlu0 %2163
      %2165 = vrot.lane.b32.xlu0 %v1301, 97
      %v2166 = vpop.permute.xlu0 %2165
      %2167 = vrot.lane.b32.xlu0 %v1302, 97
      %v2168 = vpop.permute.xlu0 %2167
      %2169 = vrot.lane.b32.xlu0 %v1303, 97
      %v2170 = vpop.permute.xlu0 %2169
      %2171 = vrot.lane.b32.xlu0 %v1304, 97
      %v2172 = vpop.permute.xlu0 %2171
      %v2173 = vsel %vm876, %v2110, %v2112
      %v2174 = vsel %vm876, %v2112, %v2114
      %v2175 = vsel %vm876, %v2114, %v2116
      %v2176 = vsel %vm876, %v2116, %v2118
      %v2177 = vsel %vm876, %v2118, %v2120
      %v2178 = vsel %vm876, %v2120, %v2122
      %v2179 = vsel %vm876, %v2122, %v2124
      %v2180 = vsel %vm876, %v2126, %v2128
      %v2181 = vsel %vm876, %v2128, %v2130
      %v2182 = vsel %vm876, %v2130, %v2132
      %v2183 = vsel %vm876, %v2132, %v2134
      %v2184 = vsel %vm876, %v2134, %v2136
      %v2185 = vsel %vm876, %v2136, %v2138
      %v2186 = vsel %vm876, %v2138, %v2140
      %v2187 = vsel %vm876, %v2142, %v2144
      %v2188 = vsel %vm876, %v2144, %v2146
      %v2189 = vsel %vm876, %v2146, %v2148
      %v2190 = vsel %vm876, %v2148, %v2150
      %v2191 = vsel %vm876, %v2150, %v2152
      %v2192 = vsel %vm876, %v2152, %v2154
      %v2193 = vsel %vm876, %v2154, %v2156
      %v2194 = vsel %vm876, %v2158, %v2160
      %v2195 = vsel %vm876, %v2160, %v2162
      %v2196 = vsel %vm876, %v2162, %v2164
      %v2197 = vsel %vm876, %v2164, %v2166
      %v2198 = vsel %vm876, %v2166, %v2168
      %v2199 = vsel %vm876, %v2168, %v2170
      %v2200 = vsel %vm876, %v2170, %v2172
      %v2233 = vsel %vm876, %v2124, 0.0
      %v2234 = vsel %vm876, %v2140, 0.0
      %v2235 = vsel %vm876, %v2156, 0.0
      %v2236 = vsel %vm876, %v2172, 0.0
      %v2237 = vsel %vm664, %v2173, 0.0
      %v2238 = vsel %vm665, %v2174, 0.0
      %v2239 = vsel %vm666, %v2175, 0.0
      %v2240 = vsel %vm667, %v2176, 0.0
      %v2241 = vsel %vm668, %v2177, 0.0
      %v2242 = vsel %vm669, %v2178, 0.0
      %v2243 = vsel %vm670, %v2179, 0.0
      %v2244 = vsel %vm671, %v2233, 0.0
      %v2245 = vsel %vm664, %v2180, 0.0
      %v2246 = vsel %vm665, %v2181, 0.0
      %v2247 = vsel %vm666, %v2182, 0.0
      %v2248 = vsel %vm667, %v2183, 0.0
      %v2249 = vsel %vm668, %v2184, 0.0
      %v2250 = vsel %vm669, %v2185, 0.0
      %v2251 = vsel %vm670, %v2186, 0.0
      %v2252 = vsel %vm671, %v2234, 0.0
      %v2253 = vsel %vm664, %v2187, 0.0
      %v2254 = vsel %vm665, %v2188, 0.0
      %v2255 = vsel %vm666, %v2189, 0.0
      %v2256 = vsel %vm667, %v2190, 0.0
      %v2257 = vsel %vm668, %v2191, 0.0
      %v2258 = vsel %vm669, %v2192, 0.0
      %v2259 = vsel %vm670, %v2193, 0.0
      %v2260 = vsel %vm671, %v2235, 0.0
      %v2261 = vsel %vm664, %v2194, 0.0
      %v2262 = vsel %vm665, %v2195, 0.0
      %v2263 = vsel %vm666, %v2196, 0.0
      %v2264 = vsel %vm667, %v2197, 0.0
      %v2265 = vsel %vm668, %v2198, 0.0
      %v2266 = vsel %vm669, %v2199, 0.0
      %v2267 = vsel %vm670, %v2200, 0.0
      %v2268 = vsel %vm671, %v2236, 0.0
      %2269 = vrot.lane.b32.xlu0 %v1273, 96
      %v2270 = vpop.permute.xlu0 %2269
      %2271 = vrot.lane.b32.xlu0 %v1274, 96
      %v2272 = vpop.permute.xlu0 %2271
      %2273 = vrot.lane.b32.xlu0 %v1275, 96
      %v2274 = vpop.permute.xlu0 %2273
      %2275 = vrot.lane.b32.xlu0 %v1276, 96
      %v2276 = vpop.permute.xlu0 %2275
      %2277 = vrot.lane.b32.xlu0 %v1277, 96
      %v2278 = vpop.permute.xlu0 %2277
      %2279 = vrot.lane.b32.xlu0 %v1278, 96
      %v2280 = vpop.permute.xlu0 %2279
      %2281 = vrot.lane.b32.xlu0 %v1279, 96
      %v2282 = vpop.permute.xlu0 %2281
      %2283 = vrot.lane.b32.xlu0 %v1280, 96
      %v2284 = vpop.permute.xlu0 %2283
      %2285 = vrot.lane.b32.xlu0 %v1281, 96
      %v2286 = vpop.permute.xlu0 %2285
      %2287 = vrot.lane.b32.xlu0 %v1282, 96
      %v2288 = vpop.permute.xlu0 %2287
      %2289 = vrot.lane.b32.xlu0 %v1283, 96
      %v2290 = vpop.permute.xlu0 %2289
      %2291 = vrot.lane.b32.xlu0 %v1284, 96
      %v2292 = vpop.permute.xlu0 %2291
      %2293 = vrot.lane.b32.xlu0 %v1285, 96
      %v2294 = vpop.permute.xlu0 %2293
      %2295 = vrot.lane.b32.xlu0 %v1286, 96
      %v2296 = vpop.permute.xlu0 %2295
      %2297 = vrot.lane.b32.xlu0 %v1287, 96
      %v2298 = vpop.permute.xlu0 %2297
      %2299 = vrot.lane.b32.xlu0 %v1288, 96
      %v2300 = vpop.permute.xlu0 %2299
      %2301 = vrot.lane.b32.xlu0 %v1289, 96
      %v2302 = vpop.permute.xlu0 %2301
      %2303 = vrot.lane.b32.xlu0 %v1290, 96
      %v2304 = vpop.permute.xlu0 %2303
      %2305 = vrot.lane.b32.xlu0 %v1291, 96
      %v2306 = vpop.permute.xlu0 %2305
      %2307 = vrot.lane.b32.xlu0 %v1292, 96
      %v2308 = vpop.permute.xlu0 %2307
      %2309 = vrot.lane.b32.xlu0 %v1293, 96
      %v2310 = vpop.permute.xlu0 %2309
      %2311 = vrot.lane.b32.xlu0 %v1294, 96
      %v2312 = vpop.permute.xlu0 %2311
      %2313 = vrot.lane.b32.xlu0 %v1295, 96
      %v2314 = vpop.permute.xlu0 %2313
      %2315 = vrot.lane.b32.xlu0 %v1296, 96
      %v2316 = vpop.permute.xlu0 %2315
      %2317 = vrot.lane.b32.xlu0 %v1297, 96
      %v2318 = vpop.permute.xlu0 %2317
      %2319 = vrot.lane.b32.xlu0 %v1298, 96
      %v2320 = vpop.permute.xlu0 %2319
      %2321 = vrot.lane.b32.xlu0 %v1299, 96
      %v2322 = vpop.permute.xlu0 %2321
      %2323 = vrot.lane.b32.xlu0 %v1300, 96
      %v2324 = vpop.permute.xlu0 %2323
      %2325 = vrot.lane.b32.xlu0 %v1301, 96
      %v2326 = vpop.permute.xlu0 %2325
      %2327 = vrot.lane.b32.xlu0 %v1302, 96
      %v2328 = vpop.permute.xlu0 %2327
      %2329 = vrot.lane.b32.xlu0 %v1303, 96
      %v2330 = vpop.permute.xlu0 %2329
      %2331 = vrot.lane.b32.xlu0 %v1304, 96
      %v2332 = vpop.permute.xlu0 %2331
      %v2333 = vsel %vm917, %v2270, %v2272
      %v2334 = vsel %vm917, %v2272, %v2274
      %v2335 = vsel %vm917, %v2274, %v2276
      %v2336 = vsel %vm917, %v2276, %v2278
      %v2337 = vsel %vm917, %v2278, %v2280
      %v2338 = vsel %vm917, %v2280, %v2282
      %v2339 = vsel %vm917, %v2282, %v2284
      %v2340 = vsel %vm917, %v2286, %v2288
      %v2341 = vsel %vm917, %v2288, %v2290
      %v2342 = vsel %vm917, %v2290, %v2292
      %v2343 = vsel %vm917, %v2292, %v2294
      %v2344 = vsel %vm917, %v2294, %v2296
      %v2345 = vsel %vm917, %v2296, %v2298
      %v2346 = vsel %vm917, %v2298, %v2300
      %v2347 = vsel %vm917, %v2302, %v2304
      %v2348 = vsel %vm917, %v2304, %v2306
      %v2349 = vsel %vm917, %v2306, %v2308
      %v2350 = vsel %vm917, %v2308, %v2310
      %v2351 = vsel %vm917, %v2310, %v2312
      %v2352 = vsel %vm917, %v2312, %v2314
      %v2353 = vsel %vm917, %v2314, %v2316
      %v2354 = vsel %vm917, %v2318, %v2320
      %v2355 = vsel %vm917, %v2320, %v2322
      %v2356 = vsel %vm917, %v2322, %v2324
      %v2357 = vsel %vm917, %v2324, %v2326
      %v2358 = vsel %vm917, %v2326, %v2328
      %v2359 = vsel %vm917, %v2328, %v2330
      %v2360 = vsel %vm917, %v2330, %v2332
      %v2393 = vsel %vm917, %v2284, 0.0
      %v2394 = vsel %vm917, %v2300, 0.0
      %v2395 = vsel %vm917, %v2316, 0.0
      %v2396 = vsel %vm917, %v2332, 0.0
      %2397 = vrot.lane.b32.xlu0 %v1273, 95
      %v2398 = vpop.permute.xlu0 %2397
      %2399 = vrot.lane.b32.xlu0 %v1274, 95
      %v2400 = vpop.permute.xlu0 %2399
      %2401 = vrot.lane.b32.xlu0 %v1275, 95
      %v2402 = vpop.permute.xlu0 %2401
      %2403 = vrot.lane.b32.xlu0 %v1276, 95
      %v2404 = vpop.permute.xlu0 %2403
      %2405 = vrot.lane.b32.xlu0 %v1277, 95
      %v2406 = vpop.permute.xlu0 %2405
      %2407 = vrot.lane.b32.xlu0 %v1278, 95
      %v2408 = vpop.permute.xlu0 %2407
      %2409 = vrot.lane.b32.xlu0 %v1279, 95
      %v2410 = vpop.permute.xlu0 %2409
      %2411 = vrot.lane.b32.xlu0 %v1280, 95
      %v2412 = vpop.permute.xlu0 %2411
      %2413 = vrot.lane.b32.xlu0 %v1281, 95
      %v2414 = vpop.permute.xlu0 %2413
      %2415 = vrot.lane.b32.xlu0 %v1282, 95
      %v2416 = vpop.permute.xlu0 %2415
      %2417 = vrot.lane.b32.xlu0 %v1283, 95
      %v2418 = vpop.permute.xlu0 %2417
      %2419 = vrot.lane.b32.xlu0 %v1284, 95
      %v2420 = vpop.permute.xlu0 %2419
      %2421 = vrot.lane.b32.xlu0 %v1285, 95
      %v2422 = vpop.permute.xlu0 %2421
      %2423 = vrot.lane.b32.xlu0 %v1286, 95
      %v2424 = vpop.permute.xlu0 %2423
      %2425 = vrot.lane.b32.xlu0 %v1287, 95
      %v2426 = vpop.permute.xlu0 %2425
      %2427 = vrot.lane.b32.xlu0 %v1288, 95
      %v2428 = vpop.permute.xlu0 %2427
      %2429 = vrot.lane.b32.xlu0 %v1289, 95
      %v2430 = vpop.permute.xlu0 %2429
      %2431 = vrot.lane.b32.xlu0 %v1290, 95
      %v2432 = vpop.permute.xlu0 %2431
      %2433 = vrot.lane.b32.xlu0 %v1291, 95
      %v2434 = vpop.permute.xlu0 %2433
      %2435 = vrot.lane.b32.xlu0 %v1292, 95
      %v2436 = vpop.permute.xlu0 %2435
      %2437 = vrot.lane.b32.xlu0 %v1293, 95
      %v2438 = vpop.permute.xlu0 %2437
      %2439 = vrot.lane.b32.xlu0 %v1294, 95
      %v2440 = vpop.permute.xlu0 %2439
      %2441 = vrot.lane.b32.xlu0 %v1295, 95
      %v2442 = vpop.permute.xlu0 %2441
      %2443 = vrot.lane.b32.xlu0 %v1296, 95
      %v2444 = vpop.permute.xlu0 %2443
      %2445 = vrot.lane.b32.xlu0 %v1297, 95
      %v2446 = vpop.permute.xlu0 %2445
      %2447 = vrot.lane.b32.xlu0 %v1298, 95
      %v2448 = vpop.permute.xlu0 %2447
      %2449 = vrot.lane.b32.xlu0 %v1299, 95
      %v2450 = vpop.permute.xlu0 %2449
      %2451 = vrot.lane.b32.xlu0 %v1300, 95
      %v2452 = vpop.permute.xlu0 %2451
      %2453 = vrot.lane.b32.xlu0 %v1301, 95
      %v2454 = vpop.permute.xlu0 %2453
      %2455 = vrot.lane.b32.xlu0 %v1302, 95
      %v2456 = vpop.permute.xlu0 %2455
      %2457 = vrot.lane.b32.xlu0 %v1303, 95
      %v2458 = vpop.permute.xlu0 %2457
      %2459 = vrot.lane.b32.xlu0 %v1304, 95
      %v2460 = vpop.permute.xlu0 %2459
      %v2461 = vsel %vm950, %v2398, %v2400
      %v2462 = vsel %vm950, %v2400, %v2402
      %v2463 = vsel %vm950, %v2402, %v2404
      %v2464 = vsel %vm950, %v2404, %v2406
      %v2465 = vsel %vm950, %v2406, %v2408
      %v2466 = vsel %vm950, %v2408, %v2410
      %v2467 = vsel %vm950, %v2410, %v2412
      %v2468 = vsel %vm950, %v2414, %v2416
      %v2469 = vsel %vm950, %v2416, %v2418
      %v2470 = vsel %vm950, %v2418, %v2420
      %v2471 = vsel %vm950, %v2420, %v2422
      %v2472 = vsel %vm950, %v2422, %v2424
      %v2473 = vsel %vm950, %v2424, %v2426
      %v2474 = vsel %vm950, %v2426, %v2428
      %v2475 = vsel %vm950, %v2430, %v2432
      %v2476 = vsel %vm950, %v2432, %v2434
      %v2477 = vsel %vm950, %v2434, %v2436
      %v2478 = vsel %vm950, %v2436, %v2438
      %v2479 = vsel %vm950, %v2438, %v2440
      %v2480 = vsel %vm950, %v2440, %v2442
      %v2481 = vsel %vm950, %v2442, %v2444
      %v2482 = vsel %vm950, %v2446, %v2448
      %v2483 = vsel %vm950, %v2448, %v2450
      %v2484 = vsel %vm950, %v2450, %v2452
      %v2485 = vsel %vm950, %v2452, %v2454
      %v2486 = vsel %vm950, %v2454, %v2456
      %v2487 = vsel %vm950, %v2456, %v2458
      %v2488 = vsel %vm950, %v2458, %v2460
      %v2521 = vsel %vm950, %v2412, 0.0
      %v2522 = vsel %vm950, %v2428, 0.0
      %v2523 = vsel %vm950, %v2444, 0.0
      %v2524 = vsel %vm950, %v2460, 0.0
      %v2525 = vsel %vm762, %v2461, 0.0
      %v2526 = vsel %vm763, %v2462, 0.0
      %v2527 = vsel %vm764, %v2463, 0.0
      %v2528 = vsel %vm765, %v2464, 0.0
      %v2529 = vsel %vm766, %v2465, 0.0
      %v2530 = vsel %vm767, %v2466, 0.0
      %v2531 = vsel %vm768, %v2467, 0.0
      %v2532 = vsel %vm769, %v2521, 0.0
      %v2533 = vsel %vm762, %v2468, 0.0
      %v2534 = vsel %vm763, %v2469, 0.0
      %v2535 = vsel %vm764, %v2470, 0.0
      %v2536 = vsel %vm765, %v2471, 0.0
      %v2537 = vsel %vm766, %v2472, 0.0
      %v2538 = vsel %vm767, %v2473, 0.0
      %v2539 = vsel %vm768, %v2474, 0.0
      %v2540 = vsel %vm769, %v2522, 0.0
      %v2541 = vsel %vm762, %v2475, 0.0
      %v2542 = vsel %vm763, %v2476, 0.0
      %v2543 = vsel %vm764, %v2477, 0.0
      %v2544 = vsel %vm765, %v2478, 0.0
      %v2545 = vsel %vm766, %v2479, 0.0
      %v2546 = vsel %vm767, %v2480, 0.0
      %v2547 = vsel %vm768, %v2481, 0.0
      %v2548 = vsel %vm769, %v2523, 0.0
      %v2549 = vsel %vm762, %v2482, 0.0
      %v2550 = vsel %vm763, %v2483, 0.0
      %v2551 = vsel %vm764, %v2484, 0.0
      %v2552 = vsel %vm765, %v2485, 0.0
      %v2553 = vsel %vm766, %v2486, 0.0
      %v2554 = vsel %vm767, %v2487, 0.0
      %v2555 = vsel %vm768, %v2488, 0.0
      %v2556 = vsel %vm769, %v2524, 0.0
      %v2557 = vpack.c.bf16 %v1477, %v1469
      %v2558 = vpack.c.bf16 %v1478, %v1470
      %v2559 = vpack.c.bf16 %v1479, %v1471
      %v2560 = vpack.c.bf16 %v1480, %v1472
      %v2561 = vpack.c.bf16 %v1481, %v1473
      %v2562 = vpack.c.bf16 %v1482, %v1474
      %v2563 = vpack.c.bf16 %v1483, %v1475
      %v2564 = vpack.c.bf16 %v1484, %v1476
      %v2565 = vpack.c.bf16 %v1493, %v1485
      %v2566 = vpack.c.bf16 %v1494, %v1486
      %v2567 = vpack.c.bf16 %v1495, %v1487
      %v2568 = vpack.c.bf16 %v1496, %v1488
      %v2569 = vpack.c.bf16 %v1497, %v1489
      %v2570 = vpack.c.bf16 %v1498, %v1490
      %v2571 = vpack.c.bf16 %v1499, %v1491
      %v2572 = vpack.c.bf16 %v1500, %v1492
      %v2573 = vpack.c.bf16 %v1626, %v1625
      %v2574 = vpack.c.bf16 %v1572, %v1565
      %v2575 = vpack.c.bf16 %v1573, %v1566
      %v2576 = vpack.c.bf16 %v1574, %v1567
      %v2577 = vpack.c.bf16 %v1575, %v1568
      %v2578 = vpack.c.bf16 %v1576, %v1569
      %v2579 = vpack.c.bf16 %v1577, %v1570
      %v2580 = vpack.c.bf16 %v1578, %v1571
      %v2581 = vpack.c.bf16 %v1628, %v1627
      %v2582 = vpack.c.bf16 %v1586, %v1579
      %v2583 = vpack.c.bf16 %v1587, %v1580
      %v2584 = vpack.c.bf16 %v1588, %v1581
      %v2585 = vpack.c.bf16 %v1589, %v1582
      %v2586 = vpack.c.bf16 %v1590, %v1583
      %v2587 = vpack.c.bf16 %v1591, %v1584
      %v2588 = vpack.c.bf16 %v1592, %v1585
      %v2589 = vpack.c.bf16 %v1765, %v1757
      %v2590 = vpack.c.bf16 %v1766, %v1758
      %v2591 = vpack.c.bf16 %v1767, %v1759
      %v2592 = vpack.c.bf16 %v1768, %v1760
      %v2593 = vpack.c.bf16 %v1769, %v1761
      %v2594 = vpack.c.bf16 %v1770, %v1762
      %v2595 = vpack.c.bf16 %v1771, %v1763
      %v2596 = vpack.c.bf16 %v1772, %v1764
      %v2597 = vpack.c.bf16 %v1781, %v1773
      %v2598 = vpack.c.bf16 %v1782, %v1774
      %v2599 = vpack.c.bf16 %v1783, %v1775
      %v2600 = vpack.c.bf16 %v1784, %v1776
      %v2601 = vpack.c.bf16 %v1785, %v1777
      %v2602 = vpack.c.bf16 %v1786, %v1778
      %v2603 = vpack.c.bf16 %v1787, %v1779
      %v2604 = vpack.c.bf16 %v1788, %v1780
      %v2605 = vpack.c.bf16 %v1925, %v1917
      %v2606 = vpack.c.bf16 %v1926, %v1918
      %v2607 = vpack.c.bf16 %v1927, %v1919
      %v2608 = vpack.c.bf16 %v1928, %v1920
      %v2609 = vpack.c.bf16 %v1929, %v1921
      %v2610 = vpack.c.bf16 %v1930, %v1922
      %v2611 = vpack.c.bf16 %v1931, %v1923
      %v2612 = vpack.c.bf16 %v1932, %v1924
      %v2613 = vpack.c.bf16 %v1941, %v1933
      %v2614 = vpack.c.bf16 %v1942, %v1934
      %v2615 = vpack.c.bf16 %v1943, %v1935
      %v2616 = vpack.c.bf16 %v1944, %v1936
      %v2617 = vpack.c.bf16 %v1945, %v1937
      %v2618 = vpack.c.bf16 %v1946, %v1938
      %v2619 = vpack.c.bf16 %v1947, %v1939
      %v2620 = vpack.c.bf16 %v1948, %v1940
      %v2621 = vpack.c.bf16 %v1281, %v1273
      %v2622 = vpack.c.bf16 %v1282, %v1274
      %v2623 = vpack.c.bf16 %v1283, %v1275
      %v2624 = vpack.c.bf16 %v1284, %v1276
      %v2625 = vpack.c.bf16 %v1285, %v1277
      %v2626 = vpack.c.bf16 %v1286, %v1278
      %v2627 = vpack.c.bf16 %v1287, %v1279
      %v2628 = vpack.c.bf16 %v1288, %v1280
      %v2629 = vpack.c.bf16 %v1297, %v1289
      %v2630 = vpack.c.bf16 %v1298, %v1290
      %v2631 = vpack.c.bf16 %v1299, %v1291
      %v2632 = vpack.c.bf16 %v1300, %v1292
      %v2633 = vpack.c.bf16 %v1301, %v1293
      %v2634 = vpack.c.bf16 %v1302, %v1294
      %v2635 = vpack.c.bf16 %v1303, %v1295
      %v2636 = vpack.c.bf16 %v1304, %v1296
      %v2637 = vpack.c.bf16 %v2085, %v2077
      %v2638 = vpack.c.bf16 %v2086, %v2078
      %v2639 = vpack.c.bf16 %v2087, %v2079
      %v2640 = vpack.c.bf16 %v2088, %v2080
      %v2641 = vpack.c.bf16 %v2089, %v2081
      %v2642 = vpack.c.bf16 %v2090, %v2082
      %v2643 = vpack.c.bf16 %v2091, %v2083
      %v2644 = vpack.c.bf16 %v2092, %v2084
      %v2645 = vpack.c.bf16 %v2101, %v2093
      %v2646 = vpack.c.bf16 %v2102, %v2094
      %v2647 = vpack.c.bf16 %v2103, %v2095
      %v2648 = vpack.c.bf16 %v2104, %v2096
      %v2649 = vpack.c.bf16 %v2105, %v2097
      %v2650 = vpack.c.bf16 %v2106, %v2098
      %v2651 = vpack.c.bf16 %v2107, %v2099
      %v2652 = vpack.c.bf16 %v2108, %v2100
      %v2653 = vpack.c.bf16 %v2245, %v2237
      %v2654 = vpack.c.bf16 %v2246, %v2238
      %v2655 = vpack.c.bf16 %v2247, %v2239
      %v2656 = vpack.c.bf16 %v2248, %v2240
      %v2657 = vpack.c.bf16 %v2249, %v2241
      %v2658 = vpack.c.bf16 %v2250, %v2242
      %v2659 = vpack.c.bf16 %v2251, %v2243
      %v2660 = vpack.c.bf16 %v2252, %v2244
      %v2661 = vpack.c.bf16 %v2261, %v2253
      %v2662 = vpack.c.bf16 %v2262, %v2254
      %v2663 = vpack.c.bf16 %v2263, %v2255
      %v2664 = vpack.c.bf16 %v2264, %v2256
      %v2665 = vpack.c.bf16 %v2265, %v2257
      %v2666 = vpack.c.bf16 %v2266, %v2258
      %v2667 = vpack.c.bf16 %v2267, %v2259
      %v2668 = vpack.c.bf16 %v2268, %v2260
      %v2669 = vpack.c.bf16 %v2340, %v2333
      %v2670 = vpack.c.bf16 %v2341, %v2334
      %v2671 = vpack.c.bf16 %v2342, %v2335
      %v2672 = vpack.c.bf16 %v2343, %v2336
      %v2673 = vpack.c.bf16 %v2344, %v2337
      %v2674 = vpack.c.bf16 %v2345, %v2338
      %v2675 = vpack.c.bf16 %v2346, %v2339
      %v2676 = vpack.c.bf16 %v2394, %v2393
      %v2677 = vpack.c.bf16 %v2354, %v2347
      %v2678 = vpack.c.bf16 %v2355, %v2348
      %v2679 = vpack.c.bf16 %v2356, %v2349
      %v2680 = vpack.c.bf16 %v2357, %v2350
      %v2681 = vpack.c.bf16 %v2358, %v2351
      %v2682 = vpack.c.bf16 %v2359, %v2352
      %v2683 = vpack.c.bf16 %v2360, %v2353
      %v2684 = vpack.c.bf16 %v2396, %v2395
      %v2685 = vpack.c.bf16 %v2533, %v2525
      %v2686 = vpack.c.bf16 %v2534, %v2526
      %v2687 = vpack.c.bf16 %v2535, %v2527
      %v2688 = vpack.c.bf16 %v2536, %v2528
      %v2689 = vpack.c.bf16 %v2537, %v2529
      %v2690 = vpack.c.bf16 %v2538, %v2530
      %v2691 = vpack.c.bf16 %v2539, %v2531
      %v2692 = vpack.c.bf16 %v2540, %v2532
      %v2693 = vpack.c.bf16 %v2549, %v2541
      %v2694 = vpack.c.bf16 %v2550, %v2542
      %v2695 = vpack.c.bf16 %v2551, %v2543
      %v2696 = vpack.c.bf16 %v2552, %v2544
      %v2697 = vpack.c.bf16 %v2553, %v2545
      %v2698 = vpack.c.bf16 %v2554, %v2546
      %v2699 = vpack.c.bf16 %v2555, %v2547
      %v2700 = vpack.c.bf16 %v2556, %v2548
      %v2701 = vld [vmem:[%s3] sm:$0xff]
      %v2702 = vld [vmem:[%s3 + $0x8] sm:$0xf]
      %v2703 = vld [vmem:[%s3 + $0xc] sm:$0xff]
      %v2704 = vld [vmem:[%s3 + $0x14] sm:$0xf]
      %v2705 = vld [vmem:[%s3 + $0x18] sm:$0xff]
      %v2706 = vld [vmem:[%s3 + $0x20] sm:$0xf]
      %v2707 = vld [vmem:[%s3 + $0x24] sm:$0xff]
      %v2708 = vld [vmem:[%s3 + $0x2c] sm:$0xf]
      %2710 = vset.pattern.permute.xlu0 0
      %2711 = vperm.xlu0 %2710, %v1305
      %v2712 = vpop.permute.xlu0 %2711
      %2715 = vset.pattern.permute.xlu0 0
      %2716 = vperm.xlu0 %2715, %v1306
      %v2717 = vpop.permute.xlu0 %2716
      %2720 = vset.pattern.permute.xlu0 0
      %2721 = vperm.xlu0 %2720, %v1307
      %v2722 = vpop.permute.xlu0 %2721
      %2725 = vset.pattern.permute.xlu0 0
      %2726 = vperm.xlu0 %2725, %v1308
      %v2727 = vpop.permute.xlu0 %2726
      %v2737 = vunpack.c.l.b16 %v2701
      %v2738 = vunpack.c.h.b16 %v2701
      %v2739 = vunpack.c.l.b16 %v2702
      %v2740 = vunpack.c.l.b16 %v2703
      %v2741 = vunpack.c.h.b16 %v2703
      %v2742 = vunpack.c.l.b16 %v2704
      %v2743 = vunpack.c.l.b16 %v2705
      %v2744 = vunpack.c.h.b16 %v2705
      %v2745 = vunpack.c.l.b16 %v2706
      %v2746 = vunpack.c.l.b16 %v2707
      %v2747 = vunpack.c.h.b16 %v2707
      %v2748 = vunpack.c.l.b16 %v2708
      %v2749 = vpack.c.b16 %v2740, %v2737
      %v2750 = vpack.c.b16 %v2741, %v2738
      %v2751 = vpack.c.b16 %v2742, %v2739
      %v2752 = vpack.c.b16 %v2746, %v2743
      %v2753 = vpack.c.b16 %v2747, %v2744
      %v2754 = vpack.c.b16 %v2748, %v2745
      %v2760 = vsel %vm696, %v2751, 0
      %v2763 = vsel %vm696, %v2754, 0
      %2765 = vmatprep.subr.bf16.mxu0 %v2614
      %2766 = vmatpush1.bf16.msra.mxu0 %v2613
      %2767 = vmatprep.subr.bf16.mxu0 %v2606
      %2768 = vmatpush1.bf16.msra.mxu0 %v2605
      %2769 = vmatprep.subr.bf16.mxu0 %v2598
      %2770 = vmatpush1.bf16.msra.mxu0 %v2597
      %2771 = vmatprep.subr.bf16.mxu0 %v2590
      %2772 = vmatpush1.bf16.msra.mxu0 %v2589
      %2773 = vmatprep.subr.bf16.mxu0 %v2582
      %2774 = vmatpush1.bf16.msra.mxu0 %v2581
      %2775 = vmatprep.subr.bf16.mxu0 %v2574
      %2776 = vmatpush1.bf16.msra.mxu0 %v2573
      %2777 = vmatprep.subr.bf16.mxu0 %v2566
      %2778 = vmatpush1.bf16.msra.mxu0 %v2565
      %2779 = vmatprep.subr.bf16.mxu0 %v2558
      %2780 = vmatpush1.bf16.msra.mxu0 %v2557
      %2781 = vmatprep.subr.bf16.mxu0 %v2678
      %2782 = vmatpush2.bf16.msra.mxu0 %v2677
      %2783 = vmatprep.subr.bf16.mxu0 %v2670
      %2784 = vmatpush2.bf16.msra.mxu0 %v2669
      %2785 = vmatprep.subr.bf16.mxu0 %v2662
      %2786 = vmatpush2.bf16.msra.mxu0 %v2661
      %2787 = vmatprep.subr.bf16.mxu0 %v2654
      %2788 = vmatpush2.bf16.msra.mxu0 %v2653
      %2789 = vmatprep.subr.bf16.mxu0 %v2646
      %2790 = vmatpush2.bf16.msra.mxu0 %v2645
      %2791 = vmatprep.subr.bf16.mxu0 %v2638
      %2792 = vmatpush2.bf16.msra.mxu0 %v2637
      %2793 = vmatprep.subr.bf16.mxu0 %v2630
      %2794 = vmatpush2.bf16.msra.mxu0 %v2629
      %2795 = vmatprep.subr.bf16.mxu0 %v2622
      %2796 = vmatpush2.bf16.msra.mxu0 %v2621
      %2797 = vmatprep.mubr.bf16.mxu0 %v2750
      %2798 = vmatmul.mubr.bf16.gmra.mxu0 %v2749
      %v2799 = vpop.f32.mrf.mxu0
      %v2800 = vadd.f32 %v2712, %v2799
      %v2801 = vpop.f32.mrf.mxu0
      %v2802 = vadd.f32 %v2712, %v2801
      %v2803 = vpop.f32.mrf.mxu0
      %v2804 = vadd.f32 %v2717, %v2803
      %v2805 = vpop.f32.mrf.mxu0
      %v2806 = vadd.f32 %v2717, %v2805
      %2807 = vmatprep.mubr.bf16.mxu0 %v2753
      %2808 = vmatmul.mubr.bf16.gmra.mxu0 %v2752
      %v2809 = vpop.f32.mrf.mxu0
      %v2810 = vadd.f32 %v2722, %v2809
      %v2811 = vpop.f32.mrf.mxu0
      %v2812 = vadd.f32 %v2722, %v2811
      %v2813 = vpop.f32.mrf.mxu0
      %v2814 = vadd.f32 %v2727, %v2813
      %v2815 = vpop.f32.mrf.mxu0
      %v2816 = vadd.f32 %v2727, %v2815
      %2817 = vdwg.mxu0
      %2818 = vmatprep.subr.bf16.mxu0 0
      %2819 = vmatpush1.bf16.msra.mxu0 0
      %2820 = vmatprep.subr.bf16.mxu0 0
      %2821 = vmatpush1.bf16.msra.mxu0 0
      %2822 = vmatprep.subr.bf16.mxu0 0
      %2823 = vmatpush1.bf16.msra.mxu0 0
      %2824 = vmatprep.subr.bf16.mxu0 0
      %2825 = vmatpush1.bf16.msra.mxu0 0
      %2826 = vmatprep.subr.bf16.mxu0 0
      %2827 = vmatpush1.bf16.msra.mxu0 0
      %2828 = vmatprep.subr.bf16.mxu0 0
      %2829 = vmatpush1.bf16.msra.mxu0 0
      %2830 = vmatprep.subr.bf16.mxu0 %v2694
      %2831 = vmatpush1.bf16.msra.mxu0 %v2693
      %2832 = vmatprep.subr.bf16.mxu0 %v2686
      %2833 = vmatpush1.bf16.msra.mxu0 %v2685
      %2834 = vmatprep.subr.bf16.mxu0 0
      %2835 = vmatpush2.bf16.msra.mxu0 0
      %2836 = vmatprep.subr.bf16.mxu0 0
      %2837 = vmatpush2.bf16.msra.mxu0 0
      %2838 = vmatprep.subr.bf16.mxu0 0
      %2839 = vmatpush2.bf16.msra.mxu0 0
      %2840 = vmatprep.subr.bf16.mxu0 0
      %2841 = vmatpush2.bf16.msra.mxu0 0
      %2842 = vmatprep.subr.bf16.mxu0 0
      %2843 = vmatpush2.bf16.msra.mxu0 0
      %2844 = vmatprep.subr.bf16.mxu0 0
      %2845 = vmatpush2.bf16.msra.mxu0 0
      %2846 = vmatprep.subr.bf16.mxu0 0
      %2847 = vmatpush2.bf16.msra.mxu0 0
      %2848 = vmatprep.subr.bf16.mxu0 0
      %2849 = vmatpush2.bf16.msra.mxu0 0
      %2850 = vmatprep.mubr.bf16.mxu0 0
      %2851 = vmatmul.mubr.bf16.gmra.mxu0 %v2760
      %v2852 = vpop.f32.mrf.mxu0
      %v2853 = vadd.f32 %v2800, %v2852
      %v2854 = vpop.f32.mrf.mxu0
      %v2855 = vadd.f32 %v2802, %v2854
      %v2856 = vpop.f32.mrf.mxu0
      %v2857 = vadd.f32 %v2804, %v2856
      %v2858 = vpop.f32.mrf.mxu0
      %v2859 = vadd.f32 %v2806, %v2858
      %2860 = vmatprep.mubr.bf16.mxu0 0
      %2861 = vmatmul.mubr.bf16.gmra.mxu0 %v2763
      %v2862 = vpop.f32.mrf.mxu0
      %v2863 = vadd.f32 %v2810, %v2862
      %v2864 = vpop.f32.mrf.mxu0
      %v2865 = vadd.f32 %v2812, %v2864
      %v2866 = vpop.f32.mrf.mxu0
      %v2867 = vadd.f32 %v2814, %v2866
      %v2868 = vpop.f32.mrf.mxu0
      %v2869 = vadd.f32 %v2816, %v2868
      %2870 = vdwg.mxu0
      %2871 = vmatprep.subr.bf16.mxu0 %v2616
      %2872 = vmatpush1.bf16.msra.mxu0 %v2615
      %2873 = vmatprep.subr.bf16.mxu0 %v2608
      %2874 = vmatpush1.bf16.msra.mxu0 %v2607
      %2875 = vmatprep.subr.bf16.mxu0 %v2600
      %2876 = vmatpush1.bf16.msra.mxu0 %v2599
      %2877 = vmatprep.subr.bf16.mxu0 %v2592
      %2878 = vmatpush1.bf16.msra.mxu0 %v2591
      %2879 = vmatprep.subr.bf16.mxu0 %v2584
      %2880 = vmatpush1.bf16.msra.mxu0 %v2583
      %2881 = vmatprep.subr.bf16.mxu0 %v2576
      %2882 = vmatpush1.bf16.msra.mxu0 %v2575
      %2883 = vmatprep.subr.bf16.mxu0 %v2568
      %2884 = vmatpush1.bf16.msra.mxu0 %v2567
      %2885 = vmatprep.subr.bf16.mxu0 %v2560
      %2886 = vmatpush1.bf16.msra.mxu0 %v2559
      %2887 = vmatprep.subr.bf16.mxu0 %v2680
      %2888 = vmatpush2.bf16.msra.mxu0 %v2679
      %2889 = vmatprep.subr.bf16.mxu0 %v2672
      %2890 = vmatpush2.bf16.msra.mxu0 %v2671
      %2891 = vmatprep.subr.bf16.mxu0 %v2664
      %2892 = vmatpush2.bf16.msra.mxu0 %v2663
      %2893 = vmatprep.subr.bf16.mxu0 %v2656
      %2894 = vmatpush2.bf16.msra.mxu0 %v2655
      %2895 = vmatprep.subr.bf16.mxu0 %v2648
      %2896 = vmatpush2.bf16.msra.mxu0 %v2647
      %2897 = vmatprep.subr.bf16.mxu0 %v2640
      %2898 = vmatpush2.bf16.msra.mxu0 %v2639
      %2899 = vmatprep.subr.bf16.mxu0 %v2632
      %2900 = vmatpush2.bf16.msra.mxu0 %v2631
      %2901 = vmatprep.subr.bf16.mxu0 %v2624
      %2902 = vmatpush2.bf16.msra.mxu0 %v2623
      %2903 = vmatprep.mubr.bf16.mxu0 %v2750
      %2904 = vmatmul.mubr.bf16.gmra.mxu0 %v2749
      %v2905 = vpop.f32.mrf.mxu0
      %v2906 = vadd.f32 %v2712, %v2905
      %v2907 = vpop.f32.mrf.mxu0
      %v2908 = vadd.f32 %v2712, %v2907
      %v2909 = vpop.f32.mrf.mxu0
      %v2910 = vadd.f32 %v2717, %v2909
      %v2911 = vpop.f32.mrf.mxu0
      %v2912 = vadd.f32 %v2717, %v2911
      %2913 = vmatprep.mubr.bf16.mxu0 %v2753
      %2914 = vmatmul.mubr.bf16.gmra.mxu0 %v2752
      %v2915 = vpop.f32.mrf.mxu0
      %v2916 = vadd.f32 %v2722, %v2915
      %v2917 = vpop.f32.mrf.mxu0
      %v2918 = vadd.f32 %v2722, %v2917
      %v2919 = vpop.f32.mrf.mxu0
      %v2920 = vadd.f32 %v2727, %v2919
      %v2921 = vpop.f32.mrf.mxu0
      %v2922 = vadd.f32 %v2727, %v2921
      %2923 = vdwg.mxu0
      %2924 = vmatprep.subr.bf16.mxu0 0
      %2925 = vmatpush1.bf16.msra.mxu0 0
      %2926 = vmatprep.subr.bf16.mxu0 0
      %2927 = vmatpush1.bf16.msra.mxu0 0
      %2928 = vmatprep.subr.bf16.mxu0 0
      %2929 = vmatpush1.bf16.msra.mxu0 0
      %2930 = vmatprep.subr.bf16.mxu0 0
      %2931 = vmatpush1.bf16.msra.mxu0 0
      %2932 = vmatprep.subr.bf16.mxu0 0
      %2933 = vmatpush1.bf16.msra.mxu0 0
      %2934 = vmatprep.subr.bf16.mxu0 0
      %2935 = vmatpush1.bf16.msra.mxu0 0
      %2936 = vmatprep.subr.bf16.mxu0 %v2696
      %2937 = vmatpush1.bf16.msra.mxu0 %v2695
      %2938 = vmatprep.subr.bf16.mxu0 %v2688
      %2939 = vmatpush1.bf16.msra.mxu0 %v2687
      %2940 = vmatprep.subr.bf16.mxu0 0
      %2941 = vmatpush2.bf16.msra.mxu0 0
      %2942 = vmatprep.subr.bf16.mxu0 0
      %2943 = vmatpush2.bf16.msra.mxu0 0
      %2944 = vmatprep.subr.bf16.mxu0 0
      %2945 = vmatpush2.bf16.msra.mxu0 0
      %2946 = vmatprep.subr.bf16.mxu0 0
      %2947 = vmatpush2.bf16.msra.mxu0 0
      %2948 = vmatprep.subr.bf16.mxu0 0
      %2949 = vmatpush2.bf16.msra.mxu0 0
      %2950 = vmatprep.subr.bf16.mxu0 0
      %2951 = vmatpush2.bf16.msra.mxu0 0
      %2952 = vmatprep.subr.bf16.mxu0 0
      %2953 = vmatpush2.bf16.msra.mxu0 0
      %2954 = vmatprep.subr.bf16.mxu0 0
      %2955 = vmatpush2.bf16.msra.mxu0 0
      %2956 = vmatprep.mubr.bf16.mxu0 0
      %2957 = vmatmul.mubr.bf16.gmra.mxu0 %v2760
      %v2958 = vpop.f32.mrf.mxu0
      %v2959 = vadd.f32 %v2906, %v2958
      %v2960 = vpop.f32.mrf.mxu0
      %v2961 = vadd.f32 %v2908, %v2960
      %v2962 = vpop.f32.mrf.mxu0
      %v2963 = vadd.f32 %v2910, %v2962
      %v2964 = vpop.f32.mrf.mxu0
      %v2965 = vadd.f32 %v2912, %v2964
      %2966 = vmatprep.mubr.bf16.mxu0 0
      %2967 = vmatmul.mubr.bf16.gmra.mxu0 %v2763
      %v2968 = vpop.f32.mrf.mxu0
      %v2969 = vadd.f32 %v2916, %v2968
      %v2970 = vpop.f32.mrf.mxu0
      %v2971 = vadd.f32 %v2918, %v2970
      %v2972 = vpop.f32.mrf.mxu0
      %v2973 = vadd.f32 %v2920, %v2972
      %v2974 = vpop.f32.mrf.mxu0
      %v2975 = vadd.f32 %v2922, %v2974
      %2976 = vdwg.mxu0
      %2977 = vmatprep.subr.bf16.mxu0 %v2618
      %2978 = vmatpush1.bf16.msra.mxu0 %v2617
      %2979 = vmatprep.subr.bf16.mxu0 %v2610
      %2980 = vmatpush1.bf16.msra.mxu0 %v2609
      %2981 = vmatprep.subr.bf16.mxu0 %v2602
      %2982 = vmatpush1.bf16.msra.mxu0 %v2601
      %2983 = vmatprep.subr.bf16.mxu0 %v2594
      %2984 = vmatpush1.bf16.msra.mxu0 %v2593
      %2985 = vmatprep.subr.bf16.mxu0 %v2586
      %2986 = vmatpush1.bf16.msra.mxu0 %v2585
      %2987 = vmatprep.subr.bf16.mxu0 %v2578
      %2988 = vmatpush1.bf16.msra.mxu0 %v2577
      %2989 = vmatprep.subr.bf16.mxu0 %v2570
      %2990 = vmatpush1.bf16.msra.mxu0 %v2569
      %2991 = vmatprep.subr.bf16.mxu0 %v2562
      %2992 = vmatpush1.bf16.msra.mxu0 %v2561
      %2993 = vmatprep.subr.bf16.mxu0 %v2682
      %2994 = vmatpush2.bf16.msra.mxu0 %v2681
      %2995 = vmatprep.subr.bf16.mxu0 %v2674
      %2996 = vmatpush2.bf16.msra.mxu0 %v2673
      %2997 = vmatprep.subr.bf16.mxu0 %v2666
      %2998 = vmatpush2.bf16.msra.mxu0 %v2665
      %2999 = vmatprep.subr.bf16.mxu0 %v2658
      %3000 = vmatpush2.bf16.msra.mxu0 %v2657
      %3001 = vmatprep.subr.bf16.mxu0 %v2650
      %3002 = vmatpush2.bf16.msra.mxu0 %v2649
      %3003 = vmatprep.subr.bf16.mxu0 %v2642
      %3004 = vmatpush2.bf16.msra.mxu0 %v2641
      %3005 = vmatprep.subr.bf16.mxu0 %v2634
      %3006 = vmatpush2.bf16.msra.mxu0 %v2633
      %3007 = vmatprep.subr.bf16.mxu0 %v2626
      %3008 = vmatpush2.bf16.msra.mxu0 %v2625
      %3009 = vmatprep.mubr.bf16.mxu0 %v2750
      %3010 = vmatmul.mubr.bf16.gmra.mxu0 %v2749
      %v3011 = vpop.f32.mrf.mxu0
      %v3012 = vadd.f32 %v2712, %v3011
      %v3013 = vpop.f32.mrf.mxu0
      %v3014 = vadd.f32 %v2712, %v3013
      %v3015 = vpop.f32.mrf.mxu0
      %v3016 = vadd.f32 %v2717, %v3015
      %v3017 = vpop.f32.mrf.mxu0
      %v3018 = vadd.f32 %v2717, %v3017
      %3019 = vmatprep.mubr.bf16.mxu0 %v2753
      %3020 = vmatmul.mubr.bf16.gmra.mxu0 %v2752
      %v3021 = vpop.f32.mrf.mxu0
      %v3022 = vadd.f32 %v2722, %v3021
      %v3023 = vpop.f32.mrf.mxu0
      %v3024 = vadd.f32 %v2722, %v3023
      %v3025 = vpop.f32.mrf.mxu0
      %v3026 = vadd.f32 %v2727, %v3025
      %v3027 = vpop.f32.mrf.mxu0
      %v3028 = vadd.f32 %v2727, %v3027
      %3029 = vdwg.mxu0
      %3030 = vmatprep.subr.bf16.mxu0 0
      %3031 = vmatpush1.bf16.msra.mxu0 0
      %3032 = vmatprep.subr.bf16.mxu0 0
      %3033 = vmatpush1.bf16.msra.mxu0 0
      %3034 = vmatprep.subr.bf16.mxu0 0
      %3035 = vmatpush1.bf16.msra.mxu0 0
      %3036 = vmatprep.subr.bf16.mxu0 0
      %3037 = vmatpush1.bf16.msra.mxu0 0
      %3038 = vmatprep.subr.bf16.mxu0 0
      %3039 = vmatpush1.bf16.msra.mxu0 0
      %3040 = vmatprep.subr.bf16.mxu0 0
      %3041 = vmatpush1.bf16.msra.mxu0 0
      %3042 = vmatprep.subr.bf16.mxu0 %v2698
      %3043 = vmatpush1.bf16.msra.mxu0 %v2697
      %3044 = vmatprep.subr.bf16.mxu0 %v2690
      %3045 = vmatpush1.bf16.msra.mxu0 %v2689
      %3046 = vmatprep.subr.bf16.mxu0 0
      %3047 = vmatpush2.bf16.msra.mxu0 0
      %3048 = vmatprep.subr.bf16.mxu0 0
      %3049 = vmatpush2.bf16.msra.mxu0 0
      %3050 = vmatprep.subr.bf16.mxu0 0
      %3051 = vmatpush2.bf16.msra.mxu0 0
      %3052 = vmatprep.subr.bf16.mxu0 0
      %3053 = vmatpush2.bf16.msra.mxu0 0
      %3054 = vmatprep.subr.bf16.mxu0 0
      %3055 = vmatpush2.bf16.msra.mxu0 0
      %3056 = vmatprep.subr.bf16.mxu0 0
      %3057 = vmatpush2.bf16.msra.mxu0 0
      %3058 = vmatprep.subr.bf16.mxu0 0
      %3059 = vmatpush2.bf16.msra.mxu0 0
      %3060 = vmatprep.subr.bf16.mxu0 0
      %3061 = vmatpush2.bf16.msra.mxu0 0
      %3062 = vmatprep.mubr.bf16.mxu0 0
      %3063 = vmatmul.mubr.bf16.gmra.mxu0 %v2760
      %v3064 = vpop.f32.mrf.mxu0
      %v3065 = vadd.f32 %v3012, %v3064
      %v3066 = vpop.f32.mrf.mxu0
      %v3067 = vadd.f32 %v3014, %v3066
      %v3068 = vpop.f32.mrf.mxu0
      %v3069 = vadd.f32 %v3016, %v3068
      %v3070 = vpop.f32.mrf.mxu0
      %v3071 = vadd.f32 %v3018, %v3070
      %3072 = vmatprep.mubr.bf16.mxu0 0
      %3073 = vmatmul.mubr.bf16.gmra.mxu0 %v2763
      %v3074 = vpop.f32.mrf.mxu0
      %v3075 = vadd.f32 %v3022, %v3074
      %v3076 = vpop.f32.mrf.mxu0
      %v3077 = vadd.f32 %v3024, %v3076
      %v3078 = vpop.f32.mrf.mxu0
      %v3079 = vadd.f32 %v3026, %v3078
      %v3080 = vpop.f32.mrf.mxu0
      %v3081 = vadd.f32 %v3028, %v3080
      %3082 = vdwg.mxu0
      %3083 = vmatprep.subr.bf16.mxu0 %v2620
      %3084 = vmatpush1.bf16.msra.mxu0 %v2619
      %3085 = vmatprep.subr.bf16.mxu0 %v2612
      %3086 = vmatpush1.bf16.msra.mxu0 %v2611
      %3087 = vmatprep.subr.bf16.mxu0 %v2604
      %3088 = vmatpush1.bf16.msra.mxu0 %v2603
      %3089 = vmatprep.subr.bf16.mxu0 %v2596
      %3090 = vmatpush1.bf16.msra.mxu0 %v2595
      %3091 = vmatprep.subr.bf16.mxu0 %v2588
      %3092 = vmatpush1.bf16.msra.mxu0 %v2587
      %3093 = vmatprep.subr.bf16.mxu0 %v2580
      %3094 = vmatpush1.bf16.msra.mxu0 %v2579
      %3095 = vmatprep.subr.bf16.mxu0 %v2572
      %3096 = vmatpush1.bf16.msra.mxu0 %v2571
      %3097 = vmatprep.subr.bf16.mxu0 %v2564
      %3098 = vmatpush1.bf16.msra.mxu0 %v2563
      %3099 = vmatprep.subr.bf16.mxu0 %v2684
      %3100 = vmatpush2.bf16.msra.mxu0 %v2683
      %3101 = vmatprep.subr.bf16.mxu0 %v2676
      %3102 = vmatpush2.bf16.msra.mxu0 %v2675
      %3103 = vmatprep.subr.bf16.mxu0 %v2668
      %3104 = vmatpush2.bf16.msra.mxu0 %v2667
      %3105 = vmatprep.subr.bf16.mxu0 %v2660
      %3106 = vmatpush2.bf16.msra.mxu0 %v2659
      %3107 = vmatprep.subr.bf16.mxu0 %v2652
      %3108 = vmatpush2.bf16.msra.mxu0 %v2651
      %3109 = vmatprep.subr.bf16.mxu0 %v2644
      %3110 = vmatpush2.bf16.msra.mxu0 %v2643
      %3111 = vmatprep.subr.bf16.mxu0 %v2636
      %3112 = vmatpush2.bf16.msra.mxu0 %v2635
      %3113 = vmatprep.subr.bf16.mxu0 %v2628
      %3114 = vmatpush2.bf16.msra.mxu0 %v2627
      %3115 = vmatprep.mubr.bf16.mxu0 %v2750
      %3116 = vmatmul.mubr.bf16.gmra.mxu0 %v2749
      %v3117 = vpop.f32.mrf.mxu0
      %v3118 = vadd.f32 %v2712, %v3117
      %v3119 = vpop.f32.mrf.mxu0
      %v3120 = vadd.f32 %v2712, %v3119
      %v3121 = vpop.f32.mrf.mxu0
      %v3122 = vadd.f32 %v2717, %v3121
      %v3123 = vpop.f32.mrf.mxu0
      %v3124 = vadd.f32 %v2717, %v3123
      %3125 = vmatprep.mubr.bf16.mxu0 %v2753
      %3126 = vmatmul.mubr.bf16.gmra.mxu0 %v2752
      %v3127 = vpop.f32.mrf.mxu0
      %v3128 = vadd.f32 %v2722, %v3127
      %v3129 = vpop.f32.mrf.mxu0
      %v3130 = vadd.f32 %v2722, %v3129
      %v3131 = vpop.f32.mrf.mxu0
      %v3132 = vadd.f32 %v2727, %v3131
      %v3133 = vpop.f32.mrf.mxu0
      %v3134 = vadd.f32 %v2727, %v3133
      %3135 = vdwg.mxu0
      %3136 = vmatprep.subr.bf16.mxu0 0
      %3137 = vmatpush1.bf16.msra.mxu0 0
      %3138 = vmatprep.subr.bf16.mxu0 0
      %3139 = vmatpush1.bf16.msra.mxu0 0
      %3140 = vmatprep.subr.bf16.mxu0 0
      %3141 = vmatpush1.bf16.msra.mxu0 0
      %3142 = vmatprep.subr.bf16.mxu0 0
      %3143 = vmatpush1.bf16.msra.mxu0 0
      %3144 = vmatprep.subr.bf16.mxu0 0
      %3145 = vmatpush1.bf16.msra.mxu0 0
      %3146 = vmatprep.subr.bf16.mxu0 0
      %3147 = vmatpush1.bf16.msra.mxu0 0
      %3148 = vmatprep.subr.bf16.mxu0 %v2700
      %3149 = vmatpush1.bf16.msra.mxu0 %v2699
      %3150 = vmatprep.subr.bf16.mxu0 %v2692
      %3151 = vmatpush1.bf16.msra.mxu0 %v2691
      %3152 = vmatprep.subr.bf16.mxu0 0
      %3153 = vmatpush2.bf16.msra.mxu0 0
      %3154 = vmatprep.subr.bf16.mxu0 0
      %3155 = vmatpush2.bf16.msra.mxu0 0
      %3156 = vmatprep.subr.bf16.mxu0 0
      %3157 = vmatpush2.bf16.msra.mxu0 0
      %3158 = vmatprep.subr.bf16.mxu0 0
      %3159 = vmatpush2.bf16.msra.mxu0 0
      %3160 = vmatprep.subr.bf16.mxu0 0
      %3161 = vmatpush2.bf16.msra.mxu0 0
      %3162 = vmatprep.subr.bf16.mxu0 0
      %3163 = vmatpush2.bf16.msra.mxu0 0
      %3164 = vmatprep.subr.bf16.mxu0 0
      %3165 = vmatpush2.bf16.msra.mxu0 0
      %3166 = vmatprep.subr.bf16.mxu0 0
      %3167 = vmatpush2.bf16.msra.mxu0 0
      %3168 = vmatprep.mubr.bf16.mxu0 0
      %3169 = vmatmul.mubr.bf16.gmra.mxu0 %v2760
      %v3170 = vpop.f32.mrf.mxu0
      %v3171 = vadd.f32 %v3118, %v3170
      %v3172 = vpop.f32.mrf.mxu0
      %v3173 = vadd.f32 %v3120, %v3172
      %v3174 = vpop.f32.mrf.mxu0
      %v3175 = vadd.f32 %v3122, %v3174
      %v3176 = vpop.f32.mrf.mxu0
      %v3177 = vadd.f32 %v3124, %v3176
      %3178 = vmatprep.mubr.bf16.mxu0 0
      %3179 = vmatmul.mubr.bf16.gmra.mxu0 %v2763
      %v3180 = vpop.f32.mrf.mxu0
      %v3181 = vadd.f32 %v3128, %v3180
      %v3182 = vpop.f32.mrf.mxu0
      %v3183 = vadd.f32 %v3130, %v3182
      %v3184 = vpop.f32.mrf.mxu0
      %v3185 = vadd.f32 %v3132, %v3184
      %v3186 = vpop.f32.mrf.mxu0
      %v3187 = vadd.f32 %v3134, %v3186
      %3188 = vdwg.mxu0
      %v3189 = vmax.f32 %v2853, 0.0
      %v3190 = vmax.f32 %v2855, 0.0
      %v3191 = vmax.f32 %v2959, 0.0
      %v3192 = vmax.f32 %v2961, 0.0
      %v3193 = vmax.f32 %v3065, 0.0
      %v3194 = vmax.f32 %v3067, 0.0
      %v3195 = vmax.f32 %v3171, 0.0
      %v3196 = vmax.f32 %v3173, 0.0
      %v3197 = vmax.f32 %v2857, 0.0
      %v3198 = vmax.f32 %v2859, 0.0
      %v3199 = vmax.f32 %v2963, 0.0
      %v3200 = vmax.f32 %v2965, 0.0
      %v3201 = vmax.f32 %v3069, 0.0
      %v3202 = vmax.f32 %v3071, 0.0
      %v3203 = vmax.f32 %v3175, 0.0
      %v3204 = vmax.f32 %v3177, 0.0
      %v3205 = vmax.f32 %v2863, 0.0
      %v3206 = vmax.f32 %v2865, 0.0
      %v3207 = vmax.f32 %v2969, 0.0
      %v3208 = vmax.f32 %v2971, 0.0
      %v3209 = vmax.f32 %v3075, 0.0
      %v3210 = vmax.f32 %v3077, 0.0
      %v3211 = vmax.f32 %v3181, 0.0
      %v3212 = vmax.f32 %v3183, 0.0
      %v3213 = vmax.f32 %v2867, 0.0
      %v3214 = vmax.f32 %v2869, 0.0
      %v3215 = vmax.f32 %v2973, 0.0
      %v3216 = vmax.f32 %v2975, 0.0
      %v3217 = vmax.f32 %v3079, 0.0
      %v3218 = vmax.f32 %v3081, 0.0
      %v3219 = vmax.f32 %v3185, 0.0
      %v3220 = vmax.f32 %v3187, 0.0
      %v3221 = vpack.c.bf16 %v3197, %v3189
      %v3222 = vpack.c.bf16 %v3198, %v3190
      %v3223 = vpack.c.bf16 %v3199, %v3191
      %v3224 = vpack.c.bf16 %v3200, %v3192
      %v3225 = vpack.c.bf16 %v3201, %v3193
      %v3226 = vpack.c.bf16 %v3202, %v3194
      %v3227 = vpack.c.bf16 %v3203, %v3195
      %v3228 = vpack.c.bf16 %v3204, %v3196
      %v3229 = vpack.c.bf16 %v3213, %v3205
      %v3230 = vpack.c.bf16 %v3214, %v3206
      %v3231 = vpack.c.bf16 %v3215, %v3207
      %v3232 = vpack.c.bf16 %v3216, %v3208
      %v3233 = vpack.c.bf16 %v3217, %v3209
      %v3234 = vpack.c.bf16 %v3218, %v3210
      %v3235 = vpack.c.bf16 %v3219, %v3211
      %v3236 = vpack.c.bf16 %v3220, %v3212
      %v3237 = vld [vmem:[%s13] sm:$0xff]
      %v3238 = vld [vmem:[%s13 + $0x8] sm:$0xff]
      %v3239 = vld [vmem:[%s13 + $0x10] sm:$0xff]
      %v3240 = vld [vmem:[%s13 + $0x18] sm:$0xff]
      %v3241 = vld [vmem:[%s13 + $0x20] sm:$0xff]
      %v3242 = vld [vmem:[%s13 + $0x28] sm:$0xff]
      %v3243 = vld [vmem:[%s13 + $0x30] sm:$0xff]
      %v3244 = vld [vmem:[%s13 + $0x38] sm:$0xff]
      %v3245 = vld [vmem:[%s13 + $0x40] sm:$0xff]
      %v3246 = vld [vmem:[%s13 + $0x48] sm:$0xff]
      %v3247 = vld [vmem:[%s13 + $0x50] sm:$0xff]
      %v3248 = vld [vmem:[%s13 + $0x58] sm:$0xff]
      %v3249 = vld [vmem:[%s13 + $0x60] sm:$0xff]
      %v3250 = vld [vmem:[%s13 + $0x68] sm:$0xff]
      %v3251 = vld [vmem:[%s13 + $0x70] sm:$0xff]
      %v3252 = vld [vmem:[%s13 + $0x78] sm:$0xff]
      %v3253 = vld [vmem:[%s13 + $0x80] sm:$0xff]
      %v3254 = vld [vmem:[%s13 + $0x88] sm:$0xff]
      %v3255 = vld [vmem:[%s13 + $0x90] sm:$0xff]
      %v3256 = vld [vmem:[%s13 + $0x98] sm:$0xff]
      %v3257 = vld [vmem:[%s13 + $0xa0] sm:$0xff]
      %v3258 = vld [vmem:[%s13 + $0xa8] sm:$0xff]
      %v3259 = vld [vmem:[%s13 + $0xb0] sm:$0xff]
      %v3260 = vld [vmem:[%s13 + $0xb8] sm:$0xff]
      %v3261 = vld [vmem:[%s13 + $0xc0] sm:$0xff]
      %v3262 = vld [vmem:[%s13 + $0xc8] sm:$0xff]
      %v3263 = vld [vmem:[%s13 + $0xd0] sm:$0xff]
      %v3264 = vld [vmem:[%s13 + $0xd8] sm:$0xff]
      %v3265 = vld [vmem:[%s13 + $0xe0] sm:$0xff]
      %v3266 = vld [vmem:[%s13 + $0xe8] sm:$0xff]
      %v3267 = vld [vmem:[%s13 + $0xf0] sm:$0xff]
      %v3268 = vld [vmem:[%s13 + $0xf8] sm:$0xff]
      %v3269 = vld [vmem:[%s13 + $0x100] sm:$0xff]
      %v3270 = vld [vmem:[%s13 + $0x108] sm:$0xff]
      %v3271 = vld [vmem:[%s13 + $0x110] sm:$0xff]
      %v3272 = vld [vmem:[%s13 + $0x118] sm:$0xff]
      %v3273 = vld [vmem:[%s13 + $0x120] sm:$0xff]
      %v3274 = vld [vmem:[%s13 + $0x128] sm:$0xff]
      %v3275 = vld [vmem:[%s13 + $0x130] sm:$0xff]
      %v3276 = vld [vmem:[%s13 + $0x138] sm:$0xff]
      %v3277 = vld [vmem:[%s13 + $0x140] sm:$0xff]
      %v3278 = vld [vmem:[%s13 + $0x148] sm:$0xff]
      %v3279 = vld [vmem:[%s13 + $0x150] sm:$0xff]
      %v3280 = vld [vmem:[%s13 + $0x158] sm:$0xff]
      %v3281 = vld [vmem:[%s13 + $0x160] sm:$0xff]
      %v3282 = vld [vmem:[%s13 + $0x168] sm:$0xff]
      %v3283 = vld [vmem:[%s13 + $0x170] sm:$0xff]
      %v3284 = vld [vmem:[%s13 + $0x178] sm:$0xff]
      %v3285 = vld [vmem:[%s13 + $0x180] sm:$0xff]
      %v3286 = vld [vmem:[%s13 + $0x188] sm:$0xff]
      %v3287 = vld [vmem:[%s13 + $0x190] sm:$0xff]
      %v3288 = vld [vmem:[%s13 + $0x198] sm:$0xff]
      %v3289 = vld [vmem:[%s13 + $0x1a0] sm:$0xff]
      %v3290 = vld [vmem:[%s13 + $0x1a8] sm:$0xff]
      %v3291 = vld [vmem:[%s13 + $0x1b0] sm:$0xff]
      %v3292 = vld [vmem:[%s13 + $0x1b8] sm:$0xff]
      %v3293 = vld [vmem:[%s13 + $0x1c0] sm:$0xff]
      %v3294 = vld [vmem:[%s13 + $0x1c8] sm:$0xff]
      %v3295 = vld [vmem:[%s13 + $0x1d0] sm:$0xff]
      %v3296 = vld [vmem:[%s13 + $0x1d8] sm:$0xff]
      %v3297 = vld [vmem:[%s13 + $0x1e0] sm:$0xff]
      %v3298 = vld [vmem:[%s13 + $0x1e8] sm:$0xff]
      %v3299 = vld [vmem:[%s13 + $0x1f0] sm:$0xff]
      %v3300 = vld [vmem:[%s13 + $0x1f8] sm:$0xff]
      %v3301 = vld [vmem:[%s13 + $0x200] sm:$0xff]
      %v3302 = vld [vmem:[%s13 + $0x208] sm:$0xff]
      %v3303 = vld [vmem:[%s13 + $0x210] sm:$0xff]
      %v3304 = vld [vmem:[%s13 + $0x218] sm:$0xff]
      %v3305 = vld [vmem:[%s13 + $0x220] sm:$0xff]
      %v3306 = vld [vmem:[%s13 + $0x228] sm:$0xff]
      %v3307 = vld [vmem:[%s13 + $0x230] sm:$0xff]
      %v3308 = vld [vmem:[%s13 + $0x238] sm:$0xff]
      %v3309 = vld [vmem:[%s13 + $0x240] sm:$0xff]
      %v3310 = vld [vmem:[%s13 + $0x248] sm:$0xff]
      %v3311 = vld [vmem:[%s13 + $0x250] sm:$0xff]
      %v3312 = vld [vmem:[%s13 + $0x258] sm:$0xff]
      %v3313 = vld [vmem:[%s13 + $0x260] sm:$0xff]
      %v3314 = vld [vmem:[%s13 + $0x268] sm:$0xff]
      %v3315 = vld [vmem:[%s13 + $0x270] sm:$0xff]
      %v3316 = vld [vmem:[%s13 + $0x278] sm:$0xff]
      %v3317 = vld [vmem:[%s13 + $0x280] sm:$0xff]
      %v3318 = vld [vmem:[%s13 + $0x288] sm:$0xff]
      %v3319 = vld [vmem:[%s13 + $0x290] sm:$0xff]
      %v3320 = vld [vmem:[%s13 + $0x298] sm:$0xff]
      %v3321 = vld [vmem:[%s13 + $0x2a0] sm:$0xff]
      %v3322 = vld [vmem:[%s13 + $0x2a8] sm:$0xff]
      %v3323 = vld [vmem:[%s13 + $0x2b0] sm:$0xff]
      %v3324 = vld [vmem:[%s13 + $0x2b8] sm:$0xff]
      %v3325 = vld [vmem:[%s13 + $0x2c0] sm:$0xff]
      %v3326 = vld [vmem:[%s13 + $0x2c8] sm:$0xff]
      %v3327 = vld [vmem:[%s13 + $0x2d0] sm:$0xff]
      %v3328 = vld [vmem:[%s13 + $0x2d8] sm:$0xff]
      %v3329 = vld [vmem:[%s13 + $0x2e0] sm:$0xff]
      %v3330 = vld [vmem:[%s13 + $0x2e8] sm:$0xff]
      %v3331 = vld [vmem:[%s13 + $0x2f0] sm:$0xff]
      %v3332 = vld [vmem:[%s13 + $0x2f8] sm:$0xff]
      %v3333 = vld [vmem:[%s13 + $0x300] sm:$0xff]
      %v3334 = vld [vmem:[%s13 + $0x308] sm:$0xff]
      %v3335 = vld [vmem:[%s13 + $0x310] sm:$0xff]
      %v3336 = vld [vmem:[%s13 + $0x318] sm:$0xff]
      %v3337 = vld [vmem:[%s13 + $0x320] sm:$0xff]
      %v3338 = vld [vmem:[%s13 + $0x328] sm:$0xff]
      %v3339 = vld [vmem:[%s13 + $0x330] sm:$0xff]
      %v3340 = vld [vmem:[%s13 + $0x338] sm:$0xff]
      %v3341 = vld [vmem:[%s13 + $0x340] sm:$0xff]
      %v3342 = vld [vmem:[%s13 + $0x348] sm:$0xff]
      %v3343 = vld [vmem:[%s13 + $0x350] sm:$0xff]
      %v3344 = vld [vmem:[%s13 + $0x358] sm:$0xff]
      %v3345 = vld [vmem:[%s13 + $0x360] sm:$0xff]
      %v3346 = vld [vmem:[%s13 + $0x368] sm:$0xff]
      %v3347 = vld [vmem:[%s13 + $0x370] sm:$0xff]
      %v3348 = vld [vmem:[%s13 + $0x378] sm:$0xff]
      %v3349 = vld [vmem:[%s13 + $0x380] sm:$0xff]
      %v3350 = vld [vmem:[%s13 + $0x388] sm:$0xff]
      %v3351 = vld [vmem:[%s13 + $0x390] sm:$0xff]
      %v3352 = vld [vmem:[%s13 + $0x398] sm:$0xff]
      %v3353 = vld [vmem:[%s13 + $0x3a0] sm:$0xff]
      %v3354 = vld [vmem:[%s13 + $0x3a8] sm:$0xff]
      %v3355 = vld [vmem:[%s13 + $0x3b0] sm:$0xff]
      %v3356 = vld [vmem:[%s13 + $0x3b8] sm:$0xff]
      %v3357 = vld [vmem:[%s13 + $0x3c0] sm:$0xff]
      %v3358 = vld [vmem:[%s13 + $0x3c8] sm:$0xff]
      %v3359 = vld [vmem:[%s13 + $0x3d0] sm:$0xff]
      %v3360 = vld [vmem:[%s13 + $0x3d8] sm:$0xff]
      %v3361 = vld [vmem:[%s13 + $0x3e0] sm:$0xff]
      %v3362 = vld [vmem:[%s13 + $0x3e8] sm:$0xff]
      %v3363 = vld [vmem:[%s13 + $0x3f0] sm:$0xff]
      %v3364 = vld [vmem:[%s13 + $0x3f8] sm:$0xff]
      %v3493 = vunpack.c.l.b16 %v3237
      %v3494 = vunpack.c.h.b16 %v3237
      %v3495 = vunpack.c.l.b16 %v3238
      %v3496 = vunpack.c.h.b16 %v3238
      %v3497 = vunpack.c.l.b16 %v3239
      %v3498 = vunpack.c.h.b16 %v3239
      %v3499 = vunpack.c.l.b16 %v3240
      %v3500 = vunpack.c.h.b16 %v3240
      %v3501 = vunpack.c.l.b16 %v3241
      %v3502 = vunpack.c.h.b16 %v3241
      %v3503 = vunpack.c.l.b16 %v3242
      %v3504 = vunpack.c.h.b16 %v3242
      %v3505 = vunpack.c.l.b16 %v3243
      %v3506 = vunpack.c.h.b16 %v3243
      %v3507 = vunpack.c.l.b16 %v3244
      %v3508 = vunpack.c.h.b16 %v3244
      %v3509 = vunpack.c.l.b16 %v3245
      %v3510 = vunpack.c.h.b16 %v3245
      %v3511 = vunpack.c.l.b16 %v3246
      %v3512 = vunpack.c.h.b16 %v3246
      %v3513 = vunpack.c.l.b16 %v3247
      %v3514 = vunpack.c.h.b16 %v3247
      %v3515 = vunpack.c.l.b16 %v3248
      %v3516 = vunpack.c.h.b16 %v3248
      %v3517 = vunpack.c.l.b16 %v3249
      %v3518 = vunpack.c.h.b16 %v3249
      %v3519 = vunpack.c.l.b16 %v3250
      %v3520 = vunpack.c.h.b16 %v3250
      %v3521 = vunpack.c.l.b16 %v3251
      %v3522 = vunpack.c.h.b16 %v3251
      %v3523 = vunpack.c.l.b16 %v3252
      %v3524 = vunpack.c.h.b16 %v3252
      %v3525 = vunpack.c.l.b16 %v3253
      %v3526 = vunpack.c.h.b16 %v3253
      %v3527 = vunpack.c.l.b16 %v3254
      %v3528 = vunpack.c.h.b16 %v3254
      %v3529 = vunpack.c.l.b16 %v3255
      %v3530 = vunpack.c.h.b16 %v3255
      %v3531 = vunpack.c.l.b16 %v3256
      %v3532 = vunpack.c.h.b16 %v3256
      %v3533 = vunpack.c.l.b16 %v3257
      %v3534 = vunpack.c.h.b16 %v3257
      %v3535 = vunpack.c.l.b16 %v3258
      %v3536 = vunpack.c.h.b16 %v3258
      %v3537 = vunpack.c.l.b16 %v3259
      %v3538 = vunpack.c.h.b16 %v3259
      %v3539 = vunpack.c.l.b16 %v3260
      %v3540 = vunpack.c.h.b16 %v3260
      %v3541 = vunpack.c.l.b16 %v3261
      %v3542 = vunpack.c.h.b16 %v3261
      %v3543 = vunpack.c.l.b16 %v3262
      %v3544 = vunpack.c.h.b16 %v3262
      %v3545 = vunpack.c.l.b16 %v3263
      %v3546 = vunpack.c.h.b16 %v3263
      %v3547 = vunpack.c.l.b16 %v3264
      %v3548 = vunpack.c.h.b16 %v3264
      %v3549 = vunpack.c.l.b16 %v3265
      %v3550 = vunpack.c.h.b16 %v3265
      %v3551 = vunpack.c.l.b16 %v3266
      %v3552 = vunpack.c.h.b16 %v3266
      %v3553 = vunpack.c.l.b16 %v3267
      %v3554 = vunpack.c.h.b16 %v3267
      %v3555 = vunpack.c.l.b16 %v3268
      %v3556 = vunpack.c.h.b16 %v3268
      %v3557 = vunpack.c.l.b16 %v3269
      %v3558 = vunpack.c.h.b16 %v3269
      %v3559 = vunpack.c.l.b16 %v3270
      %v3560 = vunpack.c.h.b16 %v3270
      %v3561 = vunpack.c.l.b16 %v3271
      %v3562 = vunpack.c.h.b16 %v3271
      %v3563 = vunpack.c.l.b16 %v3272
      %v3564 = vunpack.c.h.b16 %v3272
      %v3565 = vunpack.c.l.b16 %v3273
      %v3566 = vunpack.c.h.b16 %v3273
      %v3567 = vunpack.c.l.b16 %v3274
      %v3568 = vunpack.c.h.b16 %v3274
      %v3569 = vunpack.c.l.b16 %v3275
      %v3570 = vunpack.c.h.b16 %v3275
      %v3571 = vunpack.c.l.b16 %v3276
      %v3572 = vunpack.c.h.b16 %v3276
      %v3573 = vunpack.c.l.b16 %v3277
      %v3574 = vunpack.c.h.b16 %v3277
      %v3575 = vunpack.c.l.b16 %v3278
      %v3576 = vunpack.c.h.b16 %v3278
      %v3577 = vunpack.c.l.b16 %v3279
      %v3578 = vunpack.c.h.b16 %v3279
      %v3579 = vunpack.c.l.b16 %v3280
      %v3580 = vunpack.c.h.b16 %v3280
      %v3581 = vunpack.c.l.b16 %v3281
      %v3582 = vunpack.c.h.b16 %v3281
      %v3583 = vunpack.c.l.b16 %v3282
      %v3584 = vunpack.c.h.b16 %v3282
      %v3585 = vunpack.c.l.b16 %v3283
      %v3586 = vunpack.c.h.b16 %v3283
      %v3587 = vunpack.c.l.b16 %v3284
      %v3588 = vunpack.c.h.b16 %v3284
      %v3589 = vunpack.c.l.b16 %v3285
      %v3590 = vunpack.c.h.b16 %v3285
      %v3591 = vunpack.c.l.b16 %v3286
      %v3592 = vunpack.c.h.b16 %v3286
      %v3593 = vunpack.c.l.b16 %v3287
      %v3594 = vunpack.c.h.b16 %v3287
      %v3595 = vunpack.c.l.b16 %v3288
      %v3596 = vunpack.c.h.b16 %v3288
      %v3597 = vunpack.c.l.b16 %v3289
      %v3598 = vunpack.c.h.b16 %v3289
      %v3599 = vunpack.c.l.b16 %v3290
      %v3600 = vunpack.c.h.b16 %v3290
      %v3601 = vunpack.c.l.b16 %v3291
      %v3602 = vunpack.c.h.b16 %v3291
      %v3603 = vunpack.c.l.b16 %v3292
      %v3604 = vunpack.c.h.b16 %v3292
      %v3605 = vunpack.c.l.b16 %v3293
      %v3606 = vunpack.c.h.b16 %v3293
      %v3607 = vunpack.c.l.b16 %v3294
      %v3608 = vunpack.c.h.b16 %v3294
      %v3609 = vunpack.c.l.b16 %v3295
      %v3610 = vunpack.c.h.b16 %v3295
      %v3611 = vunpack.c.l.b16 %v3296
      %v3612 = vunpack.c.h.b16 %v3296
      %v3613 = vunpack.c.l.b16 %v3297
      %v3614 = vunpack.c.h.b16 %v3297
      %v3615 = vunpack.c.l.b16 %v3298
      %v3616 = vunpack.c.h.b16 %v3298
      %v3617 = vunpack.c.l.b16 %v3299
      %v3618 = vunpack.c.h.b16 %v3299
      %v3619 = vunpack.c.l.b16 %v3300
      %v3620 = vunpack.c.h.b16 %v3300
      %v3621 = vunpack.c.l.b16 %v3301
      %v3622 = vunpack.c.h.b16 %v3301
      %v3623 = vunpack.c.l.b16 %v3302
      %v3624 = vunpack.c.h.b16 %v3302
      %v3625 = vunpack.c.l.b16 %v3303
      %v3626 = vunpack.c.h.b16 %v3303
      %v3627 = vunpack.c.l.b16 %v3304
      %v3628 = vunpack.c.h.b16 %v3304
      %v3629 = vunpack.c.l.b16 %v3305
      %v3630 = vunpack.c.h.b16 %v3305
      %v3631 = vunpack.c.l.b16 %v3306
      %v3632 = vunpack.c.h.b16 %v3306
      %v3633 = vunpack.c.l.b16 %v3307
      %v3634 = vunpack.c.h.b16 %v3307
      %v3635 = vunpack.c.l.b16 %v3308
      %v3636 = vunpack.c.h.b16 %v3308
      %v3637 = vunpack.c.l.b16 %v3309
      %v3638 = vunpack.c.h.b16 %v3309
      %v3639 = vunpack.c.l.b16 %v3310
      %v3640 = vunpack.c.h.b16 %v3310
      %v3641 = vunpack.c.l.b16 %v3311
      %v3642 = vunpack.c.h.b16 %v3311
      %v3643 = vunpack.c.l.b16 %v3312
      %v3644 = vunpack.c.h.b16 %v3312
      %v3645 = vunpack.c.l.b16 %v3313
      %v3646 = vunpack.c.h.b16 %v3313
      %v3647 = vunpack.c.l.b16 %v3314
      %v3648 = vunpack.c.h.b16 %v3314
      %v3649 = vunpack.c.l.b16 %v3315
      %v3650 = vunpack.c.h.b16 %v3315
      %v3651 = vunpack.c.l.b16 %v3316
      %v3652 = vunpack.c.h.b16 %v3316
      %v3653 = vunpack.c.l.b16 %v3317
      %v3654 = vunpack.c.h.b16 %v3317
      %v3655 = vunpack.c.l.b16 %v3318
      %v3656 = vunpack.c.h.b16 %v3318
      %v3657 = vunpack.c.l.b16 %v3319
      %v3658 = vunpack.c.h.b16 %v3319
      %v3659 = vunpack.c.l.b16 %v3320
      %v3660 = vunpack.c.h.b16 %v3320
      %v3661 = vunpack.c.l.b16 %v3321
      %v3662 = vunpack.c.h.b16 %v3321
      %v3663 = vunpack.c.l.b16 %v3322
      %v3664 = vunpack.c.h.b16 %v3322
      %v3665 = vunpack.c.l.b16 %v3323
      %v3666 = vunpack.c.h.b16 %v3323
      %v3667 = vunpack.c.l.b16 %v3324
      %v3668 = vunpack.c.h.b16 %v3324
      %v3669 = vunpack.c.l.b16 %v3325
      %v3670 = vunpack.c.h.b16 %v3325
      %v3671 = vunpack.c.l.b16 %v3326
      %v3672 = vunpack.c.h.b16 %v3326
      %v3673 = vunpack.c.l.b16 %v3327
      %v3674 = vunpack.c.h.b16 %v3327
      %v3675 = vunpack.c.l.b16 %v3328
      %v3676 = vunpack.c.h.b16 %v3328
      %v3677 = vunpack.c.l.b16 %v3329
      %v3678 = vunpack.c.h.b16 %v3329
      %v3679 = vunpack.c.l.b16 %v3330
      %v3680 = vunpack.c.h.b16 %v3330
      %v3681 = vunpack.c.l.b16 %v3331
      %v3682 = vunpack.c.h.b16 %v3331
      %v3683 = vunpack.c.l.b16 %v3332
      %v3684 = vunpack.c.h.b16 %v3332
      %v3685 = vunpack.c.l.b16 %v3333
      %v3686 = vunpack.c.h.b16 %v3333
      %v3687 = vunpack.c.l.b16 %v3334
      %v3688 = vunpack.c.h.b16 %v3334
      %v3689 = vunpack.c.l.b16 %v3335
      %v3690 = vunpack.c.h.b16 %v3335
      %v3691 = vunpack.c.l.b16 %v3336
      %v3692 = vunpack.c.h.b16 %v3336
      %v3693 = vunpack.c.l.b16 %v3337
      %v3694 = vunpack.c.h.b16 %v3337
      %v3695 = vunpack.c.l.b16 %v3338
      %v3696 = vunpack.c.h.b16 %v3338
      %v3697 = vunpack.c.l.b16 %v3339
      %v3698 = vunpack.c.h.b16 %v3339
      %v3699 = vunpack.c.l.b16 %v3340
      %v3700 = vunpack.c.h.b16 %v3340
      %v3701 = vunpack.c.l.b16 %v3341
      %v3702 = vunpack.c.h.b16 %v3341
      %v3703 = vunpack.c.l.b16 %v3342
      %v3704 = vunpack.c.h.b16 %v3342
      %v3705 = vunpack.c.l.b16 %v3343
      %v3706 = vunpack.c.h.b16 %v3343
      %v3707 = vunpack.c.l.b16 %v3344
      %v3708 = vunpack.c.h.b16 %v3344
      %v3709 = vunpack.c.l.b16 %v3345
      %v3710 = vunpack.c.h.b16 %v3345
      %v3711 = vunpack.c.l.b16 %v3346
      %v3712 = vunpack.c.h.b16 %v3346
      %v3713 = vunpack.c.l.b16 %v3347
      %v3714 = vunpack.c.h.b16 %v3347
      %v3715 = vunpack.c.l.b16 %v3348
      %v3716 = vunpack.c.h.b16 %v3348
      %v3717 = vunpack.c.l.b16 %v3349
      %v3718 = vunpack.c.h.b16 %v3349
      %v3719 = vunpack.c.l.b16 %v3350
      %v3720 = vunpack.c.h.b16 %v3350
      %v3721 = vunpack.c.l.b16 %v3351
      %v3722 = vunpack.c.h.b16 %v3351
      %v3723 = vunpack.c.l.b16 %v3352
      %v3724 = vunpack.c.h.b16 %v3352
      %v3725 = vunpack.c.l.b16 %v3353
      %v3726 = vunpack.c.h.b16 %v3353
      %v3727 = vunpack.c.l.b16 %v3354
      %v3728 = vunpack.c.h.b16 %v3354
      %v3729 = vunpack.c.l.b16 %v3355
      %v3730 = vunpack.c.h.b16 %v3355
      %v3731 = vunpack.c.l.b16 %v3356
      %v3732 = vunpack.c.h.b16 %v3356
      %v3733 = vunpack.c.l.b16 %v3357
      %v3734 = vunpack.c.h.b16 %v3357
      %v3735 = vunpack.c.l.b16 %v3358
      %v3736 = vunpack.c.h.b16 %v3358
      %v3737 = vunpack.c.l.b16 %v3359
      %v3738 = vunpack.c.h.b16 %v3359
      %v3739 = vunpack.c.l.b16 %v3360
      %v3740 = vunpack.c.h.b16 %v3360
      %v3741 = vunpack.c.l.b16 %v3361
      %v3742 = vunpack.c.h.b16 %v3361
      %v3743 = vunpack.c.l.b16 %v3362
      %v3744 = vunpack.c.h.b16 %v3362
      %v3745 = vunpack.c.l.b16 %v3363
      %v3746 = vunpack.c.h.b16 %v3363
      %v3747 = vunpack.c.l.b16 %v3364
      %v3748 = vunpack.c.h.b16 %v3364
      %v3749 = vpack.c.b16 %v3495, %v3493
      %v3750 = vpack.c.b16 %v3496, %v3494
      %v3751 = vpack.c.b16 %v3499, %v3497
      %v3752 = vpack.c.b16 %v3500, %v3498
      %v3753 = vpack.c.b16 %v3503, %v3501
      %v3754 = vpack.c.b16 %v3504, %v3502
      %v3755 = vpack.c.b16 %v3507, %v3505
      %v3756 = vpack.c.b16 %v3508, %v3506
      %v3757 = vpack.c.b16 %v3511, %v3509
      %v3758 = vpack.c.b16 %v3512, %v3510
      %v3759 = vpack.c.b16 %v3515, %v3513
      %v3760 = vpack.c.b16 %v3516, %v3514
      %v3761 = vpack.c.b16 %v3519, %v3517
      %v3762 = vpack.c.b16 %v3520, %v3518
      %v3763 = vpack.c.b16 %v3523, %v3521
      %v3764 = vpack.c.b16 %v3524, %v3522
      %v3765 = vpack.c.b16 %v3527, %v3525
      %v3766 = vpack.c.b16 %v3528, %v3526
      %v3767 = vpack.c.b16 %v3531, %v3529
      %v3768 = vpack.c.b16 %v3532, %v3530
      %v3769 = vpack.c.b16 %v3535, %v3533
      %v3770 = vpack.c.b16 %v3536, %v3534
      %v3771 = vpack.c.b16 %v3539, %v3537
      %v3772 = vpack.c.b16 %v3540, %v3538
      %v3773 = vpack.c.b16 %v3543, %v3541
      %v3774 = vpack.c.b16 %v3544, %v3542
      %v3775 = vpack.c.b16 %v3547, %v3545
      %v3776 = vpack.c.b16 %v3548, %v3546
      %v3777 = vpack.c.b16 %v3551, %v3549
      %v3778 = vpack.c.b16 %v3552, %v3550
      %v3779 = vpack.c.b16 %v3555, %v3553
      %v3780 = vpack.c.b16 %v3556, %v3554
      %v3781 = vpack.c.b16 %v3559, %v3557
      %v3782 = vpack.c.b16 %v3560, %v3558
      %v3783 = vpack.c.b16 %v3563, %v3561
      %v3784 = vpack.c.b16 %v3564, %v3562
      %v3785 = vpack.c.b16 %v3567, %v3565
      %v3786 = vpack.c.b16 %v3568, %v3566
      %v3787 = vpack.c.b16 %v3571, %v3569
      %v3788 = vpack.c.b16 %v3572, %v3570
      %v3789 = vpack.c.b16 %v3575, %v3573
      %v3790 = vpack.c.b16 %v3576, %v3574
      %v3791 = vpack.c.b16 %v3579, %v3577
      %v3792 = vpack.c.b16 %v3580, %v3578
      %v3793 = vpack.c.b16 %v3583, %v3581
      %v3794 = vpack.c.b16 %v3584, %v3582
      %v3795 = vpack.c.b16 %v3587, %v3585
      %v3796 = vpack.c.b16 %v3588, %v3586
      %v3797 = vpack.c.b16 %v3591, %v3589
      %v3798 = vpack.c.b16 %v3592, %v3590
      %v3799 = vpack.c.b16 %v3595, %v3593
      %v3800 = vpack.c.b16 %v3596, %v3594
      %v3801 = vpack.c.b16 %v3599, %v3597
      %v3802 = vpack.c.b16 %v3600, %v3598
      %v3803 = vpack.c.b16 %v3603, %v3601
      %v3804 = vpack.c.b16 %v3604, %v3602
      %v3805 = vpack.c.b16 %v3607, %v3605
      %v3806 = vpack.c.b16 %v3608, %v3606
      %v3807 = vpack.c.b16 %v3611, %v3609
      %v3808 = vpack.c.b16 %v3612, %v3610
      %v3809 = vpack.c.b16 %v3615, %v3613
      %v3810 = vpack.c.b16 %v3616, %v3614
      %v3811 = vpack.c.b16 %v3619, %v3617
      %v3812 = vpack.c.b16 %v3620, %v3618
      %v3813 = vpack.c.b16 %v3623, %v3621
      %v3814 = vpack.c.b16 %v3624, %v3622
      %v3815 = vpack.c.b16 %v3627, %v3625
      %v3816 = vpack.c.b16 %v3628, %v3626
      %v3817 = vpack.c.b16 %v3631, %v3629
      %v3818 = vpack.c.b16 %v3632, %v3630
      %v3819 = vpack.c.b16 %v3635, %v3633
      %v3820 = vpack.c.b16 %v3636, %v3634
      %v3821 = vpack.c.b16 %v3639, %v3637
      %v3822 = vpack.c.b16 %v3640, %v3638
      %v3823 = vpack.c.b16 %v3643, %v3641
      %v3824 = vpack.c.b16 %v3644, %v3642
      %v3825 = vpack.c.b16 %v3647, %v3645
      %v3826 = vpack.c.b16 %v3648, %v3646
      %v3827 = vpack.c.b16 %v3651, %v3649
      %v3828 = vpack.c.b16 %v3652, %v3650
      %v3829 = vpack.c.b16 %v3655, %v3653
      %v3830 = vpack.c.b16 %v3656, %v3654
      %v3831 = vpack.c.b16 %v3659, %v3657
      %v3832 = vpack.c.b16 %v3660, %v3658
      %v3833 = vpack.c.b16 %v3663, %v3661
      %v3834 = vpack.c.b16 %v3664, %v3662
      %v3835 = vpack.c.b16 %v3667, %v3665
      %v3836 = vpack.c.b16 %v3668, %v3666
      %v3837 = vpack.c.b16 %v3671, %v3669
      %v3838 = vpack.c.b16 %v3672, %v3670
      %v3839 = vpack.c.b16 %v3675, %v3673
      %v3840 = vpack.c.b16 %v3676, %v3674
      %v3841 = vpack.c.b16 %v3679, %v3677
      %v3842 = vpack.c.b16 %v3680, %v3678
      %v3843 = vpack.c.b16 %v3683, %v3681
      %v3844 = vpack.c.b16 %v3684, %v3682
      %v3845 = vpack.c.b16 %v3687, %v3685
      %v3846 = vpack.c.b16 %v3688, %v3686
      %v3847 = vpack.c.b16 %v3691, %v3689
      %v3848 = vpack.c.b16 %v3692, %v3690
      %v3849 = vpack.c.b16 %v3695, %v3693
      %v3850 = vpack.c.b16 %v3696, %v3694
      %v3851 = vpack.c.b16 %v3699, %v3697
      %v3852 = vpack.c.b16 %v3700, %v3698
      %v3853 = vpack.c.b16 %v3703, %v3701
      %v3854 = vpack.c.b16 %v3704, %v3702
      %v3855 = vpack.c.b16 %v3707, %v3705
      %v3856 = vpack.c.b16 %v3708, %v3706
      %v3857 = vpack.c.b16 %v3711, %v3709
      %v3858 = vpack.c.b16 %v3712, %v3710
      %v3859 = vpack.c.b16 %v3715, %v3713
      %v3860 = vpack.c.b16 %v3716, %v3714
      %v3861 = vpack.c.b16 %v3719, %v3717
      %v3862 = vpack.c.b16 %v3720, %v3718
      %v3863 = vpack.c.b16 %v3723, %v3721
      %v3864 = vpack.c.b16 %v3724, %v3722
      %v3865 = vpack.c.b16 %v3727, %v3725
      %v3866 = vpack.c.b16 %v3728, %v3726
      %v3867 = vpack.c.b16 %v3731, %v3729
      %v3868 = vpack.c.b16 %v3732, %v3730
      %v3869 = vpack.c.b16 %v3735, %v3733
      %v3870 = vpack.c.b16 %v3736, %v3734
      %v3871 = vpack.c.b16 %v3739, %v3737
      %v3872 = vpack.c.b16 %v3740, %v3738
      %v3873 = vpack.c.b16 %v3743, %v3741
      %v3874 = vpack.c.b16 %v3744, %v3742
      %v3875 = vpack.c.b16 %v3747, %v3745
      %v3876 = vpack.c.b16 %v3748, %v3746
      %4005 = vmatprep.subr.bf16.mxu0 %v3764
      %4006 = vmatpush1.bf16.msra.mxu0 %v3763
      %4007 = vmatprep.subr.bf16.mxu0 %v3762
      %4008 = vmatpush1.bf16.msra.mxu0 %v3761
      %4009 = vmatprep.subr.bf16.mxu0 %v3760
      %4010 = vmatpush1.bf16.msra.mxu0 %v3759
      %4011 = vmatprep.subr.bf16.mxu0 %v3758
      %4012 = vmatpush1.bf16.msra.mxu0 %v3757
      %4013 = vmatprep.subr.bf16.mxu0 %v3756
      %4014 = vmatpush1.bf16.msra.mxu0 %v3755
      %4015 = vmatprep.subr.bf16.mxu0 %v3754
      %4016 = vmatpush1.bf16.msra.mxu0 %v3753
      %4017 = vmatprep.subr.bf16.mxu0 %v3752
      %4018 = vmatpush1.bf16.msra.mxu0 %v3751
      %4019 = vmatprep.subr.bf16.mxu0 %v3750
      %4020 = vmatpush1.bf16.msra.mxu0 %v3749
      %4021 = vmatprep.subr.bf16.mxu0 %v3780
      %4022 = vmatpush2.bf16.msra.mxu0 %v3779
      %4023 = vmatprep.subr.bf16.mxu0 %v3778
      %4024 = vmatpush2.bf16.msra.mxu0 %v3777
      %4025 = vmatprep.subr.bf16.mxu0 %v3776
      %4026 = vmatpush2.bf16.msra.mxu0 %v3775
      %4027 = vmatprep.subr.bf16.mxu0 %v3774
      %4028 = vmatpush2.bf16.msra.mxu0 %v3773
      %4029 = vmatprep.subr.bf16.mxu0 %v3772
      %4030 = vmatpush2.bf16.msra.mxu0 %v3771
      %4031 = vmatprep.subr.bf16.mxu0 %v3770
      %4032 = vmatpush2.bf16.msra.mxu0 %v3769
      %4033 = vmatprep.subr.bf16.mxu0 %v3768
      %4034 = vmatpush2.bf16.msra.mxu0 %v3767
      %4035 = vmatprep.subr.bf16.mxu0 %v3766
      %4036 = vmatpush2.bf16.msra.mxu0 %v3765
      %4037 = vmatprep.mubr.bf16.mxu0 %v3222
      %4038 = vmatmul.mubr.bf16.gmra.mxu0 %v3221
      %v4039 = vpop.f32.mrf.mxu0
      %v4040 = vadd.f32 0.0, %v4039
      %v4041 = vpop.f32.mrf.mxu0
      %v4042 = vadd.f32 0.0, %v4041
      %v4043 = vpop.f32.mrf.mxu0
      %v4044 = vadd.f32 0.0, %v4043
      %v4045 = vpop.f32.mrf.mxu0
      %v4046 = vadd.f32 0.0, %v4045
      %4047 = vmatprep.mubr.bf16.mxu0 %v3230
      %4048 = vmatmul.mubr.bf16.gmra.mxu0 %v3229
      %v4049 = vpop.f32.mrf.mxu0
      %v4050 = vadd.f32 0.0, %v4049
      %v4051 = vpop.f32.mrf.mxu0
      %v4052 = vadd.f32 0.0, %v4051
      %v4053 = vpop.f32.mrf.mxu0
      %v4054 = vadd.f32 0.0, %v4053
      %v4055 = vpop.f32.mrf.mxu0
      %v4056 = vadd.f32 0.0, %v4055
      %4057 = vdwg.mxu0
      %4058 = vmatprep.subr.bf16.mxu0 %v3796
      %4059 = vmatpush1.bf16.msra.mxu0 %v3795
      %4060 = vmatprep.subr.bf16.mxu0 %v3794
      %4061 = vmatpush1.bf16.msra.mxu0 %v3793
      %4062 = vmatprep.subr.bf16.mxu0 %v3792
      %4063 = vmatpush1.bf16.msra.mxu0 %v3791
      %4064 = vmatprep.subr.bf16.mxu0 %v3790
      %4065 = vmatpush1.bf16.msra.mxu0 %v3789
      %4066 = vmatprep.subr.bf16.mxu0 %v3788
      %4067 = vmatpush1.bf16.msra.mxu0 %v3787
      %4068 = vmatprep.subr.bf16.mxu0 %v3786
      %4069 = vmatpush1.bf16.msra.mxu0 %v3785
      %4070 = vmatprep.subr.bf16.mxu0 %v3784
      %4071 = vmatpush1.bf16.msra.mxu0 %v3783
      %4072 = vmatprep.subr.bf16.mxu0 %v3782
      %4073 = vmatpush1.bf16.msra.mxu0 %v3781
      %4074 = vmatprep.subr.bf16.mxu0 %v3812
      %4075 = vmatpush2.bf16.msra.mxu0 %v3811
      %4076 = vmatprep.subr.bf16.mxu0 %v3810
      %4077 = vmatpush2.bf16.msra.mxu0 %v3809
      %4078 = vmatprep.subr.bf16.mxu0 %v3808
      %4079 = vmatpush2.bf16.msra.mxu0 %v3807
      %4080 = vmatprep.subr.bf16.mxu0 %v3806
      %4081 = vmatpush2.bf16.msra.mxu0 %v3805
      %4082 = vmatprep.subr.bf16.mxu0 %v3804
      %4083 = vmatpush2.bf16.msra.mxu0 %v3803
      %4084 = vmatprep.subr.bf16.mxu0 %v3802
      %4085 = vmatpush2.bf16.msra.mxu0 %v3801
      %4086 = vmatprep.subr.bf16.mxu0 %v3800
      %4087 = vmatpush2.bf16.msra.mxu0 %v3799
      %4088 = vmatprep.subr.bf16.mxu0 %v3798
      %4089 = vmatpush2.bf16.msra.mxu0 %v3797
      %4090 = vmatprep.mubr.bf16.mxu0 %v3224
      %4091 = vmatmul.mubr.bf16.gmra.mxu0 %v3223
      %v4092 = vpop.f32.mrf.mxu0
      %v4093 = vadd.f32 %v4040, %v4092
      %v4094 = vpop.f32.mrf.mxu0
      %v4095 = vadd.f32 %v4042, %v4094
      %v4096 = vpop.f32.mrf.mxu0
      %v4097 = vadd.f32 %v4044, %v4096
      %v4098 = vpop.f32.mrf.mxu0
      %v4099 = vadd.f32 %v4046, %v4098
      %4100 = vmatprep.mubr.bf16.mxu0 %v3232
      %4101 = vmatmul.mubr.bf16.gmra.mxu0 %v3231
      %v4102 = vpop.f32.mrf.mxu0
      %v4103 = vadd.f32 %v4050, %v4102
      %v4104 = vpop.f32.mrf.mxu0
      %v4105 = vadd.f32 %v4052, %v4104
      %v4106 = vpop.f32.mrf.mxu0
      %v4107 = vadd.f32 %v4054, %v4106
      %v4108 = vpop.f32.mrf.mxu0
      %v4109 = vadd.f32 %v4056, %v4108
      %4110 = vdwg.mxu0
      %4111 = vmatprep.subr.bf16.mxu0 %v3828
      %4112 = vmatpush1.bf16.msra.mxu0 %v3827
      %4113 = vmatprep.subr.bf16.mxu0 %v3826
      %4114 = vmatpush1.bf16.msra.mxu0 %v3825
      %4115 = vmatprep.subr.bf16.mxu0 %v3824
      %4116 = vmatpush1.bf16.msra.mxu0 %v3823
      %4117 = vmatprep.subr.bf16.mxu0 %v3822
      %4118 = vmatpush1.bf16.msra.mxu0 %v3821
      %4119 = vmatprep.subr.bf16.mxu0 %v3820
      %4120 = vmatpush1.bf16.msra.mxu0 %v3819
      %4121 = vmatprep.subr.bf16.mxu0 %v3818
      %4122 = vmatpush1.bf16.msra.mxu0 %v3817
      %4123 = vmatprep.subr.bf16.mxu0 %v3816
      %4124 = vmatpush1.bf16.msra.mxu0 %v3815
      %4125 = vmatprep.subr.bf16.mxu0 %v3814
      %4126 = vmatpush1.bf16.msra.mxu0 %v3813
      %4127 = vmatprep.subr.bf16.mxu0 %v3844
      %4128 = vmatpush2.bf16.msra.mxu0 %v3843
      %4129 = vmatprep.subr.bf16.mxu0 %v3842
      %4130 = vmatpush2.bf16.msra.mxu0 %v3841
      %4131 = vmatprep.subr.bf16.mxu0 %v3840
      %4132 = vmatpush2.bf16.msra.mxu0 %v3839
      %4133 = vmatprep.subr.bf16.mxu0 %v3838
      %4134 = vmatpush2.bf16.msra.mxu0 %v3837
      %4135 = vmatprep.subr.bf16.mxu0 %v3836
      %4136 = vmatpush2.bf16.msra.mxu0 %v3835
      %4137 = vmatprep.subr.bf16.mxu0 %v3834
      %4138 = vmatpush2.bf16.msra.mxu0 %v3833
      %4139 = vmatprep.subr.bf16.mxu0 %v3832
      %4140 = vmatpush2.bf16.msra.mxu0 %v3831
      %4141 = vmatprep.subr.bf16.mxu0 %v3830
      %4142 = vmatpush2.bf16.msra.mxu0 %v3829
      %4143 = vmatprep.mubr.bf16.mxu0 %v3226
      %4144 = vmatmul.mubr.bf16.gmra.mxu0 %v3225
      %v4145 = vpop.f32.mrf.mxu0
      %v4146 = vadd.f32 %v4093, %v4145
      %v4147 = vpop.f32.mrf.mxu0
      %v4148 = vadd.f32 %v4095, %v4147
      %v4149 = vpop.f32.mrf.mxu0
      %v4150 = vadd.f32 %v4097, %v4149
      %v4151 = vpop.f32.mrf.mxu0
      %v4152 = vadd.f32 %v4099, %v4151
      %4153 = vmatprep.mubr.bf16.mxu0 %v3234
      %4154 = vmatmul.mubr.bf16.gmra.mxu0 %v3233
      %v4155 = vpop.f32.mrf.mxu0
      %v4156 = vadd.f32 %v4103, %v4155
      %v4157 = vpop.f32.mrf.mxu0
      %v4158 = vadd.f32 %v4105, %v4157
      %v4159 = vpop.f32.mrf.mxu0
      %v4160 = vadd.f32 %v4107, %v4159
      %v4161 = vpop.f32.mrf.mxu0
      %v4162 = vadd.f32 %v4109, %v4161
      %4163 = vdwg.mxu0
      %4164 = vmatprep.subr.bf16.mxu0 %v3860
      %4165 = vmatpush1.bf16.msra.mxu0 %v3859
      %4166 = vmatprep.subr.bf16.mxu0 %v3858
      %4167 = vmatpush1.bf16.msra.mxu0 %v3857
      %4168 = vmatprep.subr.bf16.mxu0 %v3856
      %4169 = vmatpush1.bf16.msra.mxu0 %v3855
      %4170 = vmatprep.subr.bf16.mxu0 %v3854
      %4171 = vmatpush1.bf16.msra.mxu0 %v3853
      %4172 = vmatprep.subr.bf16.mxu0 %v3852
      %4173 = vmatpush1.bf16.msra.mxu0 %v3851
      %4174 = vmatprep.subr.bf16.mxu0 %v3850
      %4175 = vmatpush1.bf16.msra.mxu0 %v3849
      %4176 = vmatprep.subr.bf16.mxu0 %v3848
      %4177 = vmatpush1.bf16.msra.mxu0 %v3847
      %4178 = vmatprep.subr.bf16.mxu0 %v3846
      %4179 = vmatpush1.bf16.msra.mxu0 %v3845
      %4180 = vmatprep.subr.bf16.mxu0 %v3876
      %4181 = vmatpush2.bf16.msra.mxu0 %v3875
      %4182 = vmatprep.subr.bf16.mxu0 %v3874
      %4183 = vmatpush2.bf16.msra.mxu0 %v3873
      %4184 = vmatprep.subr.bf16.mxu0 %v3872
      %4185 = vmatpush2.bf16.msra.mxu0 %v3871
      %4186 = vmatprep.subr.bf16.mxu0 %v3870
      %4187 = vmatpush2.bf16.msra.mxu0 %v3869
      %4188 = vmatprep.subr.bf16.mxu0 %v3868
      %4189 = vmatpush2.bf16.msra.mxu0 %v3867
      %4190 = vmatprep.subr.bf16.mxu0 %v3866
      %4191 = vmatpush2.bf16.msra.mxu0 %v3865
      %4192 = vmatprep.subr.bf16.mxu0 %v3864
      %4193 = vmatpush2.bf16.msra.mxu0 %v3863
      %4194 = vmatprep.subr.bf16.mxu0 %v3862
      %4195 = vmatpush2.bf16.msra.mxu0 %v3861
      %4196 = vmatprep.mubr.bf16.mxu0 %v3228
      %4197 = vmatmul.mubr.bf16.gmra.mxu0 %v3227
      %v4198 = vpop.f32.mrf.mxu0
      %v4199 = vadd.f32 %v4146, %v4198
      %v4200 = vpop.f32.mrf.mxu0
      %v4201 = vadd.f32 %v4148, %v4200
      %v4202 = vpop.f32.mrf.mxu0
      %v4203 = vadd.f32 %v4150, %v4202
      %v4204 = vpop.f32.mrf.mxu0
      %v4205 = vadd.f32 %v4152, %v4204
      %4206 = vmatprep.mubr.bf16.mxu0 %v3236
      %4207 = vmatmul.mubr.bf16.gmra.mxu0 %v3235
      %v4208 = vpop.f32.mrf.mxu0
      %v4209 = vadd.f32 %v4156, %v4208
      %v4210 = vpop.f32.mrf.mxu0
      %v4211 = vadd.f32 %v4158, %v4210
      %v4212 = vpop.f32.mrf.mxu0
      %v4213 = vadd.f32 %v4160, %v4212
      %v4214 = vpop.f32.mrf.mxu0
      %v4215 = vadd.f32 %v4162, %v4214
      %4216 = vdwg.mxu0
      %v4217 = vld [vmem:[%s6] sm:$0xff]
      %v4218 = vld [vmem:[%s6 + $0x8] sm:$0xff]
      %v4219 = vld [vmem:[%s6 + $0x10] sm:$0xff]
      %v4220 = vld [vmem:[%s6 + $0x18] sm:$0xff]
      %v4221 = vand.u32 %v591, 15
      %v4222 = vand.u32 %v592, 15
      %4231 = vrot.lane.b32.xlu0 %v4199, 17
      %v4232 = vpop.permute.xlu0 %4231
      %4233 = vrot.lane.b32.xlu0 %v4201, 17
      %v4234 = vpop.permute.xlu0 %4233
      %4235 = vrot.lane.b32.xlu0 %v4203, 17
      %v4236 = vpop.permute.xlu0 %4235
      %4237 = vrot.lane.b32.xlu0 %v4205, 17
      %v4238 = vpop.permute.xlu0 %4237
      %4239 = vrot.lane.b32.xlu0 %v4209, 17
      %v4240 = vpop.permute.xlu0 %4239
      %4241 = vrot.lane.b32.xlu0 %v4211, 17
      %v4242 = vpop.permute.xlu0 %4241
      %4243 = vrot.lane.b32.xlu0 %v4213, 17
      %v4244 = vpop.permute.xlu0 %4243
      %4245 = vrot.lane.b32.xlu0 %v4215, 17
      %v4246 = vpop.permute.xlu0 %4245
      %vm4247 = vcmask 138240
      %v4248 = vsel %vm4247, %v4232, %v4234
      %v4249 = vsel %vm4247, %v4236, %v4238
      %v4250 = vsel %vm4247, %v4240, %v4242
      %v4251 = vsel %vm4247, %v4244, %v4246
      %v4260 = vsel %vm4247, 0.0, %v4232
      %v4261 = vsel %vm4247, 0.0, %v4236
      %v4262 = vsel %vm4247, 0.0, %v4240
      %v4263 = vsel %vm4247, 0.0, %v4244
      %vm4264 = vcmp.ge.s32.totalorder %v4221, 1
      %vm4265 = vcmp.ge.s32.totalorder %v4222, 1
      %v4266 = vsel %vm4264, 1, 0
      %v4267 = vsel %vm4265, 1, 0
      %vm4268 = vcmp.eq.s32.totalorder %v4266, 1
      %vm4269 = vcmp.eq.s32.totalorder %v4267, 1
      %v4270 = vsel %vm4268, %v4260, 0.0
      %v4271 = vsel %vm4269, %v4248, 0.0
      %v4272 = vsel %vm4268, %v4261, 0.0
      %v4273 = vsel %vm4269, %v4249, 0.0
      %v4274 = vsel %vm4268, %v4262, 0.0
      %v4275 = vsel %vm4269, %v4250, 0.0
      %v4276 = vsel %vm4268, %v4263, 0.0
      %v4277 = vsel %vm4269, %v4251, 0.0
      %4278 = vrot.lane.b32.xlu0 %v4199, 16
      %v4279 = vpop.permute.xlu0 %4278
      %4280 = vrot.lane.b32.xlu0 %v4201, 16
      %v4281 = vpop.permute.xlu0 %4280
      %4282 = vrot.lane.b32.xlu0 %v4203, 16
      %v4283 = vpop.permute.xlu0 %4282
      %4284 = vrot.lane.b32.xlu0 %v4205, 16
      %v4285 = vpop.permute.xlu0 %4284
      %4286 = vrot.lane.b32.xlu0 %v4209, 16
      %v4287 = vpop.permute.xlu0 %4286
      %4288 = vrot.lane.b32.xlu0 %v4211, 16
      %v4289 = vpop.permute.xlu0 %4288
      %4290 = vrot.lane.b32.xlu0 %v4213, 16
      %v4291 = vpop.permute.xlu0 %4290
      %4292 = vrot.lane.b32.xlu0 %v4215, 16
      %v4293 = vpop.permute.xlu0 %4292
      %vm4294 = vcmask 130048
      %v4295 = vsel %vm4294, %v4279, %v4281
      %v4296 = vsel %vm4294, %v4283, %v4285
      %v4297 = vsel %vm4294, %v4287, %v4289
      %v4298 = vsel %vm4294, %v4291, %v4293
      %v4307 = vsel %vm4294, 0.0, %v4279
      %v4308 = vsel %vm4294, 0.0, %v4283
      %v4309 = vsel %vm4294, 0.0, %v4287
      %v4310 = vsel %vm4294, 0.0, %v4291
      %4311 = vrot.lane.b32.xlu0 %v4199, 15
      %v4312 = vpop.permute.xlu0 %4311
      %4313 = vrot.lane.b32.xlu0 %v4201, 15
      %v4314 = vpop.permute.xlu0 %4313
      %4315 = vrot.lane.b32.xlu0 %v4203, 15
      %v4316 = vpop.permute.xlu0 %4315
      %4317 = vrot.lane.b32.xlu0 %v4205, 15
      %v4318 = vpop.permute.xlu0 %4317
      %4319 = vrot.lane.b32.xlu0 %v4209, 15
      %v4320 = vpop.permute.xlu0 %4319
      %4321 = vrot.lane.b32.xlu0 %v4211, 15
      %v4322 = vpop.permute.xlu0 %4321
      %4323 = vrot.lane.b32.xlu0 %v4213, 15
      %v4324 = vpop.permute.xlu0 %4323
      %4325 = vrot.lane.b32.xlu0 %v4215, 15
      %v4326 = vpop.permute.xlu0 %4325
      %vm4327 = vcmask 121856
      %v4328 = vsel %vm4327, %v4312, %v4314
      %v4329 = vsel %vm4327, %v4316, %v4318
      %v4330 = vsel %vm4327, %v4320, %v4322
      %v4331 = vsel %vm4327, %v4324, %v4326
      %v4340 = vsel %vm4327, 0.0, %v4312
      %v4341 = vsel %vm4327, 0.0, %v4316
      %v4342 = vsel %vm4327, 0.0, %v4320
      %v4343 = vsel %vm4327, 0.0, %v4324
      %vm4344 = vcmp.le.s32.totalorder %v4221, 14
      %vm4345 = vcmp.le.s32.totalorder %v4222, 14
      %v4346 = vsel %vm4344, 1, 0
      %v4347 = vsel %vm4345, 1, 0
      %vm4348 = vcmp.eq.s32.totalorder %v4346, 1
      %vm4349 = vcmp.eq.s32.totalorder %v4347, 1
      %v4350 = vsel %vm4348, %v4340, 0.0
      %v4351 = vsel %vm4349, %v4328, 0.0
      %v4352 = vsel %vm4348, %v4341, 0.0
      %v4353 = vsel %vm4349, %v4329, 0.0
      %v4354 = vsel %vm4348, %v4342, 0.0
      %v4355 = vsel %vm4349, %v4330, 0.0
      %v4356 = vsel %vm4348, %v4343, 0.0
      %v4357 = vsel %vm4349, %v4331, 0.0
      %4358 = vrot.lane.b32.xlu0 %v4199, 1
      %v4359 = vpop.permute.xlu0 %4358
      %4360 = vrot.lane.b32.xlu0 %v4201, 1
      %v4361 = vpop.permute.xlu0 %4360
      %4362 = vrot.lane.b32.xlu0 %v4203, 1
      %v4363 = vpop.permute.xlu0 %4362
      %4364 = vrot.lane.b32.xlu0 %v4205, 1
      %v4365 = vpop.permute.xlu0 %4364
      %4366 = vrot.lane.b32.xlu0 %v4209, 1
      %v4367 = vpop.permute.xlu0 %4366
      %4368 = vrot.lane.b32.xlu0 %v4211, 1
      %v4369 = vpop.permute.xlu0 %4368
      %4370 = vrot.lane.b32.xlu0 %v4213, 1
      %v4371 = vpop.permute.xlu0 %4370
      %4372 = vrot.lane.b32.xlu0 %v4215, 1
      %v4373 = vpop.permute.xlu0 %4372
      %v4374 = vsel %vm794, %v4359, %v4361
      %v4375 = vsel %vm794, %v4363, %v4365
      %v4376 = vsel %vm794, %v4367, %v4369
      %v4377 = vsel %vm794, %v4371, %v4373
      %v4386 = vsel %vm794, 0.0, %v4359
      %v4387 = vsel %vm794, 0.0, %v4363
      %v4388 = vsel %vm794, 0.0, %v4367
      %v4389 = vsel %vm794, 0.0, %v4371
      %v4390 = vsel %vm4268, %v4386, 0.0
      %v4391 = vsel %vm4269, %v4374, 0.0
      %v4392 = vsel %vm4268, %v4387, 0.0
      %v4393 = vsel %vm4269, %v4375, 0.0
      %v4394 = vsel %vm4268, %v4388, 0.0
      %v4395 = vsel %vm4269, %v4376, 0.0
      %v4396 = vsel %vm4268, %v4389, 0.0
      %v4397 = vsel %vm4269, %v4377, 0.0
      %4398 = vrot.lane.b32.xlu0 %v4199, 127
      %v4399 = vpop.permute.xlu0 %4398
      %4400 = vrot.lane.b32.xlu0 %v4201, 127
      %v4401 = vpop.permute.xlu0 %4400
      %4402 = vrot.lane.b32.xlu0 %v4203, 127
      %v4403 = vpop.permute.xlu0 %4402
      %4404 = vrot.lane.b32.xlu0 %v4205, 127
      %v4405 = vpop.permute.xlu0 %4404
      %4406 = vrot.lane.b32.xlu0 %v4209, 127
      %v4407 = vpop.permute.xlu0 %4406
      %4408 = vrot.lane.b32.xlu0 %v4211, 127
      %v4409 = vpop.permute.xlu0 %4408
      %4410 = vrot.lane.b32.xlu0 %v4213, 127
      %v4411 = vpop.permute.xlu0 %4410
      %4412 = vrot.lane.b32.xlu0 %v4215, 127
      %v4413 = vpop.permute.xlu0 %4412
      %v4414 = vsel %vm835, %v4399, %v4401
      %v4415 = vsel %vm835, %v4403, %v4405
      %v4416 = vsel %vm835, %v4407, %v4409
      %v4417 = vsel %vm835, %v4411, %v4413
      %v4426 = vsel %vm835, %v4401, 0.0
      %v4427 = vsel %vm835, %v4405, 0.0
      %v4428 = vsel %vm835, %v4409, 0.0
      %v4429 = vsel %vm835, %v4413, 0.0
      %v4430 = vsel %vm4348, %v4414, 0.0
      %v4431 = vsel %vm4349, %v4426, 0.0
      %v4432 = vsel %vm4348, %v4415, 0.0
      %v4433 = vsel %vm4349, %v4427, 0.0
      %v4434 = vsel %vm4348, %v4416, 0.0
      %v4435 = vsel %vm4349, %v4428, 0.0
      %v4436 = vsel %vm4348, %v4417, 0.0
      %v4437 = vsel %vm4349, %v4429, 0.0
      %4438 = vrot.lane.b32.xlu0 %v4199, 113
      %v4439 = vpop.permute.xlu0 %4438
      %4440 = vrot.lane.b32.xlu0 %v4201, 113
      %v4441 = vpop.permute.xlu0 %4440
      %4442 = vrot.lane.b32.xlu0 %v4203, 113
      %v4443 = vpop.permute.xlu0 %4442
      %4444 = vrot.lane.b32.xlu0 %v4205, 113
      %v4445 = vpop.permute.xlu0 %4444
      %4446 = vrot.lane.b32.xlu0 %v4209, 113
      %v4447 = vpop.permute.xlu0 %4446
      %4448 = vrot.lane.b32.xlu0 %v4211, 113
      %v4449 = vpop.permute.xlu0 %4448
      %4450 = vrot.lane.b32.xlu0 %v4213, 113
      %v4451 = vpop.permute.xlu0 %4450
      %4452 = vrot.lane.b32.xlu0 %v4215, 113
      %v4453 = vpop.permute.xlu0 %4452
      %vm4454 = vcmask 924672
      %v4455 = vsel %vm4454, %v4439, %v4441
      %v4456 = vsel %vm4454, %v4443, %v4445
      %v4457 = vsel %vm4454, %v4447, %v4449
      %v4458 = vsel %vm4454, %v4451, %v4453
      %v4467 = vsel %vm4454, %v4441, 0.0
      %v4468 = vsel %vm4454, %v4445, 0.0
      %v4469 = vsel %vm4454, %v4449, 0.0
      %v4470 = vsel %vm4454, %v4453, 0.0
      %v4471 = vsel %vm4268, %v4455, 0.0
      %v4472 = vsel %vm4269, %v4467, 0.0
      %v4473 = vsel %vm4268, %v4456, 0.0
      %v4474 = vsel %vm4269, %v4468, 0.0
      %v4475 = vsel %vm4268, %v4457, 0.0
      %v4476 = vsel %vm4269, %v4469, 0.0
      %v4477 = vsel %vm4268, %v4458, 0.0
      %v4478 = vsel %vm4269, %v4470, 0.0
      %4479 = vrot.lane.b32.xlu0 %v4199, 112
      %v4480 = vpop.permute.xlu0 %4479
      %4481 = vrot.lane.b32.xlu0 %v4201, 112
      %v4482 = vpop.permute.xlu0 %4481
      %4483 = vrot.lane.b32.xlu0 %v4203, 112
      %v4484 = vpop.permute.xlu0 %4483
      %4485 = vrot.lane.b32.xlu0 %v4205, 112
      %v4486 = vpop.permute.xlu0 %4485
      %4487 = vrot.lane.b32.xlu0 %v4209, 112
      %v4488 = vpop.permute.xlu0 %4487
      %4489 = vrot.lane.b32.xlu0 %v4211, 112
      %v4490 = vpop.permute.xlu0 %4489
      %4491 = vrot.lane.b32.xlu0 %v4213, 112
      %v4492 = vpop.permute.xlu0 %4491
      %4493 = vrot.lane.b32.xlu0 %v4215, 112
      %v4494 = vpop.permute.xlu0 %4493
      %vm4495 = vcmask 916480
      %v4496 = vsel %vm4495, %v4480, %v4482
      %v4497 = vsel %vm4495, %v4484, %v4486
      %v4498 = vsel %vm4495, %v4488, %v4490
      %v4499 = vsel %vm4495, %v4492, %v4494
      %v4508 = vsel %vm4495, %v4482, 0.0
      %v4509 = vsel %vm4495, %v4486, 0.0
      %v4510 = vsel %vm4495, %v4490, 0.0
      %v4511 = vsel %vm4495, %v4494, 0.0
      %4512 = vrot.lane.b32.xlu0 %v4199, 111
      %v4513 = vpop.permute.xlu0 %4512
      %4514 = vrot.lane.b32.xlu0 %v4201, 111
      %v4515 = vpop.permute.xlu0 %4514
      %4516 = vrot.lane.b32.xlu0 %v4203, 111
      %v4517 = vpop.permute.xlu0 %4516
      %4518 = vrot.lane.b32.xlu0 %v4205, 111
      %v4519 = vpop.permute.xlu0 %4518
      %4520 = vrot.lane.b32.xlu0 %v4209, 111
      %v4521 = vpop.permute.xlu0 %4520
      %4522 = vrot.lane.b32.xlu0 %v4211, 111
      %v4523 = vpop.permute.xlu0 %4522
      %4524 = vrot.lane.b32.xlu0 %v4213, 111
      %v4525 = vpop.permute.xlu0 %4524
      %4526 = vrot.lane.b32.xlu0 %v4215, 111
      %v4527 = vpop.permute.xlu0 %4526
      %vm4528 = vcmask 908288
      %v4529 = vsel %vm4528, %v4513, %v4515
      %v4530 = vsel %vm4528, %v4517, %v4519
      %v4531 = vsel %vm4528, %v4521, %v4523
      %v4532 = vsel %vm4528, %v4525, %v4527
      %v4541 = vsel %vm4528, %v4515, 0.0
      %v4542 = vsel %vm4528, %v4519, 0.0
      %v4543 = vsel %vm4528, %v4523, 0.0
      %v4544 = vsel %vm4528, %v4527, 0.0
      %v4545 = vsel %vm4348, %v4529, 0.0
      %v4546 = vsel %vm4349, %v4541, 0.0
      %v4547 = vsel %vm4348, %v4530, 0.0
      %v4548 = vsel %vm4349, %v4542, 0.0
      %v4549 = vsel %vm4348, %v4531, 0.0
      %v4550 = vsel %vm4349, %v4543, 0.0
      %v4551 = vsel %vm4348, %v4532, 0.0
      %v4552 = vsel %vm4349, %v4544, 0.0
      %v4553 = vpack.c.bf16 %v4272, %v4270
      %v4554 = vpack.c.bf16 %v4273, %v4271
      %v4555 = vpack.c.bf16 %v4276, %v4274
      %v4556 = vpack.c.bf16 %v4277, %v4275
      %v4557 = vpack.c.bf16 %v4308, %v4307
      %v4558 = vpack.c.bf16 %v4296, %v4295
      %v4559 = vpack.c.bf16 %v4310, %v4309
      %v4560 = vpack.c.bf16 %v4298, %v4297
      %v4561 = vpack.c.bf16 %v4352, %v4350
      %v4562 = vpack.c.bf16 %v4353, %v4351
      %v4563 = vpack.c.bf16 %v4356, %v4354
      %v4564 = vpack.c.bf16 %v4357, %v4355
      %v4565 = vpack.c.bf16 %v4392, %v4390
      %v4566 = vpack.c.bf16 %v4393, %v4391
      %v4567 = vpack.c.bf16 %v4396, %v4394
      %v4568 = vpack.c.bf16 %v4397, %v4395
      %v4569 = vpack.c.bf16 %v4203, %v4199
      %v4570 = vpack.c.bf16 %v4205, %v4201
      %v4571 = vpack.c.bf16 %v4213, %v4209
      %v4572 = vpack.c.bf16 %v4215, %v4211
      %v4573 = vpack.c.bf16 %v4432, %v4430
      %v4574 = vpack.c.bf16 %v4433, %v4431
      %v4575 = vpack.c.bf16 %v4436, %v4434
      %v4576 = vpack.c.bf16 %v4437, %v4435
      %v4577 = vpack.c.bf16 %v4473, %v4471
      %v4578 = vpack.c.bf16 %v4474, %v4472
      %v4579 = vpack.c.bf16 %v4477, %v4475
      %v4580 = vpack.c.bf16 %v4478, %v4476
      %v4581 = vpack.c.bf16 %v4497, %v4496
      %v4582 = vpack.c.bf16 %v4509, %v4508
      %v4583 = vpack.c.bf16 %v4499, %v4498
      %v4584 = vpack.c.bf16 %v4511, %v4510
      %v4585 = vpack.c.bf16 %v4547, %v4545
      %v4586 = vpack.c.bf16 %v4548, %v4546
      %v4587 = vpack.c.bf16 %v4551, %v4549
      %v4588 = vpack.c.bf16 %v4552, %v4550
      %v4589 = vld [vmem:[%s5] sm:$0xff]
      %v4590 = vld [vmem:[%s5 + $0x8] sm:$0xf]
      %v4591 = vld [vmem:[%s5 + $0xc] sm:$0xff]
      %v4592 = vld [vmem:[%s5 + $0x14] sm:$0xf]
      %v4593 = vld [vmem:[%s5 + $0x18] sm:$0xff]
      %v4594 = vld [vmem:[%s5 + $0x20] sm:$0xf]
      %v4595 = vld [vmem:[%s5 + $0x24] sm:$0xff]
      %v4596 = vld [vmem:[%s5 + $0x2c] sm:$0xf]
      %4598 = vset.pattern.permute.xlu0 0
      %4599 = vperm.xlu0 %4598, %v4217
      %v4600 = vpop.permute.xlu0 %4599
      %4603 = vset.pattern.permute.xlu0 0
      %4604 = vperm.xlu0 %4603, %v4218
      %v4605 = vpop.permute.xlu0 %4604
      %4608 = vset.pattern.permute.xlu0 0
      %4609 = vperm.xlu0 %4608, %v4219
      %v4610 = vpop.permute.xlu0 %4609
      %4613 = vset.pattern.permute.xlu0 0
      %4614 = vperm.xlu0 %4613, %v4220
      %v4615 = vpop.permute.xlu0 %4614
      %v4625 = vunpack.c.l.b16 %v4589
      %v4626 = vunpack.c.h.b16 %v4589
      %v4627 = vunpack.c.l.b16 %v4590
      %v4628 = vunpack.c.l.b16 %v4591
      %v4629 = vunpack.c.h.b16 %v4591
      %v4630 = vunpack.c.l.b16 %v4592
      %v4631 = vunpack.c.l.b16 %v4593
      %v4632 = vunpack.c.h.b16 %v4593
      %v4633 = vunpack.c.l.b16 %v4594
      %v4634 = vunpack.c.l.b16 %v4595
      %v4635 = vunpack.c.h.b16 %v4595
      %v4636 = vunpack.c.l.b16 %v4596
      %v4637 = vpack.c.b16 %v4628, %v4625
      %v4638 = vpack.c.b16 %v4629, %v4626
      %v4639 = vpack.c.b16 %v4630, %v4627
      %v4640 = vpack.c.b16 %v4634, %v4631
      %v4641 = vpack.c.b16 %v4635, %v4632
      %v4642 = vpack.c.b16 %v4636, %v4633
      %v4648 = vsel %vm696, %v4639, 0
      %v4651 = vsel %vm696, %v4642, 0
      %4653 = vmatprep.subr.bf16.mxu0 %v4568
      %4654 = vmatpush1.bf16.msra.mxu0 %v4567
      %4655 = vmatprep.subr.bf16.mxu0 %v4566
      %4656 = vmatpush1.bf16.msra.mxu0 %v4565
      %4657 = vmatprep.subr.bf16.mxu0 %v4564
      %4658 = vmatpush1.bf16.msra.mxu0 %v4563
      %4659 = vmatprep.subr.bf16.mxu0 %v4562
      %4660 = vmatpush1.bf16.msra.mxu0 %v4561
      %4661 = vmatprep.subr.bf16.mxu0 %v4560
      %4662 = vmatpush1.bf16.msra.mxu0 %v4559
      %4663 = vmatprep.subr.bf16.mxu0 %v4558
      %4664 = vmatpush1.bf16.msra.mxu0 %v4557
      %4665 = vmatprep.subr.bf16.mxu0 %v4556
      %4666 = vmatpush1.bf16.msra.mxu0 %v4555
      %4667 = vmatprep.subr.bf16.mxu0 %v4554
      %4668 = vmatpush1.bf16.msra.mxu0 %v4553
      %4669 = vmatprep.subr.bf16.mxu0 %v4584
      %4670 = vmatpush2.bf16.msra.mxu0 %v4583
      %4671 = vmatprep.subr.bf16.mxu0 %v4582
      %4672 = vmatpush2.bf16.msra.mxu0 %v4581
      %4673 = vmatprep.subr.bf16.mxu0 %v4580
      %4674 = vmatpush2.bf16.msra.mxu0 %v4579
      %4675 = vmatprep.subr.bf16.mxu0 %v4578
      %4676 = vmatpush2.bf16.msra.mxu0 %v4577
      %4677 = vmatprep.subr.bf16.mxu0 %v4576
      %4678 = vmatpush2.bf16.msra.mxu0 %v4575
      %4679 = vmatprep.subr.bf16.mxu0 %v4574
      %4680 = vmatpush2.bf16.msra.mxu0 %v4573
      %4681 = vmatprep.subr.bf16.mxu0 %v4572
      %4682 = vmatpush2.bf16.msra.mxu0 %v4571
      %4683 = vmatprep.subr.bf16.mxu0 %v4570
      %4684 = vmatpush2.bf16.msra.mxu0 %v4569
      %4685 = vmatprep.mubr.bf16.mxu0 %v4638
      %4686 = vmatmul.mubr.bf16.gmra.mxu0 %v4637
      %v4687 = vpop.f32.mrf.mxu0
      %v4688 = vadd.f32 %v4600, %v4687
      %v4689 = vpop.f32.mrf.mxu0
      %v4690 = vadd.f32 %v4600, %v4689
      %v4691 = vpop.f32.mrf.mxu0
      %v4692 = vadd.f32 %v4605, %v4691
      %v4693 = vpop.f32.mrf.mxu0
      %v4694 = vadd.f32 %v4605, %v4693
      %4695 = vmatprep.mubr.bf16.mxu0 %v4641
      %4696 = vmatmul.mubr.bf16.gmra.mxu0 %v4640
      %v4697 = vpop.f32.mrf.mxu0
      %v4698 = vadd.f32 %v4610, %v4697
      %v4699 = vpop.f32.mrf.mxu0
      %v4700 = vadd.f32 %v4610, %v4699
      %v4701 = vpop.f32.mrf.mxu0
      %v4702 = vadd.f32 %v4615, %v4701
      %v4703 = vpop.f32.mrf.mxu0
      %v4704 = vadd.f32 %v4615, %v4703
      %4705 = vdwg.mxu0
      %4706 = vmatprep.subr.bf16.mxu0 0
      %4707 = vmatpush1.bf16.msra.mxu0 0
      %4708 = vmatprep.subr.bf16.mxu0 0
      %4709 = vmatpush1.bf16.msra.mxu0 0
      %4710 = vmatprep.subr.bf16.mxu0 0
      %4711 = vmatpush1.bf16.msra.mxu0 0
      %4712 = vmatprep.subr.bf16.mxu0 0
      %4713 = vmatpush1.bf16.msra.mxu0 0
      %4714 = vmatprep.subr.bf16.mxu0 0
      %4715 = vmatpush1.bf16.msra.mxu0 0
      %4716 = vmatprep.subr.bf16.mxu0 0
      %4717 = vmatpush1.bf16.msra.mxu0 0
      %4718 = vmatprep.subr.bf16.mxu0 %v4588
      %4719 = vmatpush1.bf16.msra.mxu0 %v4587
      %4720 = vmatprep.subr.bf16.mxu0 %v4586
      %4721 = vmatpush1.bf16.msra.mxu0 %v4585
      %4722 = vmatprep.subr.bf16.mxu0 0
      %4723 = vmatpush2.bf16.msra.mxu0 0
      %4724 = vmatprep.subr.bf16.mxu0 0
      %4725 = vmatpush2.bf16.msra.mxu0 0
      %4726 = vmatprep.subr.bf16.mxu0 0
      %4727 = vmatpush2.bf16.msra.mxu0 0
      %4728 = vmatprep.subr.bf16.mxu0 0
      %4729 = vmatpush2.bf16.msra.mxu0 0
      %4730 = vmatprep.subr.bf16.mxu0 0
      %4731 = vmatpush2.bf16.msra.mxu0 0
      %4732 = vmatprep.subr.bf16.mxu0 0
      %4733 = vmatpush2.bf16.msra.mxu0 0
      %4734 = vmatprep.subr.bf16.mxu0 0
      %4735 = vmatpush2.bf16.msra.mxu0 0
      %4736 = vmatprep.subr.bf16.mxu0 0
      %4737 = vmatpush2.bf16.msra.mxu0 0
      %4738 = vmatprep.mubr.bf16.mxu0 0
      %4739 = vmatmul.mubr.bf16.gmra.mxu0 %v4648
      %v4740 = vpop.f32.mrf.mxu0
      %v4741 = vadd.f32 %v4688, %v4740
      %v4742 = vpop.f32.mrf.mxu0
      %v4743 = vadd.f32 %v4690, %v4742
      %v4744 = vpop.f32.mrf.mxu0
      %v4745 = vadd.f32 %v4692, %v4744
      %v4746 = vpop.f32.mrf.mxu0
      %v4747 = vadd.f32 %v4694, %v4746
      %4748 = vmatprep.mubr.bf16.mxu0 0
      %4749 = vmatmul.mubr.bf16.gmra.mxu0 %v4651
      %v4750 = vpop.f32.mrf.mxu0
      %v4751 = vadd.f32 %v4698, %v4750
      %v4752 = vpop.f32.mrf.mxu0
      %v4753 = vadd.f32 %v4700, %v4752
      %v4754 = vpop.f32.mrf.mxu0
      %v4755 = vadd.f32 %v4702, %v4754
      %v4756 = vpop.f32.mrf.mxu0
      %v4757 = vadd.f32 %v4704, %v4756
      %4758 = vdwg.mxu0
      %v4759 = vmax.f32 %v4741, 0.0
      %v4760 = vmax.f32 %v4743, 0.0
      %v4761 = vmax.f32 %v4745, 0.0
      %v4762 = vmax.f32 %v4747, 0.0
      %v4763 = vmax.f32 %v4751, 0.0
      %v4764 = vmax.f32 %v4753, 0.0
      %v4765 = vmax.f32 %v4755, 0.0
      %v4766 = vmax.f32 %v4757, 0.0
      %v4767 = vpack.c.bf16 %v4761, %v4759
      %v4768 = vpack.c.bf16 %v4762, %v4760
      %v4769 = vpack.c.bf16 %v4765, %v4763
      %v4770 = vpack.c.bf16 %v4766, %v4764
      %v4771 = vld [vmem:[%s14] sm:$0xf]
      %v4772 = vld [vmem:[%s14 + $0x4] sm:$0xf]
      %v4773 = vld [vmem:[%s14 + $0x8] sm:$0xf]
      %v4774 = vld [vmem:[%s14 + $0xc] sm:$0xf]
      %v4775 = vld [vmem:[%s14 + $0x10] sm:$0xf]
      %v4776 = vld [vmem:[%s14 + $0x14] sm:$0xf]
      %v4777 = vld [vmem:[%s14 + $0x18] sm:$0xf]
      %v4778 = vld [vmem:[%s14 + $0x1c] sm:$0xf]
      %v4779 = vld [vmem:[%s14 + $0x20] sm:$0xf]
      %v4780 = vld [vmem:[%s14 + $0x24] sm:$0xf]
      %v4781 = vld [vmem:[%s14 + $0x28] sm:$0xf]
      %v4782 = vld [vmem:[%s14 + $0x2c] sm:$0xf]
      %v4783 = vld [vmem:[%s14 + $0x30] sm:$0xf]
      %v4784 = vld [vmem:[%s14 + $0x34] sm:$0xf]
      %v4785 = vld [vmem:[%s14 + $0x38] sm:$0xf]
      %v4786 = vld [vmem:[%s14 + $0x3c] sm:$0xf]
      %v4787 = vld [vmem:[%s14 + $0x40] sm:$0xf]
      %v4788 = vld [vmem:[%s14 + $0x44] sm:$0xf]
      %v4789 = vld [vmem:[%s14 + $0x48] sm:$0xf]
      %v4790 = vld [vmem:[%s14 + $0x4c] sm:$0xf]
      %v4791 = vld [vmem:[%s14 + $0x50] sm:$0xf]
      %v4792 = vld [vmem:[%s14 + $0x54] sm:$0xf]
      %v4793 = vld [vmem:[%s14 + $0x58] sm:$0xf]
      %v4794 = vld [vmem:[%s14 + $0x5c] sm:$0xf]
      %v4795 = vld [vmem:[%s14 + $0x60] sm:$0xf]
      %v4796 = vld [vmem:[%s14 + $0x64] sm:$0xf]
      %v4797 = vld [vmem:[%s14 + $0x68] sm:$0xf]
      %v4798 = vld [vmem:[%s14 + $0x6c] sm:$0xf]
      %v4799 = vld [vmem:[%s14 + $0x70] sm:$0xf]
      %v4800 = vld [vmem:[%s14 + $0x74] sm:$0xf]
      %v4801 = vld [vmem:[%s14 + $0x78] sm:$0xf]
      %v4802 = vld [vmem:[%s14 + $0x7c] sm:$0xf]
      %v4835 = vunpack.c.l.b16 %v4771
      %v4836 = vunpack.c.l.b16 %v4772
      %v4837 = vunpack.c.l.b16 %v4773
      %v4838 = vunpack.c.l.b16 %v4774
      %v4839 = vunpack.c.l.b16 %v4775
      %v4840 = vunpack.c.l.b16 %v4776
      %v4841 = vunpack.c.l.b16 %v4777
      %v4842 = vunpack.c.l.b16 %v4778
      %v4843 = vunpack.c.l.b16 %v4779
      %v4844 = vunpack.c.l.b16 %v4780
      %v4845 = vunpack.c.l.b16 %v4781
      %v4846 = vunpack.c.l.b16 %v4782
      %v4847 = vunpack.c.l.b16 %v4783
      %v4848 = vunpack.c.l.b16 %v4784
      %v4849 = vunpack.c.l.b16 %v4785
      %v4850 = vunpack.c.l.b16 %v4786
      %v4851 = vunpack.c.l.b16 %v4787
      %v4852 = vunpack.c.l.b16 %v4788
      %v4853 = vunpack.c.l.b16 %v4789
      %v4854 = vunpack.c.l.b16 %v4790
      %v4855 = vunpack.c.l.b16 %v4791
      %v4856 = vunpack.c.l.b16 %v4792
      %v4857 = vunpack.c.l.b16 %v4793
      %v4858 = vunpack.c.l.b16 %v4794
      %v4859 = vunpack.c.l.b16 %v4795
      %v4860 = vunpack.c.l.b16 %v4796
      %v4861 = vunpack.c.l.b16 %v4797
      %v4862 = vunpack.c.l.b16 %v4798
      %v4863 = vunpack.c.l.b16 %v4799
      %v4864 = vunpack.c.l.b16 %v4800
      %v4865 = vunpack.c.l.b16 %v4801
      %v4866 = vunpack.c.l.b16 %v4802
      %v4867 = vpack.c.b16 %v4836, %v4835
      %v4868 = vpack.c.b16 %v4838, %v4837
      %v4869 = vpack.c.b16 %v4840, %v4839
      %v4870 = vpack.c.b16 %v4842, %v4841
      %v4871 = vpack.c.b16 %v4844, %v4843
      %v4872 = vpack.c.b16 %v4846, %v4845
      %v4873 = vpack.c.b16 %v4848, %v4847
      %v4874 = vpack.c.b16 %v4850, %v4849
      %v4875 = vpack.c.b16 %v4852, %v4851
      %v4876 = vpack.c.b16 %v4854, %v4853
      %v4877 = vpack.c.b16 %v4856, %v4855
      %v4878 = vpack.c.b16 %v4858, %v4857
      %v4879 = vpack.c.b16 %v4860, %v4859
      %v4880 = vpack.c.b16 %v4862, %v4861
      %v4881 = vpack.c.b16 %v4864, %v4863
      %v4882 = vpack.c.b16 %v4866, %v4865
      %4899 = vmatprep.subr.bf16.mxu0 0
      %4900 = vmatpush1.bf16.msra.mxu0 %v4874
      %4901 = vmatprep.subr.bf16.mxu0 0
      %4902 = vmatpush1.bf16.msra.mxu0 %v4873
      %4903 = vmatprep.subr.bf16.mxu0 0
      %4904 = vmatpush1.bf16.msra.mxu0 %v4872
      %4905 = vmatprep.subr.bf16.mxu0 0
      %4906 = vmatpush1.bf16.msra.mxu0 %v4871
      %4907 = vmatprep.subr.bf16.mxu0 0
      %4908 = vmatpush1.bf16.msra.mxu0 %v4870
      %4909 = vmatprep.subr.bf16.mxu0 0
      %4910 = vmatpush1.bf16.msra.mxu0 %v4869
      %4911 = vmatprep.subr.bf16.mxu0 0
      %4912 = vmatpush1.bf16.msra.mxu0 %v4868
      %4913 = vmatprep.subr.bf16.mxu0 0
      %4914 = vmatpush1.bf16.msra.mxu0 %v4867
      %4915 = vmatprep.subr.bf16.mxu0 0
      %4916 = vmatpush2.bf16.msra.mxu0 %v4882
      %4917 = vmatprep.subr.bf16.mxu0 0
      %4918 = vmatpush2.bf16.msra.mxu0 %v4881
      %4919 = vmatprep.subr.bf16.mxu0 0
      %4920 = vmatpush2.bf16.msra.mxu0 %v4880
      %4921 = vmatprep.subr.bf16.mxu0 0
      %4922 = vmatpush2.bf16.msra.mxu0 %v4879
      %4923 = vmatprep.subr.bf16.mxu0 0
      %4924 = vmatpush2.bf16.msra.mxu0 %v4878
      %4925 = vmatprep.subr.bf16.mxu0 0
      %4926 = vmatpush2.bf16.msra.mxu0 %v4877
      %4927 = vmatprep.subr.bf16.mxu0 0
      %4928 = vmatpush2.bf16.msra.mxu0 %v4876
      %4929 = vmatprep.subr.bf16.mxu0 0
      %4930 = vmatpush2.bf16.msra.mxu0 %v4875
      %4931 = vmatprep.mubr.bf16.mxu0 %v4768
      %4932 = vmatmul.mubr.bf16.gmra.mxu0 %v4767
      %v4933 = vpop.f32.mrf.mxu0
      %v4934 = vadd.f32 0.0, %v4933
      %v4935 = vpop.f32.mrf.mxu0
      %v4936 = vpop.f32.mrf.mxu0
      %v4937 = vadd.f32 0.0, %v4936
      %v4938 = vpop.f32.mrf.mxu0
      %4939 = vmatprep.mubr.bf16.mxu0 %v4770
      %4940 = vmatmul.mubr.bf16.gmra.mxu0 %v4769
      %v4941 = vpop.f32.mrf.mxu0
      %v4942 = vadd.f32 0.0, %v4941
      %v4943 = vpop.f32.mrf.mxu0
      %v4944 = vpop.f32.mrf.mxu0
      %v4945 = vadd.f32 0.0, %v4944
      %v4946 = vpop.f32.mrf.mxu0
      %4947 = vdwg.mxu0
      %v4948 = vld [vmem:[%s8] sm:$0xff]
      %v4949 = vld [vmem:[%s8 + $0x8] sm:$0xff]
      %v4950 = vld [vmem:[%s8 + $0x10] sm:$0xff]
      %v4951 = vld [vmem:[%s8 + $0x18] sm:$0xff]
      %v4952 = vand.u32 %v591, 7
      %4957 = vrot.lane.b32.xlu0 %v4934, 9
      %v4958 = vpop.permute.xlu0 %4957
      %4959 = vrot.lane.b32.xlu0 %v4937, 9
      %v4960 = vpop.permute.xlu0 %4959
      %4961 = vrot.lane.b32.xlu0 %v4942, 9
      %v4962 = vpop.permute.xlu0 %4961
      %4963 = vrot.lane.b32.xlu0 %v4945, 9
      %v4964 = vpop.permute.xlu0 %4963
      %vm4969 = vcmask 72704
      %v4970 = vsel %vm4969, 0.0, %v4958
      %v4971 = vsel %vm4969, 0.0, %v4960
      %v4972 = vsel %vm4969, 0.0, %v4962
      %v4973 = vsel %vm4969, 0.0, %v4964
      %vm4974 = vcmp.ge.s32.totalorder %v4952, 1
      %v4975 = vsel %vm4974, 1, 0
      %vm4976 = vcmp.eq.s32.totalorder %v4975, 1
      %v4977 = vsel %vm4976, %v4970, 0.0
      %v4978 = vsel %vm4976, %v4971, 0.0
      %v4979 = vsel %vm4976, %v4972, 0.0
      %v4980 = vsel %vm4976, %v4973, 0.0
      %4981 = vrot.lane.b32.xlu0 %v4934, 8
      %v4982 = vpop.permute.xlu0 %4981
      %4983 = vrot.lane.b32.xlu0 %v4937, 8
      %v4984 = vpop.permute.xlu0 %4983
      %4985 = vrot.lane.b32.xlu0 %v4942, 8
      %v4986 = vpop.permute.xlu0 %4985
      %4987 = vrot.lane.b32.xlu0 %v4945, 8
      %v4988 = vpop.permute.xlu0 %4987
      %vm4993 = vcmask 64512
      %v4994 = vsel %vm4993, 0.0, %v4982
      %v4995 = vsel %vm4993, 0.0, %v4984
      %v4996 = vsel %vm4993, 0.0, %v4986
      %v4997 = vsel %vm4993, 0.0, %v4988
      %4998 = vrot.lane.b32.xlu0 %v4934, 7
      %v4999 = vpop.permute.xlu0 %4998
      %5000 = vrot.lane.b32.xlu0 %v4937, 7
      %v5001 = vpop.permute.xlu0 %5000
      %5002 = vrot.lane.b32.xlu0 %v4942, 7
      %v5003 = vpop.permute.xlu0 %5002
      %5004 = vrot.lane.b32.xlu0 %v4945, 7
      %v5005 = vpop.permute.xlu0 %5004
      %vm5010 = vcmask 56320
      %v5011 = vsel %vm5010, 0.0, %v4999
      %v5012 = vsel %vm5010, 0.0, %v5001
      %v5013 = vsel %vm5010, 0.0, %v5003
      %v5014 = vsel %vm5010, 0.0, %v5005
      %vm5015 = vcmp.le.s32.totalorder %v4952, 6
      %v5016 = vsel %vm5015, 1, 0
      %vm5017 = vcmp.eq.s32.totalorder %v5016, 1
      %v5018 = vsel %vm5017, %v5011, 0.0
      %v5019 = vsel %vm5017, %v5012, 0.0
      %v5020 = vsel %vm5017, %v5013, 0.0
      %v5021 = vsel %vm5017, %v5014, 0.0
      %5022 = vrot.lane.b32.xlu0 %v4934, 1
      %v5023 = vpop.permute.xlu0 %5022
      %5024 = vrot.lane.b32.xlu0 %v4937, 1
      %v5025 = vpop.permute.xlu0 %5024
      %5026 = vrot.lane.b32.xlu0 %v4942, 1
      %v5027 = vpop.permute.xlu0 %5026
      %5028 = vrot.lane.b32.xlu0 %v4945, 1
      %v5029 = vpop.permute.xlu0 %5028
      %v5034 = vsel %vm794, 0.0, %v5023
      %v5035 = vsel %vm794, 0.0, %v5025
      %v5036 = vsel %vm794, 0.0, %v5027
      %v5037 = vsel %vm794, 0.0, %v5029
      %v5038 = vsel %vm4976, %v5034, 0.0
      %v5039 = vsel %vm4976, %v5035, 0.0
      %v5040 = vsel %vm4976, %v5036, 0.0
      %v5041 = vsel %vm4976, %v5037, 0.0
      %5042 = vrot.lane.b32.xlu0 %v4934, 127
      %v5043 = vpop.permute.xlu0 %5042
      %5044 = vrot.lane.b32.xlu0 %v4937, 127
      %v5045 = vpop.permute.xlu0 %5044
      %5046 = vrot.lane.b32.xlu0 %v4942, 127
      %v5047 = vpop.permute.xlu0 %5046
      %5048 = vrot.lane.b32.xlu0 %v4945, 127
      %v5049 = vpop.permute.xlu0 %5048
      %vm5054 = vcmask 515072
      %v5055 = vsel %vm5054, %v5043, 0.0
      %v5056 = vsel %vm5054, %v5045, 0.0
      %v5057 = vsel %vm5054, %v5047, 0.0
      %v5058 = vsel %vm5054, %v5049, 0.0
      %v5059 = vsel %vm5017, %v5055, 0.0
      %v5060 = vsel %vm5017, %v5056, 0.0
      %v5061 = vsel %vm5017, %v5057, 0.0
      %v5062 = vsel %vm5017, %v5058, 0.0
      %5063 = vrot.lane.b32.xlu0 %v4934, 121
      %v5064 = vpop.permute.xlu0 %5063
      %5065 = vrot.lane.b32.xlu0 %v4937, 121
      %v5066 = vpop.permute.xlu0 %5065
      %5067 = vrot.lane.b32.xlu0 %v4942, 121
      %v5068 = vpop.permute.xlu0 %5067
      %5069 = vrot.lane.b32.xlu0 %v4945, 121
      %v5070 = vpop.permute.xlu0 %5069
      %vm5075 = vcmask 465920
      %v5076 = vsel %vm5075, %v5064, 0.0
      %v5077 = vsel %vm5075, %v5066, 0.0
      %v5078 = vsel %vm5075, %v5068, 0.0
      %v5079 = vsel %vm5075, %v5070, 0.0
      %v5080 = vsel %vm4976, %v5076, 0.0
      %v5081 = vsel %vm4976, %v5077, 0.0
      %v5082 = vsel %vm4976, %v5078, 0.0
      %v5083 = vsel %vm4976, %v5079, 0.0
      %5084 = vrot.lane.b32.xlu0 %v4934, 120
      %v5085 = vpop.permute.xlu0 %5084
      %5086 = vrot.lane.b32.xlu0 %v4937, 120
      %v5087 = vpop.permute.xlu0 %5086
      %5088 = vrot.lane.b32.xlu0 %v4942, 120
      %v5089 = vpop.permute.xlu0 %5088
      %5090 = vrot.lane.b32.xlu0 %v4945, 120
      %v5091 = vpop.permute.xlu0 %5090
      %vm5096 = vcmask 457728
      %v5097 = vsel %vm5096, %v5085, 0.0
      %v5098 = vsel %vm5096, %v5087, 0.0
      %v5099 = vsel %vm5096, %v5089, 0.0
      %v5100 = vsel %vm5096, %v5091, 0.0
      %5101 = vrot.lane.b32.xlu0 %v4934, 119
      %v5102 = vpop.permute.xlu0 %5101
      %5103 = vrot.lane.b32.xlu0 %v4937, 119
      %v5104 = vpop.permute.xlu0 %5103
      %5105 = vrot.lane.b32.xlu0 %v4942, 119
      %v5106 = vpop.permute.xlu0 %5105
      %5107 = vrot.lane.b32.xlu0 %v4945, 119
      %v5108 = vpop.permute.xlu0 %5107
      %vm5113 = vcmask 449536
      %v5114 = vsel %vm5113, %v5102, 0.0
      %v5115 = vsel %vm5113, %v5104, 0.0
      %v5116 = vsel %vm5113, %v5106, 0.0
      %v5117 = vsel %vm5113, %v5108, 0.0
      %v5118 = vsel %vm5017, %v5114, 0.0
      %v5119 = vsel %vm5017, %v5115, 0.0
      %v5120 = vsel %vm5017, %v5116, 0.0
      %v5121 = vsel %vm5017, %v5117, 0.0
      %v5122 = vpack.c.bf16 %v4978, %v4977
      %v5123 = vpack.c.bf16 %v4980, %v4979
      %v5124 = vpack.c.bf16 %v4995, %v4994
      %v5125 = vpack.c.bf16 %v4997, %v4996
      %v5126 = vpack.c.bf16 %v5019, %v5018
      %v5127 = vpack.c.bf16 %v5021, %v5020
      %v5128 = vpack.c.bf16 %v5039, %v5038
      %v5129 = vpack.c.bf16 %v5041, %v5040
      %v5130 = vpack.c.bf16 %v4937, %v4934
      %v5131 = vpack.c.bf16 %v4945, %v4942
      %v5132 = vpack.c.bf16 %v5060, %v5059
      %v5133 = vpack.c.bf16 %v5062, %v5061
      %v5134 = vpack.c.bf16 %v5081, %v5080
      %v5135 = vpack.c.bf16 %v5083, %v5082
      %v5136 = vpack.c.bf16 %v5098, %v5097
      %v5137 = vpack.c.bf16 %v5100, %v5099
      %v5138 = vpack.c.bf16 %v5119, %v5118
      %v5139 = vpack.c.bf16 %v5121, %v5120
      %v5140 = vld [vmem:[%s7] sm:$0xff]
      %v5141 = vld [vmem:[%s7 + $0x8] sm:$0xf]
      %v5142 = vld [vmem:[%s7 + $0xc] sm:$0xff]
      %v5143 = vld [vmem:[%s7 + $0x14] sm:$0xf]
      %v5144 = vld [vmem:[%s7 + $0x18] sm:$0xff]
      %v5145 = vld [vmem:[%s7 + $0x20] sm:$0xf]
      %v5146 = vld [vmem:[%s7 + $0x24] sm:$0xff]
      %v5147 = vld [vmem:[%s7 + $0x2c] sm:$0xf]
      %5149 = vset.pattern.permute.xlu0 0
      %5150 = vperm.xlu0 %5149, %v4948
      %v5151 = vpop.permute.xlu0 %5150
      %5154 = vset.pattern.permute.xlu0 0
      %5155 = vperm.xlu0 %5154, %v4949
      %v5156 = vpop.permute.xlu0 %5155
      %5159 = vset.pattern.permute.xlu0 0
      %5160 = vperm.xlu0 %5159, %v4950
      %v5161 = vpop.permute.xlu0 %5160
      %5164 = vset.pattern.permute.xlu0 0
      %5165 = vperm.xlu0 %5164, %v4951
      %v5166 = vpop.permute.xlu0 %5165
      %v5176 = vunpack.c.l.b16 %v5140
      %v5177 = vunpack.c.h.b16 %v5140
      %v5178 = vunpack.c.l.b16 %v5141
      %v5179 = vunpack.c.l.b16 %v5142
      %v5180 = vunpack.c.h.b16 %v5142
      %v5181 = vunpack.c.l.b16 %v5143
      %v5182 = vunpack.c.l.b16 %v5144
      %v5183 = vunpack.c.h.b16 %v5144
      %v5184 = vunpack.c.l.b16 %v5145
      %v5185 = vunpack.c.l.b16 %v5146
      %v5186 = vunpack.c.h.b16 %v5146
      %v5187 = vunpack.c.l.b16 %v5147
      %v5188 = vpack.c.b16 %v5179, %v5176
      %v5189 = vpack.c.b16 %v5180, %v5177
      %v5190 = vpack.c.b16 %v5181, %v5178
      %v5191 = vpack.c.b16 %v5185, %v5182
      %v5192 = vpack.c.b16 %v5186, %v5183
      %v5193 = vpack.c.b16 %v5187, %v5184
      %v5199 = vsel %vm696, %v5190, 0
      %v5202 = vsel %vm696, %v5193, 0
      %5204 = vmatprep.subr.bf16.mxu0 0
      %5205 = vmatpush1.bf16.msra.mxu0 %v5129
      %5206 = vmatprep.subr.bf16.mxu0 0
      %5207 = vmatpush1.bf16.msra.mxu0 %v5128
      %5208 = vmatprep.subr.bf16.mxu0 0
      %5209 = vmatpush1.bf16.msra.mxu0 %v5127
      %5210 = vmatprep.subr.bf16.mxu0 0
      %5211 = vmatpush1.bf16.msra.mxu0 %v5126
      %5212 = vmatprep.subr.bf16.mxu0 0
      %5213 = vmatpush1.bf16.msra.mxu0 %v5125
      %5214 = vmatprep.subr.bf16.mxu0 0
      %5215 = vmatpush1.bf16.msra.mxu0 %v5124
      %5216 = vmatprep.subr.bf16.mxu0 0
      %5217 = vmatpush1.bf16.msra.mxu0 %v5123
      %5218 = vmatprep.subr.bf16.mxu0 0
      %5219 = vmatpush1.bf16.msra.mxu0 %v5122
      %5220 = vmatprep.subr.bf16.mxu0 0
      %5221 = vmatpush2.bf16.msra.mxu0 %v5137
      %5222 = vmatprep.subr.bf16.mxu0 0
      %5223 = vmatpush2.bf16.msra.mxu0 %v5136
      %5224 = vmatprep.subr.bf16.mxu0 0
      %5225 = vmatpush2.bf16.msra.mxu0 %v5135
      %5226 = vmatprep.subr.bf16.mxu0 0
      %5227 = vmatpush2.bf16.msra.mxu0 %v5134
      %5228 = vmatprep.subr.bf16.mxu0 0
      %5229 = vmatpush2.bf16.msra.mxu0 %v5133
      %5230 = vmatprep.subr.bf16.mxu0 0
      %5231 = vmatpush2.bf16.msra.mxu0 %v5132
      %5232 = vmatprep.subr.bf16.mxu0 0
      %5233 = vmatpush2.bf16.msra.mxu0 %v5131
      %5234 = vmatprep.subr.bf16.mxu0 0
      %5235 = vmatpush2.bf16.msra.mxu0 %v5130
      %5236 = vmatprep.mubr.bf16.mxu0 %v5189
      %5237 = vmatmul.mubr.bf16.gmra.mxu0 %v5188
      %v5238 = vpop.f32.mrf.mxu0
      %v5239 = vadd.f32 %v5151, %v5238
      %v5240 = vpop.f32.mrf.mxu0
      %v5241 = vpop.f32.mrf.mxu0
      %v5242 = vadd.f32 %v5156, %v5241
      %v5243 = vpop.f32.mrf.mxu0
      %5244 = vmatprep.mubr.bf16.mxu0 %v5192
      %5245 = vmatmul.mubr.bf16.gmra.mxu0 %v5191
      %v5246 = vpop.f32.mrf.mxu0
      %v5247 = vadd.f32 %v5161, %v5246
      %v5248 = vpop.f32.mrf.mxu0
      %v5249 = vpop.f32.mrf.mxu0
      %v5250 = vadd.f32 %v5166, %v5249
      %v5251 = vpop.f32.mrf.mxu0
      %5252 = vdwg.mxu0
      %5253 = vmatprep.subr.bf16.mxu0 0
      %5254 = vmatpush1.bf16.msra.mxu0 0
      %5255 = vmatprep.subr.bf16.mxu0 0
      %5256 = vmatpush1.bf16.msra.mxu0 0
      %5257 = vmatprep.subr.bf16.mxu0 0
      %5258 = vmatpush1.bf16.msra.mxu0 0
      %5259 = vmatprep.subr.bf16.mxu0 0
      %5260 = vmatpush1.bf16.msra.mxu0 0
      %5261 = vmatprep.subr.bf16.mxu0 0
      %5262 = vmatpush1.bf16.msra.mxu0 0
      %5263 = vmatprep.subr.bf16.mxu0 0
      %5264 = vmatpush1.bf16.msra.mxu0 0
      %5265 = vmatprep.subr.bf16.mxu0 0
      %5266 = vmatpush1.bf16.msra.mxu0 %v5139
      %5267 = vmatprep.subr.bf16.mxu0 0
      %5268 = vmatpush1.bf16.msra.mxu0 %v5138
      %5269 = vmatprep.subr.bf16.mxu0 0
      %5270 = vmatpush2.bf16.msra.mxu0 0
      %5271 = vmatprep.subr.bf16.mxu0 0
      %5272 = vmatpush2.bf16.msra.mxu0 0
      %5273 = vmatprep.subr.bf16.mxu0 0
      %5274 = vmatpush2.bf16.msra.mxu0 0
      %5275 = vmatprep.subr.bf16.mxu0 0
      %5276 = vmatpush2.bf16.msra.mxu0 0
      %5277 = vmatprep.subr.bf16.mxu0 0
      %5278 = vmatpush2.bf16.msra.mxu0 0
      %5279 = vmatprep.subr.bf16.mxu0 0
      %5280 = vmatpush2.bf16.msra.mxu0 0
      %5281 = vmatprep.subr.bf16.mxu0 0
      %5282 = vmatpush2.bf16.msra.mxu0 0
      %5283 = vmatprep.subr.bf16.mxu0 0
      %5284 = vmatpush2.bf16.msra.mxu0 0
      %5285 = vmatprep.mubr.bf16.mxu0 0
      %5286 = vmatmul.mubr.bf16.gmra.mxu0 %v5199
      %v5287 = vpop.f32.mrf.mxu0
      %v5288 = vadd.f32 %v5239, %v5287
      %v5289 = vpop.f32.mrf.mxu0
      %v5290 = vpop.f32.mrf.mxu0
      %v5291 = vadd.f32 %v5242, %v5290
      %v5292 = vpop.f32.mrf.mxu0
      %5293 = vmatprep.mubr.bf16.mxu0 0
      %5294 = vmatmul.mubr.bf16.gmra.mxu0 %v5202
      %v5295 = vpop.f32.mrf.mxu0
      %v5296 = vadd.f32 %v5247, %v5295
      %v5297 = vpop.f32.mrf.mxu0
      %v5298 = vpop.f32.mrf.mxu0
      %v5299 = vadd.f32 %v5250, %v5298
      %v5300 = vpop.f32.mrf.mxu0
      %5301 = vdwg.mxu0
      %v5302 = vmax.f32 %v5288, 0.0
      %v5303 = vmax.f32 %v5291, 0.0
      %v5304 = vmax.f32 %v5296, 0.0
      %v5305 = vmax.f32 %v5299, 0.0
      %v5306 = vpack.c.bf16 %v5303, %v5302
      %v5307 = vpack.c.bf16 %v5305, %v5304
      %v5308 = vld [vmem:[%s15] sm:$0xff]
      %v5309 = vld [vmem:[%s15 + $0x8] sm:$0xff]
      %v5310 = vld [vmem:[%s15 + $0x10] sm:$0xff]
      %v5311 = vld [vmem:[%s15 + $0x18] sm:$0xff]
      %v5312 = vld [vmem:[%s15 + $0x20] sm:$0xff]
      %v5313 = vld [vmem:[%s15 + $0x28] sm:$0xff]
      %v5314 = vld [vmem:[%s15 + $0x30] sm:$0xff]
      %v5315 = vld [vmem:[%s15 + $0x38] sm:$0xff]
      %v5324 = vunpack.c.l.b16 %v5308
      %v5325 = vunpack.c.h.b16 %v5308
      %v5326 = vunpack.c.l.b16 %v5309
      %v5327 = vunpack.c.h.b16 %v5309
      %v5328 = vunpack.c.l.b16 %v5310
      %v5329 = vunpack.c.h.b16 %v5310
      %v5330 = vunpack.c.l.b16 %v5311
      %v5331 = vunpack.c.h.b16 %v5311
      %v5332 = vunpack.c.l.b16 %v5312
      %v5333 = vunpack.c.h.b16 %v5312
      %v5334 = vunpack.c.l.b16 %v5313
      %v5335 = vunpack.c.h.b16 %v5313
      %v5336 = vunpack.c.l.b16 %v5314
      %v5337 = vunpack.c.h.b16 %v5314
      %v5338 = vunpack.c.l.b16 %v5315
      %v5339 = vunpack.c.h.b16 %v5315
      %v5340 = vpack.c.b16 %v5326, %v5324
      %v5341 = vpack.c.b16 %v5327, %v5325
      %v5342 = vpack.c.b16 %v5330, %v5328
      %v5343 = vpack.c.b16 %v5331, %v5329
      %v5344 = vpack.c.b16 %v5334, %v5332
      %v5345 = vpack.c.b16 %v5335, %v5333
      %v5346 = vpack.c.b16 %v5338, %v5336
      %v5347 = vpack.c.b16 %v5339, %v5337
      %vm5356 = vcmask 523264
      %v5358 = vsel %vm5356, %v5306, 0
      %v5361 = vsel %vm5356, %v5307, 0
      %5363 = vmatprep.subr.bf16.mxu0 0
      %5364 = vmatpush1.bf16.msra.mxu0 0
      %5365 = vmatprep.subr.bf16.mxu0 0
      %5366 = vmatpush1.bf16.msra.mxu0 0
      %5367 = vmatprep.subr.bf16.mxu0 0
      %5368 = vmatpush1.bf16.msra.mxu0 0
      %5369 = vmatprep.subr.bf16.mxu0 0
      %5370 = vmatpush1.bf16.msra.mxu0 0
      %5371 = vmatprep.subr.bf16.mxu0 %v5347
      %5372 = vmatpush1.bf16.msra.mxu0 %v5346
      %5373 = vmatprep.subr.bf16.mxu0 %v5345
      %5374 = vmatpush1.bf16.msra.mxu0 %v5344
      %5375 = vmatprep.subr.bf16.mxu0 %v5343
      %5376 = vmatpush1.bf16.msra.mxu0 %v5342
      %5377 = vmatprep.subr.bf16.mxu0 %v5341
      %5378 = vmatpush1.bf16.msra.mxu0 %v5340
      %5379 = vmatprep.subr.bf16.mxu0 0
      %5380 = vmatpush2.bf16.msra.mxu0 0
      %5381 = vmatprep.subr.bf16.mxu0 0
      %5382 = vmatpush2.bf16.msra.mxu0 0
      %5383 = vmatprep.subr.bf16.mxu0 0
      %5384 = vmatpush2.bf16.msra.mxu0 0
      %5385 = vmatprep.subr.bf16.mxu0 0
      %5386 = vmatpush2.bf16.msra.mxu0 0
      %5387 = vmatprep.subr.bf16.mxu0 0
      %5388 = vmatpush2.bf16.msra.mxu0 0
      %5389 = vmatprep.subr.bf16.mxu0 0
      %5390 = vmatpush2.bf16.msra.mxu0 0
      %5391 = vmatprep.subr.bf16.mxu0 0
      %5392 = vmatpush2.bf16.msra.mxu0 0
      %5393 = vmatprep.subr.bf16.mxu0 0
      %5394 = vmatpush2.bf16.msra.mxu0 0
      %5395 = vmatprep.mubr.bf16.mxu0 0
      %5396 = vmatmul.mubr.bf16.gmra.mxu0 %v5358
      %v5397 = vpop.f32.mrf.mxu0
      %v5398 = vadd.f32 0.0, %v5397
      %v5399 = vpop.f32.mrf.mxu0
      %v5400 = vadd.f32 0.0, %v5399
      %v5401 = vpop.f32.mrf.mxu0
      %v5402 = vadd.f32 0.0, %v5401
      %v5403 = vpop.f32.mrf.mxu0
      %v5404 = vadd.f32 0.0, %v5403
      %5405 = vmatprep.mubr.bf16.mxu0 0
      %5406 = vmatmul.mubr.bf16.gmra.mxu0 %v5361
      %v5407 = vpop.f32.mrf.mxu0
      %v5408 = vadd.f32 0.0, %v5407
      %v5409 = vpop.f32.mrf.mxu0
      %v5410 = vadd.f32 0.0, %v5409
      %v5411 = vpop.f32.mrf.mxu0
      %v5412 = vadd.f32 0.0, %v5411
      %v5413 = vpop.f32.mrf.mxu0
      %v5414 = vadd.f32 0.0, %v5413
      %5415 = vdwg.mxu0
      %v5416 = vld [vmem:[%s10] sm:$0xff]
      %v5417 = vld [vmem:[%s10 + $0x8] sm:$0xff]
      %v5418 = vld [vmem:[%s10 + $0x10] sm:$0xff]
      %v5419 = vld [vmem:[%s10 + $0x18] sm:$0xff]
      %5428 = vrot.lane.b32.xlu0 %v5398, 17
      %v5429 = vpop.permute.xlu0 %5428
      %5430 = vrot.lane.b32.xlu0 %v5400, 17
      %v5431 = vpop.permute.xlu0 %5430
      %5432 = vrot.lane.b32.xlu0 %v5402, 17
      %v5433 = vpop.permute.xlu0 %5432
      %5434 = vrot.lane.b32.xlu0 %v5404, 17
      %v5435 = vpop.permute.xlu0 %5434
      %5436 = vrot.lane.b32.xlu0 %v5408, 17
      %v5437 = vpop.permute.xlu0 %5436
      %5438 = vrot.lane.b32.xlu0 %v5410, 17
      %v5439 = vpop.permute.xlu0 %5438
      %5440 = vrot.lane.b32.xlu0 %v5412, 17
      %v5441 = vpop.permute.xlu0 %5440
      %5442 = vrot.lane.b32.xlu0 %v5414, 17
      %v5443 = vpop.permute.xlu0 %5442
      %v5444 = vsel %vm4247, %v5429, %v5431
      %v5445 = vsel %vm4247, %v5433, %v5435
      %v5446 = vsel %vm4247, %v5437, %v5439
      %v5447 = vsel %vm4247, %v5441, %v5443
      %v5456 = vsel %vm4247, 0.0, %v5429
      %v5457 = vsel %vm4247, 0.0, %v5433
      %v5458 = vsel %vm4247, 0.0, %v5437
      %v5459 = vsel %vm4247, 0.0, %v5441
      %v5460 = vsel %vm4268, %v5456, 0.0
      %v5461 = vsel %vm4269, %v5444, 0.0
      %v5462 = vsel %vm4268, %v5457, 0.0
      %v5463 = vsel %vm4269, %v5445, 0.0
      %v5464 = vsel %vm4268, %v5458, 0.0
      %v5465 = vsel %vm4269, %v5446, 0.0
      %v5466 = vsel %vm4268, %v5459, 0.0
      %v5467 = vsel %vm4269, %v5447, 0.0
      %5468 = vrot.lane.b32.xlu0 %v5398, 16
      %v5469 = vpop.permute.xlu0 %5468
      %5470 = vrot.lane.b32.xlu0 %v5400, 16
      %v5471 = vpop.permute.xlu0 %5470
      %5472 = vrot.lane.b32.xlu0 %v5402, 16
      %v5473 = vpop.permute.xlu0 %5472
      %5474 = vrot.lane.b32.xlu0 %v5404, 16
      %v5475 = vpop.permute.xlu0 %5474
      %5476 = vrot.lane.b32.xlu0 %v5408, 16
      %v5477 = vpop.permute.xlu0 %5476
      %5478 = vrot.lane.b32.xlu0 %v5410, 16
      %v5479 = vpop.permute.xlu0 %5478
      %5480 = vrot.lane.b32.xlu0 %v5412, 16
      %v5481 = vpop.permute.xlu0 %5480
      %5482 = vrot.lane.b32.xlu0 %v5414, 16
      %v5483 = vpop.permute.xlu0 %5482
      %v5484 = vsel %vm4294, %v5469, %v5471
      %v5485 = vsel %vm4294, %v5473, %v5475
      %v5486 = vsel %vm4294, %v5477, %v5479
      %v5487 = vsel %vm4294, %v5481, %v5483
      %v5496 = vsel %vm4294, 0.0, %v5469
      %v5497 = vsel %vm4294, 0.0, %v5473
      %v5498 = vsel %vm4294, 0.0, %v5477
      %v5499 = vsel %vm4294, 0.0, %v5481
      %5500 = vrot.lane.b32.xlu0 %v5398, 15
      %v5501 = vpop.permute.xlu0 %5500
      %5502 = vrot.lane.b32.xlu0 %v5400, 15
      %v5503 = vpop.permute.xlu0 %5502
      %5504 = vrot.lane.b32.xlu0 %v5402, 15
      %v5505 = vpop.permute.xlu0 %5504
      %5506 = vrot.lane.b32.xlu0 %v5404, 15
      %v5507 = vpop.permute.xlu0 %5506
      %5508 = vrot.lane.b32.xlu0 %v5408, 15
      %v5509 = vpop.permute.xlu0 %5508
      %5510 = vrot.lane.b32.xlu0 %v5410, 15
      %v5511 = vpop.permute.xlu0 %5510
      %5512 = vrot.lane.b32.xlu0 %v5412, 15
      %v5513 = vpop.permute.xlu0 %5512
      %5514 = vrot.lane.b32.xlu0 %v5414, 15
      %v5515 = vpop.permute.xlu0 %5514
      %v5516 = vsel %vm4327, %v5501, %v5503
      %v5517 = vsel %vm4327, %v5505, %v5507
      %v5518 = vsel %vm4327, %v5509, %v5511
      %v5519 = vsel %vm4327, %v5513, %v5515
      %v5528 = vsel %vm4327, 0.0, %v5501
      %v5529 = vsel %vm4327, 0.0, %v5505
      %v5530 = vsel %vm4327, 0.0, %v5509
      %v5531 = vsel %vm4327, 0.0, %v5513
      %v5532 = vsel %vm4348, %v5528, 0.0
      %v5533 = vsel %vm4349, %v5516, 0.0
      %v5534 = vsel %vm4348, %v5529, 0.0
      %v5535 = vsel %vm4349, %v5517, 0.0
      %v5536 = vsel %vm4348, %v5530, 0.0
      %v5537 = vsel %vm4349, %v5518, 0.0
      %v5538 = vsel %vm4348, %v5531, 0.0
      %v5539 = vsel %vm4349, %v5519, 0.0
      %5540 = vrot.lane.b32.xlu0 %v5398, 1
      %v5541 = vpop.permute.xlu0 %5540
      %5542 = vrot.lane.b32.xlu0 %v5400, 1
      %v5543 = vpop.permute.xlu0 %5542
      %5544 = vrot.lane.b32.xlu0 %v5402, 1
      %v5545 = vpop.permute.xlu0 %5544
      %5546 = vrot.lane.b32.xlu0 %v5404, 1
      %v5547 = vpop.permute.xlu0 %5546
      %5548 = vrot.lane.b32.xlu0 %v5408, 1
      %v5549 = vpop.permute.xlu0 %5548
      %5550 = vrot.lane.b32.xlu0 %v5410, 1
      %v5551 = vpop.permute.xlu0 %5550
      %5552 = vrot.lane.b32.xlu0 %v5412, 1
      %v5553 = vpop.permute.xlu0 %5552
      %5554 = vrot.lane.b32.xlu0 %v5414, 1
      %v5555 = vpop.permute.xlu0 %5554
      %v5556 = vsel %vm794, %v5541, %v5543
      %v5557 = vsel %vm794, %v5545, %v5547
      %v5558 = vsel %vm794, %v5549, %v5551
      %v5559 = vsel %vm794, %v5553, %v5555
      %v5568 = vsel %vm794, 0.0, %v5541
      %v5569 = vsel %vm794, 0.0, %v5545
      %v5570 = vsel %vm794, 0.0, %v5549
      %v5571 = vsel %vm794, 0.0, %v5553
      %v5572 = vsel %vm4268, %v5568, 0.0
      %v5573 = vsel %vm4269, %v5556, 0.0
      %v5574 = vsel %vm4268, %v5569, 0.0
      %v5575 = vsel %vm4269, %v5557, 0.0
      %v5576 = vsel %vm4268, %v5570, 0.0
      %v5577 = vsel %vm4269, %v5558, 0.0
      %v5578 = vsel %vm4268, %v5571, 0.0
      %v5579 = vsel %vm4269, %v5559, 0.0
      %5580 = vrot.lane.b32.xlu0 %v5398, 127
      %v5581 = vpop.permute.xlu0 %5580
      %5582 = vrot.lane.b32.xlu0 %v5400, 127
      %v5583 = vpop.permute.xlu0 %5582
      %5584 = vrot.lane.b32.xlu0 %v5402, 127
      %v5585 = vpop.permute.xlu0 %5584
      %5586 = vrot.lane.b32.xlu0 %v5404, 127
      %v5587 = vpop.permute.xlu0 %5586
      %5588 = vrot.lane.b32.xlu0 %v5408, 127
      %v5589 = vpop.permute.xlu0 %5588
      %5590 = vrot.lane.b32.xlu0 %v5410, 127
      %v5591 = vpop.permute.xlu0 %5590
      %5592 = vrot.lane.b32.xlu0 %v5412, 127
      %v5593 = vpop.permute.xlu0 %5592
      %5594 = vrot.lane.b32.xlu0 %v5414, 127
      %v5595 = vpop.permute.xlu0 %5594
      %v5596 = vsel %vm835, %v5581, %v5583
      %v5597 = vsel %vm835, %v5585, %v5587
      %v5598 = vsel %vm835, %v5589, %v5591
      %v5599 = vsel %vm835, %v5593, %v5595
      %v5608 = vsel %vm835, %v5583, 0.0
      %v5609 = vsel %vm835, %v5587, 0.0
      %v5610 = vsel %vm835, %v5591, 0.0
      %v5611 = vsel %vm835, %v5595, 0.0
      %v5612 = vsel %vm4348, %v5596, 0.0
      %v5613 = vsel %vm4349, %v5608, 0.0
      %v5614 = vsel %vm4348, %v5597, 0.0
      %v5615 = vsel %vm4349, %v5609, 0.0
      %v5616 = vsel %vm4348, %v5598, 0.0
      %v5617 = vsel %vm4349, %v5610, 0.0
      %v5618 = vsel %vm4348, %v5599, 0.0
      %v5619 = vsel %vm4349, %v5611, 0.0
      %5620 = vrot.lane.b32.xlu0 %v5398, 113
      %v5621 = vpop.permute.xlu0 %5620
      %5622 = vrot.lane.b32.xlu0 %v5400, 113
      %v5623 = vpop.permute.xlu0 %5622
      %5624 = vrot.lane.b32.xlu0 %v5402, 113
      %v5625 = vpop.permute.xlu0 %5624
      %5626 = vrot.lane.b32.xlu0 %v5404, 113
      %v5627 = vpop.permute.xlu0 %5626
      %5628 = vrot.lane.b32.xlu0 %v5408, 113
      %v5629 = vpop.permute.xlu0 %5628
      %5630 = vrot.lane.b32.xlu0 %v5410, 113
      %v5631 = vpop.permute.xlu0 %5630
      %5632 = vrot.lane.b32.xlu0 %v5412, 113
      %v5633 = vpop.permute.xlu0 %5632
      %5634 = vrot.lane.b32.xlu0 %v5414, 113
      %v5635 = vpop.permute.xlu0 %5634
      %v5636 = vsel %vm4454, %v5621, %v5623
      %v5637 = vsel %vm4454, %v5625, %v5627
      %v5638 = vsel %vm4454, %v5629, %v5631
      %v5639 = vsel %vm4454, %v5633, %v5635
      %v5648 = vsel %vm4454, %v5623, 0.0
      %v5649 = vsel %vm4454, %v5627, 0.0
      %v5650 = vsel %vm4454, %v5631, 0.0
      %v5651 = vsel %vm4454, %v5635, 0.0
      %v5652 = vsel %vm4268, %v5636, 0.0
      %v5653 = vsel %vm4269, %v5648, 0.0
      %v5654 = vsel %vm4268, %v5637, 0.0
      %v5655 = vsel %vm4269, %v5649, 0.0
      %v5656 = vsel %vm4268, %v5638, 0.0
      %v5657 = vsel %vm4269, %v5650, 0.0
      %v5658 = vsel %vm4268, %v5639, 0.0
      %v5659 = vsel %vm4269, %v5651, 0.0
      %5660 = vrot.lane.b32.xlu0 %v5398, 112
      %v5661 = vpop.permute.xlu0 %5660
      %5662 = vrot.lane.b32.xlu0 %v5400, 112
      %v5663 = vpop.permute.xlu0 %5662
      %5664 = vrot.lane.b32.xlu0 %v5402, 112
      %v5665 = vpop.permute.xlu0 %5664
      %5666 = vrot.lane.b32.xlu0 %v5404, 112
      %v5667 = vpop.permute.xlu0 %5666
      %5668 = vrot.lane.b32.xlu0 %v5408, 112
      %v5669 = vpop.permute.xlu0 %5668
      %5670 = vrot.lane.b32.xlu0 %v5410, 112
      %v5671 = vpop.permute.xlu0 %5670
      %5672 = vrot.lane.b32.xlu0 %v5412, 112
      %v5673 = vpop.permute.xlu0 %5672
      %5674 = vrot.lane.b32.xlu0 %v5414, 112
      %v5675 = vpop.permute.xlu0 %5674
      %v5676 = vsel %vm4495, %v5661, %v5663
      %v5677 = vsel %vm4495, %v5665, %v5667
      %v5678 = vsel %vm4495, %v5669, %v5671
      %v5679 = vsel %vm4495, %v5673, %v5675
      %v5688 = vsel %vm4495, %v5663, 0.0
      %v5689 = vsel %vm4495, %v5667, 0.0
      %v5690 = vsel %vm4495, %v5671, 0.0
      %v5691 = vsel %vm4495, %v5675, 0.0
      %5692 = vrot.lane.b32.xlu0 %v5398, 111
      %v5693 = vpop.permute.xlu0 %5692
      %5694 = vrot.lane.b32.xlu0 %v5400, 111
      %v5695 = vpop.permute.xlu0 %5694
      %5696 = vrot.lane.b32.xlu0 %v5402, 111
      %v5697 = vpop.permute.xlu0 %5696
      %5698 = vrot.lane.b32.xlu0 %v5404, 111
      %v5699 = vpop.permute.xlu0 %5698
      %5700 = vrot.lane.b32.xlu0 %v5408, 111
      %v5701 = vpop.permute.xlu0 %5700
      %5702 = vrot.lane.b32.xlu0 %v5410, 111
      %v5703 = vpop.permute.xlu0 %5702
      %5704 = vrot.lane.b32.xlu0 %v5412, 111
      %v5705 = vpop.permute.xlu0 %5704
      %5706 = vrot.lane.b32.xlu0 %v5414, 111
      %v5707 = vpop.permute.xlu0 %5706
      %v5708 = vsel %vm4528, %v5693, %v5695
      %v5709 = vsel %vm4528, %v5697, %v5699
      %v5710 = vsel %vm4528, %v5701, %v5703
      %v5711 = vsel %vm4528, %v5705, %v5707
      %v5720 = vsel %vm4528, %v5695, 0.0
      %v5721 = vsel %vm4528, %v5699, 0.0
      %v5722 = vsel %vm4528, %v5703, 0.0
      %v5723 = vsel %vm4528, %v5707, 0.0
      %v5724 = vsel %vm4348, %v5708, 0.0
      %v5725 = vsel %vm4349, %v5720, 0.0
      %v5726 = vsel %vm4348, %v5709, 0.0
      %v5727 = vsel %vm4349, %v5721, 0.0
      %v5728 = vsel %vm4348, %v5710, 0.0
      %v5729 = vsel %vm4349, %v5722, 0.0
      %v5730 = vsel %vm4348, %v5711, 0.0
      %v5731 = vsel %vm4349, %v5723, 0.0
      %v5732 = vpack.c.bf16 %v5462, %v5460
      %v5733 = vpack.c.bf16 %v5463, %v5461
      %v5734 = vpack.c.bf16 %v5466, %v5464
      %v5735 = vpack.c.bf16 %v5467, %v5465
      %v5736 = vpack.c.bf16 %v5497, %v5496
      %v5737 = vpack.c.bf16 %v5485, %v5484
      %v5738 = vpack.c.bf16 %v5499, %v5498
      %v5739 = vpack.c.bf16 %v5487, %v5486
      %v5740 = vpack.c.bf16 %v5534, %v5532
      %v5741 = vpack.c.bf16 %v5535, %v5533
      %v5742 = vpack.c.bf16 %v5538, %v5536
      %v5743 = vpack.c.bf16 %v5539, %v5537
      %v5744 = vpack.c.bf16 %v5574, %v5572
      %v5745 = vpack.c.bf16 %v5575, %v5573
      %v5746 = vpack.c.bf16 %v5578, %v5576
      %v5747 = vpack.c.bf16 %v5579, %v5577
      %v5748 = vpack.c.bf16 %v5402, %v5398
      %v5749 = vpack.c.bf16 %v5404, %v5400
      %v5750 = vpack.c.bf16 %v5412, %v5408
      %v5751 = vpack.c.bf16 %v5414, %v5410
      %v5752 = vpack.c.bf16 %v5614, %v5612
      %v5753 = vpack.c.bf16 %v5615, %v5613
      %v5754 = vpack.c.bf16 %v5618, %v5616
      %v5755 = vpack.c.bf16 %v5619, %v5617
      %v5756 = vpack.c.bf16 %v5654, %v5652
      %v5757 = vpack.c.bf16 %v5655, %v5653
      %v5758 = vpack.c.bf16 %v5658, %v5656
      %v5759 = vpack.c.bf16 %v5659, %v5657
      %v5760 = vpack.c.bf16 %v5677, %v5676
      %v5761 = vpack.c.bf16 %v5689, %v5688
      %v5762 = vpack.c.bf16 %v5679, %v5678
      %v5763 = vpack.c.bf16 %v5691, %v5690
      %v5764 = vpack.c.bf16 %v5726, %v5724
      %v5765 = vpack.c.bf16 %v5727, %v5725
      %v5766 = vpack.c.bf16 %v5730, %v5728
      %v5767 = vpack.c.bf16 %v5731, %v5729
      %v5768 = vld [vmem:[%s9] sm:$0xff]
      %v5769 = vld [vmem:[%s9 + $0x8] sm:$0xff]
      %v5770 = vld [vmem:[%s9 + $0x10] sm:$0xf]
      %v5771 = vld [vmem:[%s9 + $0x14] sm:$0xff]
      %v5772 = vld [vmem:[%s9 + $0x1c] sm:$0xff]
      %v5773 = vld [vmem:[%s9 + $0x24] sm:$0xf]
      %v5774 = vld [vmem:[%s9 + $0x28] sm:$0xff]
      %v5775 = vld [vmem:[%s9 + $0x30] sm:$0xff]
      %v5776 = vld [vmem:[%s9 + $0x38] sm:$0xf]
      %v5777 = vld [vmem:[%s9 + $0x3c] sm:$0xff]
      %v5778 = vld [vmem:[%s9 + $0x44] sm:$0xff]
      %v5779 = vld [vmem:[%s9 + $0x4c] sm:$0xf]
      %5781 = vset.pattern.permute.xlu0 0
      %5782 = vperm.xlu0 %5781, %v5416
      %v5783 = vpop.permute.xlu0 %5782
      %5786 = vset.pattern.permute.xlu0 0
      %5787 = vperm.xlu0 %5786, %v5417
      %v5788 = vpop.permute.xlu0 %5787
      %5791 = vset.pattern.permute.xlu0 0
      %5792 = vperm.xlu0 %5791, %v5418
      %v5793 = vpop.permute.xlu0 %5792
      %5796 = vset.pattern.permute.xlu0 0
      %5797 = vperm.xlu0 %5796, %v5419
      %v5798 = vpop.permute.xlu0 %5797
      %v5812 = vunpack.c.l.b16 %v5768
      %v5813 = vunpack.c.h.b16 %v5768
      %v5814 = vunpack.c.l.b16 %v5769
      %v5815 = vunpack.c.h.b16 %v5769
      %v5816 = vunpack.c.l.b16 %v5770
      %v5817 = vunpack.c.l.b16 %v5771
      %v5818 = vunpack.c.h.b16 %v5771
      %v5819 = vunpack.c.l.b16 %v5772
      %v5820 = vunpack.c.h.b16 %v5772
      %v5821 = vunpack.c.l.b16 %v5773
      %v5822 = vunpack.c.l.b16 %v5774
      %v5823 = vunpack.c.h.b16 %v5774
      %v5824 = vunpack.c.l.b16 %v5775
      %v5825 = vunpack.c.h.b16 %v5775
      %v5826 = vunpack.c.l.b16 %v5776
      %v5827 = vunpack.c.l.b16 %v5777
      %v5828 = vunpack.c.h.b16 %v5777
      %v5829 = vunpack.c.l.b16 %v5778
      %v5830 = vunpack.c.h.b16 %v5778
      %v5831 = vunpack.c.l.b16 %v5779
      %v5832 = vpack.c.b16 %v5817, %v5812
      %v5833 = vpack.c.b16 %v5818, %v5813
      %v5834 = vpack.c.b16 %v5819, %v5814
      %v5835 = vpack.c.b16 %v5820, %v5815
      %v5836 = vpack.c.b16 %v5821, %v5816
      %v5837 = vpack.c.b16 %v5827, %v5822
      %v5838 = vpack.c.b16 %v5828, %v5823
      %v5839 = vpack.c.b16 %v5829, %v5824
      %v5840 = vpack.c.b16 %v5830, %v5825
      %v5841 = vpack.c.b16 %v5831, %v5826
      %v5851 = vsel %vm5356, %v5836, 0
      %v5854 = vsel %vm5356, %v5841, 0
      %5856 = vmatprep.subr.bf16.mxu0 %v4560
      %5857 = vmatpush1.bf16.msra.mxu0 %v4559
      %5858 = vmatprep.subr.bf16.mxu0 %v4558
      %5859 = vmatpush1.bf16.msra.mxu0 %v4557
      %5860 = vmatprep.subr.bf16.mxu0 %v5739
      %5861 = vmatpush1.bf16.msra.mxu0 %v5738
      %5862 = vmatprep.subr.bf16.mxu0 %v5737
      %5863 = vmatpush1.bf16.msra.mxu0 %v5736
      %5864 = vmatprep.subr.bf16.mxu0 %v4556
      %5865 = vmatpush1.bf16.msra.mxu0 %v4555
      %5866 = vmatprep.subr.bf16.mxu0 %v4554
      %5867 = vmatpush1.bf16.msra.mxu0 %v4553
      %5868 = vmatprep.subr.bf16.mxu0 %v5735
      %5869 = vmatpush1.bf16.msra.mxu0 %v5734
      %5870 = vmatprep.subr.bf16.mxu0 %v5733
      %5871 = vmatpush1.bf16.msra.mxu0 %v5732
      %5872 = vmatprep.subr.bf16.mxu0 %v4568
      %5873 = vmatpush2.bf16.msra.mxu0 %v4567
      %5874 = vmatprep.subr.bf16.mxu0 %v4566
      %5875 = vmatpush2.bf16.msra.mxu0 %v4565
      %5876 = vmatprep.subr.bf16.mxu0 %v5747
      %5877 = vmatpush2.bf16.msra.mxu0 %v5746
      %5878 = vmatprep.subr.bf16.mxu0 %v5745
      %5879 = vmatpush2.bf16.msra.mxu0 %v5744
      %5880 = vmatprep.subr.bf16.mxu0 %v4564
      %5881 = vmatpush2.bf16.msra.mxu0 %v4563
      %5882 = vmatprep.subr.bf16.mxu0 %v4562
      %5883 = vmatpush2.bf16.msra.mxu0 %v4561
      %5884 = vmatprep.subr.bf16.mxu0 %v5743
      %5885 = vmatpush2.bf16.msra.mxu0 %v5742
      %5886 = vmatprep.subr.bf16.mxu0 %v5741
      %5887 = vmatpush2.bf16.msra.mxu0 %v5740
      %5888 = vmatprep.mubr.bf16.mxu0 %v5833
      %5889 = vmatmul.mubr.bf16.gmra.mxu0 %v5832
      %v5890 = vpop.f32.mrf.mxu0
      %v5891 = vadd.f32 %v5783, %v5890
      %v5892 = vpop.f32.mrf.mxu0
      %v5893 = vadd.f32 %v5783, %v5892
      %v5894 = vpop.f32.mrf.mxu0
      %v5895 = vadd.f32 %v5788, %v5894
      %v5896 = vpop.f32.mrf.mxu0
      %v5897 = vadd.f32 %v5788, %v5896
      %5898 = vmatprep.mubr.bf16.mxu0 %v5838
      %5899 = vmatmul.mubr.bf16.gmra.mxu0 %v5837
      %v5900 = vpop.f32.mrf.mxu0
      %v5901 = vadd.f32 %v5793, %v5900
      %v5902 = vpop.f32.mrf.mxu0
      %v5903 = vadd.f32 %v5793, %v5902
      %v5904 = vpop.f32.mrf.mxu0
      %v5905 = vadd.f32 %v5798, %v5904
      %v5906 = vpop.f32.mrf.mxu0
      %v5907 = vadd.f32 %v5798, %v5906
      %5908 = vdwg.mxu0
      %5909 = vmatprep.subr.bf16.mxu0 %v4576
      %5910 = vmatpush1.bf16.msra.mxu0 %v4575
      %5911 = vmatprep.subr.bf16.mxu0 %v4574
      %5912 = vmatpush1.bf16.msra.mxu0 %v4573
      %5913 = vmatprep.subr.bf16.mxu0 %v5755
      %5914 = vmatpush1.bf16.msra.mxu0 %v5754
      %5915 = vmatprep.subr.bf16.mxu0 %v5753
      %5916 = vmatpush1.bf16.msra.mxu0 %v5752
      %5917 = vmatprep.subr.bf16.mxu0 %v4572
      %5918 = vmatpush1.bf16.msra.mxu0 %v4571
      %5919 = vmatprep.subr.bf16.mxu0 %v4570
      %5920 = vmatpush1.bf16.msra.mxu0 %v4569
      %5921 = vmatprep.subr.bf16.mxu0 %v5751
      %5922 = vmatpush1.bf16.msra.mxu0 %v5750
      %5923 = vmatprep.subr.bf16.mxu0 %v5749
      %5924 = vmatpush1.bf16.msra.mxu0 %v5748
      %5925 = vmatprep.subr.bf16.mxu0 %v4584
      %5926 = vmatpush2.bf16.msra.mxu0 %v4583
      %5927 = vmatprep.subr.bf16.mxu0 %v4582
      %5928 = vmatpush2.bf16.msra.mxu0 %v4581
      %5929 = vmatprep.subr.bf16.mxu0 %v5763
      %5930 = vmatpush2.bf16.msra.mxu0 %v5762
      %5931 = vmatprep.subr.bf16.mxu0 %v5761
      %5932 = vmatpush2.bf16.msra.mxu0 %v5760
      %5933 = vmatprep.subr.bf16.mxu0 %v4580
      %5934 = vmatpush2.bf16.msra.mxu0 %v4579
      %5935 = vmatprep.subr.bf16.mxu0 %v4578
      %5936 = vmatpush2.bf16.msra.mxu0 %v4577
      %5937 = vmatprep.subr.bf16.mxu0 %v5759
      %5938 = vmatpush2.bf16.msra.mxu0 %v5758
      %5939 = vmatprep.subr.bf16.mxu0 %v5757
      %5940 = vmatpush2.bf16.msra.mxu0 %v5756
      %5941 = vmatprep.mubr.bf16.mxu0 %v5835
      %5942 = vmatmul.mubr.bf16.gmra.mxu0 %v5834
      %v5943 = vpop.f32.mrf.mxu0
      %v5944 = vadd.f32 %v5891, %v5943
      %v5945 = vpop.f32.mrf.mxu0
      %v5946 = vadd.f32 %v5893, %v5945
      %v5947 = vpop.f32.mrf.mxu0
      %v5948 = vadd.f32 %v5895, %v5947
      %v5949 = vpop.f32.mrf.mxu0
      %v5950 = vadd.f32 %v5897, %v5949
      %5951 = vmatprep.mubr.bf16.mxu0 %v5840
      %5952 = vmatmul.mubr.bf16.gmra.mxu0 %v5839
      %v5953 = vpop.f32.mrf.mxu0
      %v5954 = vadd.f32 %v5901, %v5953
      %v5955 = vpop.f32.mrf.mxu0
      %v5956 = vadd.f32 %v5903, %v5955
      %v5957 = vpop.f32.mrf.mxu0
      %v5958 = vadd.f32 %v5905, %v5957
      %v5959 = vpop.f32.mrf.mxu0
      %v5960 = vadd.f32 %v5907, %v5959
      %5961 = vdwg.mxu0
      %5962 = vmatprep.subr.bf16.mxu0 0
      %5963 = vmatpush1.bf16.msra.mxu0 0
      %5964 = vmatprep.subr.bf16.mxu0 0
      %5965 = vmatpush1.bf16.msra.mxu0 0
      %5966 = vmatprep.subr.bf16.mxu0 0
      %5967 = vmatpush1.bf16.msra.mxu0 0
      %5968 = vmatprep.subr.bf16.mxu0 0
      %5969 = vmatpush1.bf16.msra.mxu0 0
      %5970 = vmatprep.subr.bf16.mxu0 %v4588
      %5971 = vmatpush1.bf16.msra.mxu0 %v4587
      %5972 = vmatprep.subr.bf16.mxu0 %v4586
      %5973 = vmatpush1.bf16.msra.mxu0 %v4585
      %5974 = vmatprep.subr.bf16.mxu0 %v5767
      %5975 = vmatpush1.bf16.msra.mxu0 %v5766
      %5976 = vmatprep.subr.bf16.mxu0 %v5765
      %5977 = vmatpush1.bf16.msra.mxu0 %v5764
      %5978 = vmatprep.subr.bf16.mxu0 0
      %5979 = vmatpush2.bf16.msra.mxu0 0
      %5980 = vmatprep.subr.bf16.mxu0 0
      %5981 = vmatpush2.bf16.msra.mxu0 0
      %5982 = vmatprep.subr.bf16.mxu0 0
      %5983 = vmatpush2.bf16.msra.mxu0 0
      %5984 = vmatprep.subr.bf16.mxu0 0
      %5985 = vmatpush2.bf16.msra.mxu0 0
      %5986 = vmatprep.subr.bf16.mxu0 0
      %5987 = vmatpush2.bf16.msra.mxu0 0
      %5988 = vmatprep.subr.bf16.mxu0 0
      %5989 = vmatpush2.bf16.msra.mxu0 0
      %5990 = vmatprep.subr.bf16.mxu0 0
      %5991 = vmatpush2.bf16.msra.mxu0 0
      %5992 = vmatprep.subr.bf16.mxu0 0
      %5993 = vmatpush2.bf16.msra.mxu0 0
      %5994 = vmatprep.mubr.bf16.mxu0 0
      %5995 = vmatmul.mubr.bf16.gmra.mxu0 %v5851
      %v5996 = vpop.f32.mrf.mxu0
      %v5997 = vadd.f32 %v5944, %v5996
      %v5998 = vpop.f32.mrf.mxu0
      %v5999 = vadd.f32 %v5946, %v5998
      %v6000 = vpop.f32.mrf.mxu0
      %v6001 = vadd.f32 %v5948, %v6000
      %v6002 = vpop.f32.mrf.mxu0
      %v6003 = vadd.f32 %v5950, %v6002
      %6004 = vmatprep.mubr.bf16.mxu0 0
      %6005 = vmatmul.mubr.bf16.gmra.mxu0 %v5854
      %v6006 = vpop.f32.mrf.mxu0
      %v6007 = vadd.f32 %v5954, %v6006
      %v6008 = vpop.f32.mrf.mxu0
      %v6009 = vadd.f32 %v5956, %v6008
      %v6010 = vpop.f32.mrf.mxu0
      %v6011 = vadd.f32 %v5958, %v6010
      %v6012 = vpop.f32.mrf.mxu0
      %v6013 = vadd.f32 %v5960, %v6012
      %6014 = vdwg.mxu0
      %v6015 = vmax.f32 %v5997, 0.0
      %v6016 = vmax.f32 %v5999, 0.0
      %v6017 = vmax.f32 %v6001, 0.0
      %v6018 = vmax.f32 %v6003, 0.0
      %v6019 = vmax.f32 %v6007, 0.0
      %v6020 = vmax.f32 %v6009, 0.0
      %v6021 = vmax.f32 %v6011, 0.0
      %v6022 = vmax.f32 %v6013, 0.0
      %v6023 = vpack.c.bf16 %v6017, %v6015
      %v6024 = vpack.c.bf16 %v6018, %v6016
      %v6025 = vpack.c.bf16 %v6021, %v6019
      %v6026 = vpack.c.bf16 %v6022, %v6020
      %v6027 = vld [vmem:[%s16] sm:$0xff]
      %v6028 = vld [vmem:[%s16 + $0x8] sm:$0xff]
      %v6029 = vld [vmem:[%s16 + $0x10] sm:$0xff]
      %v6030 = vld [vmem:[%s16 + $0x18] sm:$0xff]
      %v6031 = vld [vmem:[%s16 + $0x20] sm:$0xff]
      %v6032 = vld [vmem:[%s16 + $0x28] sm:$0xff]
      %v6033 = vld [vmem:[%s16 + $0x30] sm:$0xff]
      %v6034 = vld [vmem:[%s16 + $0x38] sm:$0xff]
      %v6035 = vld [vmem:[%s16 + $0x40] sm:$0xff]
      %v6036 = vld [vmem:[%s16 + $0x48] sm:$0xff]
      %v6037 = vld [vmem:[%s16 + $0x50] sm:$0xff]
      %v6038 = vld [vmem:[%s16 + $0x58] sm:$0xff]
      %v6039 = vld [vmem:[%s16 + $0x60] sm:$0xff]
      %v6040 = vld [vmem:[%s16 + $0x68] sm:$0xff]
      %v6041 = vld [vmem:[%s16 + $0x70] sm:$0xff]
      %v6042 = vld [vmem:[%s16 + $0x78] sm:$0xff]
      %v6043 = vld [vmem:[%s16 + $0x80] sm:$0xff]
      %v6044 = vld [vmem:[%s16 + $0x88] sm:$0xff]
      %v6045 = vld [vmem:[%s16 + $0x90] sm:$0xff]
      %v6046 = vld [vmem:[%s16 + $0x98] sm:$0xff]
      %v6047 = vld [vmem:[%s16 + $0xa0] sm:$0xff]
      %v6048 = vld [vmem:[%s16 + $0xa8] sm:$0xff]
      %v6049 = vld [vmem:[%s16 + $0xb0] sm:$0xff]
      %v6050 = vld [vmem:[%s16 + $0xb8] sm:$0xff]
      %v6051 = vld [vmem:[%s16 + $0xc0] sm:$0xff]
      %v6052 = vld [vmem:[%s16 + $0xc8] sm:$0xff]
      %v6053 = vld [vmem:[%s16 + $0xd0] sm:$0xff]
      %v6054 = vld [vmem:[%s16 + $0xd8] sm:$0xff]
      %v6055 = vld [vmem:[%s16 + $0xe0] sm:$0xff]
      %v6056 = vld [vmem:[%s16 + $0xe8] sm:$0xff]
      %v6057 = vld [vmem:[%s16 + $0xf0] sm:$0xff]
      %v6058 = vld [vmem:[%s16 + $0xf8] sm:$0xff]
      %v6059 = vld [vmem:[%s16 + $0x100] sm:$0xff]
      %v6060 = vld [vmem:[%s16 + $0x108] sm:$0xff]
      %v6061 = vld [vmem:[%s16 + $0x110] sm:$0xff]
      %v6062 = vld [vmem:[%s16 + $0x118] sm:$0xff]
      %v6063 = vld [vmem:[%s16 + $0x120] sm:$0xff]
      %v6064 = vld [vmem:[%s16 + $0x128] sm:$0xff]
      %v6065 = vld [vmem:[%s16 + $0x130] sm:$0xff]
      %v6066 = vld [vmem:[%s16 + $0x138] sm:$0xff]
      %v6067 = vld [vmem:[%s16 + $0x140] sm:$0xff]
      %v6068 = vld [vmem:[%s16 + $0x148] sm:$0xff]
      %v6069 = vld [vmem:[%s16 + $0x150] sm:$0xff]
      %v6070 = vld [vmem:[%s16 + $0x158] sm:$0xff]
      %v6071 = vld [vmem:[%s16 + $0x160] sm:$0xff]
      %v6072 = vld [vmem:[%s16 + $0x168] sm:$0xff]
      %v6073 = vld [vmem:[%s16 + $0x170] sm:$0xff]
      %v6074 = vld [vmem:[%s16 + $0x178] sm:$0xff]
      %v6075 = vld [vmem:[%s16 + $0x180] sm:$0xff]
      %v6076 = vld [vmem:[%s16 + $0x188] sm:$0xff]
      %v6077 = vld [vmem:[%s16 + $0x190] sm:$0xff]
      %v6078 = vld [vmem:[%s16 + $0x198] sm:$0xff]
      %v6079 = vld [vmem:[%s16 + $0x1a0] sm:$0xff]
      %v6080 = vld [vmem:[%s16 + $0x1a8] sm:$0xff]
      %v6081 = vld [vmem:[%s16 + $0x1b0] sm:$0xff]
      %v6082 = vld [vmem:[%s16 + $0x1b8] sm:$0xff]
      %v6083 = vld [vmem:[%s16 + $0x1c0] sm:$0xff]
      %v6084 = vld [vmem:[%s16 + $0x1c8] sm:$0xff]
      %v6085 = vld [vmem:[%s16 + $0x1d0] sm:$0xff]
      %v6086 = vld [vmem:[%s16 + $0x1d8] sm:$0xff]
      %v6087 = vld [vmem:[%s16 + $0x1e0] sm:$0xff]
      %v6088 = vld [vmem:[%s16 + $0x1e8] sm:$0xff]
      %v6089 = vld [vmem:[%s16 + $0x1f0] sm:$0xff]
      %v6090 = vld [vmem:[%s16 + $0x1f8] sm:$0xff]
      %v6091 = vld [vmem:[%s16 + $0x200] sm:$0xff]
      %v6092 = vld [vmem:[%s16 + $0x208] sm:$0xff]
      %v6093 = vld [vmem:[%s16 + $0x210] sm:$0xff]
      %v6094 = vld [vmem:[%s16 + $0x218] sm:$0xff]
      %v6095 = vld [vmem:[%s16 + $0x220] sm:$0xff]
      %v6096 = vld [vmem:[%s16 + $0x228] sm:$0xff]
      %v6097 = vld [vmem:[%s16 + $0x230] sm:$0xff]
      %v6098 = vld [vmem:[%s16 + $0x238] sm:$0xff]
      %v6099 = vld [vmem:[%s16 + $0x240] sm:$0xff]
      %v6100 = vld [vmem:[%s16 + $0x248] sm:$0xff]
      %v6101 = vld [vmem:[%s16 + $0x250] sm:$0xff]
      %v6102 = vld [vmem:[%s16 + $0x258] sm:$0xff]
      %v6103 = vld [vmem:[%s16 + $0x260] sm:$0xff]
      %v6104 = vld [vmem:[%s16 + $0x268] sm:$0xff]
      %v6105 = vld [vmem:[%s16 + $0x270] sm:$0xff]
      %v6106 = vld [vmem:[%s16 + $0x278] sm:$0xff]
      %v6107 = vld [vmem:[%s16 + $0x280] sm:$0xff]
      %v6108 = vld [vmem:[%s16 + $0x288] sm:$0xff]
      %v6109 = vld [vmem:[%s16 + $0x290] sm:$0xff]
      %v6110 = vld [vmem:[%s16 + $0x298] sm:$0xff]
      %v6111 = vld [vmem:[%s16 + $0x2a0] sm:$0xff]
      %v6112 = vld [vmem:[%s16 + $0x2a8] sm:$0xff]
      %v6113 = vld [vmem:[%s16 + $0x2b0] sm:$0xff]
      %v6114 = vld [vmem:[%s16 + $0x2b8] sm:$0xff]
      %v6115 = vld [vmem:[%s16 + $0x2c0] sm:$0xff]
      %v6116 = vld [vmem:[%s16 + $0x2c8] sm:$0xff]
      %v6117 = vld [vmem:[%s16 + $0x2d0] sm:$0xff]
      %v6118 = vld [vmem:[%s16 + $0x2d8] sm:$0xff]
      %v6119 = vld [vmem:[%s16 + $0x2e0] sm:$0xff]
      %v6120 = vld [vmem:[%s16 + $0x2e8] sm:$0xff]
      %v6121 = vld [vmem:[%s16 + $0x2f0] sm:$0xff]
      %v6122 = vld [vmem:[%s16 + $0x2f8] sm:$0xff]
      %v6123 = vld [vmem:[%s16 + $0x300] sm:$0xff]
      %v6124 = vld [vmem:[%s16 + $0x308] sm:$0xff]
      %v6125 = vld [vmem:[%s16 + $0x310] sm:$0xff]
      %v6126 = vld [vmem:[%s16 + $0x318] sm:$0xff]
      %v6127 = vld [vmem:[%s16 + $0x320] sm:$0xff]
      %v6128 = vld [vmem:[%s16 + $0x328] sm:$0xff]
      %v6129 = vld [vmem:[%s16 + $0x330] sm:$0xff]
      %v6130 = vld [vmem:[%s16 + $0x338] sm:$0xff]
      %v6131 = vld [vmem:[%s16 + $0x340] sm:$0xff]
      %v6132 = vld [vmem:[%s16 + $0x348] sm:$0xff]
      %v6133 = vld [vmem:[%s16 + $0x350] sm:$0xff]
      %v6134 = vld [vmem:[%s16 + $0x358] sm:$0xff]
      %v6135 = vld [vmem:[%s16 + $0x360] sm:$0xff]
      %v6136 = vld [vmem:[%s16 + $0x368] sm:$0xff]
      %v6137 = vld [vmem:[%s16 + $0x370] sm:$0xff]
      %v6138 = vld [vmem:[%s16 + $0x378] sm:$0xff]
      %v6139 = vld [vmem:[%s16 + $0x380] sm:$0xff]
      %v6140 = vld [vmem:[%s16 + $0x388] sm:$0xff]
      %v6141 = vld [vmem:[%s16 + $0x390] sm:$0xff]
      %v6142 = vld [vmem:[%s16 + $0x398] sm:$0xff]
      %v6143 = vld [vmem:[%s16 + $0x3a0] sm:$0xff]
      %v6144 = vld [vmem:[%s16 + $0x3a8] sm:$0xff]
      %v6145 = vld [vmem:[%s16 + $0x3b0] sm:$0xff]
      %v6146 = vld [vmem:[%s16 + $0x3b8] sm:$0xff]
      %v6147 = vld [vmem:[%s16 + $0x3c0] sm:$0xff]
      %v6148 = vld [vmem:[%s16 + $0x3c8] sm:$0xff]
      %v6149 = vld [vmem:[%s16 + $0x3d0] sm:$0xff]
      %v6150 = vld [vmem:[%s16 + $0x3d8] sm:$0xff]
      %v6151 = vld [vmem:[%s16 + $0x3e0] sm:$0xff]
      %v6152 = vld [vmem:[%s16 + $0x3e8] sm:$0xff]
      %v6153 = vld [vmem:[%s16 + $0x3f0] sm:$0xff]
      %v6154 = vld [vmem:[%s16 + $0x3f8] sm:$0xff]
      %v6283 = vunpack.c.l.b16 %v6027
      %v6284 = vunpack.c.h.b16 %v6027
      %v6285 = vunpack.c.l.b16 %v6028
      %v6286 = vunpack.c.h.b16 %v6028
      %v6287 = vunpack.c.l.b16 %v6029
      %v6288 = vunpack.c.h.b16 %v6029
      %v6289 = vunpack.c.l.b16 %v6030
      %v6290 = vunpack.c.h.b16 %v6030
      %v6291 = vunpack.c.l.b16 %v6031
      %v6292 = vunpack.c.h.b16 %v6031
      %v6293 = vunpack.c.l.b16 %v6032
      %v6294 = vunpack.c.h.b16 %v6032
      %v6295 = vunpack.c.l.b16 %v6033
      %v6296 = vunpack.c.h.b16 %v6033
      %v6297 = vunpack.c.l.b16 %v6034
      %v6298 = vunpack.c.h.b16 %v6034
      %v6299 = vunpack.c.l.b16 %v6035
      %v6300 = vunpack.c.h.b16 %v6035
      %v6301 = vunpack.c.l.b16 %v6036
      %v6302 = vunpack.c.h.b16 %v6036
      %v6303 = vunpack.c.l.b16 %v6037
      %v6304 = vunpack.c.h.b16 %v6037
      %v6305 = vunpack.c.l.b16 %v6038
      %v6306 = vunpack.c.h.b16 %v6038
      %v6307 = vunpack.c.l.b16 %v6039
      %v6308 = vunpack.c.h.b16 %v6039
      %v6309 = vunpack.c.l.b16 %v6040
      %v6310 = vunpack.c.h.b16 %v6040
      %v6311 = vunpack.c.l.b16 %v6041
      %v6312 = vunpack.c.h.b16 %v6041
      %v6313 = vunpack.c.l.b16 %v6042
      %v6314 = vunpack.c.h.b16 %v6042
      %v6315 = vunpack.c.l.b16 %v6043
      %v6316 = vunpack.c.h.b16 %v6043
      %v6317 = vunpack.c.l.b16 %v6044
      %v6318 = vunpack.c.h.b16 %v6044
      %v6319 = vunpack.c.l.b16 %v6045
      %v6320 = vunpack.c.h.b16 %v6045
      %v6321 = vunpack.c.l.b16 %v6046
      %v6322 = vunpack.c.h.b16 %v6046
      %v6323 = vunpack.c.l.b16 %v6047
      %v6324 = vunpack.c.h.b16 %v6047
      %v6325 = vunpack.c.l.b16 %v6048
      %v6326 = vunpack.c.h.b16 %v6048
      %v6327 = vunpack.c.l.b16 %v6049
      %v6328 = vunpack.c.h.b16 %v6049
      %v6329 = vunpack.c.l.b16 %v6050
      %v6330 = vunpack.c.h.b16 %v6050
      %v6331 = vunpack.c.l.b16 %v6051
      %v6332 = vunpack.c.h.b16 %v6051
      %v6333 = vunpack.c.l.b16 %v6052
      %v6334 = vunpack.c.h.b16 %v6052
      %v6335 = vunpack.c.l.b16 %v6053
      %v6336 = vunpack.c.h.b16 %v6053
      %v6337 = vunpack.c.l.b16 %v6054
      %v6338 = vunpack.c.h.b16 %v6054
      %v6339 = vunpack.c.l.b16 %v6055
      %v6340 = vunpack.c.h.b16 %v6055
      %v6341 = vunpack.c.l.b16 %v6056
      %v6342 = vunpack.c.h.b16 %v6056
      %v6343 = vunpack.c.l.b16 %v6057
      %v6344 = vunpack.c.h.b16 %v6057
      %v6345 = vunpack.c.l.b16 %v6058
      %v6346 = vunpack.c.h.b16 %v6058
      %v6347 = vunpack.c.l.b16 %v6059
      %v6348 = vunpack.c.h.b16 %v6059
      %v6349 = vunpack.c.l.b16 %v6060
      %v6350 = vunpack.c.h.b16 %v6060
      %v6351 = vunpack.c.l.b16 %v6061
      %v6352 = vunpack.c.h.b16 %v6061
      %v6353 = vunpack.c.l.b16 %v6062
      %v6354 = vunpack.c.h.b16 %v6062
      %v6355 = vunpack.c.l.b16 %v6063
      %v6356 = vunpack.c.h.b16 %v6063
      %v6357 = vunpack.c.l.b16 %v6064
      %v6358 = vunpack.c.h.b16 %v6064
      %v6359 = vunpack.c.l.b16 %v6065
      %v6360 = vunpack.c.h.b16 %v6065
      %v6361 = vunpack.c.l.b16 %v6066
      %v6362 = vunpack.c.h.b16 %v6066
      %v6363 = vunpack.c.l.b16 %v6067
      %v6364 = vunpack.c.h.b16 %v6067
      %v6365 = vunpack.c.l.b16 %v6068
      %v6366 = vunpack.c.h.b16 %v6068
      %v6367 = vunpack.c.l.b16 %v6069
      %v6368 = vunpack.c.h.b16 %v6069
      %v6369 = vunpack.c.l.b16 %v6070
      %v6370 = vunpack.c.h.b16 %v6070
      %v6371 = vunpack.c.l.b16 %v6071
      %v6372 = vunpack.c.h.b16 %v6071
      %v6373 = vunpack.c.l.b16 %v6072
      %v6374 = vunpack.c.h.b16 %v6072
      %v6375 = vunpack.c.l.b16 %v6073
      %v6376 = vunpack.c.h.b16 %v6073
      %v6377 = vunpack.c.l.b16 %v6074
      %v6378 = vunpack.c.h.b16 %v6074
      %v6379 = vunpack.c.l.b16 %v6075
      %v6380 = vunpack.c.h.b16 %v6075
      %v6381 = vunpack.c.l.b16 %v6076
      %v6382 = vunpack.c.h.b16 %v6076
      %v6383 = vunpack.c.l.b16 %v6077
      %v6384 = vunpack.c.h.b16 %v6077
      %v6385 = vunpack.c.l.b16 %v6078
      %v6386 = vunpack.c.h.b16 %v6078
      %v6387 = vunpack.c.l.b16 %v6079
      %v6388 = vunpack.c.h.b16 %v6079
      %v6389 = vunpack.c.l.b16 %v6080
      %v6390 = vunpack.c.h.b16 %v6080
      %v6391 = vunpack.c.l.b16 %v6081
      %v6392 = vunpack.c.h.b16 %v6081
      %v6393 = vunpack.c.l.b16 %v6082
      %v6394 = vunpack.c.h.b16 %v6082
      %v6395 = vunpack.c.l.b16 %v6083
      %v6396 = vunpack.c.h.b16 %v6083
      %v6397 = vunpack.c.l.b16 %v6084
      %v6398 = vunpack.c.h.b16 %v6084
      %v6399 = vunpack.c.l.b16 %v6085
      %v6400 = vunpack.c.h.b16 %v6085
      %v6401 = vunpack.c.l.b16 %v6086
      %v6402 = vunpack.c.h.b16 %v6086
      %v6403 = vunpack.c.l.b16 %v6087
      %v6404 = vunpack.c.h.b16 %v6087
      %v6405 = vunpack.c.l.b16 %v6088
      %v6406 = vunpack.c.h.b16 %v6088
      %v6407 = vunpack.c.l.b16 %v6089
      %v6408 = vunpack.c.h.b16 %v6089
      %v6409 = vunpack.c.l.b16 %v6090
      %v6410 = vunpack.c.h.b16 %v6090
      %v6411 = vunpack.c.l.b16 %v6091
      %v6412 = vunpack.c.h.b16 %v6091
      %v6413 = vunpack.c.l.b16 %v6092
      %v6414 = vunpack.c.h.b16 %v6092
      %v6415 = vunpack.c.l.b16 %v6093
      %v6416 = vunpack.c.h.b16 %v6093
      %v6417 = vunpack.c.l.b16 %v6094
      %v6418 = vunpack.c.h.b16 %v6094
      %v6419 = vunpack.c.l.b16 %v6095
      %v6420 = vunpack.c.h.b16 %v6095
      %v6421 = vunpack.c.l.b16 %v6096
      %v6422 = vunpack.c.h.b16 %v6096
      %v6423 = vunpack.c.l.b16 %v6097
      %v6424 = vunpack.c.h.b16 %v6097
      %v6425 = vunpack.c.l.b16 %v6098
      %v6426 = vunpack.c.h.b16 %v6098
      %v6427 = vunpack.c.l.b16 %v6099
      %v6428 = vunpack.c.h.b16 %v6099
      %v6429 = vunpack.c.l.b16 %v6100
      %v6430 = vunpack.c.h.b16 %v6100
      %v6431 = vunpack.c.l.b16 %v6101
      %v6432 = vunpack.c.h.b16 %v6101
      %v6433 = vunpack.c.l.b16 %v6102
      %v6434 = vunpack.c.h.b16 %v6102
      %v6435 = vunpack.c.l.b16 %v6103
      %v6436 = vunpack.c.h.b16 %v6103
      %v6437 = vunpack.c.l.b16 %v6104
      %v6438 = vunpack.c.h.b16 %v6104
      %v6439 = vunpack.c.l.b16 %v6105
      %v6440 = vunpack.c.h.b16 %v6105
      %v6441 = vunpack.c.l.b16 %v6106
      %v6442 = vunpack.c.h.b16 %v6106
      %v6443 = vunpack.c.l.b16 %v6107
      %v6444 = vunpack.c.h.b16 %v6107
      %v6445 = vunpack.c.l.b16 %v6108
      %v6446 = vunpack.c.h.b16 %v6108
      %v6447 = vunpack.c.l.b16 %v6109
      %v6448 = vunpack.c.h.b16 %v6109
      %v6449 = vunpack.c.l.b16 %v6110
      %v6450 = vunpack.c.h.b16 %v6110
      %v6451 = vunpack.c.l.b16 %v6111
      %v6452 = vunpack.c.h.b16 %v6111
      %v6453 = vunpack.c.l.b16 %v6112
      %v6454 = vunpack.c.h.b16 %v6112
      %v6455 = vunpack.c.l.b16 %v6113
      %v6456 = vunpack.c.h.b16 %v6113
      %v6457 = vunpack.c.l.b16 %v6114
      %v6458 = vunpack.c.h.b16 %v6114
      %v6459 = vunpack.c.l.b16 %v6115
      %v6460 = vunpack.c.h.b16 %v6115
      %v6461 = vunpack.c.l.b16 %v6116
      %v6462 = vunpack.c.h.b16 %v6116
      %v6463 = vunpack.c.l.b16 %v6117
      %v6464 = vunpack.c.h.b16 %v6117
      %v6465 = vunpack.c.l.b16 %v6118
      %v6466 = vunpack.c.h.b16 %v6118
      %v6467 = vunpack.c.l.b16 %v6119
      %v6468 = vunpack.c.h.b16 %v6119
      %v6469 = vunpack.c.l.b16 %v6120
      %v6470 = vunpack.c.h.b16 %v6120
      %v6471 = vunpack.c.l.b16 %v6121
      %v6472 = vunpack.c.h.b16 %v6121
      %v6473 = vunpack.c.l.b16 %v6122
      %v6474 = vunpack.c.h.b16 %v6122
      %v6475 = vunpack.c.l.b16 %v6123
      %v6476 = vunpack.c.h.b16 %v6123
      %v6477 = vunpack.c.l.b16 %v6124
      %v6478 = vunpack.c.h.b16 %v6124
      %v6479 = vunpack.c.l.b16 %v6125
      %v6480 = vunpack.c.h.b16 %v6125
      %v6481 = vunpack.c.l.b16 %v6126
      %v6482 = vunpack.c.h.b16 %v6126
      %v6483 = vunpack.c.l.b16 %v6127
      %v6484 = vunpack.c.h.b16 %v6127
      %v6485 = vunpack.c.l.b16 %v6128
      %v6486 = vunpack.c.h.b16 %v6128
      %v6487 = vunpack.c.l.b16 %v6129
      %v6488 = vunpack.c.h.b16 %v6129
      %v6489 = vunpack.c.l.b16 %v6130
      %v6490 = vunpack.c.h.b16 %v6130
      %v6491 = vunpack.c.l.b16 %v6131
      %v6492 = vunpack.c.h.b16 %v6131
      %v6493 = vunpack.c.l.b16 %v6132
      %v6494 = vunpack.c.h.b16 %v6132
      %v6495 = vunpack.c.l.b16 %v6133
      %v6496 = vunpack.c.h.b16 %v6133
      %v6497 = vunpack.c.l.b16 %v6134
      %v6498 = vunpack.c.h.b16 %v6134
      %v6499 = vunpack.c.l.b16 %v6135
      %v6500 = vunpack.c.h.b16 %v6135
      %v6501 = vunpack.c.l.b16 %v6136
      %v6502 = vunpack.c.h.b16 %v6136
      %v6503 = vunpack.c.l.b16 %v6137
      %v6504 = vunpack.c.h.b16 %v6137
      %v6505 = vunpack.c.l.b16 %v6138
      %v6506 = vunpack.c.h.b16 %v6138
      %v6507 = vunpack.c.l.b16 %v6139
      %v6508 = vunpack.c.h.b16 %v6139
      %v6509 = vunpack.c.l.b16 %v6140
      %v6510 = vunpack.c.h.b16 %v6140
      %v6511 = vunpack.c.l.b16 %v6141
      %v6512 = vunpack.c.h.b16 %v6141
      %v6513 = vunpack.c.l.b16 %v6142
      %v6514 = vunpack.c.h.b16 %v6142
      %v6515 = vunpack.c.l.b16 %v6143
      %v6516 = vunpack.c.h.b16 %v6143
      %v6517 = vunpack.c.l.b16 %v6144
      %v6518 = vunpack.c.h.b16 %v6144
      %v6519 = vunpack.c.l.b16 %v6145
      %v6520 = vunpack.c.h.b16 %v6145
      %v6521 = vunpack.c.l.b16 %v6146
      %v6522 = vunpack.c.h.b16 %v6146
      %v6523 = vunpack.c.l.b16 %v6147
      %v6524 = vunpack.c.h.b16 %v6147
      %v6525 = vunpack.c.l.b16 %v6148
      %v6526 = vunpack.c.h.b16 %v6148
      %v6527 = vunpack.c.l.b16 %v6149
      %v6528 = vunpack.c.h.b16 %v6149
      %v6529 = vunpack.c.l.b16 %v6150
      %v6530 = vunpack.c.h.b16 %v6150
      %v6531 = vunpack.c.l.b16 %v6151
      %v6532 = vunpack.c.h.b16 %v6151
      %v6533 = vunpack.c.l.b16 %v6152
      %v6534 = vunpack.c.h.b16 %v6152
      %v6535 = vunpack.c.l.b16 %v6153
      %v6536 = vunpack.c.h.b16 %v6153
      %v6537 = vunpack.c.l.b16 %v6154
      %v6538 = vunpack.c.h.b16 %v6154
      %v6539 = vpack.c.b16 %v6291, %v6283
      %v6540 = vpack.c.b16 %v6292, %v6284
      %v6541 = vpack.c.b16 %v6293, %v6285
      %v6542 = vpack.c.b16 %v6294, %v6286
      %v6543 = vpack.c.b16 %v6295, %v6287
      %v6544 = vpack.c.b16 %v6296, %v6288
      %v6545 = vpack.c.b16 %v6297, %v6289
      %v6546 = vpack.c.b16 %v6298, %v6290
      %v6547 = vpack.c.b16 %v6307, %v6299
      %v6548 = vpack.c.b16 %v6308, %v6300
      %v6549 = vpack.c.b16 %v6309, %v6301
      %v6550 = vpack.c.b16 %v6310, %v6302
      %v6551 = vpack.c.b16 %v6311, %v6303
      %v6552 = vpack.c.b16 %v6312, %v6304
      %v6553 = vpack.c.b16 %v6313, %v6305
      %v6554 = vpack.c.b16 %v6314, %v6306
      %v6555 = vpack.c.b16 %v6323, %v6315
      %v6556 = vpack.c.b16 %v6324, %v6316
      %v6557 = vpack.c.b16 %v6325, %v6317
      %v6558 = vpack.c.b16 %v6326, %v6318
      %v6559 = vpack.c.b16 %v6327, %v6319
      %v6560 = vpack.c.b16 %v6328, %v6320
      %v6561 = vpack.c.b16 %v6329, %v6321
      %v6562 = vpack.c.b16 %v6330, %v6322
      %v6563 = vpack.c.b16 %v6339, %v6331
      %v6564 = vpack.c.b16 %v6340, %v6332
      %v6565 = vpack.c.b16 %v6341, %v6333
      %v6566 = vpack.c.b16 %v6342, %v6334
      %v6567 = vpack.c.b16 %v6343, %v6335
      %v6568 = vpack.c.b16 %v6344, %v6336
      %v6569 = vpack.c.b16 %v6345, %v6337
      %v6570 = vpack.c.b16 %v6346, %v6338
      %v6571 = vpack.c.b16 %v6355, %v6347
      %v6572 = vpack.c.b16 %v6356, %v6348
      %v6573 = vpack.c.b16 %v6357, %v6349
      %v6574 = vpack.c.b16 %v6358, %v6350
      %v6575 = vpack.c.b16 %v6359, %v6351
      %v6576 = vpack.c.b16 %v6360, %v6352
      %v6577 = vpack.c.b16 %v6361, %v6353
      %v6578 = vpack.c.b16 %v6362, %v6354
      %v6579 = vpack.c.b16 %v6371, %v6363
      %v6580 = vpack.c.b16 %v6372, %v6364
      %v6581 = vpack.c.b16 %v6373, %v6365
      %v6582 = vpack.c.b16 %v6374, %v6366
      %v6583 = vpack.c.b16 %v6375, %v6367
      %v6584 = vpack.c.b16 %v6376, %v6368
      %v6585 = vpack.c.b16 %v6377, %v6369
      %v6586 = vpack.c.b16 %v6378, %v6370
      %v6587 = vpack.c.b16 %v6387, %v6379
      %v6588 = vpack.c.b16 %v6388, %v6380
      %v6589 = vpack.c.b16 %v6389, %v6381
      %v6590 = vpack.c.b16 %v6390, %v6382
      %v6591 = vpack.c.b16 %v6391, %v6383
      %v6592 = vpack.c.b16 %v6392, %v6384
      %v6593 = vpack.c.b16 %v6393, %v6385
      %v6594 = vpack.c.b16 %v6394, %v6386
      %v6595 = vpack.c.b16 %v6403, %v6395
      %v6596 = vpack.c.b16 %v6404, %v6396
      %v6597 = vpack.c.b16 %v6405, %v6397
      %v6598 = vpack.c.b16 %v6406, %v6398
      %v6599 = vpack.c.b16 %v6407, %v6399
      %v6600 = vpack.c.b16 %v6408, %v6400
      %v6601 = vpack.c.b16 %v6409, %v6401
      %v6602 = vpack.c.b16 %v6410, %v6402
      %v6603 = vpack.c.b16 %v6419, %v6411
      %v6604 = vpack.c.b16 %v6420, %v6412
      %v6605 = vpack.c.b16 %v6421, %v6413
      %v6606 = vpack.c.b16 %v6422, %v6414
      %v6607 = vpack.c.b16 %v6423, %v6415
      %v6608 = vpack.c.b16 %v6424, %v6416
      %v6609 = vpack.c.b16 %v6425, %v6417
      %v6610 = vpack.c.b16 %v6426, %v6418
      %v6611 = vpack.c.b16 %v6435, %v6427
      %v6612 = vpack.c.b16 %v6436, %v6428
      %v6613 = vpack.c.b16 %v6437, %v6429
      %v6614 = vpack.c.b16 %v6438, %v6430
      %v6615 = vpack.c.b16 %v6439, %v6431
      %v6616 = vpack.c.b16 %v6440, %v6432
      %v6617 = vpack.c.b16 %v6441, %v6433
      %v6618 = vpack.c.b16 %v6442, %v6434
      %v6619 = vpack.c.b16 %v6451, %v6443
      %v6620 = vpack.c.b16 %v6452, %v6444
      %v6621 = vpack.c.b16 %v6453, %v6445
      %v6622 = vpack.c.b16 %v6454, %v6446
      %v6623 = vpack.c.b16 %v6455, %v6447
      %v6624 = vpack.c.b16 %v6456, %v6448
      %v6625 = vpack.c.b16 %v6457, %v6449
      %v6626 = vpack.c.b16 %v6458, %v6450
      %v6627 = vpack.c.b16 %v6467, %v6459
      %v6628 = vpack.c.b16 %v6468, %v6460
      %v6629 = vpack.c.b16 %v6469, %v6461
      %v6630 = vpack.c.b16 %v6470, %v6462
      %v6631 = vpack.c.b16 %v6471, %v6463
      %v6632 = vpack.c.b16 %v6472, %v6464
      %v6633 = vpack.c.b16 %v6473, %v6465
      %v6634 = vpack.c.b16 %v6474, %v6466
      %v6635 = vpack.c.b16 %v6483, %v6475
      %v6636 = vpack.c.b16 %v6484, %v6476
      %v6637 = vpack.c.b16 %v6485, %v6477
      %v6638 = vpack.c.b16 %v6486, %v6478
      %v6639 = vpack.c.b16 %v6487, %v6479
      %v6640 = vpack.c.b16 %v6488, %v6480
      %v6641 = vpack.c.b16 %v6489, %v6481
      %v6642 = vpack.c.b16 %v6490, %v6482
      %v6643 = vpack.c.b16 %v6499, %v6491
      %v6644 = vpack.c.b16 %v6500, %v6492
      %v6645 = vpack.c.b16 %v6501, %v6493
      %v6646 = vpack.c.b16 %v6502, %v6494
      %v6647 = vpack.c.b16 %v6503, %v6495
      %v6648 = vpack.c.b16 %v6504, %v6496
      %v6649 = vpack.c.b16 %v6505, %v6497
      %v6650 = vpack.c.b16 %v6506, %v6498
      %v6651 = vpack.c.b16 %v6515, %v6507
      %v6652 = vpack.c.b16 %v6516, %v6508
      %v6653 = vpack.c.b16 %v6517, %v6509
      %v6654 = vpack.c.b16 %v6518, %v6510
      %v6655 = vpack.c.b16 %v6519, %v6511
      %v6656 = vpack.c.b16 %v6520, %v6512
      %v6657 = vpack.c.b16 %v6521, %v6513
      %v6658 = vpack.c.b16 %v6522, %v6514
      %v6659 = vpack.c.b16 %v6531, %v6523
      %v6660 = vpack.c.b16 %v6532, %v6524
      %v6661 = vpack.c.b16 %v6533, %v6525
      %v6662 = vpack.c.b16 %v6534, %v6526
      %v6663 = vpack.c.b16 %v6535, %v6527
      %v6664 = vpack.c.b16 %v6536, %v6528
      %v6665 = vpack.c.b16 %v6537, %v6529
      %v6666 = vpack.c.b16 %v6538, %v6530
      %6795 = vmatprep.subr.bf16.mxu0 %v6596
      %6796 = vmatpush1.bf16.msra.mxu0 %v6595
      %6797 = vmatprep.subr.bf16.mxu0 %v6588
      %6798 = vmatpush1.bf16.msra.mxu0 %v6587
      %6799 = vmatprep.subr.bf16.mxu0 %v6580
      %6800 = vmatpush1.bf16.msra.mxu0 %v6579
      %6801 = vmatprep.subr.bf16.mxu0 %v6572
      %6802 = vmatpush1.bf16.msra.mxu0 %v6571
      %6803 = vmatprep.subr.bf16.mxu0 %v6564
      %6804 = vmatpush1.bf16.msra.mxu0 %v6563
      %6805 = vmatprep.subr.bf16.mxu0 %v6556
      %6806 = vmatpush1.bf16.msra.mxu0 %v6555
      %6807 = vmatprep.subr.bf16.mxu0 %v6548
      %6808 = vmatpush1.bf16.msra.mxu0 %v6547
      %6809 = vmatprep.subr.bf16.mxu0 %v6540
      %6810 = vmatpush1.bf16.msra.mxu0 %v6539
      %6811 = vmatprep.subr.bf16.mxu0 %v6660
      %6812 = vmatpush2.bf16.msra.mxu0 %v6659
      %6813 = vmatprep.subr.bf16.mxu0 %v6652
      %6814 = vmatpush2.bf16.msra.mxu0 %v6651
      %6815 = vmatprep.subr.bf16.mxu0 %v6644
      %6816 = vmatpush2.bf16.msra.mxu0 %v6643
      %6817 = vmatprep.subr.bf16.mxu0 %v6636
      %6818 = vmatpush2.bf16.msra.mxu0 %v6635
      %6819 = vmatprep.subr.bf16.mxu0 %v6628
      %6820 = vmatpush2.bf16.msra.mxu0 %v6627
      %6821 = vmatprep.subr.bf16.mxu0 %v6620
      %6822 = vmatpush2.bf16.msra.mxu0 %v6619
      %6823 = vmatprep.subr.bf16.mxu0 %v6612
      %6824 = vmatpush2.bf16.msra.mxu0 %v6611
      %6825 = vmatprep.subr.bf16.mxu0 %v6604
      %6826 = vmatpush2.bf16.msra.mxu0 %v6603
      %6827 = vmatprep.mubr.bf16.mxu0 %v6024
      %6828 = vmatmul.mubr.bf16.gmra.mxu0 %v6023
      %v6829 = vpop.f32.mrf.mxu0
      %v6830 = vadd.f32 0.0, %v6829
      %v6831 = vpop.f32.mrf.mxu0
      %v6832 = vadd.f32 0.0, %v6831
      %v6833 = vpop.f32.mrf.mxu0
      %v6834 = vadd.f32 0.0, %v6833
      %v6835 = vpop.f32.mrf.mxu0
      %v6836 = vadd.f32 0.0, %v6835
      %6837 = vmatprep.mubr.bf16.mxu0 %v6026
      %6838 = vmatmul.mubr.bf16.gmra.mxu0 %v6025
      %v6839 = vpop.f32.mrf.mxu0
      %v6840 = vadd.f32 0.0, %v6839
      %v6841 = vpop.f32.mrf.mxu0
      %v6842 = vadd.f32 0.0, %v6841
      %v6843 = vpop.f32.mrf.mxu0
      %v6844 = vadd.f32 0.0, %v6843
      %v6845 = vpop.f32.mrf.mxu0
      %v6846 = vadd.f32 0.0, %v6845
      %6847 = vdwg.mxu0
      %6848 = vmatprep.subr.bf16.mxu0 %v6598
      %6849 = vmatpush1.bf16.msra.mxu0 %v6597
      %6850 = vmatprep.subr.bf16.mxu0 %v6590
      %6851 = vmatpush1.bf16.msra.mxu0 %v6589
      %6852 = vmatprep.subr.bf16.mxu0 %v6582
      %6853 = vmatpush1.bf16.msra.mxu0 %v6581
      %6854 = vmatprep.subr.bf16.mxu0 %v6574
      %6855 = vmatpush1.bf16.msra.mxu0 %v6573
      %6856 = vmatprep.subr.bf16.mxu0 %v6566
      %6857 = vmatpush1.bf16.msra.mxu0 %v6565
      %6858 = vmatprep.subr.bf16.mxu0 %v6558
      %6859 = vmatpush1.bf16.msra.mxu0 %v6557
      %6860 = vmatprep.subr.bf16.mxu0 %v6550
      %6861 = vmatpush1.bf16.msra.mxu0 %v6549
      %6862 = vmatprep.subr.bf16.mxu0 %v6542
      %6863 = vmatpush1.bf16.msra.mxu0 %v6541
      %6864 = vmatprep.subr.bf16.mxu0 %v6662
      %6865 = vmatpush2.bf16.msra.mxu0 %v6661
      %6866 = vmatprep.subr.bf16.mxu0 %v6654
      %6867 = vmatpush2.bf16.msra.mxu0 %v6653
      %6868 = vmatprep.subr.bf16.mxu0 %v6646
      %6869 = vmatpush2.bf16.msra.mxu0 %v6645
      %6870 = vmatprep.subr.bf16.mxu0 %v6638
      %6871 = vmatpush2.bf16.msra.mxu0 %v6637
      %6872 = vmatprep.subr.bf16.mxu0 %v6630
      %6873 = vmatpush2.bf16.msra.mxu0 %v6629
      %6874 = vmatprep.subr.bf16.mxu0 %v6622
      %6875 = vmatpush2.bf16.msra.mxu0 %v6621
      %6876 = vmatprep.subr.bf16.mxu0 %v6614
      %6877 = vmatpush2.bf16.msra.mxu0 %v6613
      %6878 = vmatprep.subr.bf16.mxu0 %v6606
      %6879 = vmatpush2.bf16.msra.mxu0 %v6605
      %6880 = vmatprep.mubr.bf16.mxu0 %v6024
      %6881 = vmatmul.mubr.bf16.gmra.mxu0 %v6023
      %v6882 = vpop.f32.mrf.mxu0
      %v6883 = vadd.f32 0.0, %v6882
      %v6884 = vpop.f32.mrf.mxu0
      %v6885 = vadd.f32 0.0, %v6884
      %v6886 = vpop.f32.mrf.mxu0
      %v6887 = vadd.f32 0.0, %v6886
      %v6888 = vpop.f32.mrf.mxu0
      %v6889 = vadd.f32 0.0, %v6888
      %6890 = vmatprep.mubr.bf16.mxu0 %v6026
      %6891 = vmatmul.mubr.bf16.gmra.mxu0 %v6025
      %v6892 = vpop.f32.mrf.mxu0
      %v6893 = vadd.f32 0.0, %v6892
      %v6894 = vpop.f32.mrf.mxu0
      %v6895 = vadd.f32 0.0, %v6894
      %v6896 = vpop.f32.mrf.mxu0
      %v6897 = vadd.f32 0.0, %v6896
      %v6898 = vpop.f32.mrf.mxu0
      %v6899 = vadd.f32 0.0, %v6898
      %6900 = vdwg.mxu0
      %6901 = vmatprep.subr.bf16.mxu0 %v6600
      %6902 = vmatpush1.bf16.msra.mxu0 %v6599
      %6903 = vmatprep.subr.bf16.mxu0 %v6592
      %6904 = vmatpush1.bf16.msra.mxu0 %v6591
      %6905 = vmatprep.subr.bf16.mxu0 %v6584
      %6906 = vmatpush1.bf16.msra.mxu0 %v6583
      %6907 = vmatprep.subr.bf16.mxu0 %v6576
      %6908 = vmatpush1.bf16.msra.mxu0 %v6575
      %6909 = vmatprep.subr.bf16.mxu0 %v6568
      %6910 = vmatpush1.bf16.msra.mxu0 %v6567
      %6911 = vmatprep.subr.bf16.mxu0 %v6560
      %6912 = vmatpush1.bf16.msra.mxu0 %v6559
      %6913 = vmatprep.subr.bf16.mxu0 %v6552
      %6914 = vmatpush1.bf16.msra.mxu0 %v6551
      %6915 = vmatprep.subr.bf16.mxu0 %v6544
      %6916 = vmatpush1.bf16.msra.mxu0 %v6543
      %6917 = vmatprep.subr.bf16.mxu0 %v6664
      %6918 = vmatpush2.bf16.msra.mxu0 %v6663
      %6919 = vmatprep.subr.bf16.mxu0 %v6656
      %6920 = vmatpush2.bf16.msra.mxu0 %v6655
      %6921 = vmatprep.subr.bf16.mxu0 %v6648
      %6922 = vmatpush2.bf16.msra.mxu0 %v6647
      %6923 = vmatprep.subr.bf16.mxu0 %v6640
      %6924 = vmatpush2.bf16.msra.mxu0 %v6639
      %6925 = vmatprep.subr.bf16.mxu0 %v6632
      %6926 = vmatpush2.bf16.msra.mxu0 %v6631
      %6927 = vmatprep.subr.bf16.mxu0 %v6624
      %6928 = vmatpush2.bf16.msra.mxu0 %v6623
      %6929 = vmatprep.subr.bf16.mxu0 %v6616
      %6930 = vmatpush2.bf16.msra.mxu0 %v6615
      %6931 = vmatprep.subr.bf16.mxu0 %v6608
      %6932 = vmatpush2.bf16.msra.mxu0 %v6607
      %6933 = vmatprep.mubr.bf16.mxu0 %v6024
      %6934 = vmatmul.mubr.bf16.gmra.mxu0 %v6023
      %v6935 = vpop.f32.mrf.mxu0
      %v6936 = vadd.f32 0.0, %v6935
      %v6937 = vpop.f32.mrf.mxu0
      %v6938 = vadd.f32 0.0, %v6937
      %v6939 = vpop.f32.mrf.mxu0
      %v6940 = vadd.f32 0.0, %v6939
      %v6941 = vpop.f32.mrf.mxu0
      %v6942 = vadd.f32 0.0, %v6941
      %6943 = vmatprep.mubr.bf16.mxu0 %v6026
      %6944 = vmatmul.mubr.bf16.gmra.mxu0 %v6025
      %v6945 = vpop.f32.mrf.mxu0
      %v6946 = vadd.f32 0.0, %v6945
      %v6947 = vpop.f32.mrf.mxu0
      %v6948 = vadd.f32 0.0, %v6947
      %v6949 = vpop.f32.mrf.mxu0
      %v6950 = vadd.f32 0.0, %v6949
      %v6951 = vpop.f32.mrf.mxu0
      %v6952 = vadd.f32 0.0, %v6951
      %6953 = vdwg.mxu0
      %6954 = vmatprep.subr.bf16.mxu0 %v6602
      %6955 = vmatpush1.bf16.msra.mxu0 %v6601
      %6956 = vmatprep.subr.bf16.mxu0 %v6594
      %6957 = vmatpush1.bf16.msra.mxu0 %v6593
      %6958 = vmatprep.subr.bf16.mxu0 %v6586
      %6959 = vmatpush1.bf16.msra.mxu0 %v6585
      %6960 = vmatprep.subr.bf16.mxu0 %v6578
      %6961 = vmatpush1.bf16.msra.mxu0 %v6577
      %6962 = vmatprep.subr.bf16.mxu0 %v6570
      %6963 = vmatpush1.bf16.msra.mxu0 %v6569
      %6964 = vmatprep.subr.bf16.mxu0 %v6562
      %6965 = vmatpush1.bf16.msra.mxu0 %v6561
      %6966 = vmatprep.subr.bf16.mxu0 %v6554
      %6967 = vmatpush1.bf16.msra.mxu0 %v6553
      %6968 = vmatprep.subr.bf16.mxu0 %v6546
      %6969 = vmatpush1.bf16.msra.mxu0 %v6545
      %6970 = vmatprep.subr.bf16.mxu0 %v6666
      %6971 = vmatpush2.bf16.msra.mxu0 %v6665
      %6972 = vmatprep.subr.bf16.mxu0 %v6658
      %6973 = vmatpush2.bf16.msra.mxu0 %v6657
      %6974 = vmatprep.subr.bf16.mxu0 %v6650
      %6975 = vmatpush2.bf16.msra.mxu0 %v6649
      %6976 = vmatprep.subr.bf16.mxu0 %v6642
      %6977 = vmatpush2.bf16.msra.mxu0 %v6641
      %6978 = vmatprep.subr.bf16.mxu0 %v6634
      %6979 = vmatpush2.bf16.msra.mxu0 %v6633
      %6980 = vmatprep.subr.bf16.mxu0 %v6626
      %6981 = vmatpush2.bf16.msra.mxu0 %v6625
      %6982 = vmatprep.subr.bf16.mxu0 %v6618
      %6983 = vmatpush2.bf16.msra.mxu0 %v6617
      %6984 = vmatprep.subr.bf16.mxu0 %v6610
      %6985 = vmatpush2.bf16.msra.mxu0 %v6609
      %6986 = vmatprep.mubr.bf16.mxu0 %v6024
      %6987 = vmatmul.mubr.bf16.gmra.mxu0 %v6023
      %v6988 = vpop.f32.mrf.mxu0
      %v6989 = vadd.f32 0.0, %v6988
      %v6990 = vpop.f32.mrf.mxu0
      %v6991 = vadd.f32 0.0, %v6990
      %v6992 = vpop.f32.mrf.mxu0
      %v6993 = vadd.f32 0.0, %v6992
      %v6994 = vpop.f32.mrf.mxu0
      %v6995 = vadd.f32 0.0, %v6994
      %6996 = vmatprep.mubr.bf16.mxu0 %v6026
      %6997 = vmatmul.mubr.bf16.gmra.mxu0 %v6025
      %v6998 = vpop.f32.mrf.mxu0
      %v6999 = vadd.f32 0.0, %v6998
      %v7000 = vpop.f32.mrf.mxu0
      %v7001 = vadd.f32 0.0, %v7000
      %v7002 = vpop.f32.mrf.mxu0
      %v7003 = vadd.f32 0.0, %v7002
      %v7004 = vpop.f32.mrf.mxu0
      %v7005 = vadd.f32 0.0, %v7004
      %7006 = vdwg.mxu0
      %v7007 = vld [vmem:[%s12] sm:$0xff]
      %v7008 = vld [vmem:[%s12 + $0x8] sm:$0xff]
      %v7009 = vld [vmem:[%s12 + $0x10] sm:$0xff]
      %v7010 = vld [vmem:[%s12 + $0x18] sm:$0xff]
      %7043 = vrot.lane.b32.xlu0 %v6830, 33
      %v7044 = vpop.permute.xlu0 %7043
      %7045 = vrot.lane.b32.xlu0 %v6832, 33
      %v7046 = vpop.permute.xlu0 %7045
      %7047 = vrot.lane.b32.xlu0 %v6883, 33
      %v7048 = vpop.permute.xlu0 %7047
      %7049 = vrot.lane.b32.xlu0 %v6885, 33
      %v7050 = vpop.permute.xlu0 %7049
      %7051 = vrot.lane.b32.xlu0 %v6936, 33
      %v7052 = vpop.permute.xlu0 %7051
      %7053 = vrot.lane.b32.xlu0 %v6938, 33
      %v7054 = vpop.permute.xlu0 %7053
      %7055 = vrot.lane.b32.xlu0 %v6989, 33
      %v7056 = vpop.permute.xlu0 %7055
      %7057 = vrot.lane.b32.xlu0 %v6991, 33
      %v7058 = vpop.permute.xlu0 %7057
      %7059 = vrot.lane.b32.xlu0 %v6834, 33
      %v7060 = vpop.permute.xlu0 %7059
      %7061 = vrot.lane.b32.xlu0 %v6836, 33
      %v7062 = vpop.permute.xlu0 %7061
      %7063 = vrot.lane.b32.xlu0 %v6887, 33
      %v7064 = vpop.permute.xlu0 %7063
      %7065 = vrot.lane.b32.xlu0 %v6889, 33
      %v7066 = vpop.permute.xlu0 %7065
      %7067 = vrot.lane.b32.xlu0 %v6940, 33
      %v7068 = vpop.permute.xlu0 %7067
      %7069 = vrot.lane.b32.xlu0 %v6942, 33
      %v7070 = vpop.permute.xlu0 %7069
      %7071 = vrot.lane.b32.xlu0 %v6993, 33
      %v7072 = vpop.permute.xlu0 %7071
      %7073 = vrot.lane.b32.xlu0 %v6995, 33
      %v7074 = vpop.permute.xlu0 %7073
      %7075 = vrot.lane.b32.xlu0 %v6840, 33
      %v7076 = vpop.permute.xlu0 %7075
      %7077 = vrot.lane.b32.xlu0 %v6842, 33
      %v7078 = vpop.permute.xlu0 %7077
      %7079 = vrot.lane.b32.xlu0 %v6893, 33
      %v7080 = vpop.permute.xlu0 %7079
      %7081 = vrot.lane.b32.xlu0 %v6895, 33
      %v7082 = vpop.permute.xlu0 %7081
      %7083 = vrot.lane.b32.xlu0 %v6946, 33
      %v7084 = vpop.permute.xlu0 %7083
      %7085 = vrot.lane.b32.xlu0 %v6948, 33
      %v7086 = vpop.permute.xlu0 %7085
      %7087 = vrot.lane.b32.xlu0 %v6999, 33
      %v7088 = vpop.permute.xlu0 %7087
      %7089 = vrot.lane.b32.xlu0 %v7001, 33
      %v7090 = vpop.permute.xlu0 %7089
      %7091 = vrot.lane.b32.xlu0 %v6844, 33
      %v7092 = vpop.permute.xlu0 %7091
      %7093 = vrot.lane.b32.xlu0 %v6846, 33
      %v7094 = vpop.permute.xlu0 %7093
      %7095 = vrot.lane.b32.xlu0 %v6897, 33
      %v7096 = vpop.permute.xlu0 %7095
      %7097 = vrot.lane.b32.xlu0 %v6899, 33
      %v7098 = vpop.permute.xlu0 %7097
      %7099 = vrot.lane.b32.xlu0 %v6950, 33
      %v7100 = vpop.permute.xlu0 %7099
      %7101 = vrot.lane.b32.xlu0 %v6952, 33
      %v7102 = vpop.permute.xlu0 %7101
      %7103 = vrot.lane.b32.xlu0 %v7003, 33
      %v7104 = vpop.permute.xlu0 %7103
      %7105 = vrot.lane.b32.xlu0 %v7005, 33
      %v7106 = vpop.permute.xlu0 %7105
      %v7107 = vsel %vm631, %v7044, %v7046
      %v7108 = vsel %vm631, %v7046, %v7048
      %v7109 = vsel %vm631, %v7048, %v7050
      %v7110 = vsel %vm631, %v7050, %v7052
      %v7111 = vsel %vm631, %v7052, %v7054
      %v7112 = vsel %vm631, %v7054, %v7056
      %v7113 = vsel %vm631, %v7056, %v7058
      %v7114 = vsel %vm631, %v7060, %v7062
      %v7115 = vsel %vm631, %v7062, %v7064
      %v7116 = vsel %vm631, %v7064, %v7066
      %v7117 = vsel %vm631, %v7066, %v7068
      %v7118 = vsel %vm631, %v7068, %v7070
      %v7119 = vsel %vm631, %v7070, %v7072
      %v7120 = vsel %vm631, %v7072, %v7074
      %v7121 = vsel %vm631, %v7076, %v7078
      %v7122 = vsel %vm631, %v7078, %v7080
      %v7123 = vsel %vm631, %v7080, %v7082
      %v7124 = vsel %vm631, %v7082, %v7084
      %v7125 = vsel %vm631, %v7084, %v7086
      %v7126 = vsel %vm631, %v7086, %v7088
      %v7127 = vsel %vm631, %v7088, %v7090
      %v7128 = vsel %vm631, %v7092, %v7094
      %v7129 = vsel %vm631, %v7094, %v7096
      %v7130 = vsel %vm631, %v7096, %v7098
      %v7131 = vsel %vm631, %v7098, %v7100
      %v7132 = vsel %vm631, %v7100, %v7102
      %v7133 = vsel %vm631, %v7102, %v7104
      %v7134 = vsel %vm631, %v7104, %v7106
      %v7167 = vsel %vm631, 0.0, %v7044
      %v7168 = vsel %vm631, 0.0, %v7060
      %v7169 = vsel %vm631, 0.0, %v7076
      %v7170 = vsel %vm631, 0.0, %v7092
      %v7171 = vsel %vm664, %v7167, 0.0
      %v7172 = vsel %vm665, %v7107, 0.0
      %v7173 = vsel %vm666, %v7108, 0.0
      %v7174 = vsel %vm667, %v7109, 0.0
      %v7175 = vsel %vm668, %v7110, 0.0
      %v7176 = vsel %vm669, %v7111, 0.0
      %v7177 = vsel %vm670, %v7112, 0.0
      %v7178 = vsel %vm671, %v7113, 0.0
      %v7179 = vsel %vm664, %v7168, 0.0
      %v7180 = vsel %vm665, %v7114, 0.0
      %v7181 = vsel %vm666, %v7115, 0.0
      %v7182 = vsel %vm667, %v7116, 0.0
      %v7183 = vsel %vm668, %v7117, 0.0
      %v7184 = vsel %vm669, %v7118, 0.0
      %v7185 = vsel %vm670, %v7119, 0.0
      %v7186 = vsel %vm671, %v7120, 0.0
      %v7187 = vsel %vm664, %v7169, 0.0
      %v7188 = vsel %vm665, %v7121, 0.0
      %v7189 = vsel %vm666, %v7122, 0.0
      %v7190 = vsel %vm667, %v7123, 0.0
      %v7191 = vsel %vm668, %v7124, 0.0
      %v7192 = vsel %vm669, %v7125, 0.0
      %v7193 = vsel %vm670, %v7126, 0.0
      %v7194 = vsel %vm671, %v7127, 0.0
      %v7195 = vsel %vm664, %v7170, 0.0
      %v7196 = vsel %vm665, %v7128, 0.0
      %v7197 = vsel %vm666, %v7129, 0.0
      %v7198 = vsel %vm667, %v7130, 0.0
      %v7199 = vsel %vm668, %v7131, 0.0
      %v7200 = vsel %vm669, %v7132, 0.0
      %v7201 = vsel %vm670, %v7133, 0.0
      %v7202 = vsel %vm671, %v7134, 0.0
      %7203 = vrot.lane.b32.xlu0 %v6830, 32
      %v7204 = vpop.permute.xlu0 %7203
      %7205 = vrot.lane.b32.xlu0 %v6832, 32
      %v7206 = vpop.permute.xlu0 %7205
      %7207 = vrot.lane.b32.xlu0 %v6883, 32
      %v7208 = vpop.permute.xlu0 %7207
      %7209 = vrot.lane.b32.xlu0 %v6885, 32
      %v7210 = vpop.permute.xlu0 %7209
      %7211 = vrot.lane.b32.xlu0 %v6936, 32
      %v7212 = vpop.permute.xlu0 %7211
      %7213 = vrot.lane.b32.xlu0 %v6938, 32
      %v7214 = vpop.permute.xlu0 %7213
      %7215 = vrot.lane.b32.xlu0 %v6989, 32
      %v7216 = vpop.permute.xlu0 %7215
      %7217 = vrot.lane.b32.xlu0 %v6991, 32
      %v7218 = vpop.permute.xlu0 %7217
      %7219 = vrot.lane.b32.xlu0 %v6834, 32
      %v7220 = vpop.permute.xlu0 %7219
      %7221 = vrot.lane.b32.xlu0 %v6836, 32
      %v7222 = vpop.permute.xlu0 %7221
      %7223 = vrot.lane.b32.xlu0 %v6887, 32
      %v7224 = vpop.permute.xlu0 %7223
      %7225 = vrot.lane.b32.xlu0 %v6889, 32
      %v7226 = vpop.permute.xlu0 %7225
      %7227 = vrot.lane.b32.xlu0 %v6940, 32
      %v7228 = vpop.permute.xlu0 %7227
      %7229 = vrot.lane.b32.xlu0 %v6942, 32
      %v7230 = vpop.permute.xlu0 %7229
      %7231 = vrot.lane.b32.xlu0 %v6993, 32
      %v7232 = vpop.permute.xlu0 %7231
      %7233 = vrot.lane.b32.xlu0 %v6995, 32
      %v7234 = vpop.permute.xlu0 %7233
      %7235 = vrot.lane.b32.xlu0 %v6840, 32
      %v7236 = vpop.permute.xlu0 %7235
      %7237 = vrot.lane.b32.xlu0 %v6842, 32
      %v7238 = vpop.permute.xlu0 %7237
      %7239 = vrot.lane.b32.xlu0 %v6893, 32
      %v7240 = vpop.permute.xlu0 %7239
      %7241 = vrot.lane.b32.xlu0 %v6895, 32
      %v7242 = vpop.permute.xlu0 %7241
      %7243 = vrot.lane.b32.xlu0 %v6946, 32
      %v7244 = vpop.permute.xlu0 %7243
      %7245 = vrot.lane.b32.xlu0 %v6948, 32
      %v7246 = vpop.permute.xlu0 %7245
      %7247 = vrot.lane.b32.xlu0 %v6999, 32
      %v7248 = vpop.permute.xlu0 %7247
      %7249 = vrot.lane.b32.xlu0 %v7001, 32
      %v7250 = vpop.permute.xlu0 %7249
      %7251 = vrot.lane.b32.xlu0 %v6844, 32
      %v7252 = vpop.permute.xlu0 %7251
      %7253 = vrot.lane.b32.xlu0 %v6846, 32
      %v7254 = vpop.permute.xlu0 %7253
      %7255 = vrot.lane.b32.xlu0 %v6897, 32
      %v7256 = vpop.permute.xlu0 %7255
      %7257 = vrot.lane.b32.xlu0 %v6899, 32
      %v7258 = vpop.permute.xlu0 %7257
      %7259 = vrot.lane.b32.xlu0 %v6950, 32
      %v7260 = vpop.permute.xlu0 %7259
      %7261 = vrot.lane.b32.xlu0 %v6952, 32
      %v7262 = vpop.permute.xlu0 %7261
      %7263 = vrot.lane.b32.xlu0 %v7003, 32
      %v7264 = vpop.permute.xlu0 %7263
      %7265 = vrot.lane.b32.xlu0 %v7005, 32
      %v7266 = vpop.permute.xlu0 %7265
      %v7267 = vsel %vm696, %v7204, %v7206
      %v7268 = vsel %vm696, %v7206, %v7208
      %v7269 = vsel %vm696, %v7208, %v7210
      %v7270 = vsel %vm696, %v7210, %v7212
      %v7271 = vsel %vm696, %v7212, %v7214
      %v7272 = vsel %vm696, %v7214, %v7216
      %v7273 = vsel %vm696, %v7216, %v7218
      %v7274 = vsel %vm696, %v7220, %v7222
      %v7275 = vsel %vm696, %v7222, %v7224
      %v7276 = vsel %vm696, %v7224, %v7226
      %v7277 = vsel %vm696, %v7226, %v7228
      %v7278 = vsel %vm696, %v7228, %v7230
      %v7279 = vsel %vm696, %v7230, %v7232
      %v7280 = vsel %vm696, %v7232, %v7234
      %v7281 = vsel %vm696, %v7236, %v7238
      %v7282 = vsel %vm696, %v7238, %v7240
      %v7283 = vsel %vm696, %v7240, %v7242
      %v7284 = vsel %vm696, %v7242, %v7244
      %v7285 = vsel %vm696, %v7244, %v7246
      %v7286 = vsel %vm696, %v7246, %v7248
      %v7287 = vsel %vm696, %v7248, %v7250
      %v7288 = vsel %vm696, %v7252, %v7254
      %v7289 = vsel %vm696, %v7254, %v7256
      %v7290 = vsel %vm696, %v7256, %v7258
      %v7291 = vsel %vm696, %v7258, %v7260
      %v7292 = vsel %vm696, %v7260, %v7262
      %v7293 = vsel %vm696, %v7262, %v7264
      %v7294 = vsel %vm696, %v7264, %v7266
      %v7327 = vsel %vm696, 0.0, %v7204
      %v7328 = vsel %vm696, 0.0, %v7220
      %v7329 = vsel %vm696, 0.0, %v7236
      %v7330 = vsel %vm696, 0.0, %v7252
      %7331 = vrot.lane.b32.xlu0 %v6830, 31
      %v7332 = vpop.permute.xlu0 %7331
      %7333 = vrot.lane.b32.xlu0 %v6832, 31
      %v7334 = vpop.permute.xlu0 %7333
      %7335 = vrot.lane.b32.xlu0 %v6883, 31
      %v7336 = vpop.permute.xlu0 %7335
      %7337 = vrot.lane.b32.xlu0 %v6885, 31
      %v7338 = vpop.permute.xlu0 %7337
      %7339 = vrot.lane.b32.xlu0 %v6936, 31
      %v7340 = vpop.permute.xlu0 %7339
      %7341 = vrot.lane.b32.xlu0 %v6938, 31
      %v7342 = vpop.permute.xlu0 %7341
      %7343 = vrot.lane.b32.xlu0 %v6989, 31
      %v7344 = vpop.permute.xlu0 %7343
      %7345 = vrot.lane.b32.xlu0 %v6991, 31
      %v7346 = vpop.permute.xlu0 %7345
      %7347 = vrot.lane.b32.xlu0 %v6834, 31
      %v7348 = vpop.permute.xlu0 %7347
      %7349 = vrot.lane.b32.xlu0 %v6836, 31
      %v7350 = vpop.permute.xlu0 %7349
      %7351 = vrot.lane.b32.xlu0 %v6887, 31
      %v7352 = vpop.permute.xlu0 %7351
      %7353 = vrot.lane.b32.xlu0 %v6889, 31
      %v7354 = vpop.permute.xlu0 %7353
      %7355 = vrot.lane.b32.xlu0 %v6940, 31
      %v7356 = vpop.permute.xlu0 %7355
      %7357 = vrot.lane.b32.xlu0 %v6942, 31
      %v7358 = vpop.permute.xlu0 %7357
      %7359 = vrot.lane.b32.xlu0 %v6993, 31
      %v7360 = vpop.permute.xlu0 %7359
      %7361 = vrot.lane.b32.xlu0 %v6995, 31
      %v7362 = vpop.permute.xlu0 %7361
      %7363 = vrot.lane.b32.xlu0 %v6840, 31
      %v7364 = vpop.permute.xlu0 %7363
      %7365 = vrot.lane.b32.xlu0 %v6842, 31
      %v7366 = vpop.permute.xlu0 %7365
      %7367 = vrot.lane.b32.xlu0 %v6893, 31
      %v7368 = vpop.permute.xlu0 %7367
      %7369 = vrot.lane.b32.xlu0 %v6895, 31
      %v7370 = vpop.permute.xlu0 %7369
      %7371 = vrot.lane.b32.xlu0 %v6946, 31
      %v7372 = vpop.permute.xlu0 %7371
      %7373 = vrot.lane.b32.xlu0 %v6948, 31
      %v7374 = vpop.permute.xlu0 %7373
      %7375 = vrot.lane.b32.xlu0 %v6999, 31
      %v7376 = vpop.permute.xlu0 %7375
      %7377 = vrot.lane.b32.xlu0 %v7001, 31
      %v7378 = vpop.permute.xlu0 %7377
      %7379 = vrot.lane.b32.xlu0 %v6844, 31
      %v7380 = vpop.permute.xlu0 %7379
      %7381 = vrot.lane.b32.xlu0 %v6846, 31
      %v7382 = vpop.permute.xlu0 %7381
      %7383 = vrot.lane.b32.xlu0 %v6897, 31
      %v7384 = vpop.permute.xlu0 %7383
      %7385 = vrot.lane.b32.xlu0 %v6899, 31
      %v7386 = vpop.permute.xlu0 %7385
      %7387 = vrot.lane.b32.xlu0 %v6950, 31
      %v7388 = vpop.permute.xlu0 %7387
      %7389 = vrot.lane.b32.xlu0 %v6952, 31
      %v7390 = vpop.permute.xlu0 %7389
      %7391 = vrot.lane.b32.xlu0 %v7003, 31
      %v7392 = vpop.permute.xlu0 %7391
      %7393 = vrot.lane.b32.xlu0 %v7005, 31
      %v7394 = vpop.permute.xlu0 %7393
      %v7395 = vsel %vm729, %v7332, %v7334
      %v7396 = vsel %vm729, %v7334, %v7336
      %v7397 = vsel %vm729, %v7336, %v7338
      %v7398 = vsel %vm729, %v7338, %v7340
      %v7399 = vsel %vm729, %v7340, %v7342
      %v7400 = vsel %vm729, %v7342, %v7344
      %v7401 = vsel %vm729, %v7344, %v7346
      %v7402 = vsel %vm729, %v7348, %v7350
      %v7403 = vsel %vm729, %v7350, %v7352
      %v7404 = vsel %vm729, %v7352, %v7354
      %v7405 = vsel %vm729, %v7354, %v7356
      %v7406 = vsel %vm729, %v7356, %v7358
      %v7407 = vsel %vm729, %v7358, %v7360
      %v7408 = vsel %vm729, %v7360, %v7362
      %v7409 = vsel %vm729, %v7364, %v7366
      %v7410 = vsel %vm729, %v7366, %v7368
      %v7411 = vsel %vm729, %v7368, %v7370
      %v7412 = vsel %vm729, %v7370, %v7372
      %v7413 = vsel %vm729, %v7372, %v7374
      %v7414 = vsel %vm729, %v7374, %v7376
      %v7415 = vsel %vm729, %v7376, %v7378
      %v7416 = vsel %vm729, %v7380, %v7382
      %v7417 = vsel %vm729, %v7382, %v7384
      %v7418 = vsel %vm729, %v7384, %v7386
      %v7419 = vsel %vm729, %v7386, %v7388
      %v7420 = vsel %vm729, %v7388, %v7390
      %v7421 = vsel %vm729, %v7390, %v7392
      %v7422 = vsel %vm729, %v7392, %v7394
      %v7455 = vsel %vm729, 0.0, %v7332
      %v7456 = vsel %vm729, 0.0, %v7348
      %v7457 = vsel %vm729, 0.0, %v7364
      %v7458 = vsel %vm729, 0.0, %v7380
      %v7459 = vsel %vm762, %v7455, 0.0
      %v7460 = vsel %vm763, %v7395, 0.0
      %v7461 = vsel %vm764, %v7396, 0.0
      %v7462 = vsel %vm765, %v7397, 0.0
      %v7463 = vsel %vm766, %v7398, 0.0
      %v7464 = vsel %vm767, %v7399, 0.0
      %v7465 = vsel %vm768, %v7400, 0.0
      %v7466 = vsel %vm769, %v7401, 0.0
      %v7467 = vsel %vm762, %v7456, 0.0
      %v7468 = vsel %vm763, %v7402, 0.0
      %v7469 = vsel %vm764, %v7403, 0.0
      %v7470 = vsel %vm765, %v7404, 0.0
      %v7471 = vsel %vm766, %v7405, 0.0
      %v7472 = vsel %vm767, %v7406, 0.0
      %v7473 = vsel %vm768, %v7407, 0.0
      %v7474 = vsel %vm769, %v7408, 0.0
      %v7475 = vsel %vm762, %v7457, 0.0
      %v7476 = vsel %vm763, %v7409, 0.0
      %v7477 = vsel %vm764, %v7410, 0.0
      %v7478 = vsel %vm765, %v7411, 0.0
      %v7479 = vsel %vm766, %v7412, 0.0
      %v7480 = vsel %vm767, %v7413, 0.0
      %v7481 = vsel %vm768, %v7414, 0.0
      %v7482 = vsel %vm769, %v7415, 0.0
      %v7483 = vsel %vm762, %v7458, 0.0
      %v7484 = vsel %vm763, %v7416, 0.0
      %v7485 = vsel %vm764, %v7417, 0.0
      %v7486 = vsel %vm765, %v7418, 0.0
      %v7487 = vsel %vm766, %v7419, 0.0
      %v7488 = vsel %vm767, %v7420, 0.0
      %v7489 = vsel %vm768, %v7421, 0.0
      %v7490 = vsel %vm769, %v7422, 0.0
      %7491 = vrot.lane.b32.xlu0 %v6830, 1
      %v7492 = vpop.permute.xlu0 %7491
      %7493 = vrot.lane.b32.xlu0 %v6832, 1
      %v7494 = vpop.permute.xlu0 %7493
      %7495 = vrot.lane.b32.xlu0 %v6883, 1
      %v7496 = vpop.permute.xlu0 %7495
      %7497 = vrot.lane.b32.xlu0 %v6885, 1
      %v7498 = vpop.permute.xlu0 %7497
      %7499 = vrot.lane.b32.xlu0 %v6936, 1
      %v7500 = vpop.permute.xlu0 %7499
      %7501 = vrot.lane.b32.xlu0 %v6938, 1
      %v7502 = vpop.permute.xlu0 %7501
      %7503 = vrot.lane.b32.xlu0 %v6989, 1
      %v7504 = vpop.permute.xlu0 %7503
      %7505 = vrot.lane.b32.xlu0 %v6991, 1
      %v7506 = vpop.permute.xlu0 %7505
      %7507 = vrot.lane.b32.xlu0 %v6834, 1
      %v7508 = vpop.permute.xlu0 %7507
      %7509 = vrot.lane.b32.xlu0 %v6836, 1
      %v7510 = vpop.permute.xlu0 %7509
      %7511 = vrot.lane.b32.xlu0 %v6887, 1
      %v7512 = vpop.permute.xlu0 %7511
      %7513 = vrot.lane.b32.xlu0 %v6889, 1
      %v7514 = vpop.permute.xlu0 %7513
      %7515 = vrot.lane.b32.xlu0 %v6940, 1
      %v7516 = vpop.permute.xlu0 %7515
      %7517 = vrot.lane.b32.xlu0 %v6942, 1
      %v7518 = vpop.permute.xlu0 %7517
      %7519 = vrot.lane.b32.xlu0 %v6993, 1
      %v7520 = vpop.permute.xlu0 %7519
      %7521 = vrot.lane.b32.xlu0 %v6995, 1
      %v7522 = vpop.permute.xlu0 %7521
      %7523 = vrot.lane.b32.xlu0 %v6840, 1
      %v7524 = vpop.permute.xlu0 %7523
      %7525 = vrot.lane.b32.xlu0 %v6842, 1
      %v7526 = vpop.permute.xlu0 %7525
      %7527 = vrot.lane.b32.xlu0 %v6893, 1
      %v7528 = vpop.permute.xlu0 %7527
      %7529 = vrot.lane.b32.xlu0 %v6895, 1
      %v7530 = vpop.permute.xlu0 %7529
      %7531 = vrot.lane.b32.xlu0 %v6946, 1
      %v7532 = vpop.permute.xlu0 %7531
      %7533 = vrot.lane.b32.xlu0 %v6948, 1
      %v7534 = vpop.permute.xlu0 %7533
      %7535 = vrot.lane.b32.xlu0 %v6999, 1
      %v7536 = vpop.permute.xlu0 %7535
      %7537 = vrot.lane.b32.xlu0 %v7001, 1
      %v7538 = vpop.permute.xlu0 %7537
      %7539 = vrot.lane.b32.xlu0 %v6844, 1
      %v7540 = vpop.permute.xlu0 %7539
      %7541 = vrot.lane.b32.xlu0 %v6846, 1
      %v7542 = vpop.permute.xlu0 %7541
      %7543 = vrot.lane.b32.xlu0 %v6897, 1
      %v7544 = vpop.permute.xlu0 %7543
      %7545 = vrot.lane.b32.xlu0 %v6899, 1
      %v7546 = vpop.permute.xlu0 %7545
      %7547 = vrot.lane.b32.xlu0 %v6950, 1
      %v7548 = vpop.permute.xlu0 %7547
      %7549 = vrot.lane.b32.xlu0 %v6952, 1
      %v7550 = vpop.permute.xlu0 %7549
      %7551 = vrot.lane.b32.xlu0 %v7003, 1
      %v7552 = vpop.permute.xlu0 %7551
      %7553 = vrot.lane.b32.xlu0 %v7005, 1
      %v7554 = vpop.permute.xlu0 %7553
      %v7555 = vsel %vm794, %v7492, %v7494
      %v7556 = vsel %vm794, %v7494, %v7496
      %v7557 = vsel %vm794, %v7496, %v7498
      %v7558 = vsel %vm794, %v7498, %v7500
      %v7559 = vsel %vm794, %v7500, %v7502
      %v7560 = vsel %vm794, %v7502, %v7504
      %v7561 = vsel %vm794, %v7504, %v7506
      %v7562 = vsel %vm794, %v7508, %v7510
      %v7563 = vsel %vm794, %v7510, %v7512
      %v7564 = vsel %vm794, %v7512, %v7514
      %v7565 = vsel %vm794, %v7514, %v7516
      %v7566 = vsel %vm794, %v7516, %v7518
      %v7567 = vsel %vm794, %v7518, %v7520
      %v7568 = vsel %vm794, %v7520, %v7522
      %v7569 = vsel %vm794, %v7524, %v7526
      %v7570 = vsel %vm794, %v7526, %v7528
      %v7571 = vsel %vm794, %v7528, %v7530
      %v7572 = vsel %vm794, %v7530, %v7532
      %v7573 = vsel %vm794, %v7532, %v7534
      %v7574 = vsel %vm794, %v7534, %v7536
      %v7575 = vsel %vm794, %v7536, %v7538
      %v7576 = vsel %vm794, %v7540, %v7542
      %v7577 = vsel %vm794, %v7542, %v7544
      %v7578 = vsel %vm794, %v7544, %v7546
      %v7579 = vsel %vm794, %v7546, %v7548
      %v7580 = vsel %vm794, %v7548, %v7550
      %v7581 = vsel %vm794, %v7550, %v7552
      %v7582 = vsel %vm794, %v7552, %v7554
      %v7615 = vsel %vm794, 0.0, %v7492
      %v7616 = vsel %vm794, 0.0, %v7508
      %v7617 = vsel %vm794, 0.0, %v7524
      %v7618 = vsel %vm794, 0.0, %v7540
      %v7619 = vsel %vm664, %v7615, 0.0
      %v7620 = vsel %vm665, %v7555, 0.0
      %v7621 = vsel %vm666, %v7556, 0.0
      %v7622 = vsel %vm667, %v7557, 0.0
      %v7623 = vsel %vm668, %v7558, 0.0
      %v7624 = vsel %vm669, %v7559, 0.0
      %v7625 = vsel %vm670, %v7560, 0.0
      %v7626 = vsel %vm671, %v7561, 0.0
      %v7627 = vsel %vm664, %v7616, 0.0
      %v7628 = vsel %vm665, %v7562, 0.0
      %v7629 = vsel %vm666, %v7563, 0.0
      %v7630 = vsel %vm667, %v7564, 0.0
      %v7631 = vsel %vm668, %v7565, 0.0
      %v7632 = vsel %vm669, %v7566, 0.0
      %v7633 = vsel %vm670, %v7567, 0.0
      %v7634 = vsel %vm671, %v7568, 0.0
      %v7635 = vsel %vm664, %v7617, 0.0
      %v7636 = vsel %vm665, %v7569, 0.0
      %v7637 = vsel %vm666, %v7570, 0.0
      %v7638 = vsel %vm667, %v7571, 0.0
      %v7639 = vsel %vm668, %v7572, 0.0
      %v7640 = vsel %vm669, %v7573, 0.0
      %v7641 = vsel %vm670, %v7574, 0.0
      %v7642 = vsel %vm671, %v7575, 0.0
      %v7643 = vsel %vm664, %v7618, 0.0
      %v7644 = vsel %vm665, %v7576, 0.0
      %v7645 = vsel %vm666, %v7577, 0.0
      %v7646 = vsel %vm667, %v7578, 0.0
      %v7647 = vsel %vm668, %v7579, 0.0
      %v7648 = vsel %vm669, %v7580, 0.0
      %v7649 = vsel %vm670, %v7581, 0.0
      %v7650 = vsel %vm671, %v7582, 0.0
      %7651 = vrot.lane.b32.xlu0 %v6830, 127
      %v7652 = vpop.permute.xlu0 %7651
      %7653 = vrot.lane.b32.xlu0 %v6832, 127
      %v7654 = vpop.permute.xlu0 %7653
      %7655 = vrot.lane.b32.xlu0 %v6883, 127
      %v7656 = vpop.permute.xlu0 %7655
      %7657 = vrot.lane.b32.xlu0 %v6885, 127
      %v7658 = vpop.permute.xlu0 %7657
      %7659 = vrot.lane.b32.xlu0 %v6936, 127
      %v7660 = vpop.permute.xlu0 %7659
      %7661 = vrot.lane.b32.xlu0 %v6938, 127
      %v7662 = vpop.permute.xlu0 %7661
      %7663 = vrot.lane.b32.xlu0 %v6989, 127
      %v7664 = vpop.permute.xlu0 %7663
      %7665 = vrot.lane.b32.xlu0 %v6991, 127
      %v7666 = vpop.permute.xlu0 %7665
      %7667 = vrot.lane.b32.xlu0 %v6834, 127
      %v7668 = vpop.permute.xlu0 %7667
      %7669 = vrot.lane.b32.xlu0 %v6836, 127
      %v7670 = vpop.permute.xlu0 %7669
      %7671 = vrot.lane.b32.xlu0 %v6887, 127
      %v7672 = vpop.permute.xlu0 %7671
      %7673 = vrot.lane.b32.xlu0 %v6889, 127
      %v7674 = vpop.permute.xlu0 %7673
      %7675 = vrot.lane.b32.xlu0 %v6940, 127
      %v7676 = vpop.permute.xlu0 %7675
      %7677 = vrot.lane.b32.xlu0 %v6942, 127
      %v7678 = vpop.permute.xlu0 %7677
      %7679 = vrot.lane.b32.xlu0 %v6993, 127
      %v7680 = vpop.permute.xlu0 %7679
      %7681 = vrot.lane.b32.xlu0 %v6995, 127
      %v7682 = vpop.permute.xlu0 %7681
      %7683 = vrot.lane.b32.xlu0 %v6840, 127
      %v7684 = vpop.permute.xlu0 %7683
      %7685 = vrot.lane.b32.xlu0 %v6842, 127
      %v7686 = vpop.permute.xlu0 %7685
      %7687 = vrot.lane.b32.xlu0 %v6893, 127
      %v7688 = vpop.permute.xlu0 %7687
      %7689 = vrot.lane.b32.xlu0 %v6895, 127
      %v7690 = vpop.permute.xlu0 %7689
      %7691 = vrot.lane.b32.xlu0 %v6946, 127
      %v7692 = vpop.permute.xlu0 %7691
      %7693 = vrot.lane.b32.xlu0 %v6948, 127
      %v7694 = vpop.permute.xlu0 %7693
      %7695 = vrot.lane.b32.xlu0 %v6999, 127
      %v7696 = vpop.permute.xlu0 %7695
      %7697 = vrot.lane.b32.xlu0 %v7001, 127
      %v7698 = vpop.permute.xlu0 %7697
      %7699 = vrot.lane.b32.xlu0 %v6844, 127
      %v7700 = vpop.permute.xlu0 %7699
      %7701 = vrot.lane.b32.xlu0 %v6846, 127
      %v7702 = vpop.permute.xlu0 %7701
      %7703 = vrot.lane.b32.xlu0 %v6897, 127
      %v7704 = vpop.permute.xlu0 %7703
      %7705 = vrot.lane.b32.xlu0 %v6899, 127
      %v7706 = vpop.permute.xlu0 %7705
      %7707 = vrot.lane.b32.xlu0 %v6950, 127
      %v7708 = vpop.permute.xlu0 %7707
      %7709 = vrot.lane.b32.xlu0 %v6952, 127
      %v7710 = vpop.permute.xlu0 %7709
      %7711 = vrot.lane.b32.xlu0 %v7003, 127
      %v7712 = vpop.permute.xlu0 %7711
      %7713 = vrot.lane.b32.xlu0 %v7005, 127
      %v7714 = vpop.permute.xlu0 %7713
      %v7715 = vsel %vm835, %v7652, %v7654
      %v7716 = vsel %vm835, %v7654, %v7656
      %v7717 = vsel %vm835, %v7656, %v7658
      %v7718 = vsel %vm835, %v7658, %v7660
      %v7719 = vsel %vm835, %v7660, %v7662
      %v7720 = vsel %vm835, %v7662, %v7664
      %v7721 = vsel %vm835, %v7664, %v7666
      %v7722 = vsel %vm835, %v7668, %v7670
      %v7723 = vsel %vm835, %v7670, %v7672
      %v7724 = vsel %vm835, %v7672, %v7674
      %v7725 = vsel %vm835, %v7674, %v7676
      %v7726 = vsel %vm835, %v7676, %v7678
      %v7727 = vsel %vm835, %v7678, %v7680
      %v7728 = vsel %vm835, %v7680, %v7682
      %v7729 = vsel %vm835, %v7684, %v7686
      %v7730 = vsel %vm835, %v7686, %v7688
      %v7731 = vsel %vm835, %v7688, %v7690
      %v7732 = vsel %vm835, %v7690, %v7692
      %v7733 = vsel %vm835, %v7692, %v7694
      %v7734 = vsel %vm835, %v7694, %v7696
      %v7735 = vsel %vm835, %v7696, %v7698
      %v7736 = vsel %vm835, %v7700, %v7702
      %v7737 = vsel %vm835, %v7702, %v7704
      %v7738 = vsel %vm835, %v7704, %v7706
      %v7739 = vsel %vm835, %v7706, %v7708
      %v7740 = vsel %vm835, %v7708, %v7710
      %v7741 = vsel %vm835, %v7710, %v7712
      %v7742 = vsel %vm835, %v7712, %v7714
      %v7775 = vsel %vm835, %v7666, 0.0
      %v7776 = vsel %vm835, %v7682, 0.0
      %v7777 = vsel %vm835, %v7698, 0.0
      %v7778 = vsel %vm835, %v7714, 0.0
      %v7779 = vsel %vm762, %v7715, 0.0
      %v7780 = vsel %vm763, %v7716, 0.0
      %v7781 = vsel %vm764, %v7717, 0.0
      %v7782 = vsel %vm765, %v7718, 0.0
      %v7783 = vsel %vm766, %v7719, 0.0
      %v7784 = vsel %vm767, %v7720, 0.0
      %v7785 = vsel %vm768, %v7721, 0.0
      %v7786 = vsel %vm769, %v7775, 0.0
      %v7787 = vsel %vm762, %v7722, 0.0
      %v7788 = vsel %vm763, %v7723, 0.0
      %v7789 = vsel %vm764, %v7724, 0.0
      %v7790 = vsel %vm765, %v7725, 0.0
      %v7791 = vsel %vm766, %v7726, 0.0
      %v7792 = vsel %vm767, %v7727, 0.0
      %v7793 = vsel %vm768, %v7728, 0.0
      %v7794 = vsel %vm769, %v7776, 0.0
      %v7795 = vsel %vm762, %v7729, 0.0
      %v7796 = vsel %vm763, %v7730, 0.0
      %v7797 = vsel %vm764, %v7731, 0.0
      %v7798 = vsel %vm765, %v7732, 0.0
      %v7799 = vsel %vm766, %v7733, 0.0
      %v7800 = vsel %vm767, %v7734, 0.0
      %v7801 = vsel %vm768, %v7735, 0.0
      %v7802 = vsel %vm769, %v7777, 0.0
      %v7803 = vsel %vm762, %v7736, 0.0
      %v7804 = vsel %vm763, %v7737, 0.0
      %v7805 = vsel %vm764, %v7738, 0.0
      %v7806 = vsel %vm765, %v7739, 0.0
      %v7807 = vsel %vm766, %v7740, 0.0
      %v7808 = vsel %vm767, %v7741, 0.0
      %v7809 = vsel %vm768, %v7742, 0.0
      %v7810 = vsel %vm769, %v7778, 0.0
      %7811 = vrot.lane.b32.xlu0 %v6830, 97
      %v7812 = vpop.permute.xlu0 %7811
      %7813 = vrot.lane.b32.xlu0 %v6832, 97
      %v7814 = vpop.permute.xlu0 %7813
      %7815 = vrot.lane.b32.xlu0 %v6883, 97
      %v7816 = vpop.permute.xlu0 %7815
      %7817 = vrot.lane.b32.xlu0 %v6885, 97
      %v7818 = vpop.permute.xlu0 %7817
      %7819 = vrot.lane.b32.xlu0 %v6936, 97
      %v7820 = vpop.permute.xlu0 %7819
      %7821 = vrot.lane.b32.xlu0 %v6938, 97
      %v7822 = vpop.permute.xlu0 %7821
      %7823 = vrot.lane.b32.xlu0 %v6989, 97
      %v7824 = vpop.permute.xlu0 %7823
      %7825 = vrot.lane.b32.xlu0 %v6991, 97
      %v7826 = vpop.permute.xlu0 %7825
      %7827 = vrot.lane.b32.xlu0 %v6834, 97
      %v7828 = vpop.permute.xlu0 %7827
      %7829 = vrot.lane.b32.xlu0 %v6836, 97
      %v7830 = vpop.permute.xlu0 %7829
      %7831 = vrot.lane.b32.xlu0 %v6887, 97
      %v7832 = vpop.permute.xlu0 %7831
      %7833 = vrot.lane.b32.xlu0 %v6889, 97
      %v7834 = vpop.permute.xlu0 %7833
      %7835 = vrot.lane.b32.xlu0 %v6940, 97
      %v7836 = vpop.permute.xlu0 %7835
      %7837 = vrot.lane.b32.xlu0 %v6942, 97
      %v7838 = vpop.permute.xlu0 %7837
      %7839 = vrot.lane.b32.xlu0 %v6993, 97
      %v7840 = vpop.permute.xlu0 %7839
      %7841 = vrot.lane.b32.xlu0 %v6995, 97
      %v7842 = vpop.permute.xlu0 %7841
      %7843 = vrot.lane.b32.xlu0 %v6840, 97
      %v7844 = vpop.permute.xlu0 %7843
      %7845 = vrot.lane.b32.xlu0 %v6842, 97
      %v7846 = vpop.permute.xlu0 %7845
      %7847 = vrot.lane.b32.xlu0 %v6893, 97
      %v7848 = vpop.permute.xlu0 %7847
      %7849 = vrot.lane.b32.xlu0 %v6895, 97
      %v7850 = vpop.permute.xlu0 %7849
      %7851 = vrot.lane.b32.xlu0 %v6946, 97
      %v7852 = vpop.permute.xlu0 %7851
      %7853 = vrot.lane.b32.xlu0 %v6948, 97
      %v7854 = vpop.permute.xlu0 %7853
      %7855 = vrot.lane.b32.xlu0 %v6999, 97
      %v7856 = vpop.permute.xlu0 %7855
      %7857 = vrot.lane.b32.xlu0 %v7001, 97
      %v7858 = vpop.permute.xlu0 %7857
      %7859 = vrot.lane.b32.xlu0 %v6844, 97
      %v7860 = vpop.permute.xlu0 %7859
      %7861 = vrot.lane.b32.xlu0 %v6846, 97
      %v7862 = vpop.permute.xlu0 %7861
      %7863 = vrot.lane.b32.xlu0 %v6897, 97
      %v7864 = vpop.permute.xlu0 %7863
      %7865 = vrot.lane.b32.xlu0 %v6899, 97
      %v7866 = vpop.permute.xlu0 %7865
      %7867 = vrot.lane.b32.xlu0 %v6950, 97
      %v7868 = vpop.permute.xlu0 %7867
      %7869 = vrot.lane.b32.xlu0 %v6952, 97
      %v7870 = vpop.permute.xlu0 %7869
      %7871 = vrot.lane.b32.xlu0 %v7003, 97
      %v7872 = vpop.permute.xlu0 %7871
      %7873 = vrot.lane.b32.xlu0 %v7005, 97
      %v7874 = vpop.permute.xlu0 %7873
      %v7875 = vsel %vm876, %v7812, %v7814
      %v7876 = vsel %vm876, %v7814, %v7816
      %v7877 = vsel %vm876, %v7816, %v7818
      %v7878 = vsel %vm876, %v7818, %v7820
      %v7879 = vsel %vm876, %v7820, %v7822
      %v7880 = vsel %vm876, %v7822, %v7824
      %v7881 = vsel %vm876, %v7824, %v7826
      %v7882 = vsel %vm876, %v7828, %v7830
      %v7883 = vsel %vm876, %v7830, %v7832
      %v7884 = vsel %vm876, %v7832, %v7834
      %v7885 = vsel %vm876, %v7834, %v7836
      %v7886 = vsel %vm876, %v7836, %v7838
      %v7887 = vsel %vm876, %v7838, %v7840
      %v7888 = vsel %vm876, %v7840, %v7842
      %v7889 = vsel %vm876, %v7844, %v7846
      %v7890 = vsel %vm876, %v7846, %v7848
      %v7891 = vsel %vm876, %v7848, %v7850
      %v7892 = vsel %vm876, %v7850, %v7852
      %v7893 = vsel %vm876, %v7852, %v7854
      %v7894 = vsel %vm876, %v7854, %v7856
      %v7895 = vsel %vm876, %v7856, %v7858
      %v7896 = vsel %vm876, %v7860, %v7862
      %v7897 = vsel %vm876, %v7862, %v7864
      %v7898 = vsel %vm876, %v7864, %v7866
      %v7899 = vsel %vm876, %v7866, %v7868
      %v7900 = vsel %vm876, %v7868, %v7870
      %v7901 = vsel %vm876, %v7870, %v7872
      %v7902 = vsel %vm876, %v7872, %v7874
      %v7935 = vsel %vm876, %v7826, 0.0
      %v7936 = vsel %vm876, %v7842, 0.0
      %v7937 = vsel %vm876, %v7858, 0.0
      %v7938 = vsel %vm876, %v7874, 0.0
      %v7939 = vsel %vm664, %v7875, 0.0
      %v7940 = vsel %vm665, %v7876, 0.0
      %v7941 = vsel %vm666, %v7877, 0.0
      %v7942 = vsel %vm667, %v7878, 0.0
      %v7943 = vsel %vm668, %v7879, 0.0
      %v7944 = vsel %vm669, %v7880, 0.0
      %v7945 = vsel %vm670, %v7881, 0.0
      %v7946 = vsel %vm671, %v7935, 0.0
      %v7947 = vsel %vm664, %v7882, 0.0
      %v7948 = vsel %vm665, %v7883, 0.0
      %v7949 = vsel %vm666, %v7884, 0.0
      %v7950 = vsel %vm667, %v7885, 0.0
      %v7951 = vsel %vm668, %v7886, 0.0
      %v7952 = vsel %vm669, %v7887, 0.0
      %v7953 = vsel %vm670, %v7888, 0.0
      %v7954 = vsel %vm671, %v7936, 0.0
      %v7955 = vsel %vm664, %v7889, 0.0
      %v7956 = vsel %vm665, %v7890, 0.0
      %v7957 = vsel %vm666, %v7891, 0.0
      %v7958 = vsel %vm667, %v7892, 0.0
      %v7959 = vsel %vm668, %v7893, 0.0
      %v7960 = vsel %vm669, %v7894, 0.0
      %v7961 = vsel %vm670, %v7895, 0.0
      %v7962 = vsel %vm671, %v7937, 0.0
      %v7963 = vsel %vm664, %v7896, 0.0
      %v7964 = vsel %vm665, %v7897, 0.0
      %v7965 = vsel %vm666, %v7898, 0.0
      %v7966 = vsel %vm667, %v7899, 0.0
      %v7967 = vsel %vm668, %v7900, 0.0
      %v7968 = vsel %vm669, %v7901, 0.0
      %v7969 = vsel %vm670, %v7902, 0.0
      %v7970 = vsel %vm671, %v7938, 0.0
      %7971 = vrot.lane.b32.xlu0 %v6830, 96
      %v7972 = vpop.permute.xlu0 %7971
      %7973 = vrot.lane.b32.xlu0 %v6832, 96
      %v7974 = vpop.permute.xlu0 %7973
      %7975 = vrot.lane.b32.xlu0 %v6883, 96
      %v7976 = vpop.permute.xlu0 %7975
      %7977 = vrot.lane.b32.xlu0 %v6885, 96
      %v7978 = vpop.permute.xlu0 %7977
      %7979 = vrot.lane.b32.xlu0 %v6936, 96
      %v7980 = vpop.permute.xlu0 %7979
      %7981 = vrot.lane.b32.xlu0 %v6938, 96
      %v7982 = vpop.permute.xlu0 %7981
      %7983 = vrot.lane.b32.xlu0 %v6989, 96
      %v7984 = vpop.permute.xlu0 %7983
      %7985 = vrot.lane.b32.xlu0 %v6991, 96
      %v7986 = vpop.permute.xlu0 %7985
      %7987 = vrot.lane.b32.xlu0 %v6834, 96
      %v7988 = vpop.permute.xlu0 %7987
      %7989 = vrot.lane.b32.xlu0 %v6836, 96
      %v7990 = vpop.permute.xlu0 %7989
      %7991 = vrot.lane.b32.xlu0 %v6887, 96
      %v7992 = vpop.permute.xlu0 %7991
      %7993 = vrot.lane.b32.xlu0 %v6889, 96
      %v7994 = vpop.permute.xlu0 %7993
      %7995 = vrot.lane.b32.xlu0 %v6940, 96
      %v7996 = vpop.permute.xlu0 %7995
      %7997 = vrot.lane.b32.xlu0 %v6942, 96
      %v7998 = vpop.permute.xlu0 %7997
      %7999 = vrot.lane.b32.xlu0 %v6993, 96
      %v8000 = vpop.permute.xlu0 %7999
      %8001 = vrot.lane.b32.xlu0 %v6995, 96
      %v8002 = vpop.permute.xlu0 %8001
      %8003 = vrot.lane.b32.xlu0 %v6840, 96
      %v8004 = vpop.permute.xlu0 %8003
      %8005 = vrot.lane.b32.xlu0 %v6842, 96
      %v8006 = vpop.permute.xlu0 %8005
      %8007 = vrot.lane.b32.xlu0 %v6893, 96
      %v8008 = vpop.permute.xlu0 %8007
      %8009 = vrot.lane.b32.xlu0 %v6895, 96
      %v8010 = vpop.permute.xlu0 %8009
      %8011 = vrot.lane.b32.xlu0 %v6946, 96
      %v8012 = vpop.permute.xlu0 %8011
      %8013 = vrot.lane.b32.xlu0 %v6948, 96
      %v8014 = vpop.permute.xlu0 %8013
      %8015 = vrot.lane.b32.xlu0 %v6999, 96
      %v8016 = vpop.permute.xlu0 %8015
      %8017 = vrot.lane.b32.xlu0 %v7001, 96
      %v8018 = vpop.permute.xlu0 %8017
      %8019 = vrot.lane.b32.xlu0 %v6844, 96
      %v8020 = vpop.permute.xlu0 %8019
      %8021 = vrot.lane.b32.xlu0 %v6846, 96
      %v8022 = vpop.permute.xlu0 %8021
      %8023 = vrot.lane.b32.xlu0 %v6897, 96
      %v8024 = vpop.permute.xlu0 %8023
      %8025 = vrot.lane.b32.xlu0 %v6899, 96
      %v8026 = vpop.permute.xlu0 %8025
      %8027 = vrot.lane.b32.xlu0 %v6950, 96
      %v8028 = vpop.permute.xlu0 %8027
      %8029 = vrot.lane.b32.xlu0 %v6952, 96
      %v8030 = vpop.permute.xlu0 %8029
      %8031 = vrot.lane.b32.xlu0 %v7003, 96
      %v8032 = vpop.permute.xlu0 %8031
      %8033 = vrot.lane.b32.xlu0 %v7005, 96
      %v8034 = vpop.permute.xlu0 %8033
      %v8035 = vsel %vm917, %v7972, %v7974
      %v8036 = vsel %vm917, %v7974, %v7976
      %v8037 = vsel %vm917, %v7976, %v7978
      %v8038 = vsel %vm917, %v7978, %v7980
      %v8039 = vsel %vm917, %v7980, %v7982
      %v8040 = vsel %vm917, %v7982, %v7984
      %v8041 = vsel %vm917, %v7984, %v7986
      %v8042 = vsel %vm917, %v7988, %v7990
      %v8043 = vsel %vm917, %v7990, %v7992
      %v8044 = vsel %vm917, %v7992, %v7994
      %v8045 = vsel %vm917, %v7994, %v7996
      %v8046 = vsel %vm917, %v7996, %v7998
      %v8047 = vsel %vm917, %v7998, %v8000
      %v8048 = vsel %vm917, %v8000, %v8002
      %v8049 = vsel %vm917, %v8004, %v8006
      %v8050 = vsel %vm917, %v8006, %v8008
      %v8051 = vsel %vm917, %v8008, %v8010
      %v8052 = vsel %vm917, %v8010, %v8012
      %v8053 = vsel %vm917, %v8012, %v8014
      %v8054 = vsel %vm917, %v8014, %v8016
      %v8055 = vsel %vm917, %v8016, %v8018
      %v8056 = vsel %vm917, %v8020, %v8022
      %v8057 = vsel %vm917, %v8022, %v8024
      %v8058 = vsel %vm917, %v8024, %v8026
      %v8059 = vsel %vm917, %v8026, %v8028
      %v8060 = vsel %vm917, %v8028, %v8030
      %v8061 = vsel %vm917, %v8030, %v8032
      %v8062 = vsel %vm917, %v8032, %v8034
      %v8095 = vsel %vm917, %v7986, 0.0
      %v8096 = vsel %vm917, %v8002, 0.0
      %v8097 = vsel %vm917, %v8018, 0.0
      %v8098 = vsel %vm917, %v8034, 0.0
      %8099 = vrot.lane.b32.xlu0 %v6830, 95
      %v8100 = vpop.permute.xlu0 %8099
      %8101 = vrot.lane.b32.xlu0 %v6832, 95
      %v8102 = vpop.permute.xlu0 %8101
      %8103 = vrot.lane.b32.xlu0 %v6883, 95
      %v8104 = vpop.permute.xlu0 %8103
      %8105 = vrot.lane.b32.xlu0 %v6885, 95
      %v8106 = vpop.permute.xlu0 %8105
      %8107 = vrot.lane.b32.xlu0 %v6936, 95
      %v8108 = vpop.permute.xlu0 %8107
      %8109 = vrot.lane.b32.xlu0 %v6938, 95
      %v8110 = vpop.permute.xlu0 %8109
      %8111 = vrot.lane.b32.xlu0 %v6989, 95
      %v8112 = vpop.permute.xlu0 %8111
      %8113 = vrot.lane.b32.xlu0 %v6991, 95
      %v8114 = vpop.permute.xlu0 %8113
      %8115 = vrot.lane.b32.xlu0 %v6834, 95
      %v8116 = vpop.permute.xlu0 %8115
      %8117 = vrot.lane.b32.xlu0 %v6836, 95
      %v8118 = vpop.permute.xlu0 %8117
      %8119 = vrot.lane.b32.xlu0 %v6887, 95
      %v8120 = vpop.permute.xlu0 %8119
      %8121 = vrot.lane.b32.xlu0 %v6889, 95
      %v8122 = vpop.permute.xlu0 %8121
      %8123 = vrot.lane.b32.xlu0 %v6940, 95
      %v8124 = vpop.permute.xlu0 %8123
      %8125 = vrot.lane.b32.xlu0 %v6942, 95
      %v8126 = vpop.permute.xlu0 %8125
      %8127 = vrot.lane.b32.xlu0 %v6993, 95
      %v8128 = vpop.permute.xlu0 %8127
      %8129 = vrot.lane.b32.xlu0 %v6995, 95
      %v8130 = vpop.permute.xlu0 %8129
      %8131 = vrot.lane.b32.xlu0 %v6840, 95
      %v8132 = vpop.permute.xlu0 %8131
      %8133 = vrot.lane.b32.xlu0 %v6842, 95
      %v8134 = vpop.permute.xlu0 %8133
      %8135 = vrot.lane.b32.xlu0 %v6893, 95
      %v8136 = vpop.permute.xlu0 %8135
      %8137 = vrot.lane.b32.xlu0 %v6895, 95
      %v8138 = vpop.permute.xlu0 %8137
      %8139 = vrot.lane.b32.xlu0 %v6946, 95
      %v8140 = vpop.permute.xlu0 %8139
      %8141 = vrot.lane.b32.xlu0 %v6948, 95
      %v8142 = vpop.permute.xlu0 %8141
      %8143 = vrot.lane.b32.xlu0 %v6999, 95
      %v8144 = vpop.permute.xlu0 %8143
      %8145 = vrot.lane.b32.xlu0 %v7001, 95
      %v8146 = vpop.permute.xlu0 %8145
      %8147 = vrot.lane.b32.xlu0 %v6844, 95
      %v8148 = vpop.permute.xlu0 %8147
      %8149 = vrot.lane.b32.xlu0 %v6846, 95
      %v8150 = vpop.permute.xlu0 %8149
      %8151 = vrot.lane.b32.xlu0 %v6897, 95
      %v8152 = vpop.permute.xlu0 %8151
      %8153 = vrot.lane.b32.xlu0 %v6899, 95
      %v8154 = vpop.permute.xlu0 %8153
      %8155 = vrot.lane.b32.xlu0 %v6950, 95
      %v8156 = vpop.permute.xlu0 %8155
      %8157 = vrot.lane.b32.xlu0 %v6952, 95
      %v8158 = vpop.permute.xlu0 %8157
      %8159 = vrot.lane.b32.xlu0 %v7003, 95
      %v8160 = vpop.permute.xlu0 %8159
      %8161 = vrot.lane.b32.xlu0 %v7005, 95
      %v8162 = vpop.permute.xlu0 %8161
      %v8163 = vsel %vm950, %v8100, %v8102
      %v8164 = vsel %vm950, %v8102, %v8104
      %v8165 = vsel %vm950, %v8104, %v8106
      %v8166 = vsel %vm950, %v8106, %v8108
      %v8167 = vsel %vm950, %v8108, %v8110
      %v8168 = vsel %vm950, %v8110, %v8112
      %v8169 = vsel %vm950, %v8112, %v8114
      %v8170 = vsel %vm950, %v8116, %v8118
      %v8171 = vsel %vm950, %v8118, %v8120
      %v8172 = vsel %vm950, %v8120, %v8122
      %v8173 = vsel %vm950, %v8122, %v8124
      %v8174 = vsel %vm950, %v8124, %v8126
      %v8175 = vsel %vm950, %v8126, %v8128
      %v8176 = vsel %vm950, %v8128, %v8130
      %v8177 = vsel %vm950, %v8132, %v8134
      %v8178 = vsel %vm950, %v8134, %v8136
      %v8179 = vsel %vm950, %v8136, %v8138
      %v8180 = vsel %vm950, %v8138, %v8140
      %v8181 = vsel %vm950, %v8140, %v8142
      %v8182 = vsel %vm950, %v8142, %v8144
      %v8183 = vsel %vm950, %v8144, %v8146
      %v8184 = vsel %vm950, %v8148, %v8150
      %v8185 = vsel %vm950, %v8150, %v8152
      %v8186 = vsel %vm950, %v8152, %v8154
      %v8187 = vsel %vm950, %v8154, %v8156
      %v8188 = vsel %vm950, %v8156, %v8158
      %v8189 = vsel %vm950, %v8158, %v8160
      %v8190 = vsel %vm950, %v8160, %v8162
      %v8223 = vsel %vm950, %v8114, 0.0
      %v8224 = vsel %vm950, %v8130, 0.0
      %v8225 = vsel %vm950, %v8146, 0.0
      %v8226 = vsel %vm950, %v8162, 0.0
      %v8227 = vsel %vm762, %v8163, 0.0
      %v8228 = vsel %vm763, %v8164, 0.0
      %v8229 = vsel %vm764, %v8165, 0.0
      %v8230 = vsel %vm765, %v8166, 0.0
      %v8231 = vsel %vm766, %v8167, 0.0
      %v8232 = vsel %vm767, %v8168, 0.0
      %v8233 = vsel %vm768, %v8169, 0.0
      %v8234 = vsel %vm769, %v8223, 0.0
      %v8235 = vsel %vm762, %v8170, 0.0
      %v8236 = vsel %vm763, %v8171, 0.0
      %v8237 = vsel %vm764, %v8172, 0.0
      %v8238 = vsel %vm765, %v8173, 0.0
      %v8239 = vsel %vm766, %v8174, 0.0
      %v8240 = vsel %vm767, %v8175, 0.0
      %v8241 = vsel %vm768, %v8176, 0.0
      %v8242 = vsel %vm769, %v8224, 0.0
      %v8243 = vsel %vm762, %v8177, 0.0
      %v8244 = vsel %vm763, %v8178, 0.0
      %v8245 = vsel %vm764, %v8179, 0.0
      %v8246 = vsel %vm765, %v8180, 0.0
      %v8247 = vsel %vm766, %v8181, 0.0
      %v8248 = vsel %vm767, %v8182, 0.0
      %v8249 = vsel %vm768, %v8183, 0.0
      %v8250 = vsel %vm769, %v8225, 0.0
      %v8251 = vsel %vm762, %v8184, 0.0
      %v8252 = vsel %vm763, %v8185, 0.0
      %v8253 = vsel %vm764, %v8186, 0.0
      %v8254 = vsel %vm765, %v8187, 0.0
      %v8255 = vsel %vm766, %v8188, 0.0
      %v8256 = vsel %vm767, %v8189, 0.0
      %v8257 = vsel %vm768, %v8190, 0.0
      %v8258 = vsel %vm769, %v8226, 0.0
      %v8259 = vpack.c.bf16 %v7179, %v7171
      %v8260 = vpack.c.bf16 %v7180, %v7172
      %v8261 = vpack.c.bf16 %v7181, %v7173
      %v8262 = vpack.c.bf16 %v7182, %v7174
      %v8263 = vpack.c.bf16 %v7183, %v7175
      %v8264 = vpack.c.bf16 %v7184, %v7176
      %v8265 = vpack.c.bf16 %v7185, %v7177
      %v8266 = vpack.c.bf16 %v7186, %v7178
      %v8267 = vpack.c.bf16 %v7195, %v7187
      %v8268 = vpack.c.bf16 %v7196, %v7188
      %v8269 = vpack.c.bf16 %v7197, %v7189
      %v8270 = vpack.c.bf16 %v7198, %v7190
      %v8271 = vpack.c.bf16 %v7199, %v7191
      %v8272 = vpack.c.bf16 %v7200, %v7192
      %v8273 = vpack.c.bf16 %v7201, %v7193
      %v8274 = vpack.c.bf16 %v7202, %v7194
      %v8275 = vpack.c.bf16 %v7328, %v7327
      %v8276 = vpack.c.bf16 %v7274, %v7267
      %v8277 = vpack.c.bf16 %v7275, %v7268
      %v8278 = vpack.c.bf16 %v7276, %v7269
      %v8279 = vpack.c.bf16 %v7277, %v7270
      %v8280 = vpack.c.bf16 %v7278, %v7271
      %v8281 = vpack.c.bf16 %v7279, %v7272
      %v8282 = vpack.c.bf16 %v7280, %v7273
      %v8283 = vpack.c.bf16 %v7330, %v7329
      %v8284 = vpack.c.bf16 %v7288, %v7281
      %v8285 = vpack.c.bf16 %v7289, %v7282
      %v8286 = vpack.c.bf16 %v7290, %v7283
      %v8287 = vpack.c.bf16 %v7291, %v7284
      %v8288 = vpack.c.bf16 %v7292, %v7285
      %v8289 = vpack.c.bf16 %v7293, %v7286
      %v8290 = vpack.c.bf16 %v7294, %v7287
      %v8291 = vpack.c.bf16 %v7467, %v7459
      %v8292 = vpack.c.bf16 %v7468, %v7460
      %v8293 = vpack.c.bf16 %v7469, %v7461
      %v8294 = vpack.c.bf16 %v7470, %v7462
      %v8295 = vpack.c.bf16 %v7471, %v7463
      %v8296 = vpack.c.bf16 %v7472, %v7464
      %v8297 = vpack.c.bf16 %v7473, %v7465
      %v8298 = vpack.c.bf16 %v7474, %v7466
      %v8299 = vpack.c.bf16 %v7483, %v7475
      %v8300 = vpack.c.bf16 %v7484, %v7476
      %v8301 = vpack.c.bf16 %v7485, %v7477
      %v8302 = vpack.c.bf16 %v7486, %v7478
      %v8303 = vpack.c.bf16 %v7487, %v7479
      %v8304 = vpack.c.bf16 %v7488, %v7480
      %v8305 = vpack.c.bf16 %v7489, %v7481
      %v8306 = vpack.c.bf16 %v7490, %v7482
      %v8307 = vpack.c.bf16 %v7627, %v7619
      %v8308 = vpack.c.bf16 %v7628, %v7620
      %v8309 = vpack.c.bf16 %v7629, %v7621
      %v8310 = vpack.c.bf16 %v7630, %v7622
      %v8311 = vpack.c.bf16 %v7631, %v7623
      %v8312 = vpack.c.bf16 %v7632, %v7624
      %v8313 = vpack.c.bf16 %v7633, %v7625
      %v8314 = vpack.c.bf16 %v7634, %v7626
      %v8315 = vpack.c.bf16 %v7643, %v7635
      %v8316 = vpack.c.bf16 %v7644, %v7636
      %v8317 = vpack.c.bf16 %v7645, %v7637
      %v8318 = vpack.c.bf16 %v7646, %v7638
      %v8319 = vpack.c.bf16 %v7647, %v7639
      %v8320 = vpack.c.bf16 %v7648, %v7640
      %v8321 = vpack.c.bf16 %v7649, %v7641
      %v8322 = vpack.c.bf16 %v7650, %v7642
      %v8323 = vpack.c.bf16 %v6834, %v6830
      %v8324 = vpack.c.bf16 %v6836, %v6832
      %v8325 = vpack.c.bf16 %v6887, %v6883
      %v8326 = vpack.c.bf16 %v6889, %v6885
      %v8327 = vpack.c.bf16 %v6940, %v6936
      %v8328 = vpack.c.bf16 %v6942, %v6938
      %v8329 = vpack.c.bf16 %v6993, %v6989
      %v8330 = vpack.c.bf16 %v6995, %v6991
      %v8331 = vpack.c.bf16 %v6844, %v6840
      %v8332 = vpack.c.bf16 %v6846, %v6842
      %v8333 = vpack.c.bf16 %v6897, %v6893
      %v8334 = vpack.c.bf16 %v6899, %v6895
      %v8335 = vpack.c.bf16 %v6950, %v6946
      %v8336 = vpack.c.bf16 %v6952, %v6948
      %v8337 = vpack.c.bf16 %v7003, %v6999
      %v8338 = vpack.c.bf16 %v7005, %v7001
      %v8339 = vpack.c.bf16 %v7787, %v7779
      %v8340 = vpack.c.bf16 %v7788, %v7780
      %v8341 = vpack.c.bf16 %v7789, %v7781
      %v8342 = vpack.c.bf16 %v7790, %v7782
      %v8343 = vpack.c.bf16 %v7791, %v7783
      %v8344 = vpack.c.bf16 %v7792, %v7784
      %v8345 = vpack.c.bf16 %v7793, %v7785
      %v8346 = vpack.c.bf16 %v7794, %v7786
      %v8347 = vpack.c.bf16 %v7803, %v7795
      %v8348 = vpack.c.bf16 %v7804, %v7796
      %v8349 = vpack.c.bf16 %v7805, %v7797
      %v8350 = vpack.c.bf16 %v7806, %v7798
      %v8351 = vpack.c.bf16 %v7807, %v7799
      %v8352 = vpack.c.bf16 %v7808, %v7800
      %v8353 = vpack.c.bf16 %v7809, %v7801
      %v8354 = vpack.c.bf16 %v7810, %v7802
      %v8355 = vpack.c.bf16 %v7947, %v7939
      %v8356 = vpack.c.bf16 %v7948, %v7940
      %v8357 = vpack.c.bf16 %v7949, %v7941
      %v8358 = vpack.c.bf16 %v7950, %v7942
      %v8359 = vpack.c.bf16 %v7951, %v7943
      %v8360 = vpack.c.bf16 %v7952, %v7944
      %v8361 = vpack.c.bf16 %v7953, %v7945
      %v8362 = vpack.c.bf16 %v7954, %v7946
      %v8363 = vpack.c.bf16 %v7963, %v7955
      %v8364 = vpack.c.bf16 %v7964, %v7956
      %v8365 = vpack.c.bf16 %v7965, %v7957
      %v8366 = vpack.c.bf16 %v7966, %v7958
      %v8367 = vpack.c.bf16 %v7967, %v7959
      %v8368 = vpack.c.bf16 %v7968, %v7960
      %v8369 = vpack.c.bf16 %v7969, %v7961
      %v8370 = vpack.c.bf16 %v7970, %v7962
      %v8371 = vpack.c.bf16 %v8042, %v8035
      %v8372 = vpack.c.bf16 %v8043, %v8036
      %v8373 = vpack.c.bf16 %v8044, %v8037
      %v8374 = vpack.c.bf16 %v8045, %v8038
      %v8375 = vpack.c.bf16 %v8046, %v8039
      %v8376 = vpack.c.bf16 %v8047, %v8040
      %v8377 = vpack.c.bf16 %v8048, %v8041
      %v8378 = vpack.c.bf16 %v8096, %v8095
      %v8379 = vpack.c.bf16 %v8056, %v8049
      %v8380 = vpack.c.bf16 %v8057, %v8050
      %v8381 = vpack.c.bf16 %v8058, %v8051
      %v8382 = vpack.c.bf16 %v8059, %v8052
      %v8383 = vpack.c.bf16 %v8060, %v8053
      %v8384 = vpack.c.bf16 %v8061, %v8054
      %v8385 = vpack.c.bf16 %v8062, %v8055
      %v8386 = vpack.c.bf16 %v8098, %v8097
      %v8387 = vpack.c.bf16 %v8235, %v8227
      %v8388 = vpack.c.bf16 %v8236, %v8228
      %v8389 = vpack.c.bf16 %v8237, %v8229
      %v8390 = vpack.c.bf16 %v8238, %v8230
      %v8391 = vpack.c.bf16 %v8239, %v8231
      %v8392 = vpack.c.bf16 %v8240, %v8232
      %v8393 = vpack.c.bf16 %v8241, %v8233
      %v8394 = vpack.c.bf16 %v8242, %v8234
      %v8395 = vpack.c.bf16 %v8251, %v8243
      %v8396 = vpack.c.bf16 %v8252, %v8244
      %v8397 = vpack.c.bf16 %v8253, %v8245
      %v8398 = vpack.c.bf16 %v8254, %v8246
      %v8399 = vpack.c.bf16 %v8255, %v8247
      %v8400 = vpack.c.bf16 %v8256, %v8248
      %v8401 = vpack.c.bf16 %v8257, %v8249
      %v8402 = vpack.c.bf16 %v8258, %v8250
      %v8403 = vld [vmem:[%s11] sm:$0xff]
      %v8404 = vld [vmem:[%s11 + $0x8] sm:$0xff]
      %v8405 = vld [vmem:[%s11 + $0x10] sm:$0xf]
      %v8406 = vld [vmem:[%s11 + $0x14] sm:$0xff]
      %v8407 = vld [vmem:[%s11 + $0x1c] sm:$0xff]
      %v8408 = vld [vmem:[%s11 + $0x24] sm:$0xf]
      %v8409 = vld [vmem:[%s11 + $0x28] sm:$0xff]
      %v8410 = vld [vmem:[%s11 + $0x30] sm:$0xff]
      %v8411 = vld [vmem:[%s11 + $0x38] sm:$0xf]
      %v8412 = vld [vmem:[%s11 + $0x3c] sm:$0xff]
      %v8413 = vld [vmem:[%s11 + $0x44] sm:$0xff]
      %v8414 = vld [vmem:[%s11 + $0x4c] sm:$0xf]
      %8416 = vset.pattern.permute.xlu0 0
      %8417 = vperm.xlu0 %8416, %v7007
      %v8418 = vpop.permute.xlu0 %8417
      %8421 = vset.pattern.permute.xlu0 0
      %8422 = vperm.xlu0 %8421, %v7008
      %v8423 = vpop.permute.xlu0 %8422
      %8426 = vset.pattern.permute.xlu0 0
      %8427 = vperm.xlu0 %8426, %v7009
      %v8428 = vpop.permute.xlu0 %8427
      %8431 = vset.pattern.permute.xlu0 0
      %8432 = vperm.xlu0 %8431, %v7010
      %v8433 = vpop.permute.xlu0 %8432
      %v8447 = vunpack.c.l.b16 %v8403
      %v8448 = vunpack.c.h.b16 %v8403
      %v8449 = vunpack.c.l.b16 %v8404
      %v8450 = vunpack.c.h.b16 %v8404
      %v8451 = vunpack.c.l.b16 %v8405
      %v8452 = vunpack.c.l.b16 %v8406
      %v8453 = vunpack.c.h.b16 %v8406
      %v8454 = vunpack.c.l.b16 %v8407
      %v8455 = vunpack.c.h.b16 %v8407
      %v8456 = vunpack.c.l.b16 %v8408
      %v8457 = vunpack.c.l.b16 %v8409
      %v8458 = vunpack.c.h.b16 %v8409
      %v8459 = vunpack.c.l.b16 %v8410
      %v8460 = vunpack.c.h.b16 %v8410
      %v8461 = vunpack.c.l.b16 %v8411
      %v8462 = vunpack.c.l.b16 %v8412
      %v8463 = vunpack.c.h.b16 %v8412
      %v8464 = vunpack.c.l.b16 %v8413
      %v8465 = vunpack.c.h.b16 %v8413
      %v8466 = vunpack.c.l.b16 %v8414
      %v8467 = vpack.c.b16 %v8452, %v8447
      %v8468 = vpack.c.b16 %v8453, %v8448
      %v8469 = vpack.c.b16 %v8454, %v8449
      %v8470 = vpack.c.b16 %v8455, %v8450
      %v8471 = vpack.c.b16 %v8456, %v8451
      %v8472 = vpack.c.b16 %v8462, %v8457
      %v8473 = vpack.c.b16 %v8463, %v8458
      %v8474 = vpack.c.b16 %v8464, %v8459
      %v8475 = vpack.c.b16 %v8465, %v8460
      %v8476 = vpack.c.b16 %v8466, %v8461
      %v8486 = vsel %vm5356, %v8471, 0
      %v8489 = vsel %vm5356, %v8476, 0
      %8491 = vmatprep.subr.bf16.mxu0 %v2582
      %8492 = vmatpush1.bf16.msra.mxu0 %v2581
      %8493 = vmatprep.subr.bf16.mxu0 %v2574
      %8494 = vmatpush1.bf16.msra.mxu0 %v2573
      %8495 = vmatprep.subr.bf16.mxu0 %v8284
      %8496 = vmatpush1.bf16.msra.mxu0 %v8283
      %8497 = vmatprep.subr.bf16.mxu0 %v8276
      %8498 = vmatpush1.bf16.msra.mxu0 %v8275
      %8499 = vmatprep.subr.bf16.mxu0 %v2566
      %8500 = vmatpush1.bf16.msra.mxu0 %v2565
      %8501 = vmatprep.subr.bf16.mxu0 %v2558
      %8502 = vmatpush1.bf16.msra.mxu0 %v2557
      %8503 = vmatprep.subr.bf16.mxu0 %v8268
      %8504 = vmatpush1.bf16.msra.mxu0 %v8267
      %8505 = vmatprep.subr.bf16.mxu0 %v8260
      %8506 = vmatpush1.bf16.msra.mxu0 %v8259
      %8507 = vmatprep.subr.bf16.mxu0 %v2614
      %8508 = vmatpush2.bf16.msra.mxu0 %v2613
      %8509 = vmatprep.subr.bf16.mxu0 %v2606
      %8510 = vmatpush2.bf16.msra.mxu0 %v2605
      %8511 = vmatprep.subr.bf16.mxu0 %v8316
      %8512 = vmatpush2.bf16.msra.mxu0 %v8315
      %8513 = vmatprep.subr.bf16.mxu0 %v8308
      %8514 = vmatpush2.bf16.msra.mxu0 %v8307
      %8515 = vmatprep.subr.bf16.mxu0 %v2598
      %8516 = vmatpush2.bf16.msra.mxu0 %v2597
      %8517 = vmatprep.subr.bf16.mxu0 %v2590
      %8518 = vmatpush2.bf16.msra.mxu0 %v2589
      %8519 = vmatprep.subr.bf16.mxu0 %v8300
      %8520 = vmatpush2.bf16.msra.mxu0 %v8299
      %8521 = vmatprep.subr.bf16.mxu0 %v8292
      %8522 = vmatpush2.bf16.msra.mxu0 %v8291
      %8523 = vmatprep.mubr.bf16.mxu0 %v8468
      %8524 = vmatmul.mubr.bf16.gmra.mxu0 %v8467
      %v8525 = vpop.f32.mrf.mxu0
      %v8526 = vadd.f32 %v8418, %v8525
      %v8527 = vpop.f32.mrf.mxu0
      %v8528 = vadd.f32 %v8418, %v8527
      %v8529 = vpop.f32.mrf.mxu0
      %v8530 = vadd.f32 %v8423, %v8529
      %v8531 = vpop.f32.mrf.mxu0
      %v8532 = vadd.f32 %v8423, %v8531
      %8533 = vmatprep.mubr.bf16.mxu0 %v8473
      %8534 = vmatmul.mubr.bf16.gmra.mxu0 %v8472
      %v8535 = vpop.f32.mrf.mxu0
      %v8536 = vadd.f32 %v8428, %v8535
      %v8537 = vpop.f32.mrf.mxu0
      %v8538 = vadd.f32 %v8428, %v8537
      %v8539 = vpop.f32.mrf.mxu0
      %v8540 = vadd.f32 %v8433, %v8539
      %v8541 = vpop.f32.mrf.mxu0
      %v8542 = vadd.f32 %v8433, %v8541
      %8543 = vdwg.mxu0
      %8544 = vmatprep.subr.bf16.mxu0 %v2646
      %8545 = vmatpush1.bf16.msra.mxu0 %v2645
      %8546 = vmatprep.subr.bf16.mxu0 %v2638
      %8547 = vmatpush1.bf16.msra.mxu0 %v2637
      %8548 = vmatprep.subr.bf16.mxu0 %v8348
      %8549 = vmatpush1.bf16.msra.mxu0 %v8347
      %8550 = vmatprep.subr.bf16.mxu0 %v8340
      %8551 = vmatpush1.bf16.msra.mxu0 %v8339
      %8552 = vmatprep.subr.bf16.mxu0 %v2630
      %8553 = vmatpush1.bf16.msra.mxu0 %v2629
      %8554 = vmatprep.subr.bf16.mxu0 %v2622
      %8555 = vmatpush1.bf16.msra.mxu0 %v2621
      %8556 = vmatprep.subr.bf16.mxu0 %v8332
      %8557 = vmatpush1.bf16.msra.mxu0 %v8331
      %8558 = vmatprep.subr.bf16.mxu0 %v8324
      %8559 = vmatpush1.bf16.msra.mxu0 %v8323
      %8560 = vmatprep.subr.bf16.mxu0 %v2678
      %8561 = vmatpush2.bf16.msra.mxu0 %v2677
      %8562 = vmatprep.subr.bf16.mxu0 %v2670
      %8563 = vmatpush2.bf16.msra.mxu0 %v2669
      %8564 = vmatprep.subr.bf16.mxu0 %v8380
      %8565 = vmatpush2.bf16.msra.mxu0 %v8379
      %8566 = vmatprep.subr.bf16.mxu0 %v8372
      %8567 = vmatpush2.bf16.msra.mxu0 %v8371
      %8568 = vmatprep.subr.bf16.mxu0 %v2662
      %8569 = vmatpush2.bf16.msra.mxu0 %v2661
      %8570 = vmatprep.subr.bf16.mxu0 %v2654
      %8571 = vmatpush2.bf16.msra.mxu0 %v2653
      %8572 = vmatprep.subr.bf16.mxu0 %v8364
      %8573 = vmatpush2.bf16.msra.mxu0 %v8363
      %8574 = vmatprep.subr.bf16.mxu0 %v8356
      %8575 = vmatpush2.bf16.msra.mxu0 %v8355
      %8576 = vmatprep.mubr.bf16.mxu0 %v8470
      %8577 = vmatmul.mubr.bf16.gmra.mxu0 %v8469
      %v8578 = vpop.f32.mrf.mxu0
      %v8579 = vadd.f32 %v8526, %v8578
      %v8580 = vpop.f32.mrf.mxu0
      %v8581 = vadd.f32 %v8528, %v8580
      %v8582 = vpop.f32.mrf.mxu0
      %v8583 = vadd.f32 %v8530, %v8582
      %v8584 = vpop.f32.mrf.mxu0
      %v8585 = vadd.f32 %v8532, %v8584
      %8586 = vmatprep.mubr.bf16.mxu0 %v8475
      %8587 = vmatmul.mubr.bf16.gmra.mxu0 %v8474
      %v8588 = vpop.f32.mrf.mxu0
      %v8589 = vadd.f32 %v8536, %v8588
      %v8590 = vpop.f32.mrf.mxu0
      %v8591 = vadd.f32 %v8538, %v8590
      %v8592 = vpop.f32.mrf.mxu0
      %v8593 = vadd.f32 %v8540, %v8592
      %v8594 = vpop.f32.mrf.mxu0
      %v8595 = vadd.f32 %v8542, %v8594
      %8596 = vdwg.mxu0
      %8597 = vmatprep.subr.bf16.mxu0 0
      %8598 = vmatpush1.bf16.msra.mxu0 0
      %8599 = vmatprep.subr.bf16.mxu0 0
      %8600 = vmatpush1.bf16.msra.mxu0 0
      %8601 = vmatprep.subr.bf16.mxu0 0
      %8602 = vmatpush1.bf16.msra.mxu0 0
      %8603 = vmatprep.subr.bf16.mxu0 0
      %8604 = vmatpush1.bf16.msra.mxu0 0
      %8605 = vmatprep.subr.bf16.mxu0 %v2694
      %8606 = vmatpush1.bf16.msra.mxu0 %v2693
      %8607 = vmatprep.subr.bf16.mxu0 %v2686
      %8608 = vmatpush1.bf16.msra.mxu0 %v2685
      %8609 = vmatprep.subr.bf16.mxu0 %v8396
      %8610 = vmatpush1.bf16.msra.mxu0 %v8395
      %8611 = vmatprep.subr.bf16.mxu0 %v8388
      %8612 = vmatpush1.bf16.msra.mxu0 %v8387
      %8613 = vmatprep.subr.bf16.mxu0 0
      %8614 = vmatpush2.bf16.msra.mxu0 0
      %8615 = vmatprep.subr.bf16.mxu0 0
      %8616 = vmatpush2.bf16.msra.mxu0 0
      %8617 = vmatprep.subr.bf16.mxu0 0
      %8618 = vmatpush2.bf16.msra.mxu0 0
      %8619 = vmatprep.subr.bf16.mxu0 0
      %8620 = vmatpush2.bf16.msra.mxu0 0
      %8621 = vmatprep.subr.bf16.mxu0 0
      %8622 = vmatpush2.bf16.msra.mxu0 0
      %8623 = vmatprep.subr.bf16.mxu0 0
      %8624 = vmatpush2.bf16.msra.mxu0 0
      %8625 = vmatprep.subr.bf16.mxu0 0
      %8626 = vmatpush2.bf16.msra.mxu0 0
      %8627 = vmatprep.subr.bf16.mxu0 0
      %8628 = vmatpush2.bf16.msra.mxu0 0
      %8629 = vmatprep.mubr.bf16.mxu0 0
      %8630 = vmatmul.mubr.bf16.gmra.mxu0 %v8486
      %v8631 = vpop.f32.mrf.mxu0
      %v8632 = vadd.f32 %v8579, %v8631
      %v8633 = vpop.f32.mrf.mxu0
      %v8634 = vadd.f32 %v8581, %v8633
      %v8635 = vpop.f32.mrf.mxu0
      %v8636 = vadd.f32 %v8583, %v8635
      %v8637 = vpop.f32.mrf.mxu0
      %v8638 = vadd.f32 %v8585, %v8637
      %8639 = vmatprep.mubr.bf16.mxu0 0
      %8640 = vmatmul.mubr.bf16.gmra.mxu0 %v8489
      %v8641 = vpop.f32.mrf.mxu0
      %v8642 = vadd.f32 %v8589, %v8641
      %v8643 = vpop.f32.mrf.mxu0
      %v8644 = vadd.f32 %v8591, %v8643
      %v8645 = vpop.f32.mrf.mxu0
      %v8646 = vadd.f32 %v8593, %v8645
      %v8647 = vpop.f32.mrf.mxu0
      %v8648 = vadd.f32 %v8595, %v8647
      %8649 = vdwg.mxu0
      %8650 = vmatprep.subr.bf16.mxu0 %v2584
      %8651 = vmatpush1.bf16.msra.mxu0 %v2583
      %8652 = vmatprep.subr.bf16.mxu0 %v2576
      %8653 = vmatpush1.bf16.msra.mxu0 %v2575
      %8654 = vmatprep.subr.bf16.mxu0 %v8286
      %8655 = vmatpush1.bf16.msra.mxu0 %v8285
      %8656 = vmatprep.subr.bf16.mxu0 %v8278
      %8657 = vmatpush1.bf16.msra.mxu0 %v8277
      %8658 = vmatprep.subr.bf16.mxu0 %v2568
      %8659 = vmatpush1.bf16.msra.mxu0 %v2567
      %8660 = vmatprep.subr.bf16.mxu0 %v2560
      %8661 = vmatpush1.bf16.msra.mxu0 %v2559
      %8662 = vmatprep.subr.bf16.mxu0 %v8270
      %8663 = vmatpush1.bf16.msra.mxu0 %v8269
      %8664 = vmatprep.subr.bf16.mxu0 %v8262
      %8665 = vmatpush1.bf16.msra.mxu0 %v8261
      %8666 = vmatprep.subr.bf16.mxu0 %v2616
      %8667 = vmatpush2.bf16.msra.mxu0 %v2615
      %8668 = vmatprep.subr.bf16.mxu0 %v2608
      %8669 = vmatpush2.bf16.msra.mxu0 %v2607
      %8670 = vmatprep.subr.bf16.mxu0 %v8318
      %8671 = vmatpush2.bf16.msra.mxu0 %v8317
      %8672 = vmatprep.subr.bf16.mxu0 %v8310
      %8673 = vmatpush2.bf16.msra.mxu0 %v8309
      %8674 = vmatprep.subr.bf16.mxu0 %v2600
      %8675 = vmatpush2.bf16.msra.mxu0 %v2599
      %8676 = vmatprep.subr.bf16.mxu0 %v2592
      %8677 = vmatpush2.bf16.msra.mxu0 %v2591
      %8678 = vmatprep.subr.bf16.mxu0 %v8302
      %8679 = vmatpush2.bf16.msra.mxu0 %v8301
      %8680 = vmatprep.subr.bf16.mxu0 %v8294
      %8681 = vmatpush2.bf16.msra.mxu0 %v8293
      %8682 = vmatprep.mubr.bf16.mxu0 %v8468
      %8683 = vmatmul.mubr.bf16.gmra.mxu0 %v8467
      %v8684 = vpop.f32.mrf.mxu0
      %v8685 = vadd.f32 %v8418, %v8684
      %v8686 = vpop.f32.mrf.mxu0
      %v8687 = vadd.f32 %v8418, %v8686
      %v8688 = vpop.f32.mrf.mxu0
      %v8689 = vadd.f32 %v8423, %v8688
      %v8690 = vpop.f32.mrf.mxu0
      %v8691 = vadd.f32 %v8423, %v8690
      %8692 = vmatprep.mubr.bf16.mxu0 %v8473
      %8693 = vmatmul.mubr.bf16.gmra.mxu0 %v8472
      %v8694 = vpop.f32.mrf.mxu0
      %v8695 = vadd.f32 %v8428, %v8694
      %v8696 = vpop.f32.mrf.mxu0
      %v8697 = vadd.f32 %v8428, %v8696
      %v8698 = vpop.f32.mrf.mxu0
      %v8699 = vadd.f32 %v8433, %v8698
      %v8700 = vpop.f32.mrf.mxu0
      %v8701 = vadd.f32 %v8433, %v8700
      %8702 = vdwg.mxu0
      %8703 = vmatprep.subr.bf16.mxu0 %v2648
      %8704 = vmatpush1.bf16.msra.mxu0 %v2647
      %8705 = vmatprep.subr.bf16.mxu0 %v2640
      %8706 = vmatpush1.bf16.msra.mxu0 %v2639
      %8707 = vmatprep.subr.bf16.mxu0 %v8350
      %8708 = vmatpush1.bf16.msra.mxu0 %v8349
      %8709 = vmatprep.subr.bf16.mxu0 %v8342
      %8710 = vmatpush1.bf16.msra.mxu0 %v8341
      %8711 = vmatprep.subr.bf16.mxu0 %v2632
      %8712 = vmatpush1.bf16.msra.mxu0 %v2631
      %8713 = vmatprep.subr.bf16.mxu0 %v2624
      %8714 = vmatpush1.bf16.msra.mxu0 %v2623
      %8715 = vmatprep.subr.bf16.mxu0 %v8334
      %8716 = vmatpush1.bf16.msra.mxu0 %v8333
      %8717 = vmatprep.subr.bf16.mxu0 %v8326
      %8718 = vmatpush1.bf16.msra.mxu0 %v8325
      %8719 = vmatprep.subr.bf16.mxu0 %v2680
      %8720 = vmatpush2.bf16.msra.mxu0 %v2679
      %8721 = vmatprep.subr.bf16.mxu0 %v2672
      %8722 = vmatpush2.bf16.msra.mxu0 %v2671
      %8723 = vmatprep.subr.bf16.mxu0 %v8382
      %8724 = vmatpush2.bf16.msra.mxu0 %v8381
      %8725 = vmatprep.subr.bf16.mxu0 %v8374
      %8726 = vmatpush2.bf16.msra.mxu0 %v8373
      %8727 = vmatprep.subr.bf16.mxu0 %v2664
      %8728 = vmatpush2.bf16.msra.mxu0 %v2663
      %8729 = vmatprep.subr.bf16.mxu0 %v2656
      %8730 = vmatpush2.bf16.msra.mxu0 %v2655
      %8731 = vmatprep.subr.bf16.mxu0 %v8366
      %8732 = vmatpush2.bf16.msra.mxu0 %v8365
      %8733 = vmatprep.subr.bf16.mxu0 %v8358
      %8734 = vmatpush2.bf16.msra.mxu0 %v8357
      %8735 = vmatprep.mubr.bf16.mxu0 %v8470
      %8736 = vmatmul.mubr.bf16.gmra.mxu0 %v8469
      %v8737 = vpop.f32.mrf.mxu0
      %v8738 = vadd.f32 %v8685, %v8737
      %v8739 = vpop.f32.mrf.mxu0
      %v8740 = vadd.f32 %v8687, %v8739
      %v8741 = vpop.f32.mrf.mxu0
      %v8742 = vadd.f32 %v8689, %v8741
      %v8743 = vpop.f32.mrf.mxu0
      %v8744 = vadd.f32 %v8691, %v8743
      %8745 = vmatprep.mubr.bf16.mxu0 %v8475
      %8746 = vmatmul.mubr.bf16.gmra.mxu0 %v8474
      %v8747 = vpop.f32.mrf.mxu0
      %v8748 = vadd.f32 %v8695, %v8747
      %v8749 = vpop.f32.mrf.mxu0
      %v8750 = vadd.f32 %v8697, %v8749
      %v8751 = vpop.f32.mrf.mxu0
      %v8752 = vadd.f32 %v8699, %v8751
      %v8753 = vpop.f32.mrf.mxu0
      %v8754 = vadd.f32 %v8701, %v8753
      %8755 = vdwg.mxu0
      %8756 = vmatprep.subr.bf16.mxu0 0
      %8757 = vmatpush1.bf16.msra.mxu0 0
      %8758 = vmatprep.subr.bf16.mxu0 0
      %8759 = vmatpush1.bf16.msra.mxu0 0
      %8760 = vmatprep.subr.bf16.mxu0 0
      %8761 = vmatpush1.bf16.msra.mxu0 0
      %8762 = vmatprep.subr.bf16.mxu0 0
      %8763 = vmatpush1.bf16.msra.mxu0 0
      %8764 = vmatprep.subr.bf16.mxu0 %v2696
      %8765 = vmatpush1.bf16.msra.mxu0 %v2695
      %8766 = vmatprep.subr.bf16.mxu0 %v2688
      %8767 = vmatpush1.bf16.msra.mxu0 %v2687
      %8768 = vmatprep.subr.bf16.mxu0 %v8398
      %8769 = vmatpush1.bf16.msra.mxu0 %v8397
      %8770 = vmatprep.subr.bf16.mxu0 %v8390
      %8771 = vmatpush1.bf16.msra.mxu0 %v8389
      %8772 = vmatprep.subr.bf16.mxu0 0
      %8773 = vmatpush2.bf16.msra.mxu0 0
      %8774 = vmatprep.subr.bf16.mxu0 0
      %8775 = vmatpush2.bf16.msra.mxu0 0
      %8776 = vmatprep.subr.bf16.mxu0 0
      %8777 = vmatpush2.bf16.msra.mxu0 0
      %8778 = vmatprep.subr.bf16.mxu0 0
      %8779 = vmatpush2.bf16.msra.mxu0 0
      %8780 = vmatprep.subr.bf16.mxu0 0
      %8781 = vmatpush2.bf16.msra.mxu0 0
      %8782 = vmatprep.subr.bf16.mxu0 0
      %8783 = vmatpush2.bf16.msra.mxu0 0
      %8784 = vmatprep.subr.bf16.mxu0 0
      %8785 = vmatpush2.bf16.msra.mxu0 0
      %8786 = vmatprep.subr.bf16.mxu0 0
      %8787 = vmatpush2.bf16.msra.mxu0 0
      %8788 = vmatprep.mubr.bf16.mxu0 0
      %8789 = vmatmul.mubr.bf16.gmra.mxu0 %v8486
      %v8790 = vpop.f32.mrf.mxu0
      %v8791 = vadd.f32 %v8738, %v8790
      %v8792 = vpop.f32.mrf.mxu0
      %v8793 = vadd.f32 %v8740, %v8792
      %v8794 = vpop.f32.mrf.mxu0
      %v8795 = vadd.f32 %v8742, %v8794
      %v8796 = vpop.f32.mrf.mxu0
      %v8797 = vadd.f32 %v8744, %v8796
      %8798 = vmatprep.mubr.bf16.mxu0 0
      %8799 = vmatmul.mubr.bf16.gmra.mxu0 %v8489
      %v8800 = vpop.f32.mrf.mxu0
      %v8801 = vadd.f32 %v8748, %v8800
      %v8802 = vpop.f32.mrf.mxu0
      %v8803 = vadd.f32 %v8750, %v8802
      %v8804 = vpop.f32.mrf.mxu0
      %v8805 = vadd.f32 %v8752, %v8804
      %v8806 = vpop.f32.mrf.mxu0
      %v8807 = vadd.f32 %v8754, %v8806
      %8808 = vdwg.mxu0
      %8809 = vmatprep.subr.bf16.mxu0 %v2586
      %8810 = vmatpush1.bf16.msra.mxu0 %v2585
      %8811 = vmatprep.subr.bf16.mxu0 %v2578
      %8812 = vmatpush1.bf16.msra.mxu0 %v2577
      %8813 = vmatprep.subr.bf16.mxu0 %v8288
      %8814 = vmatpush1.bf16.msra.mxu0 %v8287
      %8815 = vmatprep.subr.bf16.mxu0 %v8280
      %8816 = vmatpush1.bf16.msra.mxu0 %v8279
      %8817 = vmatprep.subr.bf16.mxu0 %v2570
      %8818 = vmatpush1.bf16.msra.mxu0 %v2569
      %8819 = vmatprep.subr.bf16.mxu0 %v2562
      %8820 = vmatpush1.bf16.msra.mxu0 %v2561
      %8821 = vmatprep.subr.bf16.mxu0 %v8272
      %8822 = vmatpush1.bf16.msra.mxu0 %v8271
      %8823 = vmatprep.subr.bf16.mxu0 %v8264
      %8824 = vmatpush1.bf16.msra.mxu0 %v8263
      %8825 = vmatprep.subr.bf16.mxu0 %v2618
      %8826 = vmatpush2.bf16.msra.mxu0 %v2617
      %8827 = vmatprep.subr.bf16.mxu0 %v2610
      %8828 = vmatpush2.bf16.msra.mxu0 %v2609
      %8829 = vmatprep.subr.bf16.mxu0 %v8320
      %8830 = vmatpush2.bf16.msra.mxu0 %v8319
      %8831 = vmatprep.subr.bf16.mxu0 %v8312
      %8832 = vmatpush2.bf16.msra.mxu0 %v8311
      %8833 = vmatprep.subr.bf16.mxu0 %v2602
      %8834 = vmatpush2.bf16.msra.mxu0 %v2601
      %8835 = vmatprep.subr.bf16.mxu0 %v2594
      %8836 = vmatpush2.bf16.msra.mxu0 %v2593
      %8837 = vmatprep.subr.bf16.mxu0 %v8304
      %8838 = vmatpush2.bf16.msra.mxu0 %v8303
      %8839 = vmatprep.subr.bf16.mxu0 %v8296
      %8840 = vmatpush2.bf16.msra.mxu0 %v8295
      %8841 = vmatprep.mubr.bf16.mxu0 %v8468
      %8842 = vmatmul.mubr.bf16.gmra.mxu0 %v8467
      %v8843 = vpop.f32.mrf.mxu0
      %v8844 = vadd.f32 %v8418, %v8843
      %v8845 = vpop.f32.mrf.mxu0
      %v8846 = vadd.f32 %v8418, %v8845
      %v8847 = vpop.f32.mrf.mxu0
      %v8848 = vadd.f32 %v8423, %v8847
      %v8849 = vpop.f32.mrf.mxu0
      %v8850 = vadd.f32 %v8423, %v8849
      %8851 = vmatprep.mubr.bf16.mxu0 %v8473
      %8852 = vmatmul.mubr.bf16.gmra.mxu0 %v8472
      %v8853 = vpop.f32.mrf.mxu0
      %v8854 = vadd.f32 %v8428, %v8853
      %v8855 = vpop.f32.mrf.mxu0
      %v8856 = vadd.f32 %v8428, %v8855
      %v8857 = vpop.f32.mrf.mxu0
      %v8858 = vadd.f32 %v8433, %v8857
      %v8859 = vpop.f32.mrf.mxu0
      %v8860 = vadd.f32 %v8433, %v8859
      %8861 = vdwg.mxu0
      %8862 = vmatprep.subr.bf16.mxu0 %v2650
      %8863 = vmatpush1.bf16.msra.mxu0 %v2649
      %8864 = vmatprep.subr.bf16.mxu0 %v2642
      %8865 = vmatpush1.bf16.msra.mxu0 %v2641
      %8866 = vmatprep.subr.bf16.mxu0 %v8352
      %8867 = vmatpush1.bf16.msra.mxu0 %v8351
      %8868 = vmatprep.subr.bf16.mxu0 %v8344
      %8869 = vmatpush1.bf16.msra.mxu0 %v8343
      %8870 = vmatprep.subr.bf16.mxu0 %v2634
      %8871 = vmatpush1.bf16.msra.mxu0 %v2633
      %8872 = vmatprep.subr.bf16.mxu0 %v2626
      %8873 = vmatpush1.bf16.msra.mxu0 %v2625
      %8874 = vmatprep.subr.bf16.mxu0 %v8336
      %8875 = vmatpush1.bf16.msra.mxu0 %v8335
      %8876 = vmatprep.subr.bf16.mxu0 %v8328
      %8877 = vmatpush1.bf16.msra.mxu0 %v8327
      %8878 = vmatprep.subr.bf16.mxu0 %v2682
      %8879 = vmatpush2.bf16.msra.mxu0 %v2681
      %8880 = vmatprep.subr.bf16.mxu0 %v2674
      %8881 = vmatpush2.bf16.msra.mxu0 %v2673
      %8882 = vmatprep.subr.bf16.mxu0 %v8384
      %8883 = vmatpush2.bf16.msra.mxu0 %v8383
      %8884 = vmatprep.subr.bf16.mxu0 %v8376
      %8885 = vmatpush2.bf16.msra.mxu0 %v8375
      %8886 = vmatprep.subr.bf16.mxu0 %v2666
      %8887 = vmatpush2.bf16.msra.mxu0 %v2665
      %8888 = vmatprep.subr.bf16.mxu0 %v2658
      %8889 = vmatpush2.bf16.msra.mxu0 %v2657
      %8890 = vmatprep.subr.bf16.mxu0 %v8368
      %8891 = vmatpush2.bf16.msra.mxu0 %v8367
      %8892 = vmatprep.subr.bf16.mxu0 %v8360
      %8893 = vmatpush2.bf16.msra.mxu0 %v8359
      %8894 = vmatprep.mubr.bf16.mxu0 %v8470
      %8895 = vmatmul.mubr.bf16.gmra.mxu0 %v8469
      %v8896 = vpop.f32.mrf.mxu0
      %v8897 = vadd.f32 %v8844, %v8896
      %v8898 = vpop.f32.mrf.mxu0
      %v8899 = vadd.f32 %v8846, %v8898
      %v8900 = vpop.f32.mrf.mxu0
      %v8901 = vadd.f32 %v8848, %v8900
      %v8902 = vpop.f32.mrf.mxu0
      %v8903 = vadd.f32 %v8850, %v8902
      %8904 = vmatprep.mubr.bf16.mxu0 %v8475
      %8905 = vmatmul.mubr.bf16.gmra.mxu0 %v8474
      %v8906 = vpop.f32.mrf.mxu0
      %v8907 = vadd.f32 %v8854, %v8906
      %v8908 = vpop.f32.mrf.mxu0
      %v8909 = vadd.f32 %v8856, %v8908
      %v8910 = vpop.f32.mrf.mxu0
      %v8911 = vadd.f32 %v8858, %v8910
      %v8912 = vpop.f32.mrf.mxu0
      %v8913 = vadd.f32 %v8860, %v8912
      %8914 = vdwg.mxu0
      %8915 = vmatprep.subr.bf16.mxu0 0
      %8916 = vmatpush1.bf16.msra.mxu0 0
      %8917 = vmatprep.subr.bf16.mxu0 0
      %8918 = vmatpush1.bf16.msra.mxu0 0
      %8919 = vmatprep.subr.bf16.mxu0 0
      %8920 = vmatpush1.bf16.msra.mxu0 0
      %8921 = vmatprep.subr.bf16.mxu0 0
      %8922 = vmatpush1.bf16.msra.mxu0 0
      %8923 = vmatprep.subr.bf16.mxu0 %v2698
      %8924 = vmatpush1.bf16.msra.mxu0 %v2697
      %8925 = vmatprep.subr.bf16.mxu0 %v2690
      %8926 = vmatpush1.bf16.msra.mxu0 %v2689
      %8927 = vmatprep.subr.bf16.mxu0 %v8400
      %8928 = vmatpush1.bf16.msra.mxu0 %v8399
      %8929 = vmatprep.subr.bf16.mxu0 %v8392
      %8930 = vmatpush1.bf16.msra.mxu0 %v8391
      %8931 = vmatprep.subr.bf16.mxu0 0
      %8932 = vmatpush2.bf16.msra.mxu0 0
      %8933 = vmatprep.subr.bf16.mxu0 0
      %8934 = vmatpush2.bf16.msra.mxu0 0
      %8935 = vmatprep.subr.bf16.mxu0 0
      %8936 = vmatpush2.bf16.msra.mxu0 0
      %8937 = vmatprep.subr.bf16.mxu0 0
      %8938 = vmatpush2.bf16.msra.mxu0 0
      %8939 = vmatprep.subr.bf16.mxu0 0
      %8940 = vmatpush2.bf16.msra.mxu0 0
      %8941 = vmatprep.subr.bf16.mxu0 0
      %8942 = vmatpush2.bf16.msra.mxu0 0
      %8943 = vmatprep.subr.bf16.mxu0 0
      %8944 = vmatpush2.bf16.msra.mxu0 0
      %8945 = vmatprep.subr.bf16.mxu0 0
      %8946 = vmatpush2.bf16.msra.mxu0 0
      %8947 = vmatprep.mubr.bf16.mxu0 0
      %8948 = vmatmul.mubr.bf16.gmra.mxu0 %v8486
      %v8949 = vpop.f32.mrf.mxu0
      %v8950 = vadd.f32 %v8897, %v8949
      %v8951 = vpop.f32.mrf.mxu0
      %v8952 = vadd.f32 %v8899, %v8951
      %v8953 = vpop.f32.mrf.mxu0
      %v8954 = vadd.f32 %v8901, %v8953
      %v8955 = vpop.f32.mrf.mxu0
      %v8956 = vadd.f32 %v8903, %v8955
      %8957 = vmatprep.mubr.bf16.mxu0 0
      %8958 = vmatmul.mubr.bf16.gmra.mxu0 %v8489
      %v8959 = vpop.f32.mrf.mxu0
      %v8960 = vadd.f32 %v8907, %v8959
      %v8961 = vpop.f32.mrf.mxu0
      %v8962 = vadd.f32 %v8909, %v8961
      %v8963 = vpop.f32.mrf.mxu0
      %v8964 = vadd.f32 %v8911, %v8963
      %v8965 = vpop.f32.mrf.mxu0
      %v8966 = vadd.f32 %v8913, %v8965
      %8967 = vdwg.mxu0
      %8968 = vmatprep.subr.bf16.mxu0 %v2588
      %8969 = vmatpush1.bf16.msra.mxu0 %v2587
      %8970 = vmatprep.subr.bf16.mxu0 %v2580
      %8971 = vmatpush1.bf16.msra.mxu0 %v2579
      %8972 = vmatprep.subr.bf16.mxu0 %v8290
      %8973 = vmatpush1.bf16.msra.mxu0 %v8289
      %8974 = vmatprep.subr.bf16.mxu0 %v8282
      %8975 = vmatpush1.bf16.msra.mxu0 %v8281
      %8976 = vmatprep.subr.bf16.mxu0 %v2572
      %8977 = vmatpush1.bf16.msra.mxu0 %v2571
      %8978 = vmatprep.subr.bf16.mxu0 %v2564
      %8979 = vmatpush1.bf16.msra.mxu0 %v2563
      %8980 = vmatprep.subr.bf16.mxu0 %v8274
      %8981 = vmatpush1.bf16.msra.mxu0 %v8273
      %8982 = vmatprep.subr.bf16.mxu0 %v8266
      %8983 = vmatpush1.bf16.msra.mxu0 %v8265
      %8984 = vmatprep.subr.bf16.mxu0 %v2620
      %8985 = vmatpush2.bf16.msra.mxu0 %v2619
      %8986 = vmatprep.subr.bf16.mxu0 %v2612
      %8987 = vmatpush2.bf16.msra.mxu0 %v2611
      %8988 = vmatprep.subr.bf16.mxu0 %v8322
      %8989 = vmatpush2.bf16.msra.mxu0 %v8321
      %8990 = vmatprep.subr.bf16.mxu0 %v8314
      %8991 = vmatpush2.bf16.msra.mxu0 %v8313
      %8992 = vmatprep.subr.bf16.mxu0 %v2604
      %8993 = vmatpush2.bf16.msra.mxu0 %v2603
      %8994 = vmatprep.subr.bf16.mxu0 %v2596
      %8995 = vmatpush2.bf16.msra.mxu0 %v2595
      %8996 = vmatprep.subr.bf16.mxu0 %v8306
      %8997 = vmatpush2.bf16.msra.mxu0 %v8305
      %8998 = vmatprep.subr.bf16.mxu0 %v8298
      %8999 = vmatpush2.bf16.msra.mxu0 %v8297
      %9000 = vmatprep.mubr.bf16.mxu0 %v8468
      %9001 = vmatmul.mubr.bf16.gmra.mxu0 %v8467
      %v9002 = vpop.f32.mrf.mxu0
      %v9003 = vadd.f32 %v8418, %v9002
      %v9004 = vpop.f32.mrf.mxu0
      %v9005 = vadd.f32 %v8418, %v9004
      %v9006 = vpop.f32.mrf.mxu0
      %v9007 = vadd.f32 %v8423, %v9006
      %v9008 = vpop.f32.mrf.mxu0
      %v9009 = vadd.f32 %v8423, %v9008
      %9010 = vmatprep.mubr.bf16.mxu0 %v8473
      %9011 = vmatmul.mubr.bf16.gmra.mxu0 %v8472
      %v9012 = vpop.f32.mrf.mxu0
      %v9013 = vadd.f32 %v8428, %v9012
      %v9014 = vpop.f32.mrf.mxu0
      %v9015 = vadd.f32 %v8428, %v9014
      %v9016 = vpop.f32.mrf.mxu0
      %v9017 = vadd.f32 %v8433, %v9016
      %v9018 = vpop.f32.mrf.mxu0
      %v9019 = vadd.f32 %v8433, %v9018
      %9020 = vdwg.mxu0
      %9021 = vmatprep.subr.bf16.mxu0 %v2652
      %9022 = vmatpush1.bf16.msra.mxu0 %v2651
      %9023 = vmatprep.subr.bf16.mxu0 %v2644
      %9024 = vmatpush1.bf16.msra.mxu0 %v2643
      %9025 = vmatprep.subr.bf16.mxu0 %v8354
      %9026 = vmatpush1.bf16.msra.mxu0 %v8353
      %9027 = vmatprep.subr.bf16.mxu0 %v8346
      %9028 = vmatpush1.bf16.msra.mxu0 %v8345
      %9029 = vmatprep.subr.bf16.mxu0 %v2636
      %9030 = vmatpush1.bf16.msra.mxu0 %v2635
      %9031 = vmatprep.subr.bf16.mxu0 %v2628
      %9032 = vmatpush1.bf16.msra.mxu0 %v2627
      %9033 = vmatprep.subr.bf16.mxu0 %v8338
      %9034 = vmatpush1.bf16.msra.mxu0 %v8337
      %9035 = vmatprep.subr.bf16.mxu0 %v8330
      %9036 = vmatpush1.bf16.msra.mxu0 %v8329
      %9037 = vmatprep.subr.bf16.mxu0 %v2684
      %9038 = vmatpush2.bf16.msra.mxu0 %v2683
      %9039 = vmatprep.subr.bf16.mxu0 %v2676
      %9040 = vmatpush2.bf16.msra.mxu0 %v2675
      %9041 = vmatprep.subr.bf16.mxu0 %v8386
      %9042 = vmatpush2.bf16.msra.mxu0 %v8385
      %9043 = vmatprep.subr.bf16.mxu0 %v8378
      %9044 = vmatpush2.bf16.msra.mxu0 %v8377
      %9045 = vmatprep.subr.bf16.mxu0 %v2668
      %9046 = vmatpush2.bf16.msra.mxu0 %v2667
      %9047 = vmatprep.subr.bf16.mxu0 %v2660
      %9048 = vmatpush2.bf16.msra.mxu0 %v2659
      %9049 = vmatprep.subr.bf16.mxu0 %v8370
      %9050 = vmatpush2.bf16.msra.mxu0 %v8369
      %9051 = vmatprep.subr.bf16.mxu0 %v8362
      %9052 = vmatpush2.bf16.msra.mxu0 %v8361
      %9053 = vmatprep.mubr.bf16.mxu0 %v8470
      %9054 = vmatmul.mubr.bf16.gmra.mxu0 %v8469
      %v9055 = vpop.f32.mrf.mxu0
      %v9056 = vadd.f32 %v9003, %v9055
      %v9057 = vpop.f32.mrf.mxu0
      %v9058 = vadd.f32 %v9005, %v9057
      %v9059 = vpop.f32.mrf.mxu0
      %v9060 = vadd.f32 %v9007, %v9059
      %v9061 = vpop.f32.mrf.mxu0
      %v9062 = vadd.f32 %v9009, %v9061
      %9063 = vmatprep.mubr.bf16.mxu0 %v8475
      %9064 = vmatmul.mubr.bf16.gmra.mxu0 %v8474
      %v9065 = vpop.f32.mrf.mxu0
      %v9066 = vadd.f32 %v9013, %v9065
      %v9067 = vpop.f32.mrf.mxu0
      %v9068 = vadd.f32 %v9015, %v9067
      %v9069 = vpop.f32.mrf.mxu0
      %v9070 = vadd.f32 %v9017, %v9069
      %v9071 = vpop.f32.mrf.mxu0
      %v9072 = vadd.f32 %v9019, %v9071
      %9073 = vdwg.mxu0
      %9074 = vmatprep.subr.bf16.mxu0 0
      %9075 = vmatpush1.bf16.msra.mxu0 0
      %9076 = vmatprep.subr.bf16.mxu0 0
      %9077 = vmatpush1.bf16.msra.mxu0 0
      %9078 = vmatprep.subr.bf16.mxu0 0
      %9079 = vmatpush1.bf16.msra.mxu0 0
      %9080 = vmatprep.subr.bf16.mxu0 0
      %9081 = vmatpush1.bf16.msra.mxu0 0
      %9082 = vmatprep.subr.bf16.mxu0 %v2700
      %9083 = vmatpush1.bf16.msra.mxu0 %v2699
      %9084 = vmatprep.subr.bf16.mxu0 %v2692
      %9085 = vmatpush1.bf16.msra.mxu0 %v2691
      %9086 = vmatprep.subr.bf16.mxu0 %v8402
      %9087 = vmatpush1.bf16.msra.mxu0 %v8401
      %9088 = vmatprep.subr.bf16.mxu0 %v8394
      %9089 = vmatpush1.bf16.msra.mxu0 %v8393
      %9090 = vmatprep.subr.bf16.mxu0 0
      %9091 = vmatpush2.bf16.msra.mxu0 0
      %9092 = vmatprep.subr.bf16.mxu0 0
      %9093 = vmatpush2.bf16.msra.mxu0 0
      %9094 = vmatprep.subr.bf16.mxu0 0
      %9095 = vmatpush2.bf16.msra.mxu0 0
      %9096 = vmatprep.subr.bf16.mxu0 0
      %9097 = vmatpush2.bf16.msra.mxu0 0
      %9098 = vmatprep.subr.bf16.mxu0 0
      %9099 = vmatpush2.bf16.msra.mxu0 0
      %9100 = vmatprep.subr.bf16.mxu0 0
      %9101 = vmatpush2.bf16.msra.mxu0 0
      %9102 = vmatprep.subr.bf16.mxu0 0
      %9103 = vmatpush2.bf16.msra.mxu0 0
      %9104 = vmatprep.subr.bf16.mxu0 0
      %9105 = vmatpush2.bf16.msra.mxu0 0
      %9106 = vmatprep.mubr.bf16.mxu0 0
      %9107 = vmatmul.mubr.bf16.gmra.mxu0 %v8486
      %v9108 = vpop.f32.mrf.mxu0
      %v9109 = vadd.f32 %v9056, %v9108
      %v9110 = vpop.f32.mrf.mxu0
      %v9111 = vadd.f32 %v9058, %v9110
      %v9112 = vpop.f32.mrf.mxu0
      %v9113 = vadd.f32 %v9060, %v9112
      %v9114 = vpop.f32.mrf.mxu0
      %v9115 = vadd.f32 %v9062, %v9114
      %9116 = vmatprep.mubr.bf16.mxu0 0
      %9117 = vmatmul.mubr.bf16.gmra.mxu0 %v8489
      %v9118 = vpop.f32.mrf.mxu0
      %v9119 = vadd.f32 %v9066, %v9118
      %v9120 = vpop.f32.mrf.mxu0
      %v9121 = vadd.f32 %v9068, %v9120
      %v9122 = vpop.f32.mrf.mxu0
      %v9123 = vadd.f32 %v9070, %v9122
      %v9124 = vpop.f32.mrf.mxu0
      %v9125 = vadd.f32 %v9072, %v9124
      %9126 = vdwg.mxu0
      %v9127 = vmax.f32 %v8632, 0.0
      %v9128 = vmax.f32 %v8634, 0.0
      %v9129 = vmax.f32 %v8791, 0.0
      %v9130 = vmax.f32 %v8793, 0.0
      %v9131 = vmax.f32 %v8950, 0.0
      %v9132 = vmax.f32 %v8952, 0.0
      %v9133 = vmax.f32 %v9109, 0.0
      %v9134 = vmax.f32 %v9111, 0.0
      %v9135 = vmax.f32 %v8636, 0.0
      %v9136 = vmax.f32 %v8638, 0.0
      %v9137 = vmax.f32 %v8795, 0.0
      %v9138 = vmax.f32 %v8797, 0.0
      %v9139 = vmax.f32 %v8954, 0.0
      %v9140 = vmax.f32 %v8956, 0.0
      %v9141 = vmax.f32 %v9113, 0.0
      %v9142 = vmax.f32 %v9115, 0.0
      %v9143 = vmax.f32 %v8642, 0.0
      %v9144 = vmax.f32 %v8644, 0.0
      %v9145 = vmax.f32 %v8801, 0.0
      %v9146 = vmax.f32 %v8803, 0.0
      %v9147 = vmax.f32 %v8960, 0.0
      %v9148 = vmax.f32 %v8962, 0.0
      %v9149 = vmax.f32 %v9119, 0.0
      %v9150 = vmax.f32 %v9121, 0.0
      %v9151 = vmax.f32 %v8646, 0.0
      %v9152 = vmax.f32 %v8648, 0.0
      %v9153 = vmax.f32 %v8805, 0.0
      %v9154 = vmax.f32 %v8807, 0.0
      %v9155 = vmax.f32 %v8964, 0.0
      %v9156 = vmax.f32 %v8966, 0.0
      %v9157 = vmax.f32 %v9123, 0.0
      %v9158 = vmax.f32 %v9125, 0.0
      %9159 = vst [vmem:[%s548] sm:$0xff] %v9127
      %9160 = vst [vmem:[%s548 + $0x8] sm:$0xff] %v9128
      %9161 = vst [vmem:[%s548 + $0x10] sm:$0xff] %v9129
      %9162 = vst [vmem:[%s548 + $0x18] sm:$0xff] %v9130
      %9163 = vst [vmem:[%s548 + $0x20] sm:$0xff] %v9131
      %9164 = vst [vmem:[%s548 + $0x28] sm:$0xff] %v9132
      %9165 = vst [vmem:[%s548 + $0x30] sm:$0xff] %v9133
      %9166 = vst [vmem:[%s548 + $0x38] sm:$0xff] %v9134
      %9167 = vst [vmem:[%s548 + $0x40] sm:$0xff] %v9135
      %9168 = vst [vmem:[%s548 + $0x48] sm:$0xff] %v9136
      %9169 = vst [vmem:[%s548 + $0x50] sm:$0xff] %v9137
      %9170 = vst [vmem:[%s548 + $0x58] sm:$0xff] %v9138
      %9171 = vst [vmem:[%s548 + $0x60] sm:$0xff] %v9139
      %9172 = vst [vmem:[%s548 + $0x68] sm:$0xff] %v9140
      %9173 = vst [vmem:[%s548 + $0x70] sm:$0xff] %v9141
      %9174 = vst [vmem:[%s548 + $0x78] sm:$0xff] %v9142
      %9175 = vst [vmem:[%s548 + $0x80] sm:$0xff] %v9143
      %9176 = vst [vmem:[%s548 + $0x88] sm:$0xff] %v9144
      %9177 = vst [vmem:[%s548 + $0x90] sm:$0xff] %v9145
      %9178 = vst [vmem:[%s548 + $0x98] sm:$0xff] %v9146
      %9179 = vst [vmem:[%s548 + $0xa0] sm:$0xff] %v9147
      %9180 = vst [vmem:[%s548 + $0xa8] sm:$0xff] %v9148
      %9181 = vst [vmem:[%s548 + $0xb0] sm:$0xff] %v9149
      %9182 = vst [vmem:[%s548 + $0xb8] sm:$0xff] %v9150
      %9183 = vst [vmem:[%s548 + $0xc0] sm:$0xff] %v9151
      %9184 = vst [vmem:[%s548 + $0xc8] sm:$0xff] %v9152
      %9185 = vst [vmem:[%s548 + $0xd0] sm:$0xff] %v9153
      %9186 = vst [vmem:[%s548 + $0xd8] sm:$0xff] %v9154
      %9187 = vst [vmem:[%s548 + $0xe0] sm:$0xff] %v9155
      %9188 = vst [vmem:[%s548 + $0xe8] sm:$0xff] %v9156
      %9189 = vst [vmem:[%s548 + $0xf0] sm:$0xff] %v9157
      %9190 = vst [vmem:[%s548 + $0xf8] sm:$0xff] %v9158
      %p9191 = scmp.lt.s32.totalorder %s28, 1
      %s9192 = scalar_select %p9191, %s28, 1
      %s9193 = smul.addr %s9192, 32
      %s9194 = smul.addr %s9193, 8
      %s9195 = scalar_lea.vmem %s17, %s9194
      // Predicated region
      $region89: #{encoder_forward.1} parent=87 // pred_check
        %p9196 = pneg %p408
      $region90: #{encoder_forward.1} parent=87 // pred_check_branch
        %9198 = sbr.rel (%p9196) target = $region92
      $region91: #{encoder_forward.1} parent=87 // pred_region
        _
      $region92: #{encoder_forward.1} parent=87 // pred_fallthru
        _
    $region88: #{encoder_forward.1} parent=5 // pred_fallthru
      _
    %p9199 = scmp.le.s32.totalorder 2, %s23
    // Predicated region
    $region93: #{encoder_forward.1} parent=5 // pred_check
      %p9200 = pneg %p9199
    $region94: #{encoder_forward.1} parent=5 // pred_check_branch
      %9202 = sbr.rel (%p9200) target = $region96
    $region95: #{encoder_forward.1} parent=5 // pred_region
      %s9203 = ssub.s32 %s23, 2
      // Predicated region
      $region97: #{encoder_forward.1} parent=95 // pred_check
        %p9204 = pneg %p414
      $region98: #{encoder_forward.1} parent=95 // pred_check_branch
        %9206 = sbr.rel (%p9204) target = $region100
      $region99: #{encoder_forward.1} parent=95 // pred_region
        %p9207 = scmp.lt.s32.totalorder %s29, 1
        %s9208 = scalar_select %p9207, %s29, 1
        %s9209 = smul.addr %s9208, 32
        %s9210 = smul.addr %s9209, 8
        %s9211 = scalar_lea.vmem %s17, %s9210
      $region100: #{encoder_forward.1} parent=95 // pred_fallthru
        _
    $region96: #{encoder_forward.1} parent=5 // pred_fallthru
      _
  $region6: #{encoder_forward.1} parent=0 // loop_footer
    %s27 = sadd.s32 1, %s23
  $region7: #{encoder_forward.1} parent=0 // loop_footer_branch
    %22 = sbr.rel target = $region3
  $region8: #{encoder_forward.1} parent=0 // loop_exit
    _

</llo_original>
